<compile_context>
chip_gen: v7x
topology: tpu7x:2x2x1
jax: 0.10.0
libtpu: 0.0.40
codegen_flags: <defaults>
</compile_context>

<pallas_src>
import jax
import jax.numpy as jnp
from jax.experimental import pallas as pl
from jax.experimental.pallas import tpu as pltpu


# ----------------------------------------------------------------------------
# Fused forward kernel (TB samples per grid step)
# ----------------------------------------------------------------------------
def _gesture_net_kernel(xop_ref, w1p_ref, w2p_ref, wfc1_ref, wfc2_ref,
                        vecs_ref, o_ref):
    f32, bf16 = jnp.float32, jnp.bfloat16
    tb = xop_ref.shape[0]          # batch tile
    rows = tb * 64                 # 62 real "packed" rows per sample + 2 zero pad rows

    def mxu(a, w):                 # bf16 operands, f32 accumulate
        return jnp.dot(a, w, preferred_element_type=f32)

    # ---- conv1 + bn1 + relu (8 conv positions packed per row) --------------
    # xop row j of a sample holds padded input positions 16j..16j+19 (x 4 ch).
    # w1p column order: (p % 2)*128 + (p // 2)*32 + co, so the two members of
    # each pool1 pair sit in opposite 128-lane halves.
    x2 = xop_ref[...].reshape(rows, 80)                              # bf16
    z1 = mxu(x2, w1p_ref[...])                                       # (rows, 256) f32
    z1 = jnp.maximum(z1 * vecs_ref[0:1, :] + vecs_ref[1:2, :], 0.0)  # BN1 + ReLU

    # ---- pool1 (k=2, s=2): max of the two 128-lane halves -------------------
    p1 = jnp.maximum(z1[:, 0:128], z1[:, 128:256]).astype(bf16)      # (rows, 128)
    p1_3 = p1.reshape(tb, 64, 128)      # row j: pooled positions 4j..4j+3 (32 ch each)

    # ---- conv2 operand: 7 pooled positions (224 lanes) per row --------------
    # lanes  0: 63  -> pooled 4j-2, 4j-1   (prev row, upper half; zeros for j=0)
    # lanes 64:191  -> pooled 4j .. 4j+3   (current row)
    # lanes 192:223 -> pooled 4j+4         (next row, first 32 lanes; zeros j>=61)
    z_a = jnp.zeros((tb, 1, 64), bf16)
    z_c = jnp.zeros((tb, 3, 32), bf16)
    a_part = jnp.concatenate([z_a, p1_3[:, 0:63, 64:128]], axis=1)
    c_part = jnp.concatenate([p1_3[:, 1:62, 0:32], z_c], axis=1)
    op2 = jnp.concatenate([a_part, p1_3, c_part], axis=2).reshape(rows, 224)

    # ---- conv2 + bn2 + relu (2 conv positions packed per row) ---------------
    z2 = mxu(op2, w2p_ref[...])                                      # (rows, 128) f32
    z2 = jnp.maximum(z2 * vecs_ref[2:3, 0:128] + vecs_ref[3:4, 0:128], 0.0)

    # ---- pool2: max of the two 64-lane halves -> one pooled position / row --
    p2 = jnp.maximum(z2[:, 0:64], z2[:, 64:128]).astype(bf16)        # (rows, 64)
    p2_3 = p2.reshape(tb, 64, 64)       # [sample, pooled position n (62 real), channel]

    # ---- fc1 (torch channel-major flatten folded into wfc1) + relu ----------
    # h1[b,o] = b1[o] + sum_{n,d} p2[b,n,d] * Wfc1[o, d*62+n], evaluated as 16
    # accumulated (TB,256)@(256,128) matmuls over groups of 4 positions (zero
    # weights for the 2 pad positions).  Dropout1 = identity (eval).
    h = jnp.zeros((tb, 128), f32)
    for g in range(16):
        a_g = jnp.concatenate([p2_3[:, 4 * g + t, :] for t in range(4)], axis=1)
        h = h + mxu(a_g, wfc1_ref[g])
    h1 = jnp.maximum(h + vecs_ref[4:5, 0:128], 0.0)                  # (tb, 128)

    # ---- fc2 + relu (dropout2 = identity, eval) ------------------------------
    h2 = jnp.maximum(mxu(h1.astype(bf16), wfc2_ref[...]) + vecs_ref[5:6, 0:32], 0.0)

    # ---- fc3 (out_features=1): VPU multiply + lane reduce, then sigmoid ------
    logit = jnp.sum(h2 * vecs_ref[6:7, 0:32], axis=1, keepdims=True) + vecs_ref[7:8, 0:1]
    o_ref[...] = jax.nn.sigmoid(logit)                               # (tb, 1)


# ----------------------------------------------------------------------------
# Wrapper: input packing + pallas_call
# ----------------------------------------------------------------------------
def _pack_input(x, tb):
    """x: (B, 4, 992)-compatible -> (B_pad, 64, 80) bf16 conv1 operand."""
    b = x.shape[0]
    x = x.reshape(b, 4, -1).astype(jnp.float32)
    l = x.shape[2]
    if l != 992:                                    # fc1 expects 64*62 features
        raise ValueError(f"sequence length must be 992, got {l}")
    x_cl = jnp.transpose(x, (0, 2, 1))              # channels-last (B, 992, 4)
    x_pad = jnp.pad(x_cl, ((0, 0), (2, 2), (0, 0)))  # conv padding=2 -> (B, 996, 4)
    # row j needs padded positions 16j .. 16j+19 (20 positions x 4 channels)
    idx = jnp.arange(62)[:, None] * 16 + jnp.arange(20)[None, :]     # (62, 20)
    xop = x_pad[:, idx, :].reshape(b, 62, 80)
    xop = jnp.pad(xop, ((0, 0), (0, 2), (0, 0)))    # pad rows -> 64 (zero rows)
    b_pad = ((b + tb - 1) // tb) * tb
    if b_pad != b:
        xop = jnp.pad(xop, ((0, b_pad - b), (0, 0), (0, 0)))
    return xop.astype(jnp.bfloat16), b_pad


@jax.jit
def gesture_net_forward(x, kp):
    """x: (B, 4, 992) float32 (anything with 4*992 features/sample, like torch)."""
    b = x.shape[0]
    tb = 64 if b >= 64 else max(8, ((b + 7) // 8) * 8)
    xop, b_pad = _pack_input(x, tb)
    nb = b_pad // tb

    args = (xop, kp["w1p"], kp["w2p"], kp["wfc1"], kp["wfc2"], kp["vecs"])

    rows_total = b_pad * 64
    flops = (2 * rows_total * (80 * 256 + 224 * 128)
             + 2 * b_pad * (16 * 256 * 128 + 128 * 32 + 32))
    bytes_accessed = sum(a.size * a.dtype.itemsize for a in args) + b_pad * 4

    in_specs = [
        pl.BlockSpec((tb, 64, 80), lambda i: (i, 0, 0)),
        pl.BlockSpec((80, 256), lambda i: (0, 0)),
        pl.BlockSpec((224, 128), lambda i: (0, 0)),
        pl.BlockSpec((16, 256, 128), lambda i: (0, 0, 0)),
        pl.BlockSpec((128, 32), lambda i: (0, 0)),
        pl.BlockSpec((8, 256), lambda i: (0, 0)),
    ]

    out = pl.pallas_call(
        _gesture_net_kernel,
        grid=(nb,),
        in_specs=in_specs,
        out_specs=pl.BlockSpec((tb, 1), lambda i: (i, 0)),
        out_shape=jax.ShapeDtypeStruct((b_pad, 1), jnp.float32),
        compiler_params=pltpu.CompilerParams(
            dimension_semantics=("parallel",),            # shards tiles on v7x's 2 TCs
            vmem_limit_bytes=48 * 1024 * 1024),           # headroom on v7x, lifts v5e default
        cost_estimate=pl.CostEstimate(flops=int(flops), transcendentals=int(b_pad),
                                      bytes_accessed=int(bytes_accessed)),
    )(*args)
    return out[:b]                                        # (B, 1)


# ----------------------------------------------------------------------------
# One-time parameter preparation (torch layout in -> kernel layout out)
# ----------------------------------------------------------------------------
def fold_bn(conv_bias, gamma, beta, mean, var, eps=1e-5):
    scale = gamma / jnp.sqrt(var + eps)
    shift = (conv_bias - mean) * scale + beta
    return scale.astype(jnp.float32), shift.astype(jnp.float32)


def prepare_params(p):
    f32, bf16 = jnp.float32, jnp.bfloat16
    w1 = p["w_conv1"].astype(f32)                       # (32, 4, 5)   (co, ci, k)
    w2 = p["w_conv2"].astype(f32)                       # (64, 32, 5)  (d,  c,  k)

    # conv1 packed weight (80, 256): operand lane u*4+ci holds x_pad[16j+u, ci];
    # output lane (p%2)*128 + (p//2)*32 + co is conv position 8j+p, channel co.
    w1p = jnp.zeros((80, 256), f32)
    for pp in range(8):
        col = (pp % 2) * 128 + (pp // 2) * 32
        for k in range(5):
            row = (2 * pp + k) * 4
            w1p = w1p.at[row:row + 4, col:col + 32].set(w1[:, :, k].T)

    # conv2 packed weight (224, 128): operand lane v*32+c holds pooled[4j-2+v, c];
    # output lane r*64+d is conv2 position 2j+r, channel d.
    w2p = jnp.zeros((224, 128), f32)
    for r in range(2):
        for k in range(5):
            row = (2 * r + k) * 32
            w2p = w2p.at[row:row + 32, r * 64:r * 64 + 64].set(w2[:, :, k].T)

    s1, sh1 = fold_bn(p["b_conv1"], *p["bn1"])          # (32,)
    s2, sh2 = fold_bn(p["b_conv2"], *p["bn2"])          # (64,)
    s1t, sh1t = jnp.tile(s1, 8), jnp.tile(sh1, 8)       # channel = lane % 32
    s2t, sh2t = jnp.tile(s2, 2), jnp.tile(sh2, 2)       # channel = lane % 64

    # fc1: torch weight (128, 3968) indexed by d*62 + n (channel-major flatten).
    # Regroup to (16 groups of 4 positions, 4*64, 128): wfc1[g, t*64+d, o].
    wfc1 = jnp.transpose(p["w_fc1"].astype(f32).reshape(128, 64, 62), (2, 1, 0))
    wfc1 = jnp.concatenate([wfc1, jnp.zeros((2, 64, 128), f32)], axis=0)  # pad n -> 64
    wfc1 = wfc1.reshape(16, 4 * 64, 128)

    # Pack the tiny per-channel vectors into one lane-dense (8, 256) f32 array.
    vecs = jnp.zeros((8, 256), f32)
    vecs = vecs.at[0, :].set(s1t)
    vecs = vecs.at[1, :].set(sh1t)
    vecs = vecs.at[2, :128].set(s2t)
    vecs = vecs.at[3, :128].set(sh2t)
    vecs = vecs.at[4, :128].set(p["b_fc1"].astype(f32))
    vecs = vecs.at[5, :32].set(p["b_fc2"].astype(f32))
    vecs = vecs.at[6, :32].set(p["w_fc3"].reshape(32).astype(f32))
    vecs = vecs.at[7, 0].set(p["b_fc3"].reshape(()).astype(f32))

    return dict(w1p=w1p.astype(bf16), w2p=w2p.astype(bf16),
                wfc1=wfc1.astype(bf16),
                wfc2=p["w_fc2"].T.astype(bf16),         # (128, 32)
                vecs=vecs)


def make_params(key):
    """Deterministic torch-layout parameters."""
    ks = jax.random.split(key, 16)
    p = {}
    p["w_conv1"] = 0.2 * jax.random.normal(ks[0], (32, 4, 5), jnp.float32)     # (Cout, Cin, K)
    p["b_conv1"] = 0.05 * jax.random.normal(ks[1], (32,), jnp.float32)
    p["w_conv2"] = 0.1 * jax.random.normal(ks[2], (64, 32, 5), jnp.float32)
    p["b_conv2"] = 0.05 * jax.random.normal(ks[3], (64,), jnp.float32)
    p["bn1"] = (1.0 + 0.1 * jax.random.normal(ks[4], (32,)),        # gamma
                0.05 * jax.random.normal(ks[5], (32,)),             # beta
                0.1 * jax.random.normal(ks[6], (32,)),              # running_mean
                0.8 + 0.4 * jax.random.uniform(ks[7], (32,)))       # running_var > 0
    p["bn2"] = (1.0 + 0.1 * jax.random.normal(ks[8], (64,)),
                0.05 * jax.random.normal(ks[9], (64,)),
                0.1 * jax.random.normal(ks[10], (64,)),
                0.8 + 0.4 * jax.random.uniform(ks[11], (64,)))
    p["w_fc1"] = 0.02 * jax.random.normal(ks[12], (128, 64 * 62), jnp.float32)  # torch (out, in)
    p["b_fc1"] = 0.01 * jax.random.normal(ks[13], (128,), jnp.float32)
    p["w_fc2"] = 0.1 * jax.random.normal(ks[14], (32, 128), jnp.float32)
    p["b_fc2"] = 0.01 * jax.random.normal(ks[15], (32,), jnp.float32)
    p["w_fc3"] = 0.1 * jax.random.normal(jax.random.fold_in(key, 99), (1, 32), jnp.float32)
    p["b_fc3"] = jnp.zeros((1,), jnp.float32)
    return p


# ----------------------------------------------------------------------------
# Pure-JAX f32 reference (mirrors the torch module directly)
# ----------------------------------------------------------------------------
def _reference_forward(x, p):
    b = x.shape[0]
    xr = x.reshape(b, 4, -1)                                        # (B, C, L)

    def conv_bn_relu_pool(inp, w, bias, bn):
        y = jax.lax.conv_general_dilated(
            inp, w, window_strides=(2,), padding=[(2, 2)],
            dimension_numbers=("NCH", "OIH", "NCH"))
        y = y + bias.reshape(1, -1, 1)
        gamma, beta, mean, var = bn
        y = (y - mean.reshape(1, -1, 1)) / jnp.sqrt(var.reshape(1, -1, 1) + 1e-5)
        y = y * gamma.reshape(1, -1, 1) + beta.reshape(1, -1, 1)
        y = jnp.maximum(y, 0.0)
        bb, c, ll = y.shape
        return jnp.max(y.reshape(bb, c, ll // 2, 2), axis=-1)       # MaxPool1d(2,2)

    y1 = conv_bn_relu_pool(xr, p["w_conv1"], p["b_conv1"], p["bn1"])
    y2 = conv_bn_relu_pool(y1, p["w_conv2"], p["b_conv2"], p["bn2"])
    feat = y2.reshape(b, -1)                                        # torch Flatten (channel-major)
    h = jnp.maximum(feat @ p["w_fc1"].T + p["b_fc1"], 0.0)
    h = jnp.maximum(h @ p["w_fc2"].T + p["b_fc2"], 0.0)
    return jax.nn.sigmoid(h @ p["w_fc3"].T + p["b_fc3"])            # (B, 1)


if __name__ == "__main__":
    seq_len = 992                       # length implied by fc1 in_features = 64 * 62
    torch_params = make_params(jax.random.PRNGKey(42))
    kernel_params = prepare_params(torch_params)

    # Small primary test (batch=2) + a multi-tile test (batch=150 -> 3 grid steps
    # of TB=64 with batch padding) to exercise the batched/padded paths.
    for batch in (2, 150):
        key = jax.random.fold_in(jax.random.PRNGKey(0), batch)
        x = jax.random.normal(key, (batch, 4, seq_len), jnp.float32)

        out = jax.block_until_ready(gesture_net_forward(x, kernel_params))
        ref = jax.block_until_ready(_reference_forward(x, torch_params))

        assert out.shape == (batch, 1), out.shape
        assert bool(jnp.all((out > 0.0) & (out < 1.0)))
        # bf16 MXU operands (f32 accumulate) vs a pure-f32 reference -> loose-ish tol.
        assert bool(jnp.allclose(out, ref, atol=2e-2, rtol=2e-2)), (batch, out, ref)

    print("KERNEL_OK")
</pallas_src>

<mosaic_0001>
module attributes {stable_mosaic.version = 11 : i64} {
  func.func @_gesture_net_kernel(%arg0: i32, %arg1: memref<8x64x80xbf16, #tpu.memory_space<vmem>>, %arg2: memref<80x256xbf16, #tpu.memory_space<vmem>>, %arg3: memref<224x128xbf16, #tpu.memory_space<vmem>>, %arg4: memref<16x256x128xbf16, #tpu.memory_space<vmem>>, %arg5: memref<128x32xbf16, #tpu.memory_space<vmem>>, %arg6: memref<8x256xf32, #tpu.memory_space<vmem>>, %arg7: memref<8x1xf32, #tpu.memory_space<vmem>>) attributes {dimension_semantics = [#tpu.dimension_semantics<parallel>], iteration_bounds = array<i64: 1>, scalar_prefetch = 0 : i64, scratch_operands = 0 : i64, tpu.core_type = #tpu.core_type<tc>, window_params = [{transform_indices = @transform_0, window_bounds = array<i64: 8, 64, 80>}, {pipeline_mode = #tpu.pipeline_mode<synchronous>, transform_indices = @transform_1, window_bounds = array<i64: 80, 256>}, {pipeline_mode = #tpu.pipeline_mode<synchronous>, transform_indices = @transform_2, window_bounds = array<i64: 224, 128>}, {pipeline_mode = #tpu.pipeline_mode<synchronous>, transform_indices = @transform_3, window_bounds = array<i64: 16, 256, 128>}, {pipeline_mode = #tpu.pipeline_mode<synchronous>, transform_indices = @transform_4, window_bounds = array<i64: 128, 32>}, {pipeline_mode = #tpu.pipeline_mode<synchronous>, transform_indices = @transform_5, window_bounds = array<i64: 8, 256>}, {transform_indices = @transform_6, window_bounds = array<i64: 8, 1>}]} {
    %c0 = arith.constant 0 : index
    %c0_0 = arith.constant 0 : index
    %c0_1 = arith.constant 0 : index
    %0 = vector.load %arg1[%c0, %c0_0, %c0_1] : memref<8x64x80xbf16, #tpu.memory_space<vmem>>, vector<8x64x80xbf16>
    %1 = vector.shape_cast %0 : vector<8x64x80xbf16> to vector<512x80xbf16>
    %c0_2 = arith.constant 0 : index
    %c0_3 = arith.constant 0 : index
    %2 = vector.load %arg2[%c0_2, %c0_3] : memref<80x256xbf16, #tpu.memory_space<vmem>>, vector<80x256xbf16>
    %cst = arith.constant dense<0.000000e+00> : vector<512x256xf32>
    %3 = tpu.matmul %1, %2, %cst {dimension_numbers = #tpu.dot_dimension_numbers<[1], [0], [0], [1], [0, 0, 1, 1], [], []>} : vector<512x80xbf16>, vector<80x256xbf16>, vector<512x256xf32> -> vector<512x256xf32>
    %c0_4 = arith.constant 0 : index
    %c0_5 = arith.constant 0 : index
    %4 = vector.load %arg6[%c0_4, %c0_5] : memref<8x256xf32, #tpu.memory_space<vmem>>, vector<1x256xf32>
    %5 = vector.broadcast %4 : vector<1x256xf32> to vector<512x256xf32>
    %6 = arith.mulf %3, %5 : vector<512x256xf32>
    %c1 = arith.constant 1 : index
    %c0_6 = arith.constant 0 : index
    %7 = vector.load %arg6[%c1, %c0_6] : memref<8x256xf32, #tpu.memory_space<vmem>>, vector<1x256xf32>
    %8 = vector.broadcast %7 : vector<1x256xf32> to vector<512x256xf32>
    %9 = arith.addf %6, %8 : vector<512x256xf32>
    %cst_7 = arith.constant 0.000000e+00 : f32
    %10 = vector.broadcast %cst_7 : f32 to vector<512x256xf32>
    %11 = arith.maximumf %9, %10 : vector<512x256xf32>
    %12 = vector.extract_strided_slice %11 {offsets = [0, 0], sizes = [512, 128], strides = [1, 1]} : vector<512x256xf32> to vector<512x128xf32>
    %13 = vector.extract_strided_slice %11 {offsets = [0, 128], sizes = [512, 128], strides = [1, 1]} : vector<512x256xf32> to vector<512x128xf32>
    %14 = arith.maximumf %12, %13 : vector<512x128xf32>
    %15 = arith.truncf %14 : vector<512x128xf32> to vector<512x128xbf16>
    %16 = vector.shape_cast %15 : vector<512x128xbf16> to vector<8x64x128xbf16>
    %cst_8 = arith.constant 0.000000e+00 : bf16
    %17 = vector.broadcast %cst_8 : bf16 to vector<8x1x64xbf16>
    %cst_9 = arith.constant 0.000000e+00 : bf16
    %18 = vector.broadcast %cst_9 : bf16 to vector<8x3x32xbf16>
    %19 = vector.extract_strided_slice %16 {offsets = [0, 0, 64], sizes = [8, 63, 64], strides = [1, 1, 1]} : vector<8x64x128xbf16> to vector<8x63x64xbf16>
    %20 = tpu.concatenate %17, %19 in 1 : vector<8x1x64xbf16>, vector<8x63x64xbf16> -> vector<8x64x64xbf16>
    %21 = vector.extract_strided_slice %16 {offsets = [0, 1, 0], sizes = [8, 61, 32], strides = [1, 1, 1]} : vector<8x64x128xbf16> to vector<8x61x32xbf16>
    %22 = tpu.concatenate %21, %18 in 1 : vector<8x61x32xbf16>, vector<8x3x32xbf16> -> vector<8x64x32xbf16>
    %23 = tpu.concatenate %20, %16, %22 in 2 : vector<8x64x64xbf16>, vector<8x64x128xbf16>, vector<8x64x32xbf16> -> vector<8x64x224xbf16>
    %24 = vector.shape_cast %23 : vector<8x64x224xbf16> to vector<512x224xbf16>
    %c0_10 = arith.constant 0 : index
    %c0_11 = arith.constant 0 : index
    %25 = vector.load %arg3[%c0_10, %c0_11] : memref<224x128xbf16, #tpu.memory_space<vmem>>, vector<224x128xbf16>
    %cst_12 = arith.constant dense<0.000000e+00> : vector<512x128xf32>
    %26 = tpu.matmul %24, %25, %cst_12 {dimension_numbers = #tpu.dot_dimension_numbers<[1], [0], [0], [1], [0, 0, 1, 1], [], []>} : vector<512x224xbf16>, vector<224x128xbf16>, vector<512x128xf32> -> vector<512x128xf32>
    %c2 = arith.constant 2 : index
    %c0_13 = arith.constant 0 : index
    %27 = vector.load %arg6[%c2, %c0_13] : memref<8x256xf32, #tpu.memory_space<vmem>>, vector<1x128xf32>
    %28 = vector.broadcast %27 : vector<1x128xf32> to vector<512x128xf32>
    %29 = arith.mulf %26, %28 : vector<512x128xf32>
    %c3 = arith.constant 3 : index
    %c0_14 = arith.constant 0 : index
    %30 = vector.load %arg6[%c3, %c0_14] : memref<8x256xf32, #tpu.memory_space<vmem>>, vector<1x128xf32>
    %31 = vector.broadcast %30 : vector<1x128xf32> to vector<512x128xf32>
    %32 = arith.addf %29, %31 : vector<512x128xf32>
    %cst_15 = arith.constant 0.000000e+00 : f32
    %33 = vector.broadcast %cst_15 : f32 to vector<512x128xf32>
    %34 = arith.maximumf %32, %33 : vector<512x128xf32>
    %35 = vector.extract_strided_slice %34 {offsets = [0, 0], sizes = [512, 64], strides = [1, 1]} : vector<512x128xf32> to vector<512x64xf32>
    %36 = vector.extract_strided_slice %34 {offsets = [0, 64], sizes = [512, 64], strides = [1, 1]} : vector<512x128xf32> to vector<512x64xf32>
    %37 = arith.maximumf %35, %36 : vector<512x64xf32>
    %38 = arith.truncf %37 : vector<512x64xf32> to vector<512x64xbf16>
    %39 = vector.shape_cast %38 : vector<512x64xbf16> to vector<8x64x64xbf16>
    %cst_16 = arith.constant 0.000000e+00 : f32
    %40 = vector.broadcast %cst_16 : f32 to vector<8x128xf32>
    %41 = vector.extract_strided_slice %39 {offsets = [0, 0, 0], sizes = [8, 1, 64], strides = [1, 1, 1]} : vector<8x64x64xbf16> to vector<8x1x64xbf16>
    %42 = vector.shape_cast %41 : vector<8x1x64xbf16> to vector<8x64xbf16>
    %43 = vector.extract_strided_slice %39 {offsets = [0, 1, 0], sizes = [8, 1, 64], strides = [1, 1, 1]} : vector<8x64x64xbf16> to vector<8x1x64xbf16>
    %44 = vector.shape_cast %43 : vector<8x1x64xbf16> to vector<8x64xbf16>
    %45 = vector.extract_strided_slice %39 {offsets = [0, 2, 0], sizes = [8, 1, 64], strides = [1, 1, 1]} : vector<8x64x64xbf16> to vector<8x1x64xbf16>
    %46 = vector.shape_cast %45 : vector<8x1x64xbf16> to vector<8x64xbf16>
    %47 = vector.extract_strided_slice %39 {offsets = [0, 3, 0], sizes = [8, 1, 64], strides = [1, 1, 1]} : vector<8x64x64xbf16> to vector<8x1x64xbf16>
    %48 = vector.shape_cast %47 : vector<8x1x64xbf16> to vector<8x64xbf16>
    %49 = tpu.concatenate %42, %44, %46, %48 in 1 : vector<8x64xbf16>, vector<8x64xbf16>, vector<8x64xbf16>, vector<8x64xbf16> -> vector<8x256xbf16>
    %c0_17 = arith.constant 0 : index
    %c0_18 = arith.constant 0 : index
    %c0_19 = arith.constant 0 : index
    %50 = vector.load %arg4[%c0_17, %c0_18, %c0_19] : memref<16x256x128xbf16, #tpu.memory_space<vmem>>, vector<1x256x128xbf16>
    %51 = vector.shape_cast %50 : vector<1x256x128xbf16> to vector<256x128xbf16>
    %cst_20 = arith.constant dense<0.000000e+00> : vector<8x128xf32>
    %52 = tpu.matmul %49, %51, %cst_20 {dimension_numbers = #tpu.dot_dimension_numbers<[1], [0], [0], [1], [0, 0, 1, 1], [], []>} : vector<8x256xbf16>, vector<256x128xbf16>, vector<8x128xf32> -> vector<8x128xf32>
    %53 = arith.addf %40, %52 : vector<8x128xf32>
    %54 = vector.extract_strided_slice %39 {offsets = [0, 4, 0], sizes = [8, 1, 64], strides = [1, 1, 1]} : vector<8x64x64xbf16> to vector<8x1x64xbf16>
    %55 = vector.shape_cast %54 : vector<8x1x64xbf16> to vector<8x64xbf16>
    %56 = vector.extract_strided_slice %39 {offsets = [0, 5, 0], sizes = [8, 1, 64], strides = [1, 1, 1]} : vector<8x64x64xbf16> to vector<8x1x64xbf16>
    %57 = vector.shape_cast %56 : vector<8x1x64xbf16> to vector<8x64xbf16>
    %58 = vector.extract_strided_slice %39 {offsets = [0, 6, 0], sizes = [8, 1, 64], strides = [1, 1, 1]} : vector<8x64x64xbf16> to vector<8x1x64xbf16>
    %59 = vector.shape_cast %58 : vector<8x1x64xbf16> to vector<8x64xbf16>
    %60 = vector.extract_strided_slice %39 {offsets = [0, 7, 0], sizes = [8, 1, 64], strides = [1, 1, 1]} : vector<8x64x64xbf16> to vector<8x1x64xbf16>
    %61 = vector.shape_cast %60 : vector<8x1x64xbf16> to vector<8x64xbf16>
    %62 = tpu.concatenate %55, %57, %59, %61 in 1 : vector<8x64xbf16>, vector<8x64xbf16>, vector<8x64xbf16>, vector<8x64xbf16> -> vector<8x256xbf16>
    %c1_21 = arith.constant 1 : index
    %c0_22 = arith.constant 0 : index
    %c0_23 = arith.constant 0 : index
    %63 = vector.load %arg4[%c1_21, %c0_22, %c0_23] : memref<16x256x128xbf16, #tpu.memory_space<vmem>>, vector<1x256x128xbf16>
    %64 = vector.shape_cast %63 : vector<1x256x128xbf16> to vector<256x128xbf16>
    %cst_24 = arith.constant dense<0.000000e+00> : vector<8x128xf32>
    %65 = tpu.matmul %62, %64, %cst_24 {dimension_numbers = #tpu.dot_dimension_numbers<[1], [0], [0], [1], [0, 0, 1, 1], [], []>} : vector<8x256xbf16>, vector<256x128xbf16>, vector<8x128xf32> -> vector<8x128xf32>
    %66 = arith.addf %53, %65 : vector<8x128xf32>
    %67 = vector.extract_strided_slice %39 {offsets = [0, 8, 0], sizes = [8, 1, 64], strides = [1, 1, 1]} : vector<8x64x64xbf16> to vector<8x1x64xbf16>
    %68 = vector.shape_cast %67 : vector<8x1x64xbf16> to vector<8x64xbf16>
    %69 = vector.extract_strided_slice %39 {offsets = [0, 9, 0], sizes = [8, 1, 64], strides = [1, 1, 1]} : vector<8x64x64xbf16> to vector<8x1x64xbf16>
    %70 = vector.shape_cast %69 : vector<8x1x64xbf16> to vector<8x64xbf16>
    %71 = vector.extract_strided_slice %39 {offsets = [0, 10, 0], sizes = [8, 1, 64], strides = [1, 1, 1]} : vector<8x64x64xbf16> to vector<8x1x64xbf16>
    %72 = vector.shape_cast %71 : vector<8x1x64xbf16> to vector<8x64xbf16>
    %73 = vector.extract_strided_slice %39 {offsets = [0, 11, 0], sizes = [8, 1, 64], strides = [1, 1, 1]} : vector<8x64x64xbf16> to vector<8x1x64xbf16>
    %74 = vector.shape_cast %73 : vector<8x1x64xbf16> to vector<8x64xbf16>
    %75 = tpu.concatenate %68, %70, %72, %74 in 1 : vector<8x64xbf16>, vector<8x64xbf16>, vector<8x64xbf16>, vector<8x64xbf16> -> vector<8x256xbf16>
    %c2_25 = arith.constant 2 : index
    %c0_26 = arith.constant 0 : index
    %c0_27 = arith.constant 0 : index
    %76 = vector.load %arg4[%c2_25, %c0_26, %c0_27] : memref<16x256x128xbf16, #tpu.memory_space<vmem>>, vector<1x256x128xbf16>
    %77 = vector.shape_cast %76 : vector<1x256x128xbf16> to vector<256x128xbf16>
    %cst_28 = arith.constant dense<0.000000e+00> : vector<8x128xf32>
    %78 = tpu.matmul %75, %77, %cst_28 {dimension_numbers = #tpu.dot_dimension_numbers<[1], [0], [0], [1], [0, 0, 1, 1], [], []>} : vector<8x256xbf16>, vector<256x128xbf16>, vector<8x128xf32> -> vector<8x128xf32>
    %79 = arith.addf %66, %78 : vector<8x128xf32>
    %80 = vector.extract_strided_slice %39 {offsets = [0, 12, 0], sizes = [8, 1, 64], strides = [1, 1, 1]} : vector<8x64x64xbf16> to vector<8x1x64xbf16>
    %81 = vector.shape_cast %80 : vector<8x1x64xbf16> to vector<8x64xbf16>
    %82 = vector.extract_strided_slice %39 {offsets = [0, 13, 0], sizes = [8, 1, 64], strides = [1, 1, 1]} : vector<8x64x64xbf16> to vector<8x1x64xbf16>
    %83 = vector.shape_cast %82 : vector<8x1x64xbf16> to vector<8x64xbf16>
    %84 = vector.extract_strided_slice %39 {offsets = [0, 14, 0], sizes = [8, 1, 64], strides = [1, 1, 1]} : vector<8x64x64xbf16> to vector<8x1x64xbf16>
    %85 = vector.shape_cast %84 : vector<8x1x64xbf16> to vector<8x64xbf16>
    %86 = vector.extract_strided_slice %39 {offsets = [0, 15, 0], sizes = [8, 1, 64], strides = [1, 1, 1]} : vector<8x64x64xbf16> to vector<8x1x64xbf16>
    %87 = vector.shape_cast %86 : vector<8x1x64xbf16> to vector<8x64xbf16>
    %88 = tpu.concatenate %81, %83, %85, %87 in 1 : vector<8x64xbf16>, vector<8x64xbf16>, vector<8x64xbf16>, vector<8x64xbf16> -> vector<8x256xbf16>
    %c3_29 = arith.constant 3 : index
    %c0_30 = arith.constant 0 : index
    %c0_31 = arith.constant 0 : index
    %89 = vector.load %arg4[%c3_29, %c0_30, %c0_31] : memref<16x256x128xbf16, #tpu.memory_space<vmem>>, vector<1x256x128xbf16>
    %90 = vector.shape_cast %89 : vector<1x256x128xbf16> to vector<256x128xbf16>
    %cst_32 = arith.constant dense<0.000000e+00> : vector<8x128xf32>
    %91 = tpu.matmul %88, %90, %cst_32 {dimension_numbers = #tpu.dot_dimension_numbers<[1], [0], [0], [1], [0, 0, 1, 1], [], []>} : vector<8x256xbf16>, vector<256x128xbf16>, vector<8x128xf32> -> vector<8x128xf32>
    %92 = arith.addf %79, %91 : vector<8x128xf32>
    %93 = vector.extract_strided_slice %39 {offsets = [0, 16, 0], sizes = [8, 1, 64], strides = [1, 1, 1]} : vector<8x64x64xbf16> to vector<8x1x64xbf16>
    %94 = vector.shape_cast %93 : vector<8x1x64xbf16> to vector<8x64xbf16>
    %95 = vector.extract_strided_slice %39 {offsets = [0, 17, 0], sizes = [8, 1, 64], strides = [1, 1, 1]} : vector<8x64x64xbf16> to vector<8x1x64xbf16>
    %96 = vector.shape_cast %95 : vector<8x1x64xbf16> to vector<8x64xbf16>
    %97 = vector.extract_strided_slice %39 {offsets = [0, 18, 0], sizes = [8, 1, 64], strides = [1, 1, 1]} : vector<8x64x64xbf16> to vector<8x1x64xbf16>
    %98 = vector.shape_cast %97 : vector<8x1x64xbf16> to vector<8x64xbf16>
    %99 = vector.extract_strided_slice %39 {offsets = [0, 19, 0], sizes = [8, 1, 64], strides = [1, 1, 1]} : vector<8x64x64xbf16> to vector<8x1x64xbf16>
    %100 = vector.shape_cast %99 : vector<8x1x64xbf16> to vector<8x64xbf16>
    %101 = tpu.concatenate %94, %96, %98, %100 in 1 : vector<8x64xbf16>, vector<8x64xbf16>, vector<8x64xbf16>, vector<8x64xbf16> -> vector<8x256xbf16>
    %c4 = arith.constant 4 : index
    %c0_33 = arith.constant 0 : index
    %c0_34 = arith.constant 0 : index
    %102 = vector.load %arg4[%c4, %c0_33, %c0_34] : memref<16x256x128xbf16, #tpu.memory_space<vmem>>, vector<1x256x128xbf16>
    %103 = vector.shape_cast %102 : vector<1x256x128xbf16> to vector<256x128xbf16>
    %cst_35 = arith.constant dense<0.000000e+00> : vector<8x128xf32>
    %104 = tpu.matmul %101, %103, %cst_35 {dimension_numbers = #tpu.dot_dimension_numbers<[1], [0], [0], [1], [0, 0, 1, 1], [], []>} : vector<8x256xbf16>, vector<256x128xbf16>, vector<8x128xf32> -> vector<8x128xf32>
    %105 = arith.addf %92, %104 : vector<8x128xf32>
    %106 = vector.extract_strided_slice %39 {offsets = [0, 20, 0], sizes = [8, 1, 64], strides = [1, 1, 1]} : vector<8x64x64xbf16> to vector<8x1x64xbf16>
    %107 = vector.shape_cast %106 : vector<8x1x64xbf16> to vector<8x64xbf16>
    %108 = vector.extract_strided_slice %39 {offsets = [0, 21, 0], sizes = [8, 1, 64], strides = [1, 1, 1]} : vector<8x64x64xbf16> to vector<8x1x64xbf16>
    %109 = vector.shape_cast %108 : vector<8x1x64xbf16> to vector<8x64xbf16>
    %110 = vector.extract_strided_slice %39 {offsets = [0, 22, 0], sizes = [8, 1, 64], strides = [1, 1, 1]} : vector<8x64x64xbf16> to vector<8x1x64xbf16>
    %111 = vector.shape_cast %110 : vector<8x1x64xbf16> to vector<8x64xbf16>
    %112 = vector.extract_strided_slice %39 {offsets = [0, 23, 0], sizes = [8, 1, 64], strides = [1, 1, 1]} : vector<8x64x64xbf16> to vector<8x1x64xbf16>
    %113 = vector.shape_cast %112 : vector<8x1x64xbf16> to vector<8x64xbf16>
    %114 = tpu.concatenate %107, %109, %111, %113 in 1 : vector<8x64xbf16>, vector<8x64xbf16>, vector<8x64xbf16>, vector<8x64xbf16> -> vector<8x256xbf16>
    %c5 = arith.constant 5 : index
    %c0_36 = arith.constant 0 : index
    %c0_37 = arith.constant 0 : index
    %115 = vector.load %arg4[%c5, %c0_36, %c0_37] : memref<16x256x128xbf16, #tpu.memory_space<vmem>>, vector<1x256x128xbf16>
    %116 = vector.shape_cast %115 : vector<1x256x128xbf16> to vector<256x128xbf16>
    %cst_38 = arith.constant dense<0.000000e+00> : vector<8x128xf32>
    %117 = tpu.matmul %114, %116, %cst_38 {dimension_numbers = #tpu.dot_dimension_numbers<[1], [0], [0], [1], [0, 0, 1, 1], [], []>} : vector<8x256xbf16>, vector<256x128xbf16>, vector<8x128xf32> -> vector<8x128xf32>
    %118 = arith.addf %105, %117 : vector<8x128xf32>
    %119 = vector.extract_strided_slice %39 {offsets = [0, 24, 0], sizes = [8, 1, 64], strides = [1, 1, 1]} : vector<8x64x64xbf16> to vector<8x1x64xbf16>
    %120 = vector.shape_cast %119 : vector<8x1x64xbf16> to vector<8x64xbf16>
    %121 = vector.extract_strided_slice %39 {offsets = [0, 25, 0], sizes = [8, 1, 64], strides = [1, 1, 1]} : vector<8x64x64xbf16> to vector<8x1x64xbf16>
    %122 = vector.shape_cast %121 : vector<8x1x64xbf16> to vector<8x64xbf16>
    %123 = vector.extract_strided_slice %39 {offsets = [0, 26, 0], sizes = [8, 1, 64], strides = [1, 1, 1]} : vector<8x64x64xbf16> to vector<8x1x64xbf16>
    %124 = vector.shape_cast %123 : vector<8x1x64xbf16> to vector<8x64xbf16>
    %125 = vector.extract_strided_slice %39 {offsets = [0, 27, 0], sizes = [8, 1, 64], strides = [1, 1, 1]} : vector<8x64x64xbf16> to vector<8x1x64xbf16>
    %126 = vector.shape_cast %125 : vector<8x1x64xbf16> to vector<8x64xbf16>
    %127 = tpu.concatenate %120, %122, %124, %126 in 1 : vector<8x64xbf16>, vector<8x64xbf16>, vector<8x64xbf16>, vector<8x64xbf16> -> vector<8x256xbf16>
    %c6 = arith.constant 6 : index
    %c0_39 = arith.constant 0 : index
    %c0_40 = arith.constant 0 : index
    %128 = vector.load %arg4[%c6, %c0_39, %c0_40] : memref<16x256x128xbf16, #tpu.memory_space<vmem>>, vector<1x256x128xbf16>
    %129 = vector.shape_cast %128 : vector<1x256x128xbf16> to vector<256x128xbf16>
    %cst_41 = arith.constant dense<0.000000e+00> : vector<8x128xf32>
    %130 = tpu.matmul %127, %129, %cst_41 {dimension_numbers = #tpu.dot_dimension_numbers<[1], [0], [0], [1], [0, 0, 1, 1], [], []>} : vector<8x256xbf16>, vector<256x128xbf16>, vector<8x128xf32> -> vector<8x128xf32>
    %131 = arith.addf %118, %130 : vector<8x128xf32>
    %132 = vector.extract_strided_slice %39 {offsets = [0, 28, 0], sizes = [8, 1, 64], strides = [1, 1, 1]} : vector<8x64x64xbf16> to vector<8x1x64xbf16>
    %133 = vector.shape_cast %132 : vector<8x1x64xbf16> to vector<8x64xbf16>
    %134 = vector.extract_strided_slice %39 {offsets = [0, 29, 0], sizes = [8, 1, 64], strides = [1, 1, 1]} : vector<8x64x64xbf16> to vector<8x1x64xbf16>
    %135 = vector.shape_cast %134 : vector<8x1x64xbf16> to vector<8x64xbf16>
    %136 = vector.extract_strided_slice %39 {offsets = [0, 30, 0], sizes = [8, 1, 64], strides = [1, 1, 1]} : vector<8x64x64xbf16> to vector<8x1x64xbf16>
    %137 = vector.shape_cast %136 : vector<8x1x64xbf16> to vector<8x64xbf16>
    %138 = vector.extract_strided_slice %39 {offsets = [0, 31, 0], sizes = [8, 1, 64], strides = [1, 1, 1]} : vector<8x64x64xbf16> to vector<8x1x64xbf16>
    %139 = vector.shape_cast %138 : vector<8x1x64xbf16> to vector<8x64xbf16>
    %140 = tpu.concatenate %133, %135, %137, %139 in 1 : vector<8x64xbf16>, vector<8x64xbf16>, vector<8x64xbf16>, vector<8x64xbf16> -> vector<8x256xbf16>
    %c7 = arith.constant 7 : index
    %c0_42 = arith.constant 0 : index
    %c0_43 = arith.constant 0 : index
    %141 = vector.load %arg4[%c7, %c0_42, %c0_43] : memref<16x256x128xbf16, #tpu.memory_space<vmem>>, vector<1x256x128xbf16>
    %142 = vector.shape_cast %141 : vector<1x256x128xbf16> to vector<256x128xbf16>
    %cst_44 = arith.constant dense<0.000000e+00> : vector<8x128xf32>
    %143 = tpu.matmul %140, %142, %cst_44 {dimension_numbers = #tpu.dot_dimension_numbers<[1], [0], [0], [1], [0, 0, 1, 1], [], []>} : vector<8x256xbf16>, vector<256x128xbf16>, vector<8x128xf32> -> vector<8x128xf32>
    %144 = arith.addf %131, %143 : vector<8x128xf32>
    %145 = vector.extract_strided_slice %39 {offsets = [0, 32, 0], sizes = [8, 1, 64], strides = [1, 1, 1]} : vector<8x64x64xbf16> to vector<8x1x64xbf16>
    %146 = vector.shape_cast %145 : vector<8x1x64xbf16> to vector<8x64xbf16>
    %147 = vector.extract_strided_slice %39 {offsets = [0, 33, 0], sizes = [8, 1, 64], strides = [1, 1, 1]} : vector<8x64x64xbf16> to vector<8x1x64xbf16>
    %148 = vector.shape_cast %147 : vector<8x1x64xbf16> to vector<8x64xbf16>
    %149 = vector.extract_strided_slice %39 {offsets = [0, 34, 0], sizes = [8, 1, 64], strides = [1, 1, 1]} : vector<8x64x64xbf16> to vector<8x1x64xbf16>
    %150 = vector.shape_cast %149 : vector<8x1x64xbf16> to vector<8x64xbf16>
    %151 = vector.extract_strided_slice %39 {offsets = [0, 35, 0], sizes = [8, 1, 64], strides = [1, 1, 1]} : vector<8x64x64xbf16> to vector<8x1x64xbf16>
    %152 = vector.shape_cast %151 : vector<8x1x64xbf16> to vector<8x64xbf16>
    %153 = tpu.concatenate %146, %148, %150, %152 in 1 : vector<8x64xbf16>, vector<8x64xbf16>, vector<8x64xbf16>, vector<8x64xbf16> -> vector<8x256xbf16>
    %c8 = arith.constant 8 : index
    %c0_45 = arith.constant 0 : index
    %c0_46 = arith.constant 0 : index
    %154 = vector.load %arg4[%c8, %c0_45, %c0_46] : memref<16x256x128xbf16, #tpu.memory_space<vmem>>, vector<1x256x128xbf16>
    %155 = vector.shape_cast %154 : vector<1x256x128xbf16> to vector<256x128xbf16>
    %cst_47 = arith.constant dense<0.000000e+00> : vector<8x128xf32>
    %156 = tpu.matmul %153, %155, %cst_47 {dimension_numbers = #tpu.dot_dimension_numbers<[1], [0], [0], [1], [0, 0, 1, 1], [], []>} : vector<8x256xbf16>, vector<256x128xbf16>, vector<8x128xf32> -> vector<8x128xf32>
    %157 = arith.addf %144, %156 : vector<8x128xf32>
    %158 = vector.extract_strided_slice %39 {offsets = [0, 36, 0], sizes = [8, 1, 64], strides = [1, 1, 1]} : vector<8x64x64xbf16> to vector<8x1x64xbf16>
    %159 = vector.shape_cast %158 : vector<8x1x64xbf16> to vector<8x64xbf16>
    %160 = vector.extract_strided_slice %39 {offsets = [0, 37, 0], sizes = [8, 1, 64], strides = [1, 1, 1]} : vector<8x64x64xbf16> to vector<8x1x64xbf16>
    %161 = vector.shape_cast %160 : vector<8x1x64xbf16> to vector<8x64xbf16>
    %162 = vector.extract_strided_slice %39 {offsets = [0, 38, 0], sizes = [8, 1, 64], strides = [1, 1, 1]} : vector<8x64x64xbf16> to vector<8x1x64xbf16>
    %163 = vector.shape_cast %162 : vector<8x1x64xbf16> to vector<8x64xbf16>
    %164 = vector.extract_strided_slice %39 {offsets = [0, 39, 0], sizes = [8, 1, 64], strides = [1, 1, 1]} : vector<8x64x64xbf16> to vector<8x1x64xbf16>
    %165 = vector.shape_cast %164 : vector<8x1x64xbf16> to vector<8x64xbf16>
    %166 = tpu.concatenate %159, %161, %163, %165 in 1 : vector<8x64xbf16>, vector<8x64xbf16>, vector<8x64xbf16>, vector<8x64xbf16> -> vector<8x256xbf16>
    %c9 = arith.constant 9 : index
    %c0_48 = arith.constant 0 : index
    %c0_49 = arith.constant 0 : index
    %167 = vector.load %arg4[%c9, %c0_48, %c0_49] : memref<16x256x128xbf16, #tpu.memory_space<vmem>>, vector<1x256x128xbf16>
    %168 = vector.shape_cast %167 : vector<1x256x128xbf16> to vector<256x128xbf16>
    %cst_50 = arith.constant dense<0.000000e+00> : vector<8x128xf32>
    %169 = tpu.matmul %166, %168, %cst_50 {dimension_numbers = #tpu.dot_dimension_numbers<[1], [0], [0], [1], [0, 0, 1, 1], [], []>} : vector<8x256xbf16>, vector<256x128xbf16>, vector<8x128xf32> -> vector<8x128xf32>
    %170 = arith.addf %157, %169 : vector<8x128xf32>
    %171 = vector.extract_strided_slice %39 {offsets = [0, 40, 0], sizes = [8, 1, 64], strides = [1, 1, 1]} : vector<8x64x64xbf16> to vector<8x1x64xbf16>
    %172 = vector.shape_cast %171 : vector<8x1x64xbf16> to vector<8x64xbf16>
    %173 = vector.extract_strided_slice %39 {offsets = [0, 41, 0], sizes = [8, 1, 64], strides = [1, 1, 1]} : vector<8x64x64xbf16> to vector<8x1x64xbf16>
    %174 = vector.shape_cast %173 : vector<8x1x64xbf16> to vector<8x64xbf16>
    %175 = vector.extract_strided_slice %39 {offsets = [0, 42, 0], sizes = [8, 1, 64], strides = [1, 1, 1]} : vector<8x64x64xbf16> to vector<8x1x64xbf16>
    %176 = vector.shape_cast %175 : vector<8x1x64xbf16> to vector<8x64xbf16>
    %177 = vector.extract_strided_slice %39 {offsets = [0, 43, 0], sizes = [8, 1, 64], strides = [1, 1, 1]} : vector<8x64x64xbf16> to vector<8x1x64xbf16>
    %178 = vector.shape_cast %177 : vector<8x1x64xbf16> to vector<8x64xbf16>
    %179 = tpu.concatenate %172, %174, %176, %178 in 1 : vector<8x64xbf16>, vector<8x64xbf16>, vector<8x64xbf16>, vector<8x64xbf16> -> vector<8x256xbf16>
    %c10 = arith.constant 10 : index
    %c0_51 = arith.constant 0 : index
    %c0_52 = arith.constant 0 : index
    %180 = vector.load %arg4[%c10, %c0_51, %c0_52] : memref<16x256x128xbf16, #tpu.memory_space<vmem>>, vector<1x256x128xbf16>
    %181 = vector.shape_cast %180 : vector<1x256x128xbf16> to vector<256x128xbf16>
    %cst_53 = arith.constant dense<0.000000e+00> : vector<8x128xf32>
    %182 = tpu.matmul %179, %181, %cst_53 {dimension_numbers = #tpu.dot_dimension_numbers<[1], [0], [0], [1], [0, 0, 1, 1], [], []>} : vector<8x256xbf16>, vector<256x128xbf16>, vector<8x128xf32> -> vector<8x128xf32>
    %183 = arith.addf %170, %182 : vector<8x128xf32>
    %184 = vector.extract_strided_slice %39 {offsets = [0, 44, 0], sizes = [8, 1, 64], strides = [1, 1, 1]} : vector<8x64x64xbf16> to vector<8x1x64xbf16>
    %185 = vector.shape_cast %184 : vector<8x1x64xbf16> to vector<8x64xbf16>
    %186 = vector.extract_strided_slice %39 {offsets = [0, 45, 0], sizes = [8, 1, 64], strides = [1, 1, 1]} : vector<8x64x64xbf16> to vector<8x1x64xbf16>
    %187 = vector.shape_cast %186 : vector<8x1x64xbf16> to vector<8x64xbf16>
    %188 = vector.extract_strided_slice %39 {offsets = [0, 46, 0], sizes = [8, 1, 64], strides = [1, 1, 1]} : vector<8x64x64xbf16> to vector<8x1x64xbf16>
    %189 = vector.shape_cast %188 : vector<8x1x64xbf16> to vector<8x64xbf16>
    %190 = vector.extract_strided_slice %39 {offsets = [0, 47, 0], sizes = [8, 1, 64], strides = [1, 1, 1]} : vector<8x64x64xbf16> to vector<8x1x64xbf16>
    %191 = vector.shape_cast %190 : vector<8x1x64xbf16> to vector<8x64xbf16>
    %192 = tpu.concatenate %185, %187, %189, %191 in 1 : vector<8x64xbf16>, vector<8x64xbf16>, vector<8x64xbf16>, vector<8x64xbf16> -> vector<8x256xbf16>
    %c11 = arith.constant 11 : index
    %c0_54 = arith.constant 0 : index
    %c0_55 = arith.constant 0 : index
    %193 = vector.load %arg4[%c11, %c0_54, %c0_55] : memref<16x256x128xbf16, #tpu.memory_space<vmem>>, vector<1x256x128xbf16>
    %194 = vector.shape_cast %193 : vector<1x256x128xbf16> to vector<256x128xbf16>
    %cst_56 = arith.constant dense<0.000000e+00> : vector<8x128xf32>
    %195 = tpu.matmul %192, %194, %cst_56 {dimension_numbers = #tpu.dot_dimension_numbers<[1], [0], [0], [1], [0, 0, 1, 1], [], []>} : vector<8x256xbf16>, vector<256x128xbf16>, vector<8x128xf32> -> vector<8x128xf32>
    %196 = arith.addf %183, %195 : vector<8x128xf32>
    %197 = vector.extract_strided_slice %39 {offsets = [0, 48, 0], sizes = [8, 1, 64], strides = [1, 1, 1]} : vector<8x64x64xbf16> to vector<8x1x64xbf16>
    %198 = vector.shape_cast %197 : vector<8x1x64xbf16> to vector<8x64xbf16>
    %199 = vector.extract_strided_slice %39 {offsets = [0, 49, 0], sizes = [8, 1, 64], strides = [1, 1, 1]} : vector<8x64x64xbf16> to vector<8x1x64xbf16>
    %200 = vector.shape_cast %199 : vector<8x1x64xbf16> to vector<8x64xbf16>
    %201 = vector.extract_strided_slice %39 {offsets = [0, 50, 0], sizes = [8, 1, 64], strides = [1, 1, 1]} : vector<8x64x64xbf16> to vector<8x1x64xbf16>
    %202 = vector.shape_cast %201 : vector<8x1x64xbf16> to vector<8x64xbf16>
    %203 = vector.extract_strided_slice %39 {offsets = [0, 51, 0], sizes = [8, 1, 64], strides = [1, 1, 1]} : vector<8x64x64xbf16> to vector<8x1x64xbf16>
    %204 = vector.shape_cast %203 : vector<8x1x64xbf16> to vector<8x64xbf16>
    %205 = tpu.concatenate %198, %200, %202, %204 in 1 : vector<8x64xbf16>, vector<8x64xbf16>, vector<8x64xbf16>, vector<8x64xbf16> -> vector<8x256xbf16>
    %c12 = arith.constant 12 : index
    %c0_57 = arith.constant 0 : index
    %c0_58 = arith.constant 0 : index
    %206 = vector.load %arg4[%c12, %c0_57, %c0_58] : memref<16x256x128xbf16, #tpu.memory_space<vmem>>, vector<1x256x128xbf16>
    %207 = vector.shape_cast %206 : vector<1x256x128xbf16> to vector<256x128xbf16>
    %cst_59 = arith.constant dense<0.000000e+00> : vector<8x128xf32>
    %208 = tpu.matmul %205, %207, %cst_59 {dimension_numbers = #tpu.dot_dimension_numbers<[1], [0], [0], [1], [0, 0, 1, 1], [], []>} : vector<8x256xbf16>, vector<256x128xbf16>, vector<8x128xf32> -> vector<8x128xf32>
    %209 = arith.addf %196, %208 : vector<8x128xf32>
    %210 = vector.extract_strided_slice %39 {offsets = [0, 52, 0], sizes = [8, 1, 64], strides = [1, 1, 1]} : vector<8x64x64xbf16> to vector<8x1x64xbf16>
    %211 = vector.shape_cast %210 : vector<8x1x64xbf16> to vector<8x64xbf16>
    %212 = vector.extract_strided_slice %39 {offsets = [0, 53, 0], sizes = [8, 1, 64], strides = [1, 1, 1]} : vector<8x64x64xbf16> to vector<8x1x64xbf16>
    %213 = vector.shape_cast %212 : vector<8x1x64xbf16> to vector<8x64xbf16>
    %214 = vector.extract_strided_slice %39 {offsets = [0, 54, 0], sizes = [8, 1, 64], strides = [1, 1, 1]} : vector<8x64x64xbf16> to vector<8x1x64xbf16>
    %215 = vector.shape_cast %214 : vector<8x1x64xbf16> to vector<8x64xbf16>
    %216 = vector.extract_strided_slice %39 {offsets = [0, 55, 0], sizes = [8, 1, 64], strides = [1, 1, 1]} : vector<8x64x64xbf16> to vector<8x1x64xbf16>
    %217 = vector.shape_cast %216 : vector<8x1x64xbf16> to vector<8x64xbf16>
    %218 = tpu.concatenate %211, %213, %215, %217 in 1 : vector<8x64xbf16>, vector<8x64xbf16>, vector<8x64xbf16>, vector<8x64xbf16> -> vector<8x256xbf16>
    %c13 = arith.constant 13 : index
    %c0_60 = arith.constant 0 : index
    %c0_61 = arith.constant 0 : index
    %219 = vector.load %arg4[%c13, %c0_60, %c0_61] : memref<16x256x128xbf16, #tpu.memory_space<vmem>>, vector<1x256x128xbf16>
    %220 = vector.shape_cast %219 : vector<1x256x128xbf16> to vector<256x128xbf16>
    %cst_62 = arith.constant dense<0.000000e+00> : vector<8x128xf32>
    %221 = tpu.matmul %218, %220, %cst_62 {dimension_numbers = #tpu.dot_dimension_numbers<[1], [0], [0], [1], [0, 0, 1, 1], [], []>} : vector<8x256xbf16>, vector<256x128xbf16>, vector<8x128xf32> -> vector<8x128xf32>
    %222 = arith.addf %209, %221 : vector<8x128xf32>
    %223 = vector.extract_strided_slice %39 {offsets = [0, 56, 0], sizes = [8, 1, 64], strides = [1, 1, 1]} : vector<8x64x64xbf16> to vector<8x1x64xbf16>
    %224 = vector.shape_cast %223 : vector<8x1x64xbf16> to vector<8x64xbf16>
    %225 = vector.extract_strided_slice %39 {offsets = [0, 57, 0], sizes = [8, 1, 64], strides = [1, 1, 1]} : vector<8x64x64xbf16> to vector<8x1x64xbf16>
    %226 = vector.shape_cast %225 : vector<8x1x64xbf16> to vector<8x64xbf16>
    %227 = vector.extract_strided_slice %39 {offsets = [0, 58, 0], sizes = [8, 1, 64], strides = [1, 1, 1]} : vector<8x64x64xbf16> to vector<8x1x64xbf16>
    %228 = vector.shape_cast %227 : vector<8x1x64xbf16> to vector<8x64xbf16>
    %229 = vector.extract_strided_slice %39 {offsets = [0, 59, 0], sizes = [8, 1, 64], strides = [1, 1, 1]} : vector<8x64x64xbf16> to vector<8x1x64xbf16>
    %230 = vector.shape_cast %229 : vector<8x1x64xbf16> to vector<8x64xbf16>
    %231 = tpu.concatenate %224, %226, %228, %230 in 1 : vector<8x64xbf16>, vector<8x64xbf16>, vector<8x64xbf16>, vector<8x64xbf16> -> vector<8x256xbf16>
    %c14 = arith.constant 14 : index
    %c0_63 = arith.constant 0 : index
    %c0_64 = arith.constant 0 : index
    %232 = vector.load %arg4[%c14, %c0_63, %c0_64] : memref<16x256x128xbf16, #tpu.memory_space<vmem>>, vector<1x256x128xbf16>
    %233 = vector.shape_cast %232 : vector<1x256x128xbf16> to vector<256x128xbf16>
    %cst_65 = arith.constant dense<0.000000e+00> : vector<8x128xf32>
    %234 = tpu.matmul %231, %233, %cst_65 {dimension_numbers = #tpu.dot_dimension_numbers<[1], [0], [0], [1], [0, 0, 1, 1], [], []>} : vector<8x256xbf16>, vector<256x128xbf16>, vector<8x128xf32> -> vector<8x128xf32>
    %235 = arith.addf %222, %234 : vector<8x128xf32>
    %236 = vector.extract_strided_slice %39 {offsets = [0, 60, 0], sizes = [8, 1, 64], strides = [1, 1, 1]} : vector<8x64x64xbf16> to vector<8x1x64xbf16>
    %237 = vector.shape_cast %236 : vector<8x1x64xbf16> to vector<8x64xbf16>
    %238 = vector.extract_strided_slice %39 {offsets = [0, 61, 0], sizes = [8, 1, 64], strides = [1, 1, 1]} : vector<8x64x64xbf16> to vector<8x1x64xbf16>
    %239 = vector.shape_cast %238 : vector<8x1x64xbf16> to vector<8x64xbf16>
    %240 = vector.extract_strided_slice %39 {offsets = [0, 62, 0], sizes = [8, 1, 64], strides = [1, 1, 1]} : vector<8x64x64xbf16> to vector<8x1x64xbf16>
    %241 = vector.shape_cast %240 : vector<8x1x64xbf16> to vector<8x64xbf16>
    %242 = vector.extract_strided_slice %39 {offsets = [0, 63, 0], sizes = [8, 1, 64], strides = [1, 1, 1]} : vector<8x64x64xbf16> to vector<8x1x64xbf16>
    %243 = vector.shape_cast %242 : vector<8x1x64xbf16> to vector<8x64xbf16>
    %244 = tpu.concatenate %237, %239, %241, %243 in 1 : vector<8x64xbf16>, vector<8x64xbf16>, vector<8x64xbf16>, vector<8x64xbf16> -> vector<8x256xbf16>
    %c15 = arith.constant 15 : index
    %c0_66 = arith.constant 0 : index
    %c0_67 = arith.constant 0 : index
    %245 = vector.load %arg4[%c15, %c0_66, %c0_67] : memref<16x256x128xbf16, #tpu.memory_space<vmem>>, vector<1x256x128xbf16>
    %246 = vector.shape_cast %245 : vector<1x256x128xbf16> to vector<256x128xbf16>
    %cst_68 = arith.constant dense<0.000000e+00> : vector<8x128xf32>
    %247 = tpu.matmul %244, %246, %cst_68 {dimension_numbers = #tpu.dot_dimension_numbers<[1], [0], [0], [1], [0, 0, 1, 1], [], []>} : vector<8x256xbf16>, vector<256x128xbf16>, vector<8x128xf32> -> vector<8x128xf32>
    %248 = arith.addf %235, %247 : vector<8x128xf32>
    %c4_69 = arith.constant 4 : index
    %c0_70 = arith.constant 0 : index
    %249 = vector.load %arg6[%c4_69, %c0_70] : memref<8x256xf32, #tpu.memory_space<vmem>>, vector<1x128xf32>
    %250 = vector.broadcast %249 : vector<1x128xf32> to vector<8x128xf32>
    %251 = arith.addf %248, %250 : vector<8x128xf32>
    %cst_71 = arith.constant 0.000000e+00 : f32
    %252 = vector.broadcast %cst_71 : f32 to vector<8x128xf32>
    %253 = arith.maximumf %251, %252 : vector<8x128xf32>
    %254 = arith.truncf %253 : vector<8x128xf32> to vector<8x128xbf16>
    %c0_72 = arith.constant 0 : index
    %c0_73 = arith.constant 0 : index
    %255 = vector.load %arg5[%c0_72, %c0_73] : memref<128x32xbf16, #tpu.memory_space<vmem>>, vector<128x32xbf16>
    %cst_74 = arith.constant dense<0.000000e+00> : vector<8x32xf32>
    %256 = tpu.matmul %254, %255, %cst_74 {dimension_numbers = #tpu.dot_dimension_numbers<[1], [0], [0], [1], [0, 0, 1, 1], [], []>} : vector<8x128xbf16>, vector<128x32xbf16>, vector<8x32xf32> -> vector<8x32xf32>
    %c5_75 = arith.constant 5 : index
    %c0_76 = arith.constant 0 : index
    %257 = vector.load %arg6[%c5_75, %c0_76] : memref<8x256xf32, #tpu.memory_space<vmem>>, vector<1x32xf32>
    %258 = vector.broadcast %257 : vector<1x32xf32> to vector<8x32xf32>
    %259 = arith.addf %256, %258 : vector<8x32xf32>
    %cst_77 = arith.constant 0.000000e+00 : f32
    %260 = vector.broadcast %cst_77 : f32 to vector<8x32xf32>
    %261 = arith.maximumf %259, %260 : vector<8x32xf32>
    %c6_78 = arith.constant 6 : index
    %c0_79 = arith.constant 0 : index
    %262 = vector.load %arg6[%c6_78, %c0_79] : memref<8x256xf32, #tpu.memory_space<vmem>>, vector<1x32xf32>
    %263 = vector.broadcast %262 : vector<1x32xf32> to vector<8x32xf32>
    %264 = arith.mulf %261, %263 : vector<8x32xf32>
    %cst_80 = arith.constant dense<0.000000e+00> : vector<8xf32>
    %265 = vector.multi_reduction <add>, %264, %cst_80 [1] : vector<8x32xf32> to vector<8xf32>
    %266 = vector.shape_cast %265 : vector<8xf32> to vector<8x1xf32>
    %c7_81 = arith.constant 7 : index
    %c0_82 = arith.constant 0 : index
    %267 = vector.load %arg6[%c7_81, %c0_82] : memref<8x256xf32, #tpu.memory_space<vmem>>, vector<1x1xf32>
    %268 = vector.broadcast %267 : vector<1x1xf32> to vector<8x1xf32>
    %269 = arith.addf %266, %268 : vector<8x1xf32>
    %270 = arith.negf %269 : vector<8x1xf32>
    %271 = math.exp %270 : vector<8x1xf32>
    %cst_83 = arith.constant 1.000000e+00 : f32
    %272 = vector.broadcast %cst_83 : f32 to vector<8x1xf32>
    %273 = arith.addf %272, %271 : vector<8x1xf32>
    %274 = arith.divf %272, %273 : vector<8x1xf32>
    %c0_84 = arith.constant 0 : index
    %c0_85 = arith.constant 0 : index
    %275 = vector.load %arg7[%c0_84, %c0_85] : memref<8x1xf32, #tpu.memory_space<vmem>>, vector<8x1xf32>
    tpu.vector_store %arg7[%c0_84, %c0_85], %274 {strides = array<i32>} : memref<8x1xf32, #tpu.memory_space<vmem>>, vector<8x1xf32>,
    return
  }
  func.func @transform_0(%arg0: i32) -> (i32, i32, i32) {
    %c0_i32 = arith.constant 0 : i32
    %c0_i32_0 = arith.constant 0 : i32
    %c0_i32_1 = arith.constant 0 : i32
    return %arg0, %c0_i32, %c0_i32_0 : i32, i32, i32
  }
  func.func @transform_1(%arg0: i32) -> (i32, i32) {
    %c0_i32 = arith.constant 0 : i32
    %c0_i32_0 = arith.constant 0 : i32
    %c0_i32_1 = arith.constant 0 : i32
    return %c0_i32, %c0_i32_0 : i32, i32
  }
  func.func @transform_2(%arg0: i32) -> (i32, i32) {
    %c0_i32 = arith.constant 0 : i32
    %c0_i32_0 = arith.constant 0 : i32
    %c0_i32_1 = arith.constant 0 : i32
    return %c0_i32, %c0_i32_0 : i32, i32
  }
  func.func @transform_3(%arg0: i32) -> (i32, i32, i32) {
    %c0_i32 = arith.constant 0 : i32
    %c0_i32_0 = arith.constant 0 : i32
    %c0_i32_1 = arith.constant 0 : i32
    %c0_i32_2 = arith.constant 0 : i32
    return %c0_i32, %c0_i32_0, %c0_i32_1 : i32, i32, i32
  }
  func.func @transform_4(%arg0: i32) -> (i32, i32) {
    %c0_i32 = arith.constant 0 : i32
    %c0_i32_0 = arith.constant 0 : i32
    %c0_i32_1 = arith.constant 0 : i32
    return %c0_i32, %c0_i32_0 : i32, i32
  }
  func.func @transform_5(%arg0: i32) -> (i32, i32) {
    %c0_i32 = arith.constant 0 : i32
    %c0_i32_0 = arith.constant 0 : i32
    %c0_i32_1 = arith.constant 0 : i32
    return %c0_i32, %c0_i32_0 : i32, i32
  }
  func.func @transform_6(%arg0: i32) -> (i32, i32) {
    %c0_i32 = arith.constant 0 : i32
    %c0_i32_0 = arith.constant 0 : i32
    return %arg0, %c0_i32 : i32, i32
  }
}

</mosaic_0001>

<llo_original>
// kernel: gesture_net_forward.1
$region0: #{gesture_net_forward.1}
  #allocation0 [shape = 'u32[]', space=smem, size = 0x4, offset = 0x4, fixed_abs, tag = 'smem constant byte address 0x4 - core index']
  #allocation1 [shape = 'u32[144,128]{1,0:T(1,128)}', space=vmem, size = 0x12000, scoped, tag = 'internal scratch']
  %s0 = inlined_call_operand.vmem [shape: bf16[8,64,80], index: 0, kind: input, shape index: {}]
  %s1 = inlined_call_operand.vmem [shape: bf16[80,256], index: 1, kind: input, shape index: {}]
  %s2 = inlined_call_operand.vmem [shape: bf16[224,128], index: 2, kind: input, shape index: {}]
  %s3 = inlined_call_operand.vmem [shape: bf16[16,256,128], index: 3, kind: input, shape index: {}]
  %s4 = inlined_call_operand.vmem [shape: bf16[128,32], index: 4, kind: input, shape index: {}]
  %s5 = inlined_call_operand.vmem [shape: f32[8,256], index: 5, kind: input, shape index: {}]
  %s6 = inlined_call_operand.vmem [shape: f32[8,1], index: 6, kind: output, shape index: {}]
  %s7 = sld [smem:[#allocation0]]
  $region34: #{gesture_net_forward.1} parent=0
    _
  %s9 = ssub.s32 1, %s7
  %s10 = scalar_select 0, %s9, %s7
  // Predicated region
  $region2: #{gesture_net_forward.1} parent=0 // pred_check
    _
  $region3: #{gesture_net_forward.1} parent=0 // pred_check_branch
    %12 = sbr.rel (0) target = $region5
  $region4: #{gesture_net_forward.1} parent=0 // pred_region
    _
  $region5: #{gesture_net_forward.1} parent=0 // pred_fallthru
    _
  // Predicated region
  $region6: #{gesture_net_forward.1} parent=0 // pred_check
    _
  $region7: #{gesture_net_forward.1} parent=0 // pred_check_branch
    %14 = sbr.rel (0) target = $region9
  $region8: #{gesture_net_forward.1} parent=0 // pred_region
    _
  $region9: #{gesture_net_forward.1} parent=0 // pred_fallthru
    _
  // Predicated region
  $region10: #{gesture_net_forward.1} parent=0 // pred_check
    _
  $region11: #{gesture_net_forward.1} parent=0 // pred_check_branch
    %16 = sbr.rel (0) target = $region13
  $region12: #{gesture_net_forward.1} parent=0 // pred_region
    _
  $region13: #{gesture_net_forward.1} parent=0 // pred_fallthru
    _
  // Predicated region
  $region14: #{gesture_net_forward.1} parent=0 // pred_check
    _
  $region15: #{gesture_net_forward.1} parent=0 // pred_check_branch
    %18 = sbr.rel (0) target = $region17
  $region16: #{gesture_net_forward.1} parent=0 // pred_region
    _
  $region17: #{gesture_net_forward.1} parent=0 // pred_fallthru
    _
  // Predicated region
  $region18: #{gesture_net_forward.1} parent=0 // pred_check
    _
  $region19: #{gesture_net_forward.1} parent=0 // pred_check_branch
    %20 = sbr.rel (0) target = $region21
  $region20: #{gesture_net_forward.1} parent=0 // pred_region
    _
  $region21: #{gesture_net_forward.1} parent=0 // pred_fallthru
    _
  // Predicated region
  $region22: #{gesture_net_forward.1} parent=0 // pred_check
    _
  $region23: #{gesture_net_forward.1} parent=0 // pred_check_branch
    %22 = sbr.rel (0) target = $region25
  $region24: #{gesture_net_forward.1} parent=0 // pred_region
    _
  $region25: #{gesture_net_forward.1} parent=0 // pred_fallthru
    _
  %v24 = vld [vmem:[%s0] sm:$0xf]
  %v25 = vld [vmem:[%s0 + $0x4] sm:$0xf]
  %v26 = vld [vmem:[%s0 + $0x8] sm:$0xf]
  %v27 = vld [vmem:[%s0 + $0xc] sm:$0xf]
  %v28 = vld [vmem:[%s0 + $0x10] sm:$0xf]
  %v29 = vld [vmem:[%s0 + $0x14] sm:$0xf]
  %v30 = vld [vmem:[%s0 + $0x18] sm:$0xf]
  %v31 = vld [vmem:[%s0 + $0x1c] sm:$0xf]
  %v32 = vld [vmem:[%s0 + $0x20] sm:$0xf]
  %v33 = vld [vmem:[%s0 + $0x24] sm:$0xf]
  %v34 = vld [vmem:[%s0 + $0x28] sm:$0xf]
  %v35 = vld [vmem:[%s0 + $0x2c] sm:$0xf]
  %v36 = vld [vmem:[%s0 + $0x30] sm:$0xf]
  %v37 = vld [vmem:[%s0 + $0x34] sm:$0xf]
  %v38 = vld [vmem:[%s0 + $0x38] sm:$0xf]
  %v39 = vld [vmem:[%s0 + $0x3c] sm:$0xf]
  %v40 = vld [vmem:[%s0 + $0x40] sm:$0xf]
  %v41 = vld [vmem:[%s0 + $0x44] sm:$0xf]
  %v42 = vld [vmem:[%s0 + $0x48] sm:$0xf]
  %v43 = vld [vmem:[%s0 + $0x4c] sm:$0xf]
  %v44 = vld [vmem:[%s0 + $0x50] sm:$0xf]
  %v45 = vld [vmem:[%s0 + $0x54] sm:$0xf]
  %v46 = vld [vmem:[%s0 + $0x58] sm:$0xf]
  %v47 = vld [vmem:[%s0 + $0x5c] sm:$0xf]
  %v48 = vld [vmem:[%s0 + $0x60] sm:$0xf]
  %v49 = vld [vmem:[%s0 + $0x64] sm:$0xf]
  %v50 = vld [vmem:[%s0 + $0x68] sm:$0xf]
  %v51 = vld [vmem:[%s0 + $0x6c] sm:$0xf]
  %v52 = vld [vmem:[%s0 + $0x70] sm:$0xf]
  %v53 = vld [vmem:[%s0 + $0x74] sm:$0xf]
  %v54 = vld [vmem:[%s0 + $0x78] sm:$0xf]
  %v55 = vld [vmem:[%s0 + $0x7c] sm:$0xf]
  %v56 = vld [vmem:[%s0 + $0x80] sm:$0xf]
  %v57 = vld [vmem:[%s0 + $0x84] sm:$0xf]
  %v58 = vld [vmem:[%s0 + $0x88] sm:$0xf]
  %v59 = vld [vmem:[%s0 + $0x8c] sm:$0xf]
  %v60 = vld [vmem:[%s0 + $0x90] sm:$0xf]
  %v61 = vld [vmem:[%s0 + $0x94] sm:$0xf]
  %v62 = vld [vmem:[%s0 + $0x98] sm:$0xf]
  %v63 = vld [vmem:[%s0 + $0x9c] sm:$0xf]
  %v64 = vld [vmem:[%s0 + $0xa0] sm:$0xf]
  %v65 = vld [vmem:[%s0 + $0xa4] sm:$0xf]
  %v66 = vld [vmem:[%s0 + $0xa8] sm:$0xf]
  %v67 = vld [vmem:[%s0 + $0xac] sm:$0xf]
  %v68 = vld [vmem:[%s0 + $0xb0] sm:$0xf]
  %v69 = vld [vmem:[%s0 + $0xb4] sm:$0xf]
  %v70 = vld [vmem:[%s0 + $0xb8] sm:$0xf]
  %v71 = vld [vmem:[%s0 + $0xbc] sm:$0xf]
  %v72 = vld [vmem:[%s0 + $0xc0] sm:$0xf]
  %v73 = vld [vmem:[%s0 + $0xc4] sm:$0xf]
  %v74 = vld [vmem:[%s0 + $0xc8] sm:$0xf]
  %v75 = vld [vmem:[%s0 + $0xcc] sm:$0xf]
  %v76 = vld [vmem:[%s0 + $0xd0] sm:$0xf]
  %v77 = vld [vmem:[%s0 + $0xd4] sm:$0xf]
  %v78 = vld [vmem:[%s0 + $0xd8] sm:$0xf]
  %v79 = vld [vmem:[%s0 + $0xdc] sm:$0xf]
  %v80 = vld [vmem:[%s0 + $0xe0] sm:$0xf]
  %v81 = vld [vmem:[%s0 + $0xe4] sm:$0xf]
  %v82 = vld [vmem:[%s0 + $0xe8] sm:$0xf]
  %v83 = vld [vmem:[%s0 + $0xec] sm:$0xf]
  %v84 = vld [vmem:[%s0 + $0xf0] sm:$0xf]
  %v85 = vld [vmem:[%s0 + $0xf4] sm:$0xf]
  %v86 = vld [vmem:[%s0 + $0xf8] sm:$0xf]
  %v87 = vld [vmem:[%s0 + $0xfc] sm:$0xf]
  %v88 = vld [vmem:[%s1] sm:$0xff]
  %v89 = vld [vmem:[%s1 + $0x8] sm:$0xff]
  %v90 = vld [vmem:[%s1 + $0x10] sm:$0xff]
  %v91 = vld [vmem:[%s1 + $0x18] sm:$0xff]
  %v92 = vld [vmem:[%s1 + $0x20] sm:$0xff]
  %v93 = vld [vmem:[%s1 + $0x28] sm:$0xff]
  %v94 = vld [vmem:[%s1 + $0x30] sm:$0xff]
  %v95 = vld [vmem:[%s1 + $0x38] sm:$0xff]
  %v96 = vld [vmem:[%s1 + $0x40] sm:$0xff]
  %v97 = vld [vmem:[%s1 + $0x48] sm:$0xff]
  %v162 = vunpack.c.l.b16 %v24
  %v163 = vunpack.c.l.b16 %v25
  %v164 = vunpack.c.l.b16 %v26
  %v165 = vunpack.c.l.b16 %v27
  %v166 = vunpack.c.l.b16 %v28
  %v167 = vunpack.c.l.b16 %v29
  %v168 = vunpack.c.l.b16 %v30
  %v169 = vunpack.c.l.b16 %v31
  %v170 = vunpack.c.l.b16 %v32
  %v171 = vunpack.c.l.b16 %v33
  %v172 = vunpack.c.l.b16 %v34
  %v173 = vunpack.c.l.b16 %v35
  %v174 = vunpack.c.l.b16 %v36
  %v175 = vunpack.c.l.b16 %v37
  %v176 = vunpack.c.l.b16 %v38
  %v177 = vunpack.c.l.b16 %v39
  %v178 = vunpack.c.l.b16 %v40
  %v179 = vunpack.c.l.b16 %v41
  %v180 = vunpack.c.l.b16 %v42
  %v181 = vunpack.c.l.b16 %v43
  %v182 = vunpack.c.l.b16 %v44
  %v183 = vunpack.c.l.b16 %v45
  %v184 = vunpack.c.l.b16 %v46
  %v185 = vunpack.c.l.b16 %v47
  %v186 = vunpack.c.l.b16 %v48
  %v187 = vunpack.c.l.b16 %v49
  %v188 = vunpack.c.l.b16 %v50
  %v189 = vunpack.c.l.b16 %v51
  %v190 = vunpack.c.l.b16 %v52
  %v191 = vunpack.c.l.b16 %v53
  %v192 = vunpack.c.l.b16 %v54
  %v193 = vunpack.c.l.b16 %v55
  %v194 = vunpack.c.l.b16 %v56
  %v195 = vunpack.c.l.b16 %v57
  %v196 = vunpack.c.l.b16 %v58
  %v197 = vunpack.c.l.b16 %v59
  %v198 = vunpack.c.l.b16 %v60
  %v199 = vunpack.c.l.b16 %v61
  %v200 = vunpack.c.l.b16 %v62
  %v201 = vunpack.c.l.b16 %v63
  %v202 = vunpack.c.l.b16 %v64
  %v203 = vunpack.c.l.b16 %v65
  %v204 = vunpack.c.l.b16 %v66
  %v205 = vunpack.c.l.b16 %v67
  %v206 = vunpack.c.l.b16 %v68
  %v207 = vunpack.c.l.b16 %v69
  %v208 = vunpack.c.l.b16 %v70
  %v209 = vunpack.c.l.b16 %v71
  %v210 = vunpack.c.l.b16 %v72
  %v211 = vunpack.c.l.b16 %v73
  %v212 = vunpack.c.l.b16 %v74
  %v213 = vunpack.c.l.b16 %v75
  %v214 = vunpack.c.l.b16 %v76
  %v215 = vunpack.c.l.b16 %v77
  %v216 = vunpack.c.l.b16 %v78
  %v217 = vunpack.c.l.b16 %v79
  %v218 = vunpack.c.l.b16 %v80
  %v219 = vunpack.c.l.b16 %v81
  %v220 = vunpack.c.l.b16 %v82
  %v221 = vunpack.c.l.b16 %v83
  %v222 = vunpack.c.l.b16 %v84
  %v223 = vunpack.c.l.b16 %v85
  %v224 = vunpack.c.l.b16 %v86
  %v225 = vunpack.c.l.b16 %v87
  %v226 = vpack.c.b16 %v163, %v162
  %v227 = vpack.c.b16 %v165, %v164
  %v228 = vpack.c.b16 %v167, %v166
  %v229 = vpack.c.b16 %v169, %v168
  %v230 = vpack.c.b16 %v171, %v170
  %v231 = vpack.c.b16 %v173, %v172
  %v232 = vpack.c.b16 %v175, %v174
  %v233 = vpack.c.b16 %v177, %v176
  %v234 = vpack.c.b16 %v179, %v178
  %v235 = vpack.c.b16 %v181, %v180
  %v236 = vpack.c.b16 %v183, %v182
  %v237 = vpack.c.b16 %v185, %v184
  %v238 = vpack.c.b16 %v187, %v186
  %v239 = vpack.c.b16 %v189, %v188
  %v240 = vpack.c.b16 %v191, %v190
  %v241 = vpack.c.b16 %v193, %v192
  %v242 = vpack.c.b16 %v195, %v194
  %v243 = vpack.c.b16 %v197, %v196
  %v244 = vpack.c.b16 %v199, %v198
  %v245 = vpack.c.b16 %v201, %v200
  %v246 = vpack.c.b16 %v203, %v202
  %v247 = vpack.c.b16 %v205, %v204
  %v248 = vpack.c.b16 %v207, %v206
  %v249 = vpack.c.b16 %v209, %v208
  %v250 = vpack.c.b16 %v211, %v210
  %v251 = vpack.c.b16 %v213, %v212
  %v252 = vpack.c.b16 %v215, %v214
  %v253 = vpack.c.b16 %v217, %v216
  %v254 = vpack.c.b16 %v219, %v218
  %v255 = vpack.c.b16 %v221, %v220
  %v256 = vpack.c.b16 %v223, %v222
  %v257 = vpack.c.b16 %v225, %v224
  %v268 = vunpack.c.l.b16 %v88
  %v269 = vunpack.c.h.b16 %v88
  %v270 = vunpack.c.l.b16 %v89
  %v271 = vunpack.c.h.b16 %v89
  %v272 = vunpack.c.l.b16 %v90
  %v273 = vunpack.c.h.b16 %v90
  %v274 = vunpack.c.l.b16 %v91
  %v275 = vunpack.c.h.b16 %v91
  %v276 = vunpack.c.l.b16 %v92
  %v277 = vunpack.c.h.b16 %v92
  %v278 = vunpack.c.l.b16 %v93
  %v279 = vunpack.c.h.b16 %v93
  %v280 = vunpack.c.l.b16 %v94
  %v281 = vunpack.c.h.b16 %v94
  %v282 = vunpack.c.l.b16 %v95
  %v283 = vunpack.c.h.b16 %v95
  %v284 = vunpack.c.l.b16 %v96
  %v285 = vunpack.c.h.b16 %v96
  %v286 = vunpack.c.l.b16 %v97
  %v287 = vunpack.c.h.b16 %v97
  %v288 = vpack.c.b16 %v270, %v268
  %v289 = vpack.c.b16 %v271, %v269
  %v290 = vpack.c.b16 %v274, %v272
  %v291 = vpack.c.b16 %v275, %v273
  %v292 = vpack.c.b16 %v278, %v276
  %v293 = vpack.c.b16 %v279, %v277
  %v294 = vpack.c.b16 %v282, %v280
  %v295 = vpack.c.b16 %v283, %v281
  %v296 = vpack.c.b16 %v286, %v284
  %v297 = vpack.c.b16 %v287, %v285
  %vm308 = vcmask 654336
  %v310 = vsel %vm308, %v226, 0
  %v313 = vsel %vm308, %v227, 0
  %v316 = vsel %vm308, %v228, 0
  %v319 = vsel %vm308, %v229, 0
  %v322 = vsel %vm308, %v230, 0
  %v325 = vsel %vm308, %v231, 0
  %v328 = vsel %vm308, %v232, 0
  %v331 = vsel %vm308, %v233, 0
  %v334 = vsel %vm308, %v234, 0
  %v337 = vsel %vm308, %v235, 0
  %v340 = vsel %vm308, %v236, 0
  %v343 = vsel %vm308, %v237, 0
  %v346 = vsel %vm308, %v238, 0
  %v349 = vsel %vm308, %v239, 0
  %v352 = vsel %vm308, %v240, 0
  %v355 = vsel %vm308, %v241, 0
  %v358 = vsel %vm308, %v242, 0
  %v361 = vsel %vm308, %v243, 0
  %v364 = vsel %vm308, %v244, 0
  %v367 = vsel %vm308, %v245, 0
  %v370 = vsel %vm308, %v246, 0
  %v373 = vsel %vm308, %v247, 0
  %v376 = vsel %vm308, %v248, 0
  %v379 = vsel %vm308, %v249, 0
  %v382 = vsel %vm308, %v250, 0
  %v385 = vsel %vm308, %v251, 0
  %v388 = vsel %vm308, %v252, 0
  %v391 = vsel %vm308, %v253, 0
  %v394 = vsel %vm308, %v254, 0
  %v397 = vsel %vm308, %v255, 0
  %v400 = vsel %vm308, %v256, 0
  %v403 = vsel %vm308, %v257, 0
  %405 = vmatprep.subr.bf16.mxu0 %v289
  %406 = vmatpush1.bf16.msra.mxu0 %v288
  %407 = vmatprep.subr.bf16.mxu0 %v291
  %408 = vmatpush1.bf16.msra.mxu0 %v290
  %409 = vmatprep.subr.bf16.mxu0 %v293
  %410 = vmatpush1.bf16.msra.mxu0 %v292
  %411 = vmatprep.subr.bf16.mxu0 %v295
  %412 = vmatpush1.bf16.msra.mxu0 %v294
  %413 = vmatprep.subr.bf16.mxu0 %v297
  %414 = vmatpush1.bf16.msra.mxu0 %v296
  %415 = vmatprep.subr.bf16.mxu0 0
  %416 = vmatpush1.bf16.msra.mxu0 0
  %417 = vmatprep.subr.bf16.mxu0 0
  %418 = vmatpush1.bf16.msra.mxu0 0
  %419 = vmatprep.subr.bf16.mxu0 0
  %420 = vmatpush1.bf16.msra.mxu0 0
  %421 = vmatprep.subr.bf16.mxu0 0
  %422 = vmatpush1.bf16.msra.mxu0 0
  %423 = vmatprep.subr.bf16.mxu0 0
  %424 = vmatpush1.bf16.msra.mxu0 0
  %425 = vmatprep.subr.bf16.mxu0 0
  %426 = vmatpush1.bf16.msra.mxu0 0
  %427 = vmatprep.subr.bf16.mxu0 0
  %428 = vmatpush1.bf16.msra.mxu0 0
  %429 = vmatprep.subr.bf16.mxu0 0
  %430 = vmatpush1.bf16.msra.mxu0 0
  %431 = vmatprep.subr.bf16.mxu0 0
  %432 = vmatpush1.bf16.msra.mxu0 0
  %433 = vmatprep.subr.bf16.mxu0 0
  %434 = vmatpush1.bf16.msra.mxu0 0
  %435 = vmatprep.subr.bf16.mxu0 0
  %436 = vmatpush1.bf16.msra.mxu0 0
  %437 = vmatprep.mubr.bf16.mxu0 0
  %438 = vmatmul.mubr.bf16.gmra.mrb[0].mxu0 %v310
  %v439 = vpop.f32.mrb[0].mxu0
  %v440 = vadd.f32 0.0, %v439
  %v441 = vpop.f32.mrb[0].mxu0
  %v442 = vadd.f32 0.0, %v441
  %v443 = vpop.f32.mrb[0].mxu0
  %v444 = vadd.f32 0.0, %v443
  %v445 = vpop.f32.mrb[0].mxu0
  %v446 = vadd.f32 0.0, %v445
  %447 = vmatprep.mubr.bf16.mxu0 0
  %448 = vmatmul.mubr.bf16.gmra.mrb[0].mxu0 %v313
  %v449 = vpop.f32.mrb[0].mxu0
  %v450 = vadd.f32 0.0, %v449
  %v451 = vpop.f32.mrb[0].mxu0
  %v452 = vadd.f32 0.0, %v451
  %v453 = vpop.f32.mrb[0].mxu0
  %v454 = vadd.f32 0.0, %v453
  %v455 = vpop.f32.mrb[0].mxu0
  %v456 = vadd.f32 0.0, %v455
  %457 = vmatprep.mubr.bf16.mxu0 0
  %458 = vmatmul.mubr.bf16.gmra.mrb[0].mxu0 %v316
  %v459 = vpop.f32.mrb[0].mxu0
  %v460 = vadd.f32 0.0, %v459
  %v461 = vpop.f32.mrb[0].mxu0
  %v462 = vadd.f32 0.0, %v461
  %v463 = vpop.f32.mrb[0].mxu0
  %v464 = vadd.f32 0.0, %v463
  %v465 = vpop.f32.mrb[0].mxu0
  %v466 = vadd.f32 0.0, %v465
  %467 = vmatprep.mubr.bf16.mxu0 0
  %468 = vmatmul.mubr.bf16.gmra.mrb[0].mxu0 %v319
  %v469 = vpop.f32.mrb[0].mxu0
  %v470 = vadd.f32 0.0, %v469
  %v471 = vpop.f32.mrb[0].mxu0
  %v472 = vadd.f32 0.0, %v471
  %v473 = vpop.f32.mrb[0].mxu0
  %v474 = vadd.f32 0.0, %v473
  %v475 = vpop.f32.mrb[0].mxu0
  %v476 = vadd.f32 0.0, %v475
  %477 = vmatprep.mubr.bf16.mxu0 0
  %478 = vmatmul.mubr.bf16.gmra.mrb[0].mxu0 %v322
  %v479 = vpop.f32.mrb[0].mxu0
  %v480 = vadd.f32 0.0, %v479
  %v481 = vpop.f32.mrb[0].mxu0
  %v482 = vadd.f32 0.0, %v481
  %v483 = vpop.f32.mrb[0].mxu0
  %v484 = vadd.f32 0.0, %v483
  %v485 = vpop.f32.mrb[0].mxu0
  %v486 = vadd.f32 0.0, %v485
  %487 = vmatprep.mubr.bf16.mxu0 0
  %488 = vmatmul.mubr.bf16.gmra.mrb[0].mxu0 %v325
  %v489 = vpop.f32.mrb[0].mxu0
  %v490 = vadd.f32 0.0, %v489
  %v491 = vpop.f32.mrb[0].mxu0
  %v492 = vadd.f32 0.0, %v491
  %v493 = vpop.f32.mrb[0].mxu0
  %v494 = vadd.f32 0.0, %v493
  %v495 = vpop.f32.mrb[0].mxu0
  %v496 = vadd.f32 0.0, %v495
  %497 = vmatprep.mubr.bf16.mxu0 0
  %498 = vmatmul.mubr.bf16.gmra.mrb[0].mxu0 %v328
  %v499 = vpop.f32.mrb[0].mxu0
  %v500 = vadd.f32 0.0, %v499
  %v501 = vpop.f32.mrb[0].mxu0
  %v502 = vadd.f32 0.0, %v501
  %v503 = vpop.f32.mrb[0].mxu0
  %v504 = vadd.f32 0.0, %v503
  %v505 = vpop.f32.mrb[0].mxu0
  %v506 = vadd.f32 0.0, %v505
  %507 = vmatprep.mubr.bf16.mxu0 0
  %508 = vmatmul.mubr.bf16.gmra.mrb[0].mxu0 %v331
  %v509 = vpop.f32.mrb[0].mxu0
  %v510 = vadd.f32 0.0, %v509
  %v511 = vpop.f32.mrb[0].mxu0
  %v512 = vadd.f32 0.0, %v511
  %v513 = vpop.f32.mrb[0].mxu0
  %v514 = vadd.f32 0.0, %v513
  %v515 = vpop.f32.mrb[0].mxu0
  %v516 = vadd.f32 0.0, %v515
  %517 = vmatprep.mubr.bf16.mxu0 0
  %518 = vmatmul.mubr.bf16.gmra.mrb[0].mxu0 %v334
  %v519 = vpop.f32.mrb[0].mxu0
  %v520 = vadd.f32 0.0, %v519
  %v521 = vpop.f32.mrb[0].mxu0
  %v522 = vadd.f32 0.0, %v521
  %v523 = vpop.f32.mrb[0].mxu0
  %v524 = vadd.f32 0.0, %v523
  %v525 = vpop.f32.mrb[0].mxu0
  %v526 = vadd.f32 0.0, %v525
  %527 = vmatprep.mubr.bf16.mxu0 0
  %528 = vmatmul.mubr.bf16.gmra.mrb[0].mxu0 %v337
  %v529 = vpop.f32.mrb[0].mxu0
  %v530 = vadd.f32 0.0, %v529
  %v531 = vpop.f32.mrb[0].mxu0
  %v532 = vadd.f32 0.0, %v531
  %v533 = vpop.f32.mrb[0].mxu0
  %v534 = vadd.f32 0.0, %v533
  %v535 = vpop.f32.mrb[0].mxu0
  %v536 = vadd.f32 0.0, %v535
  %537 = vmatprep.mubr.bf16.mxu0 0
  %538 = vmatmul.mubr.bf16.gmra.mrb[0].mxu0 %v340
  %v539 = vpop.f32.mrb[0].mxu0
  %v540 = vadd.f32 0.0, %v539
  %v541 = vpop.f32.mrb[0].mxu0
  %v542 = vadd.f32 0.0, %v541
  %v543 = vpop.f32.mrb[0].mxu0
  %v544 = vadd.f32 0.0, %v543
  %v545 = vpop.f32.mrb[0].mxu0
  %v546 = vadd.f32 0.0, %v545
  %547 = vmatprep.mubr.bf16.mxu0 0
  %548 = vmatmul.mubr.bf16.gmra.mrb[0].mxu0 %v343
  %v549 = vpop.f32.mrb[0].mxu0
  %v550 = vadd.f32 0.0, %v549
  %v551 = vpop.f32.mrb[0].mxu0
  %v552 = vadd.f32 0.0, %v551
  %v553 = vpop.f32.mrb[0].mxu0
  %v554 = vadd.f32 0.0, %v553
  %v555 = vpop.f32.mrb[0].mxu0
  %v556 = vadd.f32 0.0, %v555
  %557 = vmatprep.mubr.bf16.mxu0 0
  %558 = vmatmul.mubr.bf16.gmra.mrb[0].mxu0 %v346
  %v559 = vpop.f32.mrb[0].mxu0
  %v560 = vadd.f32 0.0, %v559
  %v561 = vpop.f32.mrb[0].mxu0
  %v562 = vadd.f32 0.0, %v561
  %v563 = vpop.f32.mrb[0].mxu0
  %v564 = vadd.f32 0.0, %v563
  %v565 = vpop.f32.mrb[0].mxu0
  %v566 = vadd.f32 0.0, %v565
  %567 = vmatprep.mubr.bf16.mxu0 0
  %568 = vmatmul.mubr.bf16.gmra.mrb[0].mxu0 %v349
  %v569 = vpop.f32.mrb[0].mxu0
  %v570 = vadd.f32 0.0, %v569
  %v571 = vpop.f32.mrb[0].mxu0
  %v572 = vadd.f32 0.0, %v571
  %v573 = vpop.f32.mrb[0].mxu0
  %v574 = vadd.f32 0.0, %v573
  %v575 = vpop.f32.mrb[0].mxu0
  %v576 = vadd.f32 0.0, %v575
  %577 = vmatprep.mubr.bf16.mxu0 0
  %578 = vmatmul.mubr.bf16.gmra.mrb[0].mxu0 %v352
  %v579 = vpop.f32.mrb[0].mxu0
  %v580 = vadd.f32 0.0, %v579
  %v581 = vpop.f32.mrb[0].mxu0
  %v582 = vadd.f32 0.0, %v581
  %v583 = vpop.f32.mrb[0].mxu0
  %v584 = vadd.f32 0.0, %v583
  %v585 = vpop.f32.mrb[0].mxu0
  %v586 = vadd.f32 0.0, %v585
  %587 = vmatprep.mubr.bf16.mxu0 0
  %588 = vmatmul.mubr.bf16.gmra.mrb[0].mxu0 %v355
  %v589 = vpop.f32.mrb[0].mxu0
  %v590 = vadd.f32 0.0, %v589
  %v591 = vpop.f32.mrb[0].mxu0
  %v592 = vadd.f32 0.0, %v591
  %v593 = vpop.f32.mrb[0].mxu0
  %v594 = vadd.f32 0.0, %v593
  %v595 = vpop.f32.mrb[0].mxu0
  %v596 = vadd.f32 0.0, %v595
  %597 = vmatprep.mubr.bf16.mxu0 0
  %598 = vmatmul.mubr.bf16.gmra.mrb[0].mxu0 %v358
  %v599 = vpop.f32.mrb[0].mxu0
  %v600 = vadd.f32 0.0, %v599
  %v601 = vpop.f32.mrb[0].mxu0
  %v602 = vadd.f32 0.0, %v601
  %v603 = vpop.f32.mrb[0].mxu0
  %v604 = vadd.f32 0.0, %v603
  %v605 = vpop.f32.mrb[0].mxu0
  %v606 = vadd.f32 0.0, %v605
  %607 = vmatprep.mubr.bf16.mxu0 0
  %608 = vmatmul.mubr.bf16.gmra.mrb[0].mxu0 %v361
  %v609 = vpop.f32.mrb[0].mxu0
  %v610 = vadd.f32 0.0, %v609
  %v611 = vpop.f32.mrb[0].mxu0
  %v612 = vadd.f32 0.0, %v611
  %v613 = vpop.f32.mrb[0].mxu0
  %v614 = vadd.f32 0.0, %v613
  %v615 = vpop.f32.mrb[0].mxu0
  %v616 = vadd.f32 0.0, %v615
  %617 = vmatprep.mubr.bf16.mxu0 0
  %618 = vmatmul.mubr.bf16.gmra.mrb[0].mxu0 %v364
  %v619 = vpop.f32.mrb[0].mxu0
  %v620 = vadd.f32 0.0, %v619
  %v621 = vpop.f32.mrb[0].mxu0
  %v622 = vadd.f32 0.0, %v621
  %v623 = vpop.f32.mrb[0].mxu0
  %v624 = vadd.f32 0.0, %v623
  %v625 = vpop.f32.mrb[0].mxu0
  %v626 = vadd.f32 0.0, %v625
  %627 = vmatprep.mubr.bf16.mxu0 0
  %628 = vmatmul.mubr.bf16.gmra.mrb[0].mxu0 %v367
  %v629 = vpop.f32.mrb[0].mxu0
  %v630 = vadd.f32 0.0, %v629
  %v631 = vpop.f32.mrb[0].mxu0
  %v632 = vadd.f32 0.0, %v631
  %v633 = vpop.f32.mrb[0].mxu0
  %v634 = vadd.f32 0.0, %v633
  %v635 = vpop.f32.mrb[0].mxu0
  %v636 = vadd.f32 0.0, %v635
  %637 = vmatprep.mubr.bf16.mxu0 0
  %638 = vmatmul.mubr.bf16.gmra.mrb[0].mxu0 %v370
  %v639 = vpop.f32.mrb[0].mxu0
  %v640 = vadd.f32 0.0, %v639
  %v641 = vpop.f32.mrb[0].mxu0
  %v642 = vadd.f32 0.0, %v641
  %v643 = vpop.f32.mrb[0].mxu0
  %v644 = vadd.f32 0.0, %v643
  %v645 = vpop.f32.mrb[0].mxu0
  %v646 = vadd.f32 0.0, %v645
  %647 = vmatprep.mubr.bf16.mxu0 0
  %648 = vmatmul.mubr.bf16.gmra.mrb[0].mxu0 %v373
  %v649 = vpop.f32.mrb[0].mxu0
  %v650 = vadd.f32 0.0, %v649
  %v651 = vpop.f32.mrb[0].mxu0
  %v652 = vadd.f32 0.0, %v651
  %v653 = vpop.f32.mrb[0].mxu0
  %v654 = vadd.f32 0.0, %v653
  %v655 = vpop.f32.mrb[0].mxu0
  %v656 = vadd.f32 0.0, %v655
  %657 = vmatprep.mubr.bf16.mxu0 0
  %658 = vmatmul.mubr.bf16.gmra.mrb[0].mxu0 %v376
  %v659 = vpop.f32.mrb[0].mxu0
  %v660 = vadd.f32 0.0, %v659
  %v661 = vpop.f32.mrb[0].mxu0
  %v662 = vadd.f32 0.0, %v661
  %v663 = vpop.f32.mrb[0].mxu0
  %v664 = vadd.f32 0.0, %v663
  %v665 = vpop.f32.mrb[0].mxu0
  %v666 = vadd.f32 0.0, %v665
  %667 = vmatprep.mubr.bf16.mxu0 0
  %668 = vmatmul.mubr.bf16.gmra.mrb[0].mxu0 %v379
  %v669 = vpop.f32.mrb[0].mxu0
  %v670 = vadd.f32 0.0, %v669
  %v671 = vpop.f32.mrb[0].mxu0
  %v672 = vadd.f32 0.0, %v671
  %v673 = vpop.f32.mrb[0].mxu0
  %v674 = vadd.f32 0.0, %v673
  %v675 = vpop.f32.mrb[0].mxu0
  %v676 = vadd.f32 0.0, %v675
  %677 = vmatprep.mubr.bf16.mxu0 0
  %678 = vmatmul.mubr.bf16.gmra.mrb[0].mxu0 %v382
  %v679 = vpop.f32.mrb[0].mxu0
  %v680 = vadd.f32 0.0, %v679
  %v681 = vpop.f32.mrb[0].mxu0
  %v682 = vadd.f32 0.0, %v681
  %v683 = vpop.f32.mrb[0].mxu0
  %v684 = vadd.f32 0.0, %v683
  %v685 = vpop.f32.mrb[0].mxu0
  %v686 = vadd.f32 0.0, %v685
  %687 = vmatprep.mubr.bf16.mxu0 0
  %688 = vmatmul.mubr.bf16.gmra.mrb[0].mxu0 %v385
  %v689 = vpop.f32.mrb[0].mxu0
  %v690 = vadd.f32 0.0, %v689
  %v691 = vpop.f32.mrb[0].mxu0
  %v692 = vadd.f32 0.0, %v691
  %v693 = vpop.f32.mrb[0].mxu0
  %v694 = vadd.f32 0.0, %v693
  %v695 = vpop.f32.mrb[0].mxu0
  %v696 = vadd.f32 0.0, %v695
  %697 = vmatprep.mubr.bf16.mxu0 0
  %698 = vmatmul.mubr.bf16.gmra.mrb[0].mxu0 %v388
  %v699 = vpop.f32.mrb[0].mxu0
  %v700 = vadd.f32 0.0, %v699
  %v701 = vpop.f32.mrb[0].mxu0
  %v702 = vadd.f32 0.0, %v701
  %v703 = vpop.f32.mrb[0].mxu0
  %v704 = vadd.f32 0.0, %v703
  %v705 = vpop.f32.mrb[0].mxu0
  %v706 = vadd.f32 0.0, %v705
  %707 = vmatprep.mubr.bf16.mxu0 0
  %708 = vmatmul.mubr.bf16.gmra.mrb[0].mxu0 %v391
  %v709 = vpop.f32.mrb[0].mxu0
  %v710 = vadd.f32 0.0, %v709
  %v711 = vpop.f32.mrb[0].mxu0
  %v712 = vadd.f32 0.0, %v711
  %v713 = vpop.f32.mrb[0].mxu0
  %v714 = vadd.f32 0.0, %v713
  %v715 = vpop.f32.mrb[0].mxu0
  %v716 = vadd.f32 0.0, %v715
  %717 = vmatprep.mubr.bf16.mxu0 0
  %718 = vmatmul.mubr.bf16.gmra.mrb[0].mxu0 %v394
  %v719 = vpop.f32.mrb[0].mxu0
  %v720 = vadd.f32 0.0, %v719
  %v721 = vpop.f32.mrb[0].mxu0
  %v722 = vadd.f32 0.0, %v721
  %v723 = vpop.f32.mrb[0].mxu0
  %v724 = vadd.f32 0.0, %v723
  %v725 = vpop.f32.mrb[0].mxu0
  %v726 = vadd.f32 0.0, %v725
  %727 = vmatprep.mubr.bf16.mxu0 0
  %728 = vmatmul.mubr.bf16.gmra.mrb[0].mxu0 %v397
  %v729 = vpop.f32.mrb[0].mxu0
  %v730 = vadd.f32 0.0, %v729
  %v731 = vpop.f32.mrb[0].mxu0
  %v732 = vadd.f32 0.0, %v731
  %v733 = vpop.f32.mrb[0].mxu0
  %v734 = vadd.f32 0.0, %v733
  %v735 = vpop.f32.mrb[0].mxu0
  %v736 = vadd.f32 0.0, %v735
  %737 = vmatprep.mubr.bf16.mxu0 0
  %738 = vmatmul.mubr.bf16.gmra.mrb[0].mxu0 %v400
  %v739 = vpop.f32.mrb[0].mxu0
  %v740 = vadd.f32 0.0, %v739
  %v741 = vpop.f32.mrb[0].mxu0
  %v742 = vadd.f32 0.0, %v741
  %v743 = vpop.f32.mrb[0].mxu0
  %v744 = vadd.f32 0.0, %v743
  %v745 = vpop.f32.mrb[0].mxu0
  %v746 = vadd.f32 0.0, %v745
  %747 = vmatprep.mubr.bf16.mxu0 0
  %748 = vmatmul.mubr.bf16.gmra.mrb[0].mxu0 %v403
  %v749 = vpop.f32.mrb[0].mxu0
  %v750 = vadd.f32 0.0, %v749
  %v751 = vpop.f32.mrb[0].mxu0
  %v752 = vadd.f32 0.0, %v751
  %v753 = vpop.f32.mrb[0].mxu0
  %v754 = vadd.f32 0.0, %v753
  %v755 = vpop.f32.mrb[0].mxu0
  %v756 = vadd.f32 0.0, %v755
  %757 = vdwg.mxu0
  %v758 = vld [vmem:[%s5] ss:$8 sm:$0x3]
  %v760 = vlaneseq
  %v761 = vshrl.u32 %v760, 7
  %v762 = vsub.s32 0, %v761
  %v763 = vrot.slane %v758, %v762
  %v764 = vlaneseq
  %v765 = vshrl.u32 %v764, 7
  %v766 = vsub.s32 1, %v765
  %v767 = vrot.slane %v758, %v766
  %v770 = vmul.f32 %v440, %v763
  %v771 = vmul.f32 %v442, %v767
  %v772 = vmul.f32 %v444, %v763
  %v773 = vmul.f32 %v446, %v767
  %v774 = vmul.f32 %v450, %v763
  %v775 = vmul.f32 %v452, %v767
  %v776 = vmul.f32 %v454, %v763
  %v777 = vmul.f32 %v456, %v767
  %v778 = vmul.f32 %v460, %v763
  %v779 = vmul.f32 %v462, %v767
  %v780 = vmul.f32 %v464, %v763
  %v781 = vmul.f32 %v466, %v767
  %v782 = vmul.f32 %v470, %v763
  %v783 = vmul.f32 %v472, %v767
  %v784 = vmul.f32 %v474, %v763
  %v785 = vmul.f32 %v476, %v767
  %v786 = vmul.f32 %v480, %v763
  %v787 = vmul.f32 %v482, %v767
  %v788 = vmul.f32 %v484, %v763
  %v789 = vmul.f32 %v486, %v767
  %v790 = vmul.f32 %v490, %v763
  %v791 = vmul.f32 %v492, %v767
  %v792 = vmul.f32 %v494, %v763
  %v793 = vmul.f32 %v496, %v767
  %v794 = vmul.f32 %v500, %v763
  %v795 = vmul.f32 %v502, %v767
  %v796 = vmul.f32 %v504, %v763
  %v797 = vmul.f32 %v506, %v767
  %v798 = vmul.f32 %v510, %v763
  %v799 = vmul.f32 %v512, %v767
  %v800 = vmul.f32 %v514, %v763
  %v801 = vmul.f32 %v516, %v767
  %v802 = vmul.f32 %v520, %v763
  %v803 = vmul.f32 %v522, %v767
  %v804 = vmul.f32 %v524, %v763
  %v805 = vmul.f32 %v526, %v767
  %v806 = vmul.f32 %v530, %v763
  %v807 = vmul.f32 %v532, %v767
  %v808 = vmul.f32 %v534, %v763
  %v809 = vmul.f32 %v536, %v767
  %v810 = vmul.f32 %v540, %v763
  %v811 = vmul.f32 %v542, %v767
  %v812 = vmul.f32 %v544, %v763
  %v813 = vmul.f32 %v546, %v767
  %v814 = vmul.f32 %v550, %v763
  %v815 = vmul.f32 %v552, %v767
  %v816 = vmul.f32 %v554, %v763
  %v817 = vmul.f32 %v556, %v767
  %v818 = vmul.f32 %v560, %v763
  %v819 = vmul.f32 %v562, %v767
  %v820 = vmul.f32 %v564, %v763
  %v821 = vmul.f32 %v566, %v767
  %v822 = vmul.f32 %v570, %v763
  %v823 = vmul.f32 %v572, %v767
  %v824 = vmul.f32 %v574, %v763
  %v825 = vmul.f32 %v576, %v767
  %v826 = vmul.f32 %v580, %v763
  %v827 = vmul.f32 %v582, %v767
  %v828 = vmul.f32 %v584, %v763
  %v829 = vmul.f32 %v586, %v767
  %v830 = vmul.f32 %v590, %v763
  %v831 = vmul.f32 %v592, %v767
  %v832 = vmul.f32 %v594, %v763
  %v833 = vmul.f32 %v596, %v767
  %v834 = vmul.f32 %v600, %v763
  %v835 = vmul.f32 %v602, %v767
  %v836 = vmul.f32 %v604, %v763
  %v837 = vmul.f32 %v606, %v767
  %v838 = vmul.f32 %v610, %v763
  %v839 = vmul.f32 %v612, %v767
  %v840 = vmul.f32 %v614, %v763
  %v841 = vmul.f32 %v616, %v767
  %v842 = vmul.f32 %v620, %v763
  %v843 = vmul.f32 %v622, %v767
  %v844 = vmul.f32 %v624, %v763
  %v845 = vmul.f32 %v626, %v767
  %v846 = vmul.f32 %v630, %v763
  %v847 = vmul.f32 %v632, %v767
  %v848 = vmul.f32 %v634, %v763
  %v849 = vmul.f32 %v636, %v767
  %v850 = vmul.f32 %v640, %v763
  %v851 = vmul.f32 %v642, %v767
  %v852 = vmul.f32 %v644, %v763
  %v853 = vmul.f32 %v646, %v767
  %v854 = vmul.f32 %v650, %v763
  %v855 = vmul.f32 %v652, %v767
  %v856 = vmul.f32 %v654, %v763
  %v857 = vmul.f32 %v656, %v767
  %v858 = vmul.f32 %v660, %v763
  %v859 = vmul.f32 %v662, %v767
  %v860 = vmul.f32 %v664, %v763
  %v861 = vmul.f32 %v666, %v767
  %v862 = vmul.f32 %v670, %v763
  %v863 = vmul.f32 %v672, %v767
  %v864 = vmul.f32 %v674, %v763
  %v865 = vmul.f32 %v676, %v767
  %v866 = vmul.f32 %v680, %v763
  %v867 = vmul.f32 %v682, %v767
  %v868 = vmul.f32 %v684, %v763
  %v869 = vmul.f32 %v686, %v767
  %v870 = vmul.f32 %v690, %v763
  %v871 = vmul.f32 %v692, %v767
  %v872 = vmul.f32 %v694, %v763
  %v873 = vmul.f32 %v696, %v767
  %v874 = vmul.f32 %v700, %v763
  %v875 = vmul.f32 %v702, %v767
  %v876 = vmul.f32 %v704, %v763
  %v877 = vmul.f32 %v706, %v767
  %v878 = vmul.f32 %v710, %v763
  %v879 = vmul.f32 %v712, %v767
  %v880 = vmul.f32 %v714, %v763
  %v881 = vmul.f32 %v716, %v767
  %v882 = vmul.f32 %v720, %v763
  %v883 = vmul.f32 %v722, %v767
  %v884 = vmul.f32 %v724, %v763
  %v885 = vmul.f32 %v726, %v767
  %v886 = vmul.f32 %v730, %v763
  %v887 = vmul.f32 %v732, %v767
  %v888 = vmul.f32 %v734, %v763
  %v889 = vmul.f32 %v736, %v767
  %v890 = vmul.f32 %v740, %v763
  %v891 = vmul.f32 %v742, %v767
  %v892 = vmul.f32 %v744, %v763
  %v893 = vmul.f32 %v746, %v767
  %v894 = vmul.f32 %v750, %v763
  %v895 = vmul.f32 %v752, %v767
  %v896 = vmul.f32 %v754, %v763
  %v897 = vmul.f32 %v756, %v767
  %s898 = scalar_lea.vmem %s5, 1
  %v899 = vld [vmem:[%s898] ss:$8 sm:$0x3]
  %v901 = vlaneseq
  %v902 = vshrl.u32 %v901, 7
  %v903 = vsub.s32 0, %v902
  %v904 = vrot.slane %v899, %v903
  %v905 = vlaneseq
  %v906 = vshrl.u32 %v905, 7
  %v907 = vsub.s32 1, %v906
  %v908 = vrot.slane %v899, %v907
  %v911 = vadd.f32 %v770, %v904
  %v912 = vadd.f32 %v771, %v908
  %v913 = vadd.f32 %v772, %v904
  %v914 = vadd.f32 %v773, %v908
  %v915 = vadd.f32 %v774, %v904
  %v916 = vadd.f32 %v775, %v908
  %v917 = vadd.f32 %v776, %v904
  %v918 = vadd.f32 %v777, %v908
  %v919 = vadd.f32 %v778, %v904
  %v920 = vadd.f32 %v779, %v908
  %v921 = vadd.f32 %v780, %v904
  %v922 = vadd.f32 %v781, %v908
  %v923 = vadd.f32 %v782, %v904
  %v924 = vadd.f32 %v783, %v908
  %v925 = vadd.f32 %v784, %v904
  %v926 = vadd.f32 %v785, %v908
  %v927 = vadd.f32 %v786, %v904
  %v928 = vadd.f32 %v787, %v908
  %v929 = vadd.f32 %v788, %v904
  %v930 = vadd.f32 %v789, %v908
  %v931 = vadd.f32 %v790, %v904
  %v932 = vadd.f32 %v791, %v908
  %v933 = vadd.f32 %v792, %v904
  %v934 = vadd.f32 %v793, %v908
  %v935 = vadd.f32 %v794, %v904
  %v936 = vadd.f32 %v795, %v908
  %v937 = vadd.f32 %v796, %v904
  %v938 = vadd.f32 %v797, %v908
  %v939 = vadd.f32 %v798, %v904
  %v940 = vadd.f32 %v799, %v908
  %v941 = vadd.f32 %v800, %v904
  %v942 = vadd.f32 %v801, %v908
  %v943 = vadd.f32 %v802, %v904
  %v944 = vadd.f32 %v803, %v908
  %v945 = vadd.f32 %v804, %v904
  %v946 = vadd.f32 %v805, %v908
  %v947 = vadd.f32 %v806, %v904
  %v948 = vadd.f32 %v807, %v908
  %v949 = vadd.f32 %v808, %v904
  %v950 = vadd.f32 %v809, %v908
  %v951 = vadd.f32 %v810, %v904
  %v952 = vadd.f32 %v811, %v908
  %v953 = vadd.f32 %v812, %v904
  %v954 = vadd.f32 %v813, %v908
  %v955 = vadd.f32 %v814, %v904
  %v956 = vadd.f32 %v815, %v908
  %v957 = vadd.f32 %v816, %v904
  %v958 = vadd.f32 %v817, %v908
  %v959 = vadd.f32 %v818, %v904
  %v960 = vadd.f32 %v819, %v908
  %v961 = vadd.f32 %v820, %v904
  %v962 = vadd.f32 %v821, %v908
  %v963 = vadd.f32 %v822, %v904
  %v964 = vadd.f32 %v823, %v908
  %v965 = vadd.f32 %v824, %v904
  %v966 = vadd.f32 %v825, %v908
  %v967 = vadd.f32 %v826, %v904
  %v968 = vadd.f32 %v827, %v908
  %v969 = vadd.f32 %v828, %v904
  %v970 = vadd.f32 %v829, %v908
  %v971 = vadd.f32 %v830, %v904
  %v972 = vadd.f32 %v831, %v908
  %v973 = vadd.f32 %v832, %v904
  %v974 = vadd.f32 %v833, %v908
  %v975 = vadd.f32 %v834, %v904
  %v976 = vadd.f32 %v835, %v908
  %v977 = vadd.f32 %v836, %v904
  %v978 = vadd.f32 %v837, %v908
  %v979 = vadd.f32 %v838, %v904
  %v980 = vadd.f32 %v839, %v908
  %v981 = vadd.f32 %v840, %v904
  %v982 = vadd.f32 %v841, %v908
  %v983 = vadd.f32 %v842, %v904
  %v984 = vadd.f32 %v843, %v908
  %v985 = vadd.f32 %v844, %v904
  %v986 = vadd.f32 %v845, %v908
  %v987 = vadd.f32 %v846, %v904
  %v988 = vadd.f32 %v847, %v908
  %v989 = vadd.f32 %v848, %v904
  %v990 = vadd.f32 %v849, %v908
  %v991 = vadd.f32 %v850, %v904
  %v992 = vadd.f32 %v851, %v908
  %v993 = vadd.f32 %v852, %v904
  %v994 = vadd.f32 %v853, %v908
  %v995 = vadd.f32 %v854, %v904
  %v996 = vadd.f32 %v855, %v908
  %v997 = vadd.f32 %v856, %v904
  %v998 = vadd.f32 %v857, %v908
  %v999 = vadd.f32 %v858, %v904
  %v1000 = vadd.f32 %v859, %v908
  %v1001 = vadd.f32 %v860, %v904
  %v1002 = vadd.f32 %v861, %v908
  %v1003 = vadd.f32 %v862, %v904
  %v1004 = vadd.f32 %v863, %v908
  %v1005 = vadd.f32 %v864, %v904
  %v1006 = vadd.f32 %v865, %v908
  %v1007 = vadd.f32 %v866, %v904
  %v1008 = vadd.f32 %v867, %v908
  %v1009 = vadd.f32 %v868, %v904
  %v1010 = vadd.f32 %v869, %v908
  %v1011 = vadd.f32 %v870, %v904
  %v1012 = vadd.f32 %v871, %v908
  %v1013 = vadd.f32 %v872, %v904
  %v1014 = vadd.f32 %v873, %v908
  %v1015 = vadd.f32 %v874, %v904
  %v1016 = vadd.f32 %v875, %v908
  %v1017 = vadd.f32 %v876, %v904
  %v1018 = vadd.f32 %v877, %v908
  %v1019 = vadd.f32 %v878, %v904
  %v1020 = vadd.f32 %v879, %v908
  %v1021 = vadd.f32 %v880, %v904
  %v1022 = vadd.f32 %v881, %v908
  %v1023 = vadd.f32 %v882, %v904
  %v1024 = vadd.f32 %v883, %v908
  %v1025 = vadd.f32 %v884, %v904
  %v1026 = vadd.f32 %v885, %v908
  %v1027 = vadd.f32 %v886, %v904
  %v1028 = vadd.f32 %v887, %v908
  %v1029 = vadd.f32 %v888, %v904
  %v1030 = vadd.f32 %v889, %v908
  %v1031 = vadd.f32 %v890, %v904
  %v1032 = vadd.f32 %v891, %v908
  %v1033 = vadd.f32 %v892, %v904
  %v1034 = vadd.f32 %v893, %v908
  %v1035 = vadd.f32 %v894, %v904
  %v1036 = vadd.f32 %v895, %v908
  %v1037 = vadd.f32 %v896, %v904
  %v1038 = vadd.f32 %v897, %v908
  %v1039 = vmax.f32 %v911, 0.0
  %v1040 = vmax.f32 %v912, 0.0
  %v1041 = vmax.f32 %v913, 0.0
  %v1042 = vmax.f32 %v914, 0.0
  %v1043 = vmax.f32 %v915, 0.0
  %v1044 = vmax.f32 %v916, 0.0
  %v1045 = vmax.f32 %v917, 0.0
  %v1046 = vmax.f32 %v918, 0.0
  %v1047 = vmax.f32 %v919, 0.0
  %v1048 = vmax.f32 %v920, 0.0
  %v1049 = vmax.f32 %v921, 0.0
  %v1050 = vmax.f32 %v922, 0.0
  %v1051 = vmax.f32 %v923, 0.0
  %v1052 = vmax.f32 %v924, 0.0
  %v1053 = vmax.f32 %v925, 0.0
  %v1054 = vmax.f32 %v926, 0.0
  %v1055 = vmax.f32 %v927, 0.0
  %v1056 = vmax.f32 %v928, 0.0
  %v1057 = vmax.f32 %v929, 0.0
  %v1058 = vmax.f32 %v930, 0.0
  %v1059 = vmax.f32 %v931, 0.0
  %v1060 = vmax.f32 %v932, 0.0
  %v1061 = vmax.f32 %v933, 0.0
  %v1062 = vmax.f32 %v934, 0.0
  %v1063 = vmax.f32 %v935, 0.0
  %v1064 = vmax.f32 %v936, 0.0
  %v1065 = vmax.f32 %v937, 0.0
  %v1066 = vmax.f32 %v938, 0.0
  %v1067 = vmax.f32 %v939, 0.0
  %v1068 = vmax.f32 %v940, 0.0
  %v1069 = vmax.f32 %v941, 0.0
  %v1070 = vmax.f32 %v942, 0.0
  %v1071 = vmax.f32 %v943, 0.0
  %v1072 = vmax.f32 %v944, 0.0
  %v1073 = vmax.f32 %v945, 0.0
  %v1074 = vmax.f32 %v946, 0.0
  %v1075 = vmax.f32 %v947, 0.0
  %v1076 = vmax.f32 %v948, 0.0
  %v1077 = vmax.f32 %v949, 0.0
  %v1078 = vmax.f32 %v950, 0.0
  %v1079 = vmax.f32 %v951, 0.0
  %v1080 = vmax.f32 %v952, 0.0
  %v1081 = vmax.f32 %v953, 0.0
  %v1082 = vmax.f32 %v954, 0.0
  %v1083 = vmax.f32 %v955, 0.0
  %v1084 = vmax.f32 %v956, 0.0
  %v1085 = vmax.f32 %v957, 0.0
  %v1086 = vmax.f32 %v958, 0.0
  %v1087 = vmax.f32 %v959, 0.0
  %v1088 = vmax.f32 %v960, 0.0
  %v1089 = vmax.f32 %v961, 0.0
  %v1090 = vmax.f32 %v962, 0.0
  %v1091 = vmax.f32 %v963, 0.0
  %v1092 = vmax.f32 %v964, 0.0
  %v1093 = vmax.f32 %v965, 0.0
  %v1094 = vmax.f32 %v966, 0.0
  %v1095 = vmax.f32 %v967, 0.0
  %v1096 = vmax.f32 %v968, 0.0
  %v1097 = vmax.f32 %v969, 0.0
  %v1098 = vmax.f32 %v970, 0.0
  %v1099 = vmax.f32 %v971, 0.0
  %v1100 = vmax.f32 %v972, 0.0
  %v1101 = vmax.f32 %v973, 0.0
  %v1102 = vmax.f32 %v974, 0.0
  %v1103 = vmax.f32 %v975, 0.0
  %v1104 = vmax.f32 %v976, 0.0
  %v1105 = vmax.f32 %v977, 0.0
  %v1106 = vmax.f32 %v978, 0.0
  %v1107 = vmax.f32 %v979, 0.0
  %v1108 = vmax.f32 %v980, 0.0
  %v1109 = vmax.f32 %v981, 0.0
  %v1110 = vmax.f32 %v982, 0.0
  %v1111 = vmax.f32 %v983, 0.0
  %v1112 = vmax.f32 %v984, 0.0
  %v1113 = vmax.f32 %v985, 0.0
  %v1114 = vmax.f32 %v986, 0.0
  %v1115 = vmax.f32 %v987, 0.0
  %v1116 = vmax.f32 %v988, 0.0
  %v1117 = vmax.f32 %v989, 0.0
  %v1118 = vmax.f32 %v990, 0.0
  %v1119 = vmax.f32 %v991, 0.0
  %v1120 = vmax.f32 %v992, 0.0
  %v1121 = vmax.f32 %v993, 0.0
  %v1122 = vmax.f32 %v994, 0.0
  %v1123 = vmax.f32 %v995, 0.0
  %v1124 = vmax.f32 %v996, 0.0
  %v1125 = vmax.f32 %v997, 0.0
  %v1126 = vmax.f32 %v998, 0.0
  %v1127 = vmax.f32 %v999, 0.0
  %v1128 = vmax.f32 %v1000, 0.0
  %v1129 = vmax.f32 %v1001, 0.0
  %v1130 = vmax.f32 %v1002, 0.0
  %v1131 = vmax.f32 %v1003, 0.0
  %v1132 = vmax.f32 %v1004, 0.0
  %v1133 = vmax.f32 %v1005, 0.0
  %v1134 = vmax.f32 %v1006, 0.0
  %v1135 = vmax.f32 %v1007, 0.0
  %v1136 = vmax.f32 %v1008, 0.0
  %v1137 = vmax.f32 %v1009, 0.0
  %v1138 = vmax.f32 %v1010, 0.0
  %v1139 = vmax.f32 %v1011, 0.0
  %v1140 = vmax.f32 %v1012, 0.0
  %v1141 = vmax.f32 %v1013, 0.0
  %v1142 = vmax.f32 %v1014, 0.0
  %v1143 = vmax.f32 %v1015, 0.0
  %v1144 = vmax.f32 %v1016, 0.0
  %v1145 = vmax.f32 %v1017, 0.0
  %v1146 = vmax.f32 %v1018, 0.0
  %v1147 = vmax.f32 %v1019, 0.0
  %v1148 = vmax.f32 %v1020, 0.0
  %v1149 = vmax.f32 %v1021, 0.0
  %v1150 = vmax.f32 %v1022, 0.0
  %v1151 = vmax.f32 %v1023, 0.0
  %v1152 = vmax.f32 %v1024, 0.0
  %v1153 = vmax.f32 %v1025, 0.0
  %v1154 = vmax.f32 %v1026, 0.0
  %v1155 = vmax.f32 %v1027, 0.0
  %v1156 = vmax.f32 %v1028, 0.0
  %v1157 = vmax.f32 %v1029, 0.0
  %v1158 = vmax.f32 %v1030, 0.0
  %v1159 = vmax.f32 %v1031, 0.0
  %v1160 = vmax.f32 %v1032, 0.0
  %v1161 = vmax.f32 %v1033, 0.0
  %v1162 = vmax.f32 %v1034, 0.0
  %v1163 = vmax.f32 %v1035, 0.0
  %v1164 = vmax.f32 %v1036, 0.0
  %v1165 = vmax.f32 %v1037, 0.0
  %v1166 = vmax.f32 %v1038, 0.0
  %v1167 = vmax.f32 %v1039, %v1040
  %v1168 = vmax.f32 %v1041, %v1042
  %v1169 = vmax.f32 %v1043, %v1044
  %v1170 = vmax.f32 %v1045, %v1046
  %v1171 = vmax.f32 %v1047, %v1048
  %v1172 = vmax.f32 %v1049, %v1050
  %v1173 = vmax.f32 %v1051, %v1052
  %v1174 = vmax.f32 %v1053, %v1054
  %v1175 = vmax.f32 %v1055, %v1056
  %v1176 = vmax.f32 %v1057, %v1058
  %v1177 = vmax.f32 %v1059, %v1060
  %v1178 = vmax.f32 %v1061, %v1062
  %v1179 = vmax.f32 %v1063, %v1064
  %v1180 = vmax.f32 %v1065, %v1066
  %v1181 = vmax.f32 %v1067, %v1068
  %v1182 = vmax.f32 %v1069, %v1070
  %v1183 = vmax.f32 %v1071, %v1072
  %v1184 = vmax.f32 %v1073, %v1074
  %v1185 = vmax.f32 %v1075, %v1076
  %v1186 = vmax.f32 %v1077, %v1078
  %v1187 = vmax.f32 %v1079, %v1080
  %v1188 = vmax.f32 %v1081, %v1082
  %v1189 = vmax.f32 %v1083, %v1084
  %v1190 = vmax.f32 %v1085, %v1086
  %v1191 = vmax.f32 %v1087, %v1088
  %v1192 = vmax.f32 %v1089, %v1090
  %v1193 = vmax.f32 %v1091, %v1092
  %v1194 = vmax.f32 %v1093, %v1094
  %v1195 = vmax.f32 %v1095, %v1096
  %v1196 = vmax.f32 %v1097, %v1098
  %v1197 = vmax.f32 %v1099, %v1100
  %v1198 = vmax.f32 %v1101, %v1102
  %v1199 = vmax.f32 %v1103, %v1104
  %v1200 = vmax.f32 %v1105, %v1106
  %v1201 = vmax.f32 %v1107, %v1108
  %v1202 = vmax.f32 %v1109, %v1110
  %v1203 = vmax.f32 %v1111, %v1112
  %v1204 = vmax.f32 %v1113, %v1114
  %v1205 = vmax.f32 %v1115, %v1116
  %v1206 = vmax.f32 %v1117, %v1118
  %v1207 = vmax.f32 %v1119, %v1120
  %v1208 = vmax.f32 %v1121, %v1122
  %v1209 = vmax.f32 %v1123, %v1124
  %v1210 = vmax.f32 %v1125, %v1126
  %v1211 = vmax.f32 %v1127, %v1128
  %v1212 = vmax.f32 %v1129, %v1130
  %v1213 = vmax.f32 %v1131, %v1132
  %v1214 = vmax.f32 %v1133, %v1134
  %v1215 = vmax.f32 %v1135, %v1136
  %v1216 = vmax.f32 %v1137, %v1138
  %v1217 = vmax.f32 %v1139, %v1140
  %v1218 = vmax.f32 %v1141, %v1142
  %v1219 = vmax.f32 %v1143, %v1144
  %v1220 = vmax.f32 %v1145, %v1146
  %v1221 = vmax.f32 %v1147, %v1148
  %v1222 = vmax.f32 %v1149, %v1150
  %v1223 = vmax.f32 %v1151, %v1152
  %v1224 = vmax.f32 %v1153, %v1154
  %v1225 = vmax.f32 %v1155, %v1156
  %v1226 = vmax.f32 %v1157, %v1158
  %v1227 = vmax.f32 %v1159, %v1160
  %v1228 = vmax.f32 %v1161, %v1162
  %v1229 = vmax.f32 %v1163, %v1164
  %v1230 = vmax.f32 %v1165, %v1166
  %v1231 = vpack.c.bf16 %v1168, %v1167
  %v1232 = vpack.c.bf16 %v1170, %v1169
  %v1233 = vpack.c.bf16 %v1172, %v1171
  %v1234 = vpack.c.bf16 %v1174, %v1173
  %v1235 = vpack.c.bf16 %v1176, %v1175
  %v1236 = vpack.c.bf16 %v1178, %v1177
  %v1237 = vpack.c.bf16 %v1180, %v1179
  %v1238 = vpack.c.bf16 %v1182, %v1181
  %v1239 = vpack.c.bf16 %v1184, %v1183
  %v1240 = vpack.c.bf16 %v1186, %v1185
  %v1241 = vpack.c.bf16 %v1188, %v1187
  %v1242 = vpack.c.bf16 %v1190, %v1189
  %v1243 = vpack.c.bf16 %v1192, %v1191
  %v1244 = vpack.c.bf16 %v1194, %v1193
  %v1245 = vpack.c.bf16 %v1196, %v1195
  %v1246 = vpack.c.bf16 %v1198, %v1197
  %v1247 = vpack.c.bf16 %v1200, %v1199
  %v1248 = vpack.c.bf16 %v1202, %v1201
  %v1249 = vpack.c.bf16 %v1204, %v1203
  %v1250 = vpack.c.bf16 %v1206, %v1205
  %v1251 = vpack.c.bf16 %v1208, %v1207
  %v1252 = vpack.c.bf16 %v1210, %v1209
  %v1253 = vpack.c.bf16 %v1212, %v1211
  %v1254 = vpack.c.bf16 %v1214, %v1213
  %v1255 = vpack.c.bf16 %v1216, %v1215
  %v1256 = vpack.c.bf16 %v1218, %v1217
  %v1257 = vpack.c.bf16 %v1220, %v1219
  %v1258 = vpack.c.bf16 %v1222, %v1221
  %v1259 = vpack.c.bf16 %v1224, %v1223
  %v1260 = vpack.c.bf16 %v1226, %v1225
  %v1261 = vpack.c.bf16 %v1228, %v1227
  %v1262 = vpack.c.bf16 %v1230, %v1229
  %vm1263 = vsmask.f32 256
  %v1265 = vshrl.u32 %v1231, 16
  %v1267 = vrot.slane %v1265, 7
  %v1268 = vshll.u32 %v1231, 16
  %v1270 = vor.u32 %v1267, %v1268
  %v1272 = vshrl.u32 %v1232, 16
  %v1274 = vrot.slane %v1272, 7
  %v1275 = vshll.u32 %v1232, 16
  %v1277 = vor.u32 %v1274, %v1275
  %v1278 = vsel %vm1263, %v1267, %v1277
  %v1280 = vshrl.u32 %v1233, 16
  %v1282 = vrot.slane %v1280, 7
  %v1283 = vshll.u32 %v1233, 16
  %v1285 = vor.u32 %v1282, %v1283
  %v1286 = vsel %vm1263, %v1274, %v1285
  %v1288 = vshrl.u32 %v1234, 16
  %v1290 = vrot.slane %v1288, 7
  %v1291 = vshll.u32 %v1234, 16
  %v1293 = vor.u32 %v1290, %v1291
  %v1294 = vsel %vm1263, %v1282, %v1293
  %v1296 = vshrl.u32 %v1235, 16
  %v1298 = vrot.slane %v1296, 7
  %v1299 = vshll.u32 %v1235, 16
  %v1301 = vor.u32 %v1298, %v1299
  %v1303 = vshrl.u32 %v1236, 16
  %v1305 = vrot.slane %v1303, 7
  %v1306 = vshll.u32 %v1236, 16
  %v1308 = vor.u32 %v1305, %v1306
  %v1309 = vsel %vm1263, %v1298, %v1308
  %v1311 = vshrl.u32 %v1237, 16
  %v1313 = vrot.slane %v1311, 7
  %v1314 = vshll.u32 %v1237, 16
  %v1316 = vor.u32 %v1313, %v1314
  %v1317 = vsel %vm1263, %v1305, %v1316
  %v1319 = vshrl.u32 %v1238, 16
  %v1321 = vrot.slane %v1319, 7
  %v1322 = vshll.u32 %v1238, 16
  %v1324 = vor.u32 %v1321, %v1322
  %v1325 = vsel %vm1263, %v1313, %v1324
  %v1327 = vshrl.u32 %v1239, 16
  %v1329 = vrot.slane %v1327, 7
  %v1330 = vshll.u32 %v1239, 16
  %v1332 = vor.u32 %v1329, %v1330
  %v1334 = vshrl.u32 %v1240, 16
  %v1336 = vrot.slane %v1334, 7
  %v1337 = vshll.u32 %v1240, 16
  %v1339 = vor.u32 %v1336, %v1337
  %v1340 = vsel %vm1263, %v1329, %v1339
  %v1342 = vshrl.u32 %v1241, 16
  %v1344 = vrot.slane %v1342, 7
  %v1345 = vshll.u32 %v1241, 16
  %v1347 = vor.u32 %v1344, %v1345
  %v1348 = vsel %vm1263, %v1336, %v1347
  %v1350 = vshrl.u32 %v1242, 16
  %v1352 = vrot.slane %v1350, 7
  %v1353 = vshll.u32 %v1242, 16
  %v1355 = vor.u32 %v1352, %v1353
  %v1356 = vsel %vm1263, %v1344, %v1355
  %v1358 = vshrl.u32 %v1243, 16
  %v1360 = vrot.slane %v1358, 7
  %v1361 = vshll.u32 %v1243, 16
  %v1363 = vor.u32 %v1360, %v1361
  %v1365 = vshrl.u32 %v1244, 16
  %v1367 = vrot.slane %v1365, 7
  %v1368 = vshll.u32 %v1244, 16
  %v1370 = vor.u32 %v1367, %v1368
  %v1371 = vsel %vm1263, %v1360, %v1370
  %v1373 = vshrl.u32 %v1245, 16
  %v1375 = vrot.slane %v1373, 7
  %v1376 = vshll.u32 %v1245, 16
  %v1378 = vor.u32 %v1375, %v1376
  %v1379 = vsel %vm1263, %v1367, %v1378
  %v1381 = vshrl.u32 %v1246, 16
  %v1383 = vrot.slane %v1381, 7
  %v1384 = vshll.u32 %v1246, 16
  %v1386 = vor.u32 %v1383, %v1384
  %v1387 = vsel %vm1263, %v1375, %v1386
  %v1389 = vshrl.u32 %v1247, 16
  %v1391 = vrot.slane %v1389, 7
  %v1392 = vshll.u32 %v1247, 16
  %v1394 = vor.u32 %v1391, %v1392
  %v1396 = vshrl.u32 %v1248, 16
  %v1398 = vrot.slane %v1396, 7
  %v1399 = vshll.u32 %v1248, 16
  %v1401 = vor.u32 %v1398, %v1399
  %v1402 = vsel %vm1263, %v1391, %v1401
  %v1404 = vshrl.u32 %v1249, 16
  %v1406 = vrot.slane %v1404, 7
  %v1407 = vshll.u32 %v1249, 16
  %v1409 = vor.u32 %v1406, %v1407
  %v1410 = vsel %vm1263, %v1398, %v1409
  %v1412 = vshrl.u32 %v1250, 16
  %v1414 = vrot.slane %v1412, 7
  %v1415 = vshll.u32 %v1250, 16
  %v1417 = vor.u32 %v1414, %v1415
  %v1418 = vsel %vm1263, %v1406, %v1417
  %v1420 = vshrl.u32 %v1251, 16
  %v1422 = vrot.slane %v1420, 7
  %v1423 = vshll.u32 %v1251, 16
  %v1425 = vor.u32 %v1422, %v1423
  %v1427 = vshrl.u32 %v1252, 16
  %v1429 = vrot.slane %v1427, 7
  %v1430 = vshll.u32 %v1252, 16
  %v1432 = vor.u32 %v1429, %v1430
  %v1433 = vsel %vm1263, %v1422, %v1432
  %v1435 = vshrl.u32 %v1253, 16
  %v1437 = vrot.slane %v1435, 7
  %v1438 = vshll.u32 %v1253, 16
  %v1440 = vor.u32 %v1437, %v1438
  %v1441 = vsel %vm1263, %v1429, %v1440
  %v1443 = vshrl.u32 %v1254, 16
  %v1445 = vrot.slane %v1443, 7
  %v1446 = vshll.u32 %v1254, 16
  %v1448 = vor.u32 %v1445, %v1446
  %v1449 = vsel %vm1263, %v1437, %v1448
  %v1451 = vshrl.u32 %v1255, 16
  %v1453 = vrot.slane %v1451, 7
  %v1454 = vshll.u32 %v1255, 16
  %v1456 = vor.u32 %v1453, %v1454
  %v1458 = vshrl.u32 %v1256, 16
  %v1460 = vrot.slane %v1458, 7
  %v1461 = vshll.u32 %v1256, 16
  %v1463 = vor.u32 %v1460, %v1461
  %v1464 = vsel %vm1263, %v1453, %v1463
  %v1466 = vshrl.u32 %v1257, 16
  %v1468 = vrot.slane %v1466, 7
  %v1469 = vshll.u32 %v1257, 16
  %v1471 = vor.u32 %v1468, %v1469
  %v1472 = vsel %vm1263, %v1460, %v1471
  %v1474 = vshrl.u32 %v1258, 16
  %v1476 = vrot.slane %v1474, 7
  %v1477 = vshll.u32 %v1258, 16
  %v1479 = vor.u32 %v1476, %v1477
  %v1480 = vsel %vm1263, %v1468, %v1479
  %v1482 = vshrl.u32 %v1259, 16
  %v1484 = vrot.slane %v1482, 7
  %v1485 = vshll.u32 %v1259, 16
  %v1487 = vor.u32 %v1484, %v1485
  %v1489 = vshrl.u32 %v1260, 16
  %v1491 = vrot.slane %v1489, 7
  %v1492 = vshll.u32 %v1260, 16
  %v1494 = vor.u32 %v1491, %v1492
  %v1495 = vsel %vm1263, %v1484, %v1494
  %v1497 = vshrl.u32 %v1261, 16
  %v1499 = vrot.slane %v1497, 7
  %v1500 = vshll.u32 %v1261, 16
  %v1502 = vor.u32 %v1499, %v1500
  %v1503 = vsel %vm1263, %v1491, %v1502
  %v1505 = vshrl.u32 %v1262, 16
  %v1507 = vrot.slane %v1505, 7
  %v1508 = vshll.u32 %v1262, 16
  %v1510 = vor.u32 %v1507, %v1508
  %v1511 = vsel %vm1263, %v1499, %v1510
  %1512 = vrot.lane.b32.xlu0 %v1270, 64
  %v1513 = vpop.permute.xlu0 %1512
  %1514 = vrot.lane.b32.xlu0 %v1278, 64
  %v1515 = vpop.permute.xlu0 %1514
  %1516 = vrot.lane.b32.xlu0 %v1286, 64
  %v1517 = vpop.permute.xlu0 %1516
  %1518 = vrot.lane.b32.xlu0 %v1294, 64
  %v1519 = vpop.permute.xlu0 %1518
  %1520 = vrot.lane.b32.xlu0 %v1301, 64
  %v1521 = vpop.permute.xlu0 %1520
  %1522 = vrot.lane.b32.xlu0 %v1309, 64
  %v1523 = vpop.permute.xlu0 %1522
  %1524 = vrot.lane.b32.xlu0 %v1317, 64
  %v1525 = vpop.permute.xlu0 %1524
  %1526 = vrot.lane.b32.xlu0 %v1325, 64
  %v1527 = vpop.permute.xlu0 %1526
  %1528 = vrot.lane.b32.xlu0 %v1332, 64
  %v1529 = vpop.permute.xlu0 %1528
  %1530 = vrot.lane.b32.xlu0 %v1340, 64
  %v1531 = vpop.permute.xlu0 %1530
  %1532 = vrot.lane.b32.xlu0 %v1348, 64
  %v1533 = vpop.permute.xlu0 %1532
  %1534 = vrot.lane.b32.xlu0 %v1356, 64
  %v1535 = vpop.permute.xlu0 %1534
  %1536 = vrot.lane.b32.xlu0 %v1363, 64
  %v1537 = vpop.permute.xlu0 %1536
  %1538 = vrot.lane.b32.xlu0 %v1371, 64
  %v1539 = vpop.permute.xlu0 %1538
  %1540 = vrot.lane.b32.xlu0 %v1379, 64
  %v1541 = vpop.permute.xlu0 %1540
  %1542 = vrot.lane.b32.xlu0 %v1387, 64
  %v1543 = vpop.permute.xlu0 %1542
  %1544 = vrot.lane.b32.xlu0 %v1394, 64
  %v1545 = vpop.permute.xlu0 %1544
  %1546 = vrot.lane.b32.xlu0 %v1402, 64
  %v1547 = vpop.permute.xlu0 %1546
  %1548 = vrot.lane.b32.xlu0 %v1410, 64
  %v1549 = vpop.permute.xlu0 %1548
  %1550 = vrot.lane.b32.xlu0 %v1418, 64
  %v1551 = vpop.permute.xlu0 %1550
  %1552 = vrot.lane.b32.xlu0 %v1425, 64
  %v1553 = vpop.permute.xlu0 %1552
  %1554 = vrot.lane.b32.xlu0 %v1433, 64
  %v1555 = vpop.permute.xlu0 %1554
  %1556 = vrot.lane.b32.xlu0 %v1441, 64
  %v1557 = vpop.permute.xlu0 %1556
  %1558 = vrot.lane.b32.xlu0 %v1449, 64
  %v1559 = vpop.permute.xlu0 %1558
  %1560 = vrot.lane.b32.xlu0 %v1456, 64
  %v1561 = vpop.permute.xlu0 %1560
  %1562 = vrot.lane.b32.xlu0 %v1464, 64
  %v1563 = vpop.permute.xlu0 %1562
  %1564 = vrot.lane.b32.xlu0 %v1472, 64
  %v1565 = vpop.permute.xlu0 %1564
  %1566 = vrot.lane.b32.xlu0 %v1480, 64
  %v1567 = vpop.permute.xlu0 %1566
  %1568 = vrot.lane.b32.xlu0 %v1487, 64
  %v1569 = vpop.permute.xlu0 %1568
  %1570 = vrot.lane.b32.xlu0 %v1495, 64
  %v1571 = vpop.permute.xlu0 %1570
  %1572 = vrot.lane.b32.xlu0 %v1503, 64
  %v1573 = vpop.permute.xlu0 %1572
  %1574 = vrot.lane.b32.xlu0 %v1511, 64
  %v1575 = vpop.permute.xlu0 %1574
  %vm1584 = vcmask 1040384
  %vm1585 = vmand %vm1584, %vm1263
  %v1586 = vsel %vm1585, 0, %v1513
  %v1587 = vsel %vm1585, 0, %v1521
  %v1588 = vsel %vm1585, 0, %v1529
  %v1589 = vsel %vm1585, 0, %v1537
  %v1590 = vsel %vm1585, 0, %v1545
  %v1591 = vsel %vm1585, 0, %v1553
  %v1592 = vsel %vm1585, 0, %v1561
  %v1593 = vsel %vm1585, 0, %v1569
  %vm1594 = vsmask.f32 7424
  %v1595 = vrot.slane %v1268, 1
  %v1596 = vor.u32 %v1265, %v1595
  %v1597 = vrot.slane %v1275, 1
  %v1598 = vsel %vm1594, %v1596, %v1597
  %v1599 = vor.u32 %v1272, %v1597
  %v1600 = vrot.slane %v1283, 1
  %v1601 = vsel %vm1594, %v1599, %v1600
  %v1602 = vor.u32 %v1280, %v1600
  %v1603 = vrot.slane %v1291, 1
  %v1604 = vsel %vm1594, %v1602, %v1603
  %v1605 = vor.u32 %v1288, %v1603
  %v1606 = vrot.slane %v1299, 1
  %v1607 = vor.u32 %v1296, %v1606
  %v1608 = vrot.slane %v1306, 1
  %v1609 = vsel %vm1594, %v1607, %v1608
  %v1610 = vor.u32 %v1303, %v1608
  %v1611 = vrot.slane %v1314, 1
  %v1612 = vsel %vm1594, %v1610, %v1611
  %v1613 = vor.u32 %v1311, %v1611
  %v1614 = vrot.slane %v1322, 1
  %v1615 = vsel %vm1594, %v1613, %v1614
  %v1616 = vor.u32 %v1319, %v1614
  %v1617 = vrot.slane %v1330, 1
  %v1618 = vor.u32 %v1327, %v1617
  %v1619 = vrot.slane %v1337, 1
  %v1620 = vsel %vm1594, %v1618, %v1619
  %v1621 = vor.u32 %v1334, %v1619
  %v1622 = vrot.slane %v1345, 1
  %v1623 = vsel %vm1594, %v1621, %v1622
  %v1624 = vor.u32 %v1342, %v1622
  %v1625 = vrot.slane %v1353, 1
  %v1626 = vsel %vm1594, %v1624, %v1625
  %v1627 = vor.u32 %v1350, %v1625
  %v1628 = vrot.slane %v1361, 1
  %v1629 = vor.u32 %v1358, %v1628
  %v1630 = vrot.slane %v1368, 1
  %v1631 = vsel %vm1594, %v1629, %v1630
  %v1632 = vor.u32 %v1365, %v1630
  %v1633 = vrot.slane %v1376, 1
  %v1634 = vsel %vm1594, %v1632, %v1633
  %v1635 = vor.u32 %v1373, %v1633
  %v1636 = vrot.slane %v1384, 1
  %v1637 = vsel %vm1594, %v1635, %v1636
  %v1638 = vor.u32 %v1381, %v1636
  %v1639 = vrot.slane %v1392, 1
  %v1640 = vor.u32 %v1389, %v1639
  %v1641 = vrot.slane %v1399, 1
  %v1642 = vsel %vm1594, %v1640, %v1641
  %v1643 = vor.u32 %v1396, %v1641
  %v1644 = vrot.slane %v1407, 1
  %v1645 = vsel %vm1594, %v1643, %v1644
  %v1646 = vor.u32 %v1404, %v1644
  %v1647 = vrot.slane %v1415, 1
  %v1648 = vsel %vm1594, %v1646, %v1647
  %v1649 = vor.u32 %v1412, %v1647
  %v1650 = vrot.slane %v1423, 1
  %v1651 = vor.u32 %v1420, %v1650
  %v1652 = vrot.slane %v1430, 1
  %v1653 = vsel %vm1594, %v1651, %v1652
  %v1654 = vor.u32 %v1427, %v1652
  %v1655 = vrot.slane %v1438, 1
  %v1656 = vsel %vm1594, %v1654, %v1655
  %v1657 = vor.u32 %v1435, %v1655
  %v1658 = vrot.slane %v1446, 1
  %v1659 = vsel %vm1594, %v1657, %v1658
  %v1660 = vor.u32 %v1443, %v1658
  %v1661 = vrot.slane %v1454, 1
  %v1662 = vor.u32 %v1451, %v1661
  %v1663 = vrot.slane %v1461, 1
  %v1664 = vsel %vm1594, %v1662, %v1663
  %v1665 = vor.u32 %v1458, %v1663
  %v1666 = vrot.slane %v1469, 1
  %v1667 = vsel %vm1594, %v1665, %v1666
  %v1668 = vor.u32 %v1466, %v1666
  %v1669 = vrot.slane %v1477, 1
  %v1670 = vsel %vm1594, %v1668, %v1669
  %v1671 = vor.u32 %v1474, %v1669
  %v1672 = vrot.slane %v1485, 1
  %v1673 = vor.u32 %v1482, %v1672
  %v1674 = vrot.slane %v1492, 1
  %v1675 = vsel %vm1594, %v1673, %v1674
  %v1676 = vor.u32 %v1489, %v1674
  %v1677 = vrot.slane %v1500, 1
  %v1678 = vsel %vm1594, %v1676, %v1677
  %v1679 = vor.u32 %v1497, %v1677
  %v1680 = vrot.slane %v1508, 1
  %v1681 = vsel %vm1594, %v1679, %v1680
  %v1682 = vor.u32 %v1505, %v1680
  %vm1691 = vcmask 1046528
  %vm1692 = vsmask.f32 6400
  %vm1693 = vmand %vm1691, %vm1692
  %v1694 = vsel %vm1693, %v1605, 0
  %v1695 = vsel %vm1693, %v1616, 0
  %v1696 = vsel %vm1693, %v1627, 0
  %v1697 = vsel %vm1693, %v1638, 0
  %v1698 = vsel %vm1693, %v1649, 0
  %v1699 = vsel %vm1693, %v1660, 0
  %v1700 = vsel %vm1693, %v1671, 0
  %v1701 = vsel %vm1693, %v1682, 0
  %1734 = vrot.lane.b32.xlu0 %v1231, 64
  %v1735 = vpop.permute.xlu0 %1734
  %1736 = vrot.lane.b32.xlu0 %v1232, 64
  %v1737 = vpop.permute.xlu0 %1736
  %1738 = vrot.lane.b32.xlu0 %v1233, 64
  %v1739 = vpop.permute.xlu0 %1738
  %1740 = vrot.lane.b32.xlu0 %v1234, 64
  %v1741 = vpop.permute.xlu0 %1740
  %1742 = vrot.lane.b32.xlu0 %v1235, 64
  %v1743 = vpop.permute.xlu0 %1742
  %1744 = vrot.lane.b32.xlu0 %v1236, 64
  %v1745 = vpop.permute.xlu0 %1744
  %1746 = vrot.lane.b32.xlu0 %v1237, 64
  %v1747 = vpop.permute.xlu0 %1746
  %1748 = vrot.lane.b32.xlu0 %v1238, 64
  %v1749 = vpop.permute.xlu0 %1748
  %1750 = vrot.lane.b32.xlu0 %v1239, 64
  %v1751 = vpop.permute.xlu0 %1750
  %1752 = vrot.lane.b32.xlu0 %v1240, 64
  %v1753 = vpop.permute.xlu0 %1752
  %1754 = vrot.lane.b32.xlu0 %v1241, 64
  %v1755 = vpop.permute.xlu0 %1754
  %1756 = vrot.lane.b32.xlu0 %v1242, 64
  %v1757 = vpop.permute.xlu0 %1756
  %1758 = vrot.lane.b32.xlu0 %v1243, 64
  %v1759 = vpop.permute.xlu0 %1758
  %1760 = vrot.lane.b32.xlu0 %v1244, 64
  %v1761 = vpop.permute.xlu0 %1760
  %1762 = vrot.lane.b32.xlu0 %v1245, 64
  %v1763 = vpop.permute.xlu0 %1762
  %1764 = vrot.lane.b32.xlu0 %v1246, 64
  %v1765 = vpop.permute.xlu0 %1764
  %1766 = vrot.lane.b32.xlu0 %v1247, 64
  %v1767 = vpop.permute.xlu0 %1766
  %1768 = vrot.lane.b32.xlu0 %v1248, 64
  %v1769 = vpop.permute.xlu0 %1768
  %1770 = vrot.lane.b32.xlu0 %v1249, 64
  %v1771 = vpop.permute.xlu0 %1770
  %1772 = vrot.lane.b32.xlu0 %v1250, 64
  %v1773 = vpop.permute.xlu0 %1772
  %1774 = vrot.lane.b32.xlu0 %v1251, 64
  %v1775 = vpop.permute.xlu0 %1774
  %1776 = vrot.lane.b32.xlu0 %v1252, 64
  %v1777 = vpop.permute.xlu0 %1776
  %1778 = vrot.lane.b32.xlu0 %v1253, 64
  %v1779 = vpop.permute.xlu0 %1778
  %1780 = vrot.lane.b32.xlu0 %v1254, 64
  %v1781 = vpop.permute.xlu0 %1780
  %1782 = vrot.lane.b32.xlu0 %v1255, 64
  %v1783 = vpop.permute.xlu0 %1782
  %1784 = vrot.lane.b32.xlu0 %v1256, 64
  %v1785 = vpop.permute.xlu0 %1784
  %1786 = vrot.lane.b32.xlu0 %v1257, 64
  %v1787 = vpop.permute.xlu0 %1786
  %1788 = vrot.lane.b32.xlu0 %v1258, 64
  %v1789 = vpop.permute.xlu0 %1788
  %1790 = vrot.lane.b32.xlu0 %v1259, 64
  %v1791 = vpop.permute.xlu0 %1790
  %1792 = vrot.lane.b32.xlu0 %v1260, 64
  %v1793 = vpop.permute.xlu0 %1792
  %1794 = vrot.lane.b32.xlu0 %v1261, 64
  %v1795 = vpop.permute.xlu0 %1794
  %1796 = vrot.lane.b32.xlu0 %v1262, 64
  %v1797 = vpop.permute.xlu0 %1796
  %1806 = vrot.lane.b32.xlu0 %v1598, 64
  %v1807 = vpop.permute.xlu0 %1806
  %1808 = vrot.lane.b32.xlu0 %v1601, 64
  %v1809 = vpop.permute.xlu0 %1808
  %1810 = vrot.lane.b32.xlu0 %v1604, 64
  %v1811 = vpop.permute.xlu0 %1810
  %1812 = vrot.lane.b32.xlu0 %v1694, 64
  %v1813 = vpop.permute.xlu0 %1812
  %1814 = vrot.lane.b32.xlu0 %v1609, 64
  %v1815 = vpop.permute.xlu0 %1814
  %1816 = vrot.lane.b32.xlu0 %v1612, 64
  %v1817 = vpop.permute.xlu0 %1816
  %1818 = vrot.lane.b32.xlu0 %v1615, 64
  %v1819 = vpop.permute.xlu0 %1818
  %1820 = vrot.lane.b32.xlu0 %v1695, 64
  %v1821 = vpop.permute.xlu0 %1820
  %1822 = vrot.lane.b32.xlu0 %v1620, 64
  %v1823 = vpop.permute.xlu0 %1822
  %1824 = vrot.lane.b32.xlu0 %v1623, 64
  %v1825 = vpop.permute.xlu0 %1824
  %1826 = vrot.lane.b32.xlu0 %v1626, 64
  %v1827 = vpop.permute.xlu0 %1826
  %1828 = vrot.lane.b32.xlu0 %v1696, 64
  %v1829 = vpop.permute.xlu0 %1828
  %1830 = vrot.lane.b32.xlu0 %v1631, 64
  %v1831 = vpop.permute.xlu0 %1830
  %1832 = vrot.lane.b32.xlu0 %v1634, 64
  %v1833 = vpop.permute.xlu0 %1832
  %1834 = vrot.lane.b32.xlu0 %v1637, 64
  %v1835 = vpop.permute.xlu0 %1834
  %1836 = vrot.lane.b32.xlu0 %v1697, 64
  %v1837 = vpop.permute.xlu0 %1836
  %1838 = vrot.lane.b32.xlu0 %v1642, 64
  %v1839 = vpop.permute.xlu0 %1838
  %1840 = vrot.lane.b32.xlu0 %v1645, 64
  %v1841 = vpop.permute.xlu0 %1840
  %1842 = vrot.lane.b32.xlu0 %v1648, 64
  %v1843 = vpop.permute.xlu0 %1842
  %1844 = vrot.lane.b32.xlu0 %v1698, 64
  %v1845 = vpop.permute.xlu0 %1844
  %1846 = vrot.lane.b32.xlu0 %v1653, 64
  %v1847 = vpop.permute.xlu0 %1846
  %1848 = vrot.lane.b32.xlu0 %v1656, 64
  %v1849 = vpop.permute.xlu0 %1848
  %1850 = vrot.lane.b32.xlu0 %v1659, 64
  %v1851 = vpop.permute.xlu0 %1850
  %1852 = vrot.lane.b32.xlu0 %v1699, 64
  %v1853 = vpop.permute.xlu0 %1852
  %1854 = vrot.lane.b32.xlu0 %v1664, 64
  %v1855 = vpop.permute.xlu0 %1854
  %1856 = vrot.lane.b32.xlu0 %v1667, 64
  %v1857 = vpop.permute.xlu0 %1856
  %1858 = vrot.lane.b32.xlu0 %v1670, 64
  %v1859 = vpop.permute.xlu0 %1858
  %1860 = vrot.lane.b32.xlu0 %v1700, 64
  %v1861 = vpop.permute.xlu0 %1860
  %1862 = vrot.lane.b32.xlu0 %v1675, 64
  %v1863 = vpop.permute.xlu0 %1862
  %1864 = vrot.lane.b32.xlu0 %v1678, 64
  %v1865 = vpop.permute.xlu0 %1864
  %1866 = vrot.lane.b32.xlu0 %v1681, 64
  %v1867 = vpop.permute.xlu0 %1866
  %1868 = vrot.lane.b32.xlu0 %v1701, 64
  %v1869 = vpop.permute.xlu0 %1868
  %vm1870 = vcmask 523264
  %v1873 = vsel %vm1870, %v1586, %v1735
  %v1877 = vsel %vm1870, %v1515, %v1737
  %v1881 = vsel %vm1870, %v1517, %v1739
  %v1885 = vsel %vm1870, %v1519, %v1741
  %v1889 = vsel %vm1870, %v1587, %v1743
  %v1893 = vsel %vm1870, %v1523, %v1745
  %v1897 = vsel %vm1870, %v1525, %v1747
  %v1901 = vsel %vm1870, %v1527, %v1749
  %v1905 = vsel %vm1870, %v1588, %v1751
  %v1909 = vsel %vm1870, %v1531, %v1753
  %v1913 = vsel %vm1870, %v1533, %v1755
  %v1917 = vsel %vm1870, %v1535, %v1757
  %v1921 = vsel %vm1870, %v1589, %v1759
  %v1925 = vsel %vm1870, %v1539, %v1761
  %v1929 = vsel %vm1870, %v1541, %v1763
  %v1933 = vsel %vm1870, %v1543, %v1765
  %v1937 = vsel %vm1870, %v1590, %v1767
  %v1941 = vsel %vm1870, %v1547, %v1769
  %v1945 = vsel %vm1870, %v1549, %v1771
  %v1949 = vsel %vm1870, %v1551, %v1773
  %v1953 = vsel %vm1870, %v1591, %v1775
  %v1957 = vsel %vm1870, %v1555, %v1777
  %v1961 = vsel %vm1870, %v1557, %v1779
  %v1965 = vsel %vm1870, %v1559, %v1781
  %v1969 = vsel %vm1870, %v1592, %v1783
  %v1973 = vsel %vm1870, %v1563, %v1785
  %v1977 = vsel %vm1870, %v1565, %v1787
  %v1981 = vsel %vm1870, %v1567, %v1789
  %v1985 = vsel %vm1870, %v1593, %v1791
  %v1989 = vsel %vm1870, %v1571, %v1793
  %v1993 = vsel %vm1870, %v1573, %v1795
  %v1997 = vsel %vm1870, %v1575, %v1797
  %v2000 = vsel %vm1870, %v1735, %v1807
  %v2002 = vsel %vm1870, %v1737, %v1809
  %v2004 = vsel %vm1870, %v1739, %v1811
  %v2006 = vsel %vm1870, %v1741, %v1813
  %v2008 = vsel %vm1870, %v1743, %v1815
  %v2010 = vsel %vm1870, %v1745, %v1817
  %v2012 = vsel %vm1870, %v1747, %v1819
  %v2014 = vsel %vm1870, %v1749, %v1821
  %v2016 = vsel %vm1870, %v1751, %v1823
  %v2018 = vsel %vm1870, %v1753, %v1825
  %v2020 = vsel %vm1870, %v1755, %v1827
  %v2022 = vsel %vm1870, %v1757, %v1829
  %v2024 = vsel %vm1870, %v1759, %v1831
  %v2026 = vsel %vm1870, %v1761, %v1833
  %v2028 = vsel %vm1870, %v1763, %v1835
  %v2030 = vsel %vm1870, %v1765, %v1837
  %v2032 = vsel %vm1870, %v1767, %v1839
  %v2034 = vsel %vm1870, %v1769, %v1841
  %v2036 = vsel %vm1870, %v1771, %v1843
  %v2038 = vsel %vm1870, %v1773, %v1845
  %v2040 = vsel %vm1870, %v1775, %v1847
  %v2042 = vsel %vm1870, %v1777, %v1849
  %v2044 = vsel %vm1870, %v1779, %v1851
  %v2046 = vsel %vm1870, %v1781, %v1853
  %v2048 = vsel %vm1870, %v1783, %v1855
  %v2050 = vsel %vm1870, %v1785, %v1857
  %v2052 = vsel %vm1870, %v1787, %v1859
  %v2054 = vsel %vm1870, %v1789, %v1861
  %v2056 = vsel %vm1870, %v1791, %v1863
  %v2058 = vsel %vm1870, %v1793, %v1865
  %v2060 = vsel %vm1870, %v1795, %v1867
  %v2062 = vsel %vm1870, %v1797, %v1869
  %v2063 = vld [vmem:[%s2] sm:$0xf]
  %v2064 = vld [vmem:[%s2 + $0x4] sm:$0xf]
  %v2065 = vld [vmem:[%s2 + $0x8] sm:$0xf]
  %v2066 = vld [vmem:[%s2 + $0xc] sm:$0xf]
  %v2067 = vld [vmem:[%s2 + $0x10] sm:$0xf]
  %v2068 = vld [vmem:[%s2 + $0x14] sm:$0xf]
  %v2069 = vld [vmem:[%s2 + $0x18] sm:$0xf]
  %v2070 = vld [vmem:[%s2 + $0x1c] sm:$0xf]
  %v2071 = vld [vmem:[%s2 + $0x20] sm:$0xf]
  %v2072 = vld [vmem:[%s2 + $0x24] sm:$0xf]
  %v2073 = vld [vmem:[%s2 + $0x28] sm:$0xf]
  %v2074 = vld [vmem:[%s2 + $0x2c] sm:$0xf]
  %v2075 = vld [vmem:[%s2 + $0x30] sm:$0xf]
  %v2076 = vld [vmem:[%s2 + $0x34] sm:$0xf]
  %v2077 = vld [vmem:[%s2 + $0x38] sm:$0xf]
  %v2078 = vld [vmem:[%s2 + $0x3c] sm:$0xf]
  %v2079 = vld [vmem:[%s2 + $0x40] sm:$0xf]
  %v2080 = vld [vmem:[%s2 + $0x44] sm:$0xf]
  %v2081 = vld [vmem:[%s2 + $0x48] sm:$0xf]
  %v2082 = vld [vmem:[%s2 + $0x4c] sm:$0xf]
  %v2083 = vld [vmem:[%s2 + $0x50] sm:$0xf]
  %v2084 = vld [vmem:[%s2 + $0x54] sm:$0xf]
  %v2085 = vld [vmem:[%s2 + $0x58] sm:$0xf]
  %v2086 = vld [vmem:[%s2 + $0x5c] sm:$0xf]
  %v2087 = vld [vmem:[%s2 + $0x60] sm:$0xf]
  %v2088 = vld [vmem:[%s2 + $0x64] sm:$0xf]
  %v2089 = vld [vmem:[%s2 + $0x68] sm:$0xf]
  %v2090 = vld [vmem:[%s2 + $0x6c] sm:$0xf]
  %v2119 = vunpack.c.l.b16 %v2063
  %v2120 = vunpack.c.l.b16 %v2064
  %v2121 = vunpack.c.l.b16 %v2065
  %v2122 = vunpack.c.l.b16 %v2066
  %v2123 = vunpack.c.l.b16 %v2067
  %v2124 = vunpack.c.l.b16 %v2068
  %v2125 = vunpack.c.l.b16 %v2069
  %v2126 = vunpack.c.l.b16 %v2070
  %v2127 = vunpack.c.l.b16 %v2071
  %v2128 = vunpack.c.l.b16 %v2072
  %v2129 = vunpack.c.l.b16 %v2073
  %v2130 = vunpack.c.l.b16 %v2074
  %v2131 = vunpack.c.l.b16 %v2075
  %v2132 = vunpack.c.l.b16 %v2076
  %v2133 = vunpack.c.l.b16 %v2077
  %v2134 = vunpack.c.l.b16 %v2078
  %v2135 = vunpack.c.l.b16 %v2079
  %v2136 = vunpack.c.l.b16 %v2080
  %v2137 = vunpack.c.l.b16 %v2081
  %v2138 = vunpack.c.l.b16 %v2082
  %v2139 = vunpack.c.l.b16 %v2083
  %v2140 = vunpack.c.l.b16 %v2084
  %v2141 = vunpack.c.l.b16 %v2085
  %v2142 = vunpack.c.l.b16 %v2086
  %v2143 = vunpack.c.l.b16 %v2087
  %v2144 = vunpack.c.l.b16 %v2088
  %v2145 = vunpack.c.l.b16 %v2089
  %v2146 = vunpack.c.l.b16 %v2090
  %v2147 = vpack.c.b16 %v2120, %v2119
  %v2148 = vpack.c.b16 %v2122, %v2121
  %v2149 = vpack.c.b16 %v2124, %v2123
  %v2150 = vpack.c.b16 %v2126, %v2125
  %v2151 = vpack.c.b16 %v2128, %v2127
  %v2152 = vpack.c.b16 %v2130, %v2129
  %v2153 = vpack.c.b16 %v2132, %v2131
  %v2154 = vpack.c.b16 %v2134, %v2133
  %v2155 = vpack.c.b16 %v2136, %v2135
  %v2156 = vpack.c.b16 %v2138, %v2137
  %v2157 = vpack.c.b16 %v2140, %v2139
  %v2158 = vpack.c.b16 %v2142, %v2141
  %v2159 = vpack.c.b16 %v2144, %v2143
  %v2160 = vpack.c.b16 %v2146, %v2145
  %vm2175 = vcmask 785408
  %v2176 = vsel %vm2175, %v2000, 0
  %v2178 = vsel %vm2175, %v2002, 0
  %v2180 = vsel %vm2175, %v2004, 0
  %v2182 = vsel %vm2175, %v2006, 0
  %v2184 = vsel %vm2175, %v2008, 0
  %v2186 = vsel %vm2175, %v2010, 0
  %v2188 = vsel %vm2175, %v2012, 0
  %v2190 = vsel %vm2175, %v2014, 0
  %v2192 = vsel %vm2175, %v2016, 0
  %v2194 = vsel %vm2175, %v2018, 0
  %v2196 = vsel %vm2175, %v2020, 0
  %v2198 = vsel %vm2175, %v2022, 0
  %v2200 = vsel %vm2175, %v2024, 0
  %v2202 = vsel %vm2175, %v2026, 0
  %v2204 = vsel %vm2175, %v2028, 0
  %v2206 = vsel %vm2175, %v2030, 0
  %v2208 = vsel %vm2175, %v2032, 0
  %v2210 = vsel %vm2175, %v2034, 0
  %v2212 = vsel %vm2175, %v2036, 0
  %v2214 = vsel %vm2175, %v2038, 0
  %v2216 = vsel %vm2175, %v2040, 0
  %v2218 = vsel %vm2175, %v2042, 0
  %v2220 = vsel %vm2175, %v2044, 0
  %v2222 = vsel %vm2175, %v2046, 0
  %v2224 = vsel %vm2175, %v2048, 0
  %v2226 = vsel %vm2175, %v2050, 0
  %v2228 = vsel %vm2175, %v2052, 0
  %v2230 = vsel %vm2175, %v2054, 0
  %v2232 = vsel %vm2175, %v2056, 0
  %v2234 = vsel %vm2175, %v2058, 0
  %v2236 = vsel %vm2175, %v2060, 0
  %v2238 = vsel %vm2175, %v2062, 0
  %2240 = vmatprep.subr.bf16.mxu0 0
  %2241 = vmatpush1.bf16.msra.mxu0 %v2147
  %2242 = vmatprep.subr.bf16.mxu0 0
  %2243 = vmatpush1.bf16.msra.mxu0 %v2148
  %2244 = vmatprep.subr.bf16.mxu0 0
  %2245 = vmatpush1.bf16.msra.mxu0 %v2149
  %2246 = vmatprep.subr.bf16.mxu0 0
  %2247 = vmatpush1.bf16.msra.mxu0 %v2150
  %2248 = vmatprep.subr.bf16.mxu0 0
  %2249 = vmatpush1.bf16.msra.mxu0 %v2151
  %2250 = vmatprep.subr.bf16.mxu0 0
  %2251 = vmatpush1.bf16.msra.mxu0 %v2152
  %2252 = vmatprep.subr.bf16.mxu0 0
  %2253 = vmatpush1.bf16.msra.mxu0 %v2153
  %2254 = vmatprep.subr.bf16.mxu0 0
  %2255 = vmatpush1.bf16.msra.mxu0 %v2154
  %2256 = vmatprep.subr.bf16.mxu0 0
  %2257 = vmatpush1.bf16.msra.mxu0 %v2155
  %2258 = vmatprep.subr.bf16.mxu0 0
  %2259 = vmatpush1.bf16.msra.mxu0 %v2156
  %2260 = vmatprep.subr.bf16.mxu0 0
  %2261 = vmatpush1.bf16.msra.mxu0 %v2157
  %2262 = vmatprep.subr.bf16.mxu0 0
  %2263 = vmatpush1.bf16.msra.mxu0 %v2158
  %2264 = vmatprep.subr.bf16.mxu0 0
  %2265 = vmatpush1.bf16.msra.mxu0 %v2159
  %2266 = vmatprep.subr.bf16.mxu0 0
  %2267 = vmatpush1.bf16.msra.mxu0 %v2160
  %2268 = vmatprep.subr.bf16.mxu0 0
  %2269 = vmatpush1.bf16.msra.mxu0 0
  %2270 = vmatprep.subr.bf16.mxu0 0
  %2271 = vmatpush1.bf16.msra.mxu0 0
  %2272 = vmatprep.mubr.bf16.mxu0 %v2176
  %2273 = vmatmul.mubr.bf16.gmra.mrb[0].mxu0 %v1873
  %v2274 = vpop.f32.mrb[0].mxu0
  %v2275 = vadd.f32 0.0, %v2274
  %v2276 = vpop.f32.mrb[0].mxu0
  %v2277 = vpop.f32.mrb[0].mxu0
  %v2278 = vadd.f32 0.0, %v2277
  %v2279 = vpop.f32.mrb[0].mxu0
  %2280 = vmatprep.mubr.bf16.mxu0 %v2178
  %2281 = vmatmul.mubr.bf16.gmra.mrb[0].mxu0 %v1877
  %v2282 = vpop.f32.mrb[0].mxu0
  %v2283 = vadd.f32 0.0, %v2282
  %v2284 = vpop.f32.mrb[0].mxu0
  %v2285 = vpop.f32.mrb[0].mxu0
  %v2286 = vadd.f32 0.0, %v2285
  %v2287 = vpop.f32.mrb[0].mxu0
  %2288 = vmatprep.mubr.bf16.mxu0 %v2180
  %2289 = vmatmul.mubr.bf16.gmra.mrb[0].mxu0 %v1881
  %v2290 = vpop.f32.mrb[0].mxu0
  %v2291 = vadd.f32 0.0, %v2290
  %v2292 = vpop.f32.mrb[0].mxu0
  %v2293 = vpop.f32.mrb[0].mxu0
  %v2294 = vadd.f32 0.0, %v2293
  %v2295 = vpop.f32.mrb[0].mxu0
  %2296 = vmatprep.mubr.bf16.mxu0 %v2182
  %2297 = vmatmul.mubr.bf16.gmra.mrb[0].mxu0 %v1885
  %v2298 = vpop.f32.mrb[0].mxu0
  %v2299 = vadd.f32 0.0, %v2298
  %v2300 = vpop.f32.mrb[0].mxu0
  %v2301 = vpop.f32.mrb[0].mxu0
  %v2302 = vadd.f32 0.0, %v2301
  %v2303 = vpop.f32.mrb[0].mxu0
  %2304 = vmatprep.mubr.bf16.mxu0 %v2184
  %2305 = vmatmul.mubr.bf16.gmra.mrb[0].mxu0 %v1889
  %v2306 = vpop.f32.mrb[0].mxu0
  %v2307 = vadd.f32 0.0, %v2306
  %v2308 = vpop.f32.mrb[0].mxu0
  %v2309 = vpop.f32.mrb[0].mxu0
  %v2310 = vadd.f32 0.0, %v2309
  %v2311 = vpop.f32.mrb[0].mxu0
  %2312 = vmatprep.mubr.bf16.mxu0 %v2186
  %2313 = vmatmul.mubr.bf16.gmra.mrb[0].mxu0 %v1893
  %v2314 = vpop.f32.mrb[0].mxu0
  %v2315 = vadd.f32 0.0, %v2314
  %v2316 = vpop.f32.mrb[0].mxu0
  %v2317 = vpop.f32.mrb[0].mxu0
  %v2318 = vadd.f32 0.0, %v2317
  %v2319 = vpop.f32.mrb[0].mxu0
  %2320 = vmatprep.mubr.bf16.mxu0 %v2188
  %2321 = vmatmul.mubr.bf16.gmra.mrb[0].mxu0 %v1897
  %v2322 = vpop.f32.mrb[0].mxu0
  %v2323 = vadd.f32 0.0, %v2322
  %v2324 = vpop.f32.mrb[0].mxu0
  %v2325 = vpop.f32.mrb[0].mxu0
  %v2326 = vadd.f32 0.0, %v2325
  %v2327 = vpop.f32.mrb[0].mxu0
  %2328 = vmatprep.mubr.bf16.mxu0 %v2190
  %2329 = vmatmul.mubr.bf16.gmra.mrb[0].mxu0 %v1901
  %v2330 = vpop.f32.mrb[0].mxu0
  %v2331 = vadd.f32 0.0, %v2330
  %v2332 = vpop.f32.mrb[0].mxu0
  %v2333 = vpop.f32.mrb[0].mxu0
  %v2334 = vadd.f32 0.0, %v2333
  %v2335 = vpop.f32.mrb[0].mxu0
  %2336 = vmatprep.mubr.bf16.mxu0 %v2192
  %2337 = vmatmul.mubr.bf16.gmra.mrb[0].mxu0 %v1905
  %v2338 = vpop.f32.mrb[0].mxu0
  %v2339 = vadd.f32 0.0, %v2338
  %v2340 = vpop.f32.mrb[0].mxu0
  %v2341 = vpop.f32.mrb[0].mxu0
  %v2342 = vadd.f32 0.0, %v2341
  %v2343 = vpop.f32.mrb[0].mxu0
  %2344 = vmatprep.mubr.bf16.mxu0 %v2194
  %2345 = vmatmul.mubr.bf16.gmra.mrb[0].mxu0 %v1909
  %v2346 = vpop.f32.mrb[0].mxu0
  %v2347 = vadd.f32 0.0, %v2346
  %v2348 = vpop.f32.mrb[0].mxu0
  %v2349 = vpop.f32.mrb[0].mxu0
  %v2350 = vadd.f32 0.0, %v2349
  %v2351 = vpop.f32.mrb[0].mxu0
  %2352 = vmatprep.mubr.bf16.mxu0 %v2196
  %2353 = vmatmul.mubr.bf16.gmra.mrb[0].mxu0 %v1913
  %v2354 = vpop.f32.mrb[0].mxu0
  %v2355 = vadd.f32 0.0, %v2354
  %v2356 = vpop.f32.mrb[0].mxu0
  %v2357 = vpop.f32.mrb[0].mxu0
  %v2358 = vadd.f32 0.0, %v2357
  %v2359 = vpop.f32.mrb[0].mxu0
  %2360 = vmatprep.mubr.bf16.mxu0 %v2198
  %2361 = vmatmul.mubr.bf16.gmra.mrb[0].mxu0 %v1917
  %v2362 = vpop.f32.mrb[0].mxu0
  %v2363 = vadd.f32 0.0, %v2362
  %v2364 = vpop.f32.mrb[0].mxu0
  %v2365 = vpop.f32.mrb[0].mxu0
  %v2366 = vadd.f32 0.0, %v2365
  %v2367 = vpop.f32.mrb[0].mxu0
  %2368 = vmatprep.mubr.bf16.mxu0 %v2200
  %2369 = vmatmul.mubr.bf16.gmra.mrb[0].mxu0 %v1921
  %v2370 = vpop.f32.mrb[0].mxu0
  %v2371 = vadd.f32 0.0, %v2370
  %v2372 = vpop.f32.mrb[0].mxu0
  %v2373 = vpop.f32.mrb[0].mxu0
  %v2374 = vadd.f32 0.0, %v2373
  %v2375 = vpop.f32.mrb[0].mxu0
  %2376 = vmatprep.mubr.bf16.mxu0 %v2202
  %2377 = vmatmul.mubr.bf16.gmra.mrb[0].mxu0 %v1925
  %v2378 = vpop.f32.mrb[0].mxu0
  %v2379 = vadd.f32 0.0, %v2378
  %v2380 = vpop.f32.mrb[0].mxu0
  %v2381 = vpop.f32.mrb[0].mxu0
  %v2382 = vadd.f32 0.0, %v2381
  %v2383 = vpop.f32.mrb[0].mxu0
  %2384 = vmatprep.mubr.bf16.mxu0 %v2204
  %2385 = vmatmul.mubr.bf16.gmra.mrb[0].mxu0 %v1929
  %v2386 = vpop.f32.mrb[0].mxu0
  %v2387 = vadd.f32 0.0, %v2386
  %v2388 = vpop.f32.mrb[0].mxu0
  %v2389 = vpop.f32.mrb[0].mxu0
  %v2390 = vadd.f32 0.0, %v2389
  %v2391 = vpop.f32.mrb[0].mxu0
  %2392 = vmatprep.mubr.bf16.mxu0 %v2206
  %2393 = vmatmul.mubr.bf16.gmra.mrb[0].mxu0 %v1933
  %v2394 = vpop.f32.mrb[0].mxu0
  %v2395 = vadd.f32 0.0, %v2394
  %v2396 = vpop.f32.mrb[0].mxu0
  %v2397 = vpop.f32.mrb[0].mxu0
  %v2398 = vadd.f32 0.0, %v2397
  %v2399 = vpop.f32.mrb[0].mxu0
  %2400 = vmatprep.mubr.bf16.mxu0 %v2208
  %2401 = vmatmul.mubr.bf16.gmra.mrb[0].mxu0 %v1937
  %v2402 = vpop.f32.mrb[0].mxu0
  %v2403 = vadd.f32 0.0, %v2402
  %v2404 = vpop.f32.mrb[0].mxu0
  %v2405 = vpop.f32.mrb[0].mxu0
  %v2406 = vadd.f32 0.0, %v2405
  %v2407 = vpop.f32.mrb[0].mxu0
  %2408 = vmatprep.mubr.bf16.mxu0 %v2210
  %2409 = vmatmul.mubr.bf16.gmra.mrb[0].mxu0 %v1941
  %v2410 = vpop.f32.mrb[0].mxu0
  %v2411 = vadd.f32 0.0, %v2410
  %v2412 = vpop.f32.mrb[0].mxu0
  %v2413 = vpop.f32.mrb[0].mxu0
  %v2414 = vadd.f32 0.0, %v2413
  %v2415 = vpop.f32.mrb[0].mxu0
  %2416 = vmatprep.mubr.bf16.mxu0 %v2212
  %2417 = vmatmul.mubr.bf16.gmra.mrb[0].mxu0 %v1945
  %v2418 = vpop.f32.mrb[0].mxu0
  %v2419 = vadd.f32 0.0, %v2418
  %v2420 = vpop.f32.mrb[0].mxu0
  %v2421 = vpop.f32.mrb[0].mxu0
  %v2422 = vadd.f32 0.0, %v2421
  %v2423 = vpop.f32.mrb[0].mxu0
  %2424 = vmatprep.mubr.bf16.mxu0 %v2214
  %2425 = vmatmul.mubr.bf16.gmra.mrb[0].mxu0 %v1949
  %v2426 = vpop.f32.mrb[0].mxu0
  %v2427 = vadd.f32 0.0, %v2426
  %v2428 = vpop.f32.mrb[0].mxu0
  %v2429 = vpop.f32.mrb[0].mxu0
  %v2430 = vadd.f32 0.0, %v2429
  %v2431 = vpop.f32.mrb[0].mxu0
  %2432 = vmatprep.mubr.bf16.mxu0 %v2216
  %2433 = vmatmul.mubr.bf16.gmra.mrb[0].mxu0 %v1953
  %v2434 = vpop.f32.mrb[0].mxu0
  %v2435 = vadd.f32 0.0, %v2434
  %v2436 = vpop.f32.mrb[0].mxu0
  %v2437 = vpop.f32.mrb[0].mxu0
  %v2438 = vadd.f32 0.0, %v2437
  %v2439 = vpop.f32.mrb[0].mxu0
  %2440 = vmatprep.mubr.bf16.mxu0 %v2218
  %2441 = vmatmul.mubr.bf16.gmra.mrb[0].mxu0 %v1957
  %v2442 = vpop.f32.mrb[0].mxu0
  %v2443 = vadd.f32 0.0, %v2442
  %v2444 = vpop.f32.mrb[0].mxu0
  %v2445 = vpop.f32.mrb[0].mxu0
  %v2446 = vadd.f32 0.0, %v2445
  %v2447 = vpop.f32.mrb[0].mxu0
  %2448 = vmatprep.mubr.bf16.mxu0 %v2220
  %2449 = vmatmul.mubr.bf16.gmra.mrb[0].mxu0 %v1961
  %v2450 = vpop.f32.mrb[0].mxu0
  %v2451 = vadd.f32 0.0, %v2450
  %v2452 = vpop.f32.mrb[0].mxu0
  %v2453 = vpop.f32.mrb[0].mxu0
  %v2454 = vadd.f32 0.0, %v2453
  %v2455 = vpop.f32.mrb[0].mxu0
  %2456 = vmatprep.mubr.bf16.mxu0 %v2222
  %2457 = vmatmul.mubr.bf16.gmra.mrb[0].mxu0 %v1965
  %v2458 = vpop.f32.mrb[0].mxu0
  %v2459 = vadd.f32 0.0, %v2458
  %v2460 = vpop.f32.mrb[0].mxu0
  %v2461 = vpop.f32.mrb[0].mxu0
  %v2462 = vadd.f32 0.0, %v2461
  %v2463 = vpop.f32.mrb[0].mxu0
  %2464 = vmatprep.mubr.bf16.mxu0 %v2224
  %2465 = vmatmul.mubr.bf16.gmra.mrb[0].mxu0 %v1969
  %v2466 = vpop.f32.mrb[0].mxu0
  %v2467 = vadd.f32 0.0, %v2466
  %v2468 = vpop.f32.mrb[0].mxu0
  %v2469 = vpop.f32.mrb[0].mxu0
  %v2470 = vadd.f32 0.0, %v2469
  %v2471 = vpop.f32.mrb[0].mxu0
  %2472 = vmatprep.mubr.bf16.mxu0 %v2226
  %2473 = vmatmul.mubr.bf16.gmra.mrb[0].mxu0 %v1973
  %v2474 = vpop.f32.mrb[0].mxu0
  %v2475 = vadd.f32 0.0, %v2474
  %v2476 = vpop.f32.mrb[0].mxu0
  %v2477 = vpop.f32.mrb[0].mxu0
  %v2478 = vadd.f32 0.0, %v2477
  %v2479 = vpop.f32.mrb[0].mxu0
  %2480 = vmatprep.mubr.bf16.mxu0 %v2228
  %2481 = vmatmul.mubr.bf16.gmra.mrb[0].mxu0 %v1977
  %v2482 = vpop.f32.mrb[0].mxu0
  %v2483 = vadd.f32 0.0, %v2482
  %v2484 = vpop.f32.mrb[0].mxu0
  %v2485 = vpop.f32.mrb[0].mxu0
  %v2486 = vadd.f32 0.0, %v2485
  %v2487 = vpop.f32.mrb[0].mxu0
  %2488 = vmatprep.mubr.bf16.mxu0 %v2230
  %2489 = vmatmul.mubr.bf16.gmra.mrb[0].mxu0 %v1981
  %v2490 = vpop.f32.mrb[0].mxu0
  %v2491 = vadd.f32 0.0, %v2490
  %v2492 = vpop.f32.mrb[0].mxu0
  %v2493 = vpop.f32.mrb[0].mxu0
  %v2494 = vadd.f32 0.0, %v2493
  %v2495 = vpop.f32.mrb[0].mxu0
  %2496 = vmatprep.mubr.bf16.mxu0 %v2232
  %2497 = vmatmul.mubr.bf16.gmra.mrb[0].mxu0 %v1985
  %v2498 = vpop.f32.mrb[0].mxu0
  %v2499 = vadd.f32 0.0, %v2498
  %v2500 = vpop.f32.mrb[0].mxu0
  %v2501 = vpop.f32.mrb[0].mxu0
  %v2502 = vadd.f32 0.0, %v2501
  %v2503 = vpop.f32.mrb[0].mxu0
  %2504 = vmatprep.mubr.bf16.mxu0 %v2234
  %2505 = vmatmul.mubr.bf16.gmra.mrb[0].mxu0 %v1989
  %v2506 = vpop.f32.mrb[0].mxu0
  %v2507 = vadd.f32 0.0, %v2506
  %v2508 = vpop.f32.mrb[0].mxu0
  %v2509 = vpop.f32.mrb[0].mxu0
  %v2510 = vadd.f32 0.0, %v2509
  %v2511 = vpop.f32.mrb[0].mxu0
  %2512 = vmatprep.mubr.bf16.mxu0 %v2236
  %2513 = vmatmul.mubr.bf16.gmra.mrb[0].mxu0 %v1993
  %v2514 = vpop.f32.mrb[0].mxu0
  %v2515 = vadd.f32 0.0, %v2514
  %v2516 = vpop.f32.mrb[0].mxu0
  %v2517 = vpop.f32.mrb[0].mxu0
  %v2518 = vadd.f32 0.0, %v2517
  %v2519 = vpop.f32.mrb[0].mxu0
  %2520 = vmatprep.mubr.bf16.mxu0 %v2238
  %2521 = vmatmul.mubr.bf16.gmra.mrb[0].mxu0 %v1997
  %v2522 = vpop.f32.mrb[0].mxu0
  %v2523 = vadd.f32 0.0, %v2522
  %v2524 = vpop.f32.mrb[0].mxu0
  %v2525 = vpop.f32.mrb[0].mxu0
  %v2526 = vadd.f32 0.0, %v2525
  %v2527 = vpop.f32.mrb[0].mxu0
  %2528 = vdwg.mxu0
  %v2529 = vld [vmem:[%s5 + $0x2] ss:$0 sm:$0xff]
  %v2530 = vmul.f32 %v2275, %v2529
  %v2531 = vmul.f32 %v2278, %v2529
  %v2532 = vmul.f32 %v2283, %v2529
  %v2533 = vmul.f32 %v2286, %v2529
  %v2534 = vmul.f32 %v2291, %v2529
  %v2535 = vmul.f32 %v2294, %v2529
  %v2536 = vmul.f32 %v2299, %v2529
  %v2537 = vmul.f32 %v2302, %v2529
  %v2538 = vmul.f32 %v2307, %v2529
  %v2539 = vmul.f32 %v2310, %v2529
  %v2540 = vmul.f32 %v2315, %v2529
  %v2541 = vmul.f32 %v2318, %v2529
  %v2542 = vmul.f32 %v2323, %v2529
  %v2543 = vmul.f32 %v2326, %v2529
  %v2544 = vmul.f32 %v2331, %v2529
  %v2545 = vmul.f32 %v2334, %v2529
  %v2546 = vmul.f32 %v2339, %v2529
  %v2547 = vmul.f32 %v2342, %v2529
  %v2548 = vmul.f32 %v2347, %v2529
  %v2549 = vmul.f32 %v2350, %v2529
  %v2550 = vmul.f32 %v2355, %v2529
  %v2551 = vmul.f32 %v2358, %v2529
  %v2552 = vmul.f32 %v2363, %v2529
  %v2553 = vmul.f32 %v2366, %v2529
  %v2554 = vmul.f32 %v2371, %v2529
  %v2555 = vmul.f32 %v2374, %v2529
  %v2556 = vmul.f32 %v2379, %v2529
  %v2557 = vmul.f32 %v2382, %v2529
  %v2558 = vmul.f32 %v2387, %v2529
  %v2559 = vmul.f32 %v2390, %v2529
  %v2560 = vmul.f32 %v2395, %v2529
  %v2561 = vmul.f32 %v2398, %v2529
  %v2562 = vmul.f32 %v2403, %v2529
  %v2563 = vmul.f32 %v2406, %v2529
  %v2564 = vmul.f32 %v2411, %v2529
  %v2565 = vmul.f32 %v2414, %v2529
  %v2566 = vmul.f32 %v2419, %v2529
  %v2567 = vmul.f32 %v2422, %v2529
  %v2568 = vmul.f32 %v2427, %v2529
  %v2569 = vmul.f32 %v2430, %v2529
  %v2570 = vmul.f32 %v2435, %v2529
  %v2571 = vmul.f32 %v2438, %v2529
  %v2572 = vmul.f32 %v2443, %v2529
  %v2573 = vmul.f32 %v2446, %v2529
  %v2574 = vmul.f32 %v2451, %v2529
  %v2575 = vmul.f32 %v2454, %v2529
  %v2576 = vmul.f32 %v2459, %v2529
  %v2577 = vmul.f32 %v2462, %v2529
  %v2578 = vmul.f32 %v2467, %v2529
  %v2579 = vmul.f32 %v2470, %v2529
  %v2580 = vmul.f32 %v2475, %v2529
  %v2581 = vmul.f32 %v2478, %v2529
  %v2582 = vmul.f32 %v2483, %v2529
  %v2583 = vmul.f32 %v2486, %v2529
  %v2584 = vmul.f32 %v2491, %v2529
  %v2585 = vmul.f32 %v2494, %v2529
  %v2586 = vmul.f32 %v2499, %v2529
  %v2587 = vmul.f32 %v2502, %v2529
  %v2588 = vmul.f32 %v2507, %v2529
  %v2589 = vmul.f32 %v2510, %v2529
  %v2590 = vmul.f32 %v2515, %v2529
  %v2591 = vmul.f32 %v2518, %v2529
  %v2592 = vmul.f32 %v2523, %v2529
  %v2593 = vmul.f32 %v2526, %v2529
  %v2594 = vld [vmem:[%s5 + $0x3] ss:$0 sm:$0xff]
  %v2595 = vadd.f32 %v2530, %v2594
  %v2596 = vadd.f32 %v2531, %v2594
  %v2597 = vadd.f32 %v2532, %v2594
  %v2598 = vadd.f32 %v2533, %v2594
  %v2599 = vadd.f32 %v2534, %v2594
  %v2600 = vadd.f32 %v2535, %v2594
  %v2601 = vadd.f32 %v2536, %v2594
  %v2602 = vadd.f32 %v2537, %v2594
  %v2603 = vadd.f32 %v2538, %v2594
  %v2604 = vadd.f32 %v2539, %v2594
  %v2605 = vadd.f32 %v2540, %v2594
  %v2606 = vadd.f32 %v2541, %v2594
  %v2607 = vadd.f32 %v2542, %v2594
  %v2608 = vadd.f32 %v2543, %v2594
  %v2609 = vadd.f32 %v2544, %v2594
  %v2610 = vadd.f32 %v2545, %v2594
  %v2611 = vadd.f32 %v2546, %v2594
  %v2612 = vadd.f32 %v2547, %v2594
  %v2613 = vadd.f32 %v2548, %v2594
  %v2614 = vadd.f32 %v2549, %v2594
  %v2615 = vadd.f32 %v2550, %v2594
  %v2616 = vadd.f32 %v2551, %v2594
  %v2617 = vadd.f32 %v2552, %v2594
  %v2618 = vadd.f32 %v2553, %v2594
  %v2619 = vadd.f32 %v2554, %v2594
  %v2620 = vadd.f32 %v2555, %v2594
  %v2621 = vadd.f32 %v2556, %v2594
  %v2622 = vadd.f32 %v2557, %v2594
  %v2623 = vadd.f32 %v2558, %v2594
  %v2624 = vadd.f32 %v2559, %v2594
  %v2625 = vadd.f32 %v2560, %v2594
  %v2626 = vadd.f32 %v2561, %v2594
  %v2627 = vadd.f32 %v2562, %v2594
  %v2628 = vadd.f32 %v2563, %v2594
  %v2629 = vadd.f32 %v2564, %v2594
  %v2630 = vadd.f32 %v2565, %v2594
  %v2631 = vadd.f32 %v2566, %v2594
  %v2632 = vadd.f32 %v2567, %v2594
  %v2633 = vadd.f32 %v2568, %v2594
  %v2634 = vadd.f32 %v2569, %v2594
  %v2635 = vadd.f32 %v2570, %v2594
  %v2636 = vadd.f32 %v2571, %v2594
  %v2637 = vadd.f32 %v2572, %v2594
  %v2638 = vadd.f32 %v2573, %v2594
  %v2639 = vadd.f32 %v2574, %v2594
  %v2640 = vadd.f32 %v2575, %v2594
  %v2641 = vadd.f32 %v2576, %v2594
  %v2642 = vadd.f32 %v2577, %v2594
  %v2643 = vadd.f32 %v2578, %v2594
  %v2644 = vadd.f32 %v2579, %v2594
  %v2645 = vadd.f32 %v2580, %v2594
  %v2646 = vadd.f32 %v2581, %v2594
  %v2647 = vadd.f32 %v2582, %v2594
  %v2648 = vadd.f32 %v2583, %v2594
  %v2649 = vadd.f32 %v2584, %v2594
  %v2650 = vadd.f32 %v2585, %v2594
  %v2651 = vadd.f32 %v2586, %v2594
  %v2652 = vadd.f32 %v2587, %v2594
  %v2653 = vadd.f32 %v2588, %v2594
  %v2654 = vadd.f32 %v2589, %v2594
  %v2655 = vadd.f32 %v2590, %v2594
  %v2656 = vadd.f32 %v2591, %v2594
  %v2657 = vadd.f32 %v2592, %v2594
  %v2658 = vadd.f32 %v2593, %v2594
  %v2659 = vmax.f32 %v2595, 0.0
  %v2660 = vmax.f32 %v2596, 0.0
  %v2661 = vmax.f32 %v2597, 0.0
  %v2662 = vmax.f32 %v2598, 0.0
  %v2663 = vmax.f32 %v2599, 0.0
  %v2664 = vmax.f32 %v2600, 0.0
  %v2665 = vmax.f32 %v2601, 0.0
  %v2666 = vmax.f32 %v2602, 0.0
  %v2667 = vmax.f32 %v2603, 0.0
  %v2668 = vmax.f32 %v2604, 0.0
  %v2669 = vmax.f32 %v2605, 0.0
  %v2670 = vmax.f32 %v2606, 0.0
  %v2671 = vmax.f32 %v2607, 0.0
  %v2672 = vmax.f32 %v2608, 0.0
  %v2673 = vmax.f32 %v2609, 0.0
  %v2674 = vmax.f32 %v2610, 0.0
  %v2675 = vmax.f32 %v2611, 0.0
  %v2676 = vmax.f32 %v2612, 0.0
  %v2677 = vmax.f32 %v2613, 0.0
  %v2678 = vmax.f32 %v2614, 0.0
  %v2679 = vmax.f32 %v2615, 0.0
  %v2680 = vmax.f32 %v2616, 0.0
  %v2681 = vmax.f32 %v2617, 0.0
  %v2682 = vmax.f32 %v2618, 0.0
  %v2683 = vmax.f32 %v2619, 0.0
  %v2684 = vmax.f32 %v2620, 0.0
  %v2685 = vmax.f32 %v2621, 0.0
  %v2686 = vmax.f32 %v2622, 0.0
  %v2687 = vmax.f32 %v2623, 0.0
  %v2688 = vmax.f32 %v2624, 0.0
  %v2689 = vmax.f32 %v2625, 0.0
  %v2690 = vmax.f32 %v2626, 0.0
  %v2691 = vmax.f32 %v2627, 0.0
  %v2692 = vmax.f32 %v2628, 0.0
  %v2693 = vmax.f32 %v2629, 0.0
  %v2694 = vmax.f32 %v2630, 0.0
  %v2695 = vmax.f32 %v2631, 0.0
  %v2696 = vmax.f32 %v2632, 0.0
  %v2697 = vmax.f32 %v2633, 0.0
  %v2698 = vmax.f32 %v2634, 0.0
  %v2699 = vmax.f32 %v2635, 0.0
  %v2700 = vmax.f32 %v2636, 0.0
  %v2701 = vmax.f32 %v2637, 0.0
  %v2702 = vmax.f32 %v2638, 0.0
  %v2703 = vmax.f32 %v2639, 0.0
  %v2704 = vmax.f32 %v2640, 0.0
  %v2705 = vmax.f32 %v2641, 0.0
  %v2706 = vmax.f32 %v2642, 0.0
  %v2707 = vmax.f32 %v2643, 0.0
  %v2708 = vmax.f32 %v2644, 0.0
  %v2709 = vmax.f32 %v2645, 0.0
  %v2710 = vmax.f32 %v2646, 0.0
  %v2711 = vmax.f32 %v2647, 0.0
  %v2712 = vmax.f32 %v2648, 0.0
  %v2713 = vmax.f32 %v2649, 0.0
  %v2714 = vmax.f32 %v2650, 0.0
  %v2715 = vmax.f32 %v2651, 0.0
  %v2716 = vmax.f32 %v2652, 0.0
  %v2717 = vmax.f32 %v2653, 0.0
  %v2718 = vmax.f32 %v2654, 0.0
  %v2719 = vmax.f32 %v2655, 0.0
  %v2720 = vmax.f32 %v2656, 0.0
  %v2721 = vmax.f32 %v2657, 0.0
  %v2722 = vmax.f32 %v2658, 0.0
  %2787 = vrot.lane.b32.xlu0 %v2659, 64
  %v2788 = vpop.permute.xlu0 %2787
  %2789 = vrot.lane.b32.xlu0 %v2660, 64
  %v2790 = vpop.permute.xlu0 %2789
  %2791 = vrot.lane.b32.xlu0 %v2661, 64
  %v2792 = vpop.permute.xlu0 %2791
  %2793 = vrot.lane.b32.xlu0 %v2662, 64
  %v2794 = vpop.permute.xlu0 %2793
  %2795 = vrot.lane.b32.xlu0 %v2663, 64
  %v2796 = vpop.permute.xlu0 %2795
  %2797 = vrot.lane.b32.xlu0 %v2664, 64
  %v2798 = vpop.permute.xlu0 %2797
  %2799 = vrot.lane.b32.xlu0 %v2665, 64
  %v2800 = vpop.permute.xlu0 %2799
  %2801 = vrot.lane.b32.xlu0 %v2666, 64
  %v2802 = vpop.permute.xlu0 %2801
  %2803 = vrot.lane.b32.xlu0 %v2667, 64
  %v2804 = vpop.permute.xlu0 %2803
  %2805 = vrot.lane.b32.xlu0 %v2668, 64
  %v2806 = vpop.permute.xlu0 %2805
  %2807 = vrot.lane.b32.xlu0 %v2669, 64
  %v2808 = vpop.permute.xlu0 %2807
  %2809 = vrot.lane.b32.xlu0 %v2670, 64
  %v2810 = vpop.permute.xlu0 %2809
  %2811 = vrot.lane.b32.xlu0 %v2671, 64
  %v2812 = vpop.permute.xlu0 %2811
  %2813 = vrot.lane.b32.xlu0 %v2672, 64
  %v2814 = vpop.permute.xlu0 %2813
  %2815 = vrot.lane.b32.xlu0 %v2673, 64
  %v2816 = vpop.permute.xlu0 %2815
  %2817 = vrot.lane.b32.xlu0 %v2674, 64
  %v2818 = vpop.permute.xlu0 %2817
  %2819 = vrot.lane.b32.xlu0 %v2675, 64
  %v2820 = vpop.permute.xlu0 %2819
  %2821 = vrot.lane.b32.xlu0 %v2676, 64
  %v2822 = vpop.permute.xlu0 %2821
  %2823 = vrot.lane.b32.xlu0 %v2677, 64
  %v2824 = vpop.permute.xlu0 %2823
  %2825 = vrot.lane.b32.xlu0 %v2678, 64
  %v2826 = vpop.permute.xlu0 %2825
  %2827 = vrot.lane.b32.xlu0 %v2679, 64
  %v2828 = vpop.permute.xlu0 %2827
  %2829 = vrot.lane.b32.xlu0 %v2680, 64
  %v2830 = vpop.permute.xlu0 %2829
  %2831 = vrot.lane.b32.xlu0 %v2681, 64
  %v2832 = vpop.permute.xlu0 %2831
  %2833 = vrot.lane.b32.xlu0 %v2682, 64
  %v2834 = vpop.permute.xlu0 %2833
  %2835 = vrot.lane.b32.xlu0 %v2683, 64
  %v2836 = vpop.permute.xlu0 %2835
  %2837 = vrot.lane.b32.xlu0 %v2684, 64
  %v2838 = vpop.permute.xlu0 %2837
  %2839 = vrot.lane.b32.xlu0 %v2685, 64
  %v2840 = vpop.permute.xlu0 %2839
  %2841 = vrot.lane.b32.xlu0 %v2686, 64
  %v2842 = vpop.permute.xlu0 %2841
  %2843 = vrot.lane.b32.xlu0 %v2687, 64
  %v2844 = vpop.permute.xlu0 %2843
  %2845 = vrot.lane.b32.xlu0 %v2688, 64
  %v2846 = vpop.permute.xlu0 %2845
  %2847 = vrot.lane.b32.xlu0 %v2689, 64
  %v2848 = vpop.permute.xlu0 %2847
  %2849 = vrot.lane.b32.xlu0 %v2690, 64
  %v2850 = vpop.permute.xlu0 %2849
  %2851 = vrot.lane.b32.xlu0 %v2691, 64
  %v2852 = vpop.permute.xlu0 %2851
  %2853 = vrot.lane.b32.xlu0 %v2692, 64
  %v2854 = vpop.permute.xlu0 %2853
  %2855 = vrot.lane.b32.xlu0 %v2693, 64
  %v2856 = vpop.permute.xlu0 %2855
  %2857 = vrot.lane.b32.xlu0 %v2694, 64
  %v2858 = vpop.permute.xlu0 %2857
  %2859 = vrot.lane.b32.xlu0 %v2695, 64
  %v2860 = vpop.permute.xlu0 %2859
  %2861 = vrot.lane.b32.xlu0 %v2696, 64
  %v2862 = vpop.permute.xlu0 %2861
  %2863 = vrot.lane.b32.xlu0 %v2697, 64
  %v2864 = vpop.permute.xlu0 %2863
  %2865 = vrot.lane.b32.xlu0 %v2698, 64
  %v2866 = vpop.permute.xlu0 %2865
  %2867 = vrot.lane.b32.xlu0 %v2699, 64
  %v2868 = vpop.permute.xlu0 %2867
  %2869 = vrot.lane.b32.xlu0 %v2700, 64
  %v2870 = vpop.permute.xlu0 %2869
  %2871 = vrot.lane.b32.xlu0 %v2701, 64
  %v2872 = vpop.permute.xlu0 %2871
  %2873 = vrot.lane.b32.xlu0 %v2702, 64
  %v2874 = vpop.permute.xlu0 %2873
  %2875 = vrot.lane.b32.xlu0 %v2703, 64
  %v2876 = vpop.permute.xlu0 %2875
  %2877 = vrot.lane.b32.xlu0 %v2704, 64
  %v2878 = vpop.permute.xlu0 %2877
  %2879 = vrot.lane.b32.xlu0 %v2705, 64
  %v2880 = vpop.permute.xlu0 %2879
  %2881 = vrot.lane.b32.xlu0 %v2706, 64
  %v2882 = vpop.permute.xlu0 %2881
  %2883 = vrot.lane.b32.xlu0 %v2707, 64
  %v2884 = vpop.permute.xlu0 %2883
  %2885 = vrot.lane.b32.xlu0 %v2708, 64
  %v2886 = vpop.permute.xlu0 %2885
  %2887 = vrot.lane.b32.xlu0 %v2709, 64
  %v2888 = vpop.permute.xlu0 %2887
  %2889 = vrot.lane.b32.xlu0 %v2710, 64
  %v2890 = vpop.permute.xlu0 %2889
  %2891 = vrot.lane.b32.xlu0 %v2711, 64
  %v2892 = vpop.permute.xlu0 %2891
  %2893 = vrot.lane.b32.xlu0 %v2712, 64
  %v2894 = vpop.permute.xlu0 %2893
  %2895 = vrot.lane.b32.xlu0 %v2713, 64
  %v2896 = vpop.permute.xlu0 %2895
  %2897 = vrot.lane.b32.xlu0 %v2714, 64
  %v2898 = vpop.permute.xlu0 %2897
  %2899 = vrot.lane.b32.xlu0 %v2715, 64
  %v2900 = vpop.permute.xlu0 %2899
  %2901 = vrot.lane.b32.xlu0 %v2716, 64
  %v2902 = vpop.permute.xlu0 %2901
  %2903 = vrot.lane.b32.xlu0 %v2717, 64
  %v2904 = vpop.permute.xlu0 %2903
  %2905 = vrot.lane.b32.xlu0 %v2718, 64
  %v2906 = vpop.permute.xlu0 %2905
  %2907 = vrot.lane.b32.xlu0 %v2719, 64
  %v2908 = vpop.permute.xlu0 %2907
  %2909 = vrot.lane.b32.xlu0 %v2720, 64
  %v2910 = vpop.permute.xlu0 %2909
  %2911 = vrot.lane.b32.xlu0 %v2721, 64
  %v2912 = vpop.permute.xlu0 %2911
  %2913 = vrot.lane.b32.xlu0 %v2722, 64
  %v2914 = vpop.permute.xlu0 %2913
  %v2979 = vmax.f32 %v2659, %v2788
  %v2980 = vmax.f32 %v2660, %v2790
  %v2981 = vmax.f32 %v2661, %v2792
  %v2982 = vmax.f32 %v2662, %v2794
  %v2983 = vmax.f32 %v2663, %v2796
  %v2984 = vmax.f32 %v2664, %v2798
  %v2985 = vmax.f32 %v2665, %v2800
  %v2986 = vmax.f32 %v2666, %v2802
  %v2987 = vmax.f32 %v2667, %v2804
  %v2988 = vmax.f32 %v2668, %v2806
  %v2989 = vmax.f32 %v2669, %v2808
  %v2990 = vmax.f32 %v2670, %v2810
  %v2991 = vmax.f32 %v2671, %v2812
  %v2992 = vmax.f32 %v2672, %v2814
  %v2993 = vmax.f32 %v2673, %v2816
  %v2994 = vmax.f32 %v2674, %v2818
  %v2995 = vmax.f32 %v2675, %v2820
  %v2996 = vmax.f32 %v2676, %v2822
  %v2997 = vmax.f32 %v2677, %v2824
  %v2998 = vmax.f32 %v2678, %v2826
  %v2999 = vmax.f32 %v2679, %v2828
  %v3000 = vmax.f32 %v2680, %v2830
  %v3001 = vmax.f32 %v2681, %v2832
  %v3002 = vmax.f32 %v2682, %v2834
  %v3003 = vmax.f32 %v2683, %v2836
  %v3004 = vmax.f32 %v2684, %v2838
  %v3005 = vmax.f32 %v2685, %v2840
  %v3006 = vmax.f32 %v2686, %v2842
  %v3007 = vmax.f32 %v2687, %v2844
  %v3008 = vmax.f32 %v2688, %v2846
  %v3009 = vmax.f32 %v2689, %v2848
  %v3010 = vmax.f32 %v2690, %v2850
  %v3011 = vmax.f32 %v2691, %v2852
  %v3012 = vmax.f32 %v2692, %v2854
  %v3013 = vmax.f32 %v2693, %v2856
  %v3014 = vmax.f32 %v2694, %v2858
  %v3015 = vmax.f32 %v2695, %v2860
  %v3016 = vmax.f32 %v2696, %v2862
  %v3017 = vmax.f32 %v2697, %v2864
  %v3018 = vmax.f32 %v2698, %v2866
  %v3019 = vmax.f32 %v2699, %v2868
  %v3020 = vmax.f32 %v2700, %v2870
  %v3021 = vmax.f32 %v2701, %v2872
  %v3022 = vmax.f32 %v2702, %v2874
  %v3023 = vmax.f32 %v2703, %v2876
  %v3024 = vmax.f32 %v2704, %v2878
  %v3025 = vmax.f32 %v2705, %v2880
  %v3026 = vmax.f32 %v2706, %v2882
  %v3027 = vmax.f32 %v2707, %v2884
  %v3028 = vmax.f32 %v2708, %v2886
  %v3029 = vmax.f32 %v2709, %v2888
  %v3030 = vmax.f32 %v2710, %v2890
  %v3031 = vmax.f32 %v2711, %v2892
  %v3032 = vmax.f32 %v2712, %v2894
  %v3033 = vmax.f32 %v2713, %v2896
  %v3034 = vmax.f32 %v2714, %v2898
  %v3035 = vmax.f32 %v2715, %v2900
  %v3036 = vmax.f32 %v2716, %v2902
  %v3037 = vmax.f32 %v2717, %v2904
  %v3038 = vmax.f32 %v2718, %v2906
  %v3039 = vmax.f32 %v2719, %v2908
  %v3040 = vmax.f32 %v2720, %v2910
  %v3041 = vmax.f32 %v2721, %v2912
  %v3042 = vmax.f32 %v2722, %v2914
  %v3043 = vpack.c.bf16 %v2980, %v2979
  %v3044 = vpack.c.bf16 %v2982, %v2981
  %v3045 = vpack.c.bf16 %v2984, %v2983
  %v3046 = vpack.c.bf16 %v2986, %v2985
  %v3047 = vpack.c.bf16 %v2988, %v2987
  %v3048 = vpack.c.bf16 %v2990, %v2989
  %v3049 = vpack.c.bf16 %v2992, %v2991
  %v3050 = vpack.c.bf16 %v2994, %v2993
  %v3051 = vpack.c.bf16 %v2996, %v2995
  %v3052 = vpack.c.bf16 %v2998, %v2997
  %v3053 = vpack.c.bf16 %v3000, %v2999
  %v3054 = vpack.c.bf16 %v3002, %v3001
  %v3055 = vpack.c.bf16 %v3004, %v3003
  %v3056 = vpack.c.bf16 %v3006, %v3005
  %v3057 = vpack.c.bf16 %v3008, %v3007
  %v3058 = vpack.c.bf16 %v3010, %v3009
  %v3059 = vpack.c.bf16 %v3012, %v3011
  %v3060 = vpack.c.bf16 %v3014, %v3013
  %v3061 = vpack.c.bf16 %v3016, %v3015
  %v3062 = vpack.c.bf16 %v3018, %v3017
  %v3063 = vpack.c.bf16 %v3020, %v3019
  %v3064 = vpack.c.bf16 %v3022, %v3021
  %v3065 = vpack.c.bf16 %v3024, %v3023
  %v3066 = vpack.c.bf16 %v3026, %v3025
  %v3067 = vpack.c.bf16 %v3028, %v3027
  %v3068 = vpack.c.bf16 %v3030, %v3029
  %v3069 = vpack.c.bf16 %v3032, %v3031
  %v3070 = vpack.c.bf16 %v3034, %v3033
  %v3071 = vpack.c.bf16 %v3036, %v3035
  %v3072 = vpack.c.bf16 %v3038, %v3037
  %v3073 = vpack.c.bf16 %v3040, %v3039
  %v3074 = vpack.c.bf16 %v3042, %v3041
  %v3083 = vunpack.c.l.b16 %v3043
  %v3084 = vunpack.c.l.b16 %v3047
  %v3085 = vunpack.c.l.b16 %v3051
  %v3086 = vunpack.c.l.b16 %v3055
  %v3087 = vunpack.c.l.b16 %v3059
  %v3088 = vunpack.c.l.b16 %v3063
  %v3089 = vunpack.c.l.b16 %v3067
  %v3090 = vunpack.c.l.b16 %v3071
  %v3091 = vrot.slane %v3084, 7
  %vm3092 = vcmask 1041409
  %v3093 = vsel %vm3092, %v3091, %v3083
  %v3094 = vrot.slane %v3085, 6
  %vm3095 = vcmask 1042434
  %v3096 = vsel %vm3095, %v3094, %v3093
  %v3097 = vrot.slane %v3086, 5
  %vm3098 = vcmask 1043459
  %v3099 = vsel %vm3098, %v3097, %v3096
  %v3100 = vrot.slane %v3087, 4
  %vm3101 = vcmask 1044484
  %v3102 = vsel %vm3101, %v3100, %v3099
  %v3103 = vrot.slane %v3088, 3
  %vm3104 = vcmask 1045509
  %v3105 = vsel %vm3104, %v3103, %v3102
  %v3106 = vrot.slane %v3089, 2
  %vm3107 = vcmask 1046534
  %v3108 = vsel %vm3107, %v3106, %v3105
  %v3109 = vrot.slane %v3090, 1
  %vm3110 = vcmask 1047559
  %v3111 = vsel %vm3110, %v3109, %v3108
  %v3112 = vpack.c.b16 %v3111, %v3111
  %v3113 = vrot.slane %v3083, 1
  %v3114 = vsel %vm3092, %v3084, %v3113
  %v3115 = vrot.slane %v3085, 7
  %v3116 = vsel %vm3095, %v3115, %v3114
  %v3117 = vrot.slane %v3086, 6
  %v3118 = vsel %vm3098, %v3117, %v3116
  %v3119 = vrot.slane %v3087, 5
  %v3120 = vsel %vm3101, %v3119, %v3118
  %v3121 = vrot.slane %v3088, 4
  %v3122 = vsel %vm3104, %v3121, %v3120
  %v3123 = vrot.slane %v3089, 3
  %v3124 = vsel %vm3107, %v3123, %v3122
  %v3125 = vrot.slane %v3090, 2
  %v3126 = vsel %vm3110, %v3125, %v3124
  %v3127 = vpack.c.b16 %v3126, %v3126
  %3128 = vrot.lane.b32.xlu0 %v3127, 64
  %v3129 = vpop.permute.xlu0 %3128
  %v3130 = vrot.slane %v3083, 2
  %v3131 = vrot.slane %v3084, 1
  %v3132 = vsel %vm3092, %v3131, %v3130
  %v3133 = vsel %vm3095, %v3085, %v3132
  %v3134 = vrot.slane %v3086, 7
  %v3135 = vsel %vm3098, %v3134, %v3133
  %v3136 = vrot.slane %v3087, 6
  %v3137 = vsel %vm3101, %v3136, %v3135
  %v3138 = vrot.slane %v3088, 5
  %v3139 = vsel %vm3104, %v3138, %v3137
  %v3140 = vrot.slane %v3089, 4
  %v3141 = vsel %vm3107, %v3140, %v3139
  %v3142 = vrot.slane %v3090, 3
  %v3143 = vsel %vm3110, %v3142, %v3141
  %v3144 = vpack.c.b16 %v3143, %v3143
  %v3145 = vrot.slane %v3083, 3
  %v3146 = vrot.slane %v3084, 2
  %v3147 = vsel %vm3092, %v3146, %v3145
  %v3148 = vrot.slane %v3085, 1
  %v3149 = vsel %vm3095, %v3148, %v3147
  %v3150 = vsel %vm3098, %v3086, %v3149
  %v3151 = vrot.slane %v3087, 7
  %v3152 = vsel %vm3101, %v3151, %v3150
  %v3153 = vrot.slane %v3088, 6
  %v3154 = vsel %vm3104, %v3153, %v3152
  %v3155 = vrot.slane %v3089, 5
  %v3156 = vsel %vm3107, %v3155, %v3154
  %v3157 = vrot.slane %v3090, 4
  %v3158 = vsel %vm3110, %v3157, %v3156
  %v3159 = vpack.c.b16 %v3158, %v3158
  %3160 = vrot.lane.b32.xlu0 %v3159, 64
  %v3161 = vpop.permute.xlu0 %3160
  %v3164 = vsel %vm1870, %v3112, %v3129
  %v3168 = vsel %vm1870, %v3144, %v3161
  %v3170 = vld [vmem:[%s3] sm:$0xf]
  %v3171 = vld [vmem:[%s3 + $0x4] sm:$0xf]
  %v3172 = vld [vmem:[%s3 + $0x8] sm:$0xf]
  %v3173 = vld [vmem:[%s3 + $0xc] sm:$0xf]
  %v3174 = vld [vmem:[%s3 + $0x10] sm:$0xf]
  %v3175 = vld [vmem:[%s3 + $0x14] sm:$0xf]
  %v3176 = vld [vmem:[%s3 + $0x18] sm:$0xf]
  %v3177 = vld [vmem:[%s3 + $0x1c] sm:$0xf]
  %v3178 = vld [vmem:[%s3 + $0x20] sm:$0xf]
  %v3179 = vld [vmem:[%s3 + $0x24] sm:$0xf]
  %v3180 = vld [vmem:[%s3 + $0x28] sm:$0xf]
  %v3181 = vld [vmem:[%s3 + $0x2c] sm:$0xf]
  %v3182 = vld [vmem:[%s3 + $0x30] sm:$0xf]
  %v3183 = vld [vmem:[%s3 + $0x34] sm:$0xf]
  %v3184 = vld [vmem:[%s3 + $0x38] sm:$0xf]
  %v3185 = vld [vmem:[%s3 + $0x3c] sm:$0xf]
  %v3186 = vld [vmem:[%s3 + $0x40] sm:$0xf]
  %v3187 = vld [vmem:[%s3 + $0x44] sm:$0xf]
  %v3188 = vld [vmem:[%s3 + $0x48] sm:$0xf]
  %v3189 = vld [vmem:[%s3 + $0x4c] sm:$0xf]
  %v3190 = vld [vmem:[%s3 + $0x50] sm:$0xf]
  %v3191 = vld [vmem:[%s3 + $0x54] sm:$0xf]
  %v3192 = vld [vmem:[%s3 + $0x58] sm:$0xf]
  %v3193 = vld [vmem:[%s3 + $0x5c] sm:$0xf]
  %v3194 = vld [vmem:[%s3 + $0x60] sm:$0xf]
  %v3195 = vld [vmem:[%s3 + $0x64] sm:$0xf]
  %v3196 = vld [vmem:[%s3 + $0x68] sm:$0xf]
  %v3197 = vld [vmem:[%s3 + $0x6c] sm:$0xf]
  %v3198 = vld [vmem:[%s3 + $0x70] sm:$0xf]
  %v3199 = vld [vmem:[%s3 + $0x74] sm:$0xf]
  %v3200 = vld [vmem:[%s3 + $0x78] sm:$0xf]
  %v3201 = vld [vmem:[%s3 + $0x7c] sm:$0xf]
  %v3202 = vsel %vm3104, %v3091, %v3083
  %v3203 = vsel %vm3107, %v3094, %v3202
  %v3204 = vsel %vm3110, %v3097, %v3203
  %v3205 = vsel %vm3092, %v3103, %v3100
  %v3206 = vsel %vm3095, %v3106, %v3205
  %v3207 = vsel %vm3098, %v3109, %v3206
  %v3208 = vpack.c.b16 %v3207, %v3204
  %v3209 = vsel %vm3104, %v3084, %v3113
  %v3210 = vsel %vm3107, %v3115, %v3209
  %v3211 = vsel %vm3110, %v3117, %v3210
  %v3212 = vsel %vm3092, %v3121, %v3119
  %v3213 = vsel %vm3095, %v3123, %v3212
  %v3214 = vsel %vm3098, %v3125, %v3213
  %v3215 = vpack.c.b16 %v3214, %v3211
  %3216 = vrot.lane.b32.xlu0 %v3215, 64
  %v3217 = vpop.permute.xlu0 %3216
  %v3218 = vsel %vm3104, %v3131, %v3130
  %v3219 = vsel %vm3107, %v3085, %v3218
  %v3220 = vsel %vm3110, %v3134, %v3219
  %v3221 = vsel %vm3092, %v3138, %v3136
  %v3222 = vsel %vm3095, %v3140, %v3221
  %v3223 = vsel %vm3098, %v3142, %v3222
  %v3224 = vpack.c.b16 %v3223, %v3220
  %v3225 = vsel %vm3104, %v3146, %v3145
  %v3226 = vsel %vm3107, %v3148, %v3225
  %v3227 = vsel %vm3110, %v3086, %v3226
  %v3228 = vsel %vm3092, %v3153, %v3151
  %v3229 = vsel %vm3095, %v3155, %v3228
  %v3230 = vsel %vm3098, %v3157, %v3229
  %v3231 = vpack.c.b16 %v3230, %v3227
  %3232 = vrot.lane.b32.xlu0 %v3231, 64
  %v3233 = vpop.permute.xlu0 %3232
  %v3236 = vsel %vm1870, %v3208, %v3217
  %v3239 = vsel %vm1870, %v3224, %v3233
  %s3240 = scalar_lea.vmem %s3, 128
  %v3241 = vld [vmem:[%s3240] sm:$0xf]
  %v3242 = vld [vmem:[%s3240 + $0x4] sm:$0xf]
  %v3243 = vld [vmem:[%s3240 + $0x8] sm:$0xf]
  %v3244 = vld [vmem:[%s3240 + $0xc] sm:$0xf]
  %v3245 = vld [vmem:[%s3240 + $0x10] sm:$0xf]
  %v3246 = vld [vmem:[%s3240 + $0x14] sm:$0xf]
  %v3247 = vld [vmem:[%s3240 + $0x18] sm:$0xf]
  %v3248 = vld [vmem:[%s3240 + $0x1c] sm:$0xf]
  %v3249 = vld [vmem:[%s3240 + $0x20] sm:$0xf]
  %v3250 = vld [vmem:[%s3240 + $0x24] sm:$0xf]
  %v3251 = vld [vmem:[%s3240 + $0x28] sm:$0xf]
  %v3252 = vld [vmem:[%s3240 + $0x2c] sm:$0xf]
  %v3253 = vld [vmem:[%s3240 + $0x30] sm:$0xf]
  %v3254 = vld [vmem:[%s3240 + $0x34] sm:$0xf]
  %v3255 = vld [vmem:[%s3240 + $0x38] sm:$0xf]
  %v3256 = vld [vmem:[%s3240 + $0x3c] sm:$0xf]
  %v3257 = vld [vmem:[%s3240 + $0x40] sm:$0xf]
  %v3258 = vld [vmem:[%s3240 + $0x44] sm:$0xf]
  %v3259 = vld [vmem:[%s3240 + $0x48] sm:$0xf]
  %v3260 = vld [vmem:[%s3240 + $0x4c] sm:$0xf]
  %v3261 = vld [vmem:[%s3240 + $0x50] sm:$0xf]
  %v3262 = vld [vmem:[%s3240 + $0x54] sm:$0xf]
  %v3263 = vld [vmem:[%s3240 + $0x58] sm:$0xf]
  %v3264 = vld [vmem:[%s3240 + $0x5c] sm:$0xf]
  %v3265 = vld [vmem:[%s3240 + $0x60] sm:$0xf]
  %v3266 = vld [vmem:[%s3240 + $0x64] sm:$0xf]
  %v3267 = vld [vmem:[%s3240 + $0x68] sm:$0xf]
  %v3268 = vld [vmem:[%s3240 + $0x6c] sm:$0xf]
  %v3269 = vld [vmem:[%s3240 + $0x70] sm:$0xf]
  %v3270 = vld [vmem:[%s3240 + $0x74] sm:$0xf]
  %v3271 = vld [vmem:[%s3240 + $0x78] sm:$0xf]
  %v3272 = vld [vmem:[%s3240 + $0x7c] sm:$0xf]
  %v3275 = vrot.slane %v3236, 2
  %v3276 = vrot.slane %v3239, 2
  %v3311 = vunpack.c.l.b16 %v3241
  %v3312 = vunpack.c.l.b16 %v3242
  %v3313 = vunpack.c.l.b16 %v3243
  %v3314 = vunpack.c.l.b16 %v3244
  %v3315 = vunpack.c.l.b16 %v3245
  %v3316 = vunpack.c.l.b16 %v3246
  %v3317 = vunpack.c.l.b16 %v3247
  %v3318 = vunpack.c.l.b16 %v3248
  %v3319 = vunpack.c.l.b16 %v3249
  %v3320 = vunpack.c.l.b16 %v3250
  %v3321 = vunpack.c.l.b16 %v3251
  %v3322 = vunpack.c.l.b16 %v3252
  %v3323 = vunpack.c.l.b16 %v3253
  %v3324 = vunpack.c.l.b16 %v3254
  %v3325 = vunpack.c.l.b16 %v3255
  %v3326 = vunpack.c.l.b16 %v3256
  %v3327 = vunpack.c.l.b16 %v3257
  %v3328 = vunpack.c.l.b16 %v3258
  %v3329 = vunpack.c.l.b16 %v3259
  %v3330 = vunpack.c.l.b16 %v3260
  %v3331 = vunpack.c.l.b16 %v3261
  %v3332 = vunpack.c.l.b16 %v3262
  %v3333 = vunpack.c.l.b16 %v3263
  %v3334 = vunpack.c.l.b16 %v3264
  %v3335 = vunpack.c.l.b16 %v3265
  %v3336 = vunpack.c.l.b16 %v3266
  %v3337 = vunpack.c.l.b16 %v3267
  %v3338 = vunpack.c.l.b16 %v3268
  %v3339 = vunpack.c.l.b16 %v3269
  %v3340 = vunpack.c.l.b16 %v3270
  %v3341 = vunpack.c.l.b16 %v3271
  %v3342 = vunpack.c.l.b16 %v3272
  %v3343 = vpack.c.b16 %v3312, %v3311
  %v3344 = vpack.c.b16 %v3314, %v3313
  %v3345 = vpack.c.b16 %v3316, %v3315
  %v3346 = vpack.c.b16 %v3318, %v3317
  %v3347 = vpack.c.b16 %v3320, %v3319
  %v3348 = vpack.c.b16 %v3322, %v3321
  %v3349 = vpack.c.b16 %v3324, %v3323
  %v3350 = vpack.c.b16 %v3326, %v3325
  %v3351 = vpack.c.b16 %v3328, %v3327
  %v3352 = vpack.c.b16 %v3330, %v3329
  %v3353 = vpack.c.b16 %v3332, %v3331
  %v3354 = vpack.c.b16 %v3334, %v3333
  %v3355 = vpack.c.b16 %v3336, %v3335
  %v3356 = vpack.c.b16 %v3338, %v3337
  %v3357 = vpack.c.b16 %v3340, %v3339
  %v3358 = vpack.c.b16 %v3342, %v3341
  %3375 = vmatprep.subr.bf16.mxu0 0
  %3376 = vmatpush1.bf16.msra.mxu0 %v3343
  %3377 = vmatprep.subr.bf16.mxu0 0
  %3378 = vmatpush1.bf16.msra.mxu0 %v3344
  %3379 = vmatprep.subr.bf16.mxu0 0
  %3380 = vmatpush1.bf16.msra.mxu0 %v3345
  %3381 = vmatprep.subr.bf16.mxu0 0
  %3382 = vmatpush1.bf16.msra.mxu0 %v3346
  %3383 = vmatprep.subr.bf16.mxu0 0
  %3384 = vmatpush1.bf16.msra.mxu0 %v3347
  %3385 = vmatprep.subr.bf16.mxu0 0
  %3386 = vmatpush1.bf16.msra.mxu0 %v3348
  %3387 = vmatprep.subr.bf16.mxu0 0
  %3388 = vmatpush1.bf16.msra.mxu0 %v3349
  %3389 = vmatprep.subr.bf16.mxu0 0
  %3390 = vmatpush1.bf16.msra.mxu0 %v3350
  %3391 = vmatprep.subr.bf16.mxu0 0
  %3392 = vmatpush1.bf16.msra.mxu0 %v3351
  %3393 = vmatprep.subr.bf16.mxu0 0
  %3394 = vmatpush1.bf16.msra.mxu0 %v3352
  %3395 = vmatprep.subr.bf16.mxu0 0
  %3396 = vmatpush1.bf16.msra.mxu0 %v3353
  %3397 = vmatprep.subr.bf16.mxu0 0
  %3398 = vmatpush1.bf16.msra.mxu0 %v3354
  %3399 = vmatprep.subr.bf16.mxu0 0
  %3400 = vmatpush1.bf16.msra.mxu0 %v3355
  %3401 = vmatprep.subr.bf16.mxu0 0
  %3402 = vmatpush1.bf16.msra.mxu0 %v3356
  %3403 = vmatprep.subr.bf16.mxu0 0
  %3404 = vmatpush1.bf16.msra.mxu0 %v3357
  %3405 = vmatprep.subr.bf16.mxu0 0
  %3406 = vmatpush1.bf16.msra.mxu0 %v3358
  %3407 = vmatprep.mubr.bf16.mxu0 %v3276
  %3408 = vmatmul.mubr.bf16.gmra.mrb[0].mxu0 %v3275
  %v3409 = vpop.f32.mrb[0].mxu0
  %v3410 = vadd.f32 0.0, %v3409
  %v3411 = vpop.f32.mrb[0].mxu0
  %v3412 = vpop.f32.mrb[0].mxu0
  %v3413 = vpop.f32.mrb[0].mxu0
  %3414 = vdwg.mxu0
  %v3447 = vunpack.c.l.b16 %v3170
  %v3448 = vunpack.c.l.b16 %v3171
  %v3449 = vunpack.c.l.b16 %v3172
  %v3450 = vunpack.c.l.b16 %v3173
  %v3451 = vunpack.c.l.b16 %v3174
  %v3452 = vunpack.c.l.b16 %v3175
  %v3453 = vunpack.c.l.b16 %v3176
  %v3454 = vunpack.c.l.b16 %v3177
  %v3455 = vunpack.c.l.b16 %v3178
  %v3456 = vunpack.c.l.b16 %v3179
  %v3457 = vunpack.c.l.b16 %v3180
  %v3458 = vunpack.c.l.b16 %v3181
  %v3459 = vunpack.c.l.b16 %v3182
  %v3460 = vunpack.c.l.b16 %v3183
  %v3461 = vunpack.c.l.b16 %v3184
  %v3462 = vunpack.c.l.b16 %v3185
  %v3463 = vunpack.c.l.b16 %v3186
  %v3464 = vunpack.c.l.b16 %v3187
  %v3465 = vunpack.c.l.b16 %v3188
  %v3466 = vunpack.c.l.b16 %v3189
  %v3467 = vunpack.c.l.b16 %v3190
  %v3468 = vunpack.c.l.b16 %v3191
  %v3469 = vunpack.c.l.b16 %v3192
  %v3470 = vunpack.c.l.b16 %v3193
  %v3471 = vunpack.c.l.b16 %v3194
  %v3472 = vunpack.c.l.b16 %v3195
  %v3473 = vunpack.c.l.b16 %v3196
  %v3474 = vunpack.c.l.b16 %v3197
  %v3475 = vunpack.c.l.b16 %v3198
  %v3476 = vunpack.c.l.b16 %v3199
  %v3477 = vunpack.c.l.b16 %v3200
  %v3478 = vunpack.c.l.b16 %v3201
  %v3479 = vpack.c.b16 %v3448, %v3447
  %v3480 = vpack.c.b16 %v3450, %v3449
  %v3481 = vpack.c.b16 %v3452, %v3451
  %v3482 = vpack.c.b16 %v3454, %v3453
  %v3483 = vpack.c.b16 %v3456, %v3455
  %v3484 = vpack.c.b16 %v3458, %v3457
  %v3485 = vpack.c.b16 %v3460, %v3459
  %v3486 = vpack.c.b16 %v3462, %v3461
  %v3487 = vpack.c.b16 %v3464, %v3463
  %v3488 = vpack.c.b16 %v3466, %v3465
  %v3489 = vpack.c.b16 %v3468, %v3467
  %v3490 = vpack.c.b16 %v3470, %v3469
  %v3491 = vpack.c.b16 %v3472, %v3471
  %v3492 = vpack.c.b16 %v3474, %v3473
  %v3493 = vpack.c.b16 %v3476, %v3475
  %v3494 = vpack.c.b16 %v3478, %v3477
  %3511 = vmatprep.subr.bf16.mxu0 0
  %3512 = vmatpush1.bf16.msra.mxu0 %v3479
  %3513 = vmatprep.subr.bf16.mxu0 0
  %3514 = vmatpush1.bf16.msra.mxu0 %v3480
  %3515 = vmatprep.subr.bf16.mxu0 0
  %3516 = vmatpush1.bf16.msra.mxu0 %v3481
  %3517 = vmatprep.subr.bf16.mxu0 0
  %3518 = vmatpush1.bf16.msra.mxu0 %v3482
  %3519 = vmatprep.subr.bf16.mxu0 0
  %3520 = vmatpush1.bf16.msra.mxu0 %v3483
  %3521 = vmatprep.subr.bf16.mxu0 0
  %3522 = vmatpush1.bf16.msra.mxu0 %v3484
  %3523 = vmatprep.subr.bf16.mxu0 0
  %3524 = vmatpush1.bf16.msra.mxu0 %v3485
  %3525 = vmatprep.subr.bf16.mxu0 0
  %3526 = vmatpush1.bf16.msra.mxu0 %v3486
  %3527 = vmatprep.subr.bf16.mxu0 0
  %3528 = vmatpush1.bf16.msra.mxu0 %v3487
  %3529 = vmatprep.subr.bf16.mxu0 0
  %3530 = vmatpush1.bf16.msra.mxu0 %v3488
  %3531 = vmatprep.subr.bf16.mxu0 0
  %3532 = vmatpush1.bf16.msra.mxu0 %v3489
  %3533 = vmatprep.subr.bf16.mxu0 0
  %3534 = vmatpush1.bf16.msra.mxu0 %v3490
  %3535 = vmatprep.subr.bf16.mxu0 0
  %3536 = vmatpush1.bf16.msra.mxu0 %v3491
  %3537 = vmatprep.subr.bf16.mxu0 0
  %3538 = vmatpush1.bf16.msra.mxu0 %v3492
  %3539 = vmatprep.subr.bf16.mxu0 0
  %3540 = vmatpush1.bf16.msra.mxu0 %v3493
  %3541 = vmatprep.subr.bf16.mxu0 0
  %3542 = vmatpush1.bf16.msra.mxu0 %v3494
  %3543 = vmatprep.mubr.bf16.mxu0 %v3168
  %3544 = vmatmul.mubr.bf16.gmra.mrb[0].mxu0 %v3164
  %v3545 = vpop.f32.mrb[0].mxu0
  %v3546 = vadd.f32 %v3410, %v3545
  %v3547 = vpop.f32.mrb[0].mxu0
  %v3548 = vpop.f32.mrb[0].mxu0
  %v3549 = vpop.f32.mrb[0].mxu0
  %3550 = vdwg.mxu0
  %v3551 = vunpack.c.h.b16 %v3043
  %v3552 = vunpack.c.h.b16 %v3047
  %v3553 = vunpack.c.h.b16 %v3051
  %v3554 = vunpack.c.h.b16 %v3055
  %v3555 = vunpack.c.h.b16 %v3059
  %v3556 = vunpack.c.h.b16 %v3063
  %v3557 = vunpack.c.h.b16 %v3067
  %v3558 = vunpack.c.h.b16 %v3071
  %v3559 = vrot.slane %v3552, 7
  %v3560 = vsel %vm3092, %v3559, %v3551
  %v3561 = vrot.slane %v3553, 6
  %v3562 = vsel %vm3095, %v3561, %v3560
  %v3563 = vrot.slane %v3554, 5
  %v3564 = vsel %vm3098, %v3563, %v3562
  %v3565 = vrot.slane %v3555, 4
  %v3566 = vsel %vm3101, %v3565, %v3564
  %v3567 = vrot.slane %v3556, 3
  %v3568 = vsel %vm3104, %v3567, %v3566
  %v3569 = vrot.slane %v3557, 2
  %v3570 = vsel %vm3107, %v3569, %v3568
  %v3571 = vrot.slane %v3558, 1
  %v3572 = vsel %vm3110, %v3571, %v3570
  %v3573 = vpack.c.b16 %v3572, %v3572
  %v3574 = vrot.slane %v3551, 1
  %v3575 = vsel %vm3092, %v3552, %v3574
  %v3576 = vrot.slane %v3553, 7
  %v3577 = vsel %vm3095, %v3576, %v3575
  %v3578 = vrot.slane %v3554, 6
  %v3579 = vsel %vm3098, %v3578, %v3577
  %v3580 = vrot.slane %v3555, 5
  %v3581 = vsel %vm3101, %v3580, %v3579
  %v3582 = vrot.slane %v3556, 4
  %v3583 = vsel %vm3104, %v3582, %v3581
  %v3584 = vrot.slane %v3557, 3
  %v3585 = vsel %vm3107, %v3584, %v3583
  %v3586 = vrot.slane %v3558, 2
  %v3587 = vsel %vm3110, %v3586, %v3585
  %v3588 = vpack.c.b16 %v3587, %v3587
  %3589 = vrot.lane.b32.xlu0 %v3588, 64
  %v3590 = vpop.permute.xlu0 %3589
  %v3591 = vrot.slane %v3551, 2
  %v3592 = vrot.slane %v3552, 1
  %v3593 = vsel %vm3092, %v3592, %v3591
  %v3594 = vsel %vm3095, %v3553, %v3593
  %v3595 = vrot.slane %v3554, 7
  %v3596 = vsel %vm3098, %v3595, %v3594
  %v3597 = vrot.slane %v3555, 6
  %v3598 = vsel %vm3101, %v3597, %v3596
  %v3599 = vrot.slane %v3556, 5
  %v3600 = vsel %vm3104, %v3599, %v3598
  %v3601 = vrot.slane %v3557, 4
  %v3602 = vsel %vm3107, %v3601, %v3600
  %v3603 = vrot.slane %v3558, 3
  %v3604 = vsel %vm3110, %v3603, %v3602
  %v3605 = vpack.c.b16 %v3604, %v3604
  %v3606 = vrot.slane %v3551, 3
  %v3607 = vrot.slane %v3552, 2
  %v3608 = vsel %vm3092, %v3607, %v3606
  %v3609 = vrot.slane %v3553, 1
  %v3610 = vsel %vm3095, %v3609, %v3608
  %v3611 = vsel %vm3098, %v3554, %v3610
  %v3612 = vrot.slane %v3555, 7
  %v3613 = vsel %vm3101, %v3612, %v3611
  %v3614 = vrot.slane %v3556, 6
  %v3615 = vsel %vm3104, %v3614, %v3613
  %v3616 = vrot.slane %v3557, 5
  %v3617 = vsel %vm3107, %v3616, %v3615
  %v3618 = vrot.slane %v3558, 4
  %v3619 = vsel %vm3110, %v3618, %v3617
  %v3620 = vpack.c.b16 %v3619, %v3619
  %3621 = vrot.lane.b32.xlu0 %v3620, 64
  %v3622 = vpop.permute.xlu0 %3621
  %v3625 = vsel %vm1870, %v3573, %v3590
  %v3628 = vsel %vm1870, %v3605, %v3622
  %s3629 = scalar_lea.vmem %s3, 256
  %v3630 = vld [vmem:[%s3629] sm:$0xf]
  %v3631 = vld [vmem:[%s3629 + $0x4] sm:$0xf]
  %v3632 = vld [vmem:[%s3629 + $0x8] sm:$0xf]
  %v3633 = vld [vmem:[%s3629 + $0xc] sm:$0xf]
  %v3634 = vld [vmem:[%s3629 + $0x10] sm:$0xf]
  %v3635 = vld [vmem:[%s3629 + $0x14] sm:$0xf]
  %v3636 = vld [vmem:[%s3629 + $0x18] sm:$0xf]
  %v3637 = vld [vmem:[%s3629 + $0x1c] sm:$0xf]
  %v3638 = vld [vmem:[%s3629 + $0x20] sm:$0xf]
  %v3639 = vld [vmem:[%s3629 + $0x24] sm:$0xf]
  %v3640 = vld [vmem:[%s3629 + $0x28] sm:$0xf]
  %v3641 = vld [vmem:[%s3629 + $0x2c] sm:$0xf]
  %v3642 = vld [vmem:[%s3629 + $0x30] sm:$0xf]
  %v3643 = vld [vmem:[%s3629 + $0x34] sm:$0xf]
  %v3644 = vld [vmem:[%s3629 + $0x38] sm:$0xf]
  %v3645 = vld [vmem:[%s3629 + $0x3c] sm:$0xf]
  %v3646 = vld [vmem:[%s3629 + $0x40] sm:$0xf]
  %v3647 = vld [vmem:[%s3629 + $0x44] sm:$0xf]
  %v3648 = vld [vmem:[%s3629 + $0x48] sm:$0xf]
  %v3649 = vld [vmem:[%s3629 + $0x4c] sm:$0xf]
  %v3650 = vld [vmem:[%s3629 + $0x50] sm:$0xf]
  %v3651 = vld [vmem:[%s3629 + $0x54] sm:$0xf]
  %v3652 = vld [vmem:[%s3629 + $0x58] sm:$0xf]
  %v3653 = vld [vmem:[%s3629 + $0x5c] sm:$0xf]
  %v3654 = vld [vmem:[%s3629 + $0x60] sm:$0xf]
  %v3655 = vld [vmem:[%s3629 + $0x64] sm:$0xf]
  %v3656 = vld [vmem:[%s3629 + $0x68] sm:$0xf]
  %v3657 = vld [vmem:[%s3629 + $0x6c] sm:$0xf]
  %v3658 = vld [vmem:[%s3629 + $0x70] sm:$0xf]
  %v3659 = vld [vmem:[%s3629 + $0x74] sm:$0xf]
  %v3660 = vld [vmem:[%s3629 + $0x78] sm:$0xf]
  %v3661 = vld [vmem:[%s3629 + $0x7c] sm:$0xf]
  %v3664 = vrot.slane %v3625, 4
  %v3665 = vrot.slane %v3628, 4
  %v3700 = vunpack.c.l.b16 %v3630
  %v3701 = vunpack.c.l.b16 %v3631
  %v3702 = vunpack.c.l.b16 %v3632
  %v3703 = vunpack.c.l.b16 %v3633
  %v3704 = vunpack.c.l.b16 %v3634
  %v3705 = vunpack.c.l.b16 %v3635
  %v3706 = vunpack.c.l.b16 %v3636
  %v3707 = vunpack.c.l.b16 %v3637
  %v3708 = vunpack.c.l.b16 %v3638
  %v3709 = vunpack.c.l.b16 %v3639
  %v3710 = vunpack.c.l.b16 %v3640
  %v3711 = vunpack.c.l.b16 %v3641
  %v3712 = vunpack.c.l.b16 %v3642
  %v3713 = vunpack.c.l.b16 %v3643
  %v3714 = vunpack.c.l.b16 %v3644
  %v3715 = vunpack.c.l.b16 %v3645
  %v3716 = vunpack.c.l.b16 %v3646
  %v3717 = vunpack.c.l.b16 %v3647
  %v3718 = vunpack.c.l.b16 %v3648
  %v3719 = vunpack.c.l.b16 %v3649
  %v3720 = vunpack.c.l.b16 %v3650
  %v3721 = vunpack.c.l.b16 %v3651
  %v3722 = vunpack.c.l.b16 %v3652
  %v3723 = vunpack.c.l.b16 %v3653
  %v3724 = vunpack.c.l.b16 %v3654
  %v3725 = vunpack.c.l.b16 %v3655
  %v3726 = vunpack.c.l.b16 %v3656
  %v3727 = vunpack.c.l.b16 %v3657
  %v3728 = vunpack.c.l.b16 %v3658
  %v3729 = vunpack.c.l.b16 %v3659
  %v3730 = vunpack.c.l.b16 %v3660
  %v3731 = vunpack.c.l.b16 %v3661
  %v3732 = vpack.c.b16 %v3701, %v3700
  %v3733 = vpack.c.b16 %v3703, %v3702
  %v3734 = vpack.c.b16 %v3705, %v3704
  %v3735 = vpack.c.b16 %v3707, %v3706
  %v3736 = vpack.c.b16 %v3709, %v3708
  %v3737 = vpack.c.b16 %v3711, %v3710
  %v3738 = vpack.c.b16 %v3713, %v3712
  %v3739 = vpack.c.b16 %v3715, %v3714
  %v3740 = vpack.c.b16 %v3717, %v3716
  %v3741 = vpack.c.b16 %v3719, %v3718
  %v3742 = vpack.c.b16 %v3721, %v3720
  %v3743 = vpack.c.b16 %v3723, %v3722
  %v3744 = vpack.c.b16 %v3725, %v3724
  %v3745 = vpack.c.b16 %v3727, %v3726
  %v3746 = vpack.c.b16 %v3729, %v3728
  %v3747 = vpack.c.b16 %v3731, %v3730
  %3764 = vmatprep.subr.bf16.mxu0 0
  %3765 = vmatpush1.bf16.msra.mxu0 %v3732
  %3766 = vmatprep.subr.bf16.mxu0 0
  %3767 = vmatpush1.bf16.msra.mxu0 %v3733
  %3768 = vmatprep.subr.bf16.mxu0 0
  %3769 = vmatpush1.bf16.msra.mxu0 %v3734
  %3770 = vmatprep.subr.bf16.mxu0 0
  %3771 = vmatpush1.bf16.msra.mxu0 %v3735
  %3772 = vmatprep.subr.bf16.mxu0 0
  %3773 = vmatpush1.bf16.msra.mxu0 %v3736
  %3774 = vmatprep.subr.bf16.mxu0 0
  %3775 = vmatpush1.bf16.msra.mxu0 %v3737
  %3776 = vmatprep.subr.bf16.mxu0 0
  %3777 = vmatpush1.bf16.msra.mxu0 %v3738
  %3778 = vmatprep.subr.bf16.mxu0 0
  %3779 = vmatpush1.bf16.msra.mxu0 %v3739
  %3780 = vmatprep.subr.bf16.mxu0 0
  %3781 = vmatpush1.bf16.msra.mxu0 %v3740
  %3782 = vmatprep.subr.bf16.mxu0 0
  %3783 = vmatpush1.bf16.msra.mxu0 %v3741
  %3784 = vmatprep.subr.bf16.mxu0 0
  %3785 = vmatpush1.bf16.msra.mxu0 %v3742
  %3786 = vmatprep.subr.bf16.mxu0 0
  %3787 = vmatpush1.bf16.msra.mxu0 %v3743
  %3788 = vmatprep.subr.bf16.mxu0 0
  %3789 = vmatpush1.bf16.msra.mxu0 %v3744
  %3790 = vmatprep.subr.bf16.mxu0 0
  %3791 = vmatpush1.bf16.msra.mxu0 %v3745
  %3792 = vmatprep.subr.bf16.mxu0 0
  %3793 = vmatpush1.bf16.msra.mxu0 %v3746
  %3794 = vmatprep.subr.bf16.mxu0 0
  %3795 = vmatpush1.bf16.msra.mxu0 %v3747
  %3796 = vmatprep.mubr.bf16.mxu0 %v3665
  %3797 = vmatmul.mubr.bf16.gmra.mrb[0].mxu0 %v3664
  %v3798 = vpop.f32.mrb[0].mxu0
  %v3799 = vadd.f32 0.0, %v3798
  %v3800 = vpop.f32.mrb[0].mxu0
  %v3801 = vpop.f32.mrb[0].mxu0
  %v3802 = vpop.f32.mrb[0].mxu0
  %3803 = vdwg.mxu0
  %v3804 = vadd.f32 %v3546, %v3799
  %v3805 = vsel %vm3104, %v3559, %v3551
  %v3806 = vsel %vm3107, %v3561, %v3805
  %v3807 = vsel %vm3110, %v3563, %v3806
  %v3808 = vsel %vm3092, %v3567, %v3565
  %v3809 = vsel %vm3095, %v3569, %v3808
  %v3810 = vsel %vm3098, %v3571, %v3809
  %v3811 = vpack.c.b16 %v3807, %v3807
  %v3812 = vpack.c.b16 %v3810, %v3810
  %v3813 = vsel %vm3104, %v3552, %v3574
  %v3814 = vsel %vm3107, %v3576, %v3813
  %v3815 = vsel %vm3110, %v3578, %v3814
  %v3816 = vsel %vm3092, %v3582, %v3580
  %v3817 = vsel %vm3095, %v3584, %v3816
  %v3818 = vsel %vm3098, %v3586, %v3817
  %v3819 = vpack.c.b16 %v3815, %v3815
  %v3820 = vpack.c.b16 %v3818, %v3818
  %3821 = vrot.lane.b32.xlu0 %v3819, 64
  %v3822 = vpop.permute.xlu0 %3821
  %3823 = vrot.lane.b32.xlu0 %v3820, 64
  %v3824 = vpop.permute.xlu0 %3823
  %v3825 = vsel %vm3104, %v3592, %v3591
  %v3826 = vsel %vm3107, %v3553, %v3825
  %v3827 = vsel %vm3110, %v3595, %v3826
  %v3828 = vsel %vm3092, %v3599, %v3597
  %v3829 = vsel %vm3095, %v3601, %v3828
  %v3830 = vsel %vm3098, %v3603, %v3829
  %v3831 = vpack.c.b16 %v3827, %v3827
  %v3832 = vpack.c.b16 %v3830, %v3830
  %v3833 = vsel %vm3104, %v3607, %v3606
  %v3834 = vsel %vm3107, %v3609, %v3833
  %v3835 = vsel %vm3110, %v3554, %v3834
  %v3836 = vsel %vm3092, %v3614, %v3612
  %v3837 = vsel %vm3095, %v3616, %v3836
  %v3838 = vsel %vm3098, %v3618, %v3837
  %v3839 = vpack.c.b16 %v3835, %v3835
  %v3840 = vpack.c.b16 %v3838, %v3838
  %3841 = vrot.lane.b32.xlu0 %v3839, 64
  %v3842 = vpop.permute.xlu0 %3841
  %3843 = vrot.lane.b32.xlu0 %v3840, 64
  %v3844 = vpop.permute.xlu0 %3843
  %v3847 = vsel %vm1870, %v3811, %v3822
  %v3850 = vsel %vm1870, %v3812, %v3824
  %v3853 = vsel %vm1870, %v3831, %v3842
  %v3856 = vsel %vm1870, %v3832, %v3844
  %s3857 = scalar_lea.vmem %s3, 384
  %v3858 = vld [vmem:[%s3857] sm:$0xf]
  %v3859 = vld [vmem:[%s3857 + $0x4] sm:$0xf]
  %v3860 = vld [vmem:[%s3857 + $0x8] sm:$0xf]
  %v3861 = vld [vmem:[%s3857 + $0xc] sm:$0xf]
  %v3862 = vld [vmem:[%s3857 + $0x10] sm:$0xf]
  %v3863 = vld [vmem:[%s3857 + $0x14] sm:$0xf]
  %v3864 = vld [vmem:[%s3857 + $0x18] sm:$0xf]
  %v3865 = vld [vmem:[%s3857 + $0x1c] sm:$0xf]
  %v3866 = vld [vmem:[%s3857 + $0x20] sm:$0xf]
  %v3867 = vld [vmem:[%s3857 + $0x24] sm:$0xf]
  %v3868 = vld [vmem:[%s3857 + $0x28] sm:$0xf]
  %v3869 = vld [vmem:[%s3857 + $0x2c] sm:$0xf]
  %v3870 = vld [vmem:[%s3857 + $0x30] sm:$0xf]
  %v3871 = vld [vmem:[%s3857 + $0x34] sm:$0xf]
  %v3872 = vld [vmem:[%s3857 + $0x38] sm:$0xf]
  %v3873 = vld [vmem:[%s3857 + $0x3c] sm:$0xf]
  %v3874 = vld [vmem:[%s3857 + $0x40] sm:$0xf]
  %v3875 = vld [vmem:[%s3857 + $0x44] sm:$0xf]
  %v3876 = vld [vmem:[%s3857 + $0x48] sm:$0xf]
  %v3877 = vld [vmem:[%s3857 + $0x4c] sm:$0xf]
  %v3878 = vld [vmem:[%s3857 + $0x50] sm:$0xf]
  %v3879 = vld [vmem:[%s3857 + $0x54] sm:$0xf]
  %v3880 = vld [vmem:[%s3857 + $0x58] sm:$0xf]
  %v3881 = vld [vmem:[%s3857 + $0x5c] sm:$0xf]
  %v3882 = vld [vmem:[%s3857 + $0x60] sm:$0xf]
  %v3883 = vld [vmem:[%s3857 + $0x64] sm:$0xf]
  %v3884 = vld [vmem:[%s3857 + $0x68] sm:$0xf]
  %v3885 = vld [vmem:[%s3857 + $0x6c] sm:$0xf]
  %v3886 = vld [vmem:[%s3857 + $0x70] sm:$0xf]
  %v3887 = vld [vmem:[%s3857 + $0x74] sm:$0xf]
  %v3888 = vld [vmem:[%s3857 + $0x78] sm:$0xf]
  %v3889 = vld [vmem:[%s3857 + $0x7c] sm:$0xf]
  %vm3894 = vcmask 1041408
  %v3895 = vrot.slane %v3847, 6
  %v3896 = vrot.slane %v3850, 6
  %v3897 = vsel %vm3894, %v3895, %v3896
  %v3898 = vrot.slane %v3853, 6
  %v3899 = vrot.slane %v3856, 6
  %v3900 = vsel %vm3894, %v3898, %v3899
  %v3935 = vunpack.c.l.b16 %v3858
  %v3936 = vunpack.c.l.b16 %v3859
  %v3937 = vunpack.c.l.b16 %v3860
  %v3938 = vunpack.c.l.b16 %v3861
  %v3939 = vunpack.c.l.b16 %v3862
  %v3940 = vunpack.c.l.b16 %v3863
  %v3941 = vunpack.c.l.b16 %v3864
  %v3942 = vunpack.c.l.b16 %v3865
  %v3943 = vunpack.c.l.b16 %v3866
  %v3944 = vunpack.c.l.b16 %v3867
  %v3945 = vunpack.c.l.b16 %v3868
  %v3946 = vunpack.c.l.b16 %v3869
  %v3947 = vunpack.c.l.b16 %v3870
  %v3948 = vunpack.c.l.b16 %v3871
  %v3949 = vunpack.c.l.b16 %v3872
  %v3950 = vunpack.c.l.b16 %v3873
  %v3951 = vunpack.c.l.b16 %v3874
  %v3952 = vunpack.c.l.b16 %v3875
  %v3953 = vunpack.c.l.b16 %v3876
  %v3954 = vunpack.c.l.b16 %v3877
  %v3955 = vunpack.c.l.b16 %v3878
  %v3956 = vunpack.c.l.b16 %v3879
  %v3957 = vunpack.c.l.b16 %v3880
  %v3958 = vunpack.c.l.b16 %v3881
  %v3959 = vunpack.c.l.b16 %v3882
  %v3960 = vunpack.c.l.b16 %v3883
  %v3961 = vunpack.c.l.b16 %v3884
  %v3962 = vunpack.c.l.b16 %v3885
  %v3963 = vunpack.c.l.b16 %v3886
  %v3964 = vunpack.c.l.b16 %v3887
  %v3965 = vunpack.c.l.b16 %v3888
  %v3966 = vunpack.c.l.b16 %v3889
  %v3967 = vpack.c.b16 %v3936, %v3935
  %v3968 = vpack.c.b16 %v3938, %v3937
  %v3969 = vpack.c.b16 %v3940, %v3939
  %v3970 = vpack.c.b16 %v3942, %v3941
  %v3971 = vpack.c.b16 %v3944, %v3943
  %v3972 = vpack.c.b16 %v3946, %v3945
  %v3973 = vpack.c.b16 %v3948, %v3947
  %v3974 = vpack.c.b16 %v3950, %v3949
  %v3975 = vpack.c.b16 %v3952, %v3951
  %v3976 = vpack.c.b16 %v3954, %v3953
  %v3977 = vpack.c.b16 %v3956, %v3955
  %v3978 = vpack.c.b16 %v3958, %v3957
  %v3979 = vpack.c.b16 %v3960, %v3959
  %v3980 = vpack.c.b16 %v3962, %v3961
  %v3981 = vpack.c.b16 %v3964, %v3963
  %v3982 = vpack.c.b16 %v3966, %v3965
  %3999 = vmatprep.subr.bf16.mxu0 0
  %4000 = vmatpush1.bf16.msra.mxu0 %v3967
  %4001 = vmatprep.subr.bf16.mxu0 0
  %4002 = vmatpush1.bf16.msra.mxu0 %v3968
  %4003 = vmatprep.subr.bf16.mxu0 0
  %4004 = vmatpush1.bf16.msra.mxu0 %v3969
  %4005 = vmatprep.subr.bf16.mxu0 0
  %4006 = vmatpush1.bf16.msra.mxu0 %v3970
  %4007 = vmatprep.subr.bf16.mxu0 0
  %4008 = vmatpush1.bf16.msra.mxu0 %v3971
  %4009 = vmatprep.subr.bf16.mxu0 0
  %4010 = vmatpush1.bf16.msra.mxu0 %v3972
  %4011 = vmatprep.subr.bf16.mxu0 0
  %4012 = vmatpush1.bf16.msra.mxu0 %v3973
  %4013 = vmatprep.subr.bf16.mxu0 0
  %4014 = vmatpush1.bf16.msra.mxu0 %v3974
  %4015 = vmatprep.subr.bf16.mxu0 0
  %4016 = vmatpush1.bf16.msra.mxu0 %v3975
  %4017 = vmatprep.subr.bf16.mxu0 0
  %4018 = vmatpush1.bf16.msra.mxu0 %v3976
  %4019 = vmatprep.subr.bf16.mxu0 0
  %4020 = vmatpush1.bf16.msra.mxu0 %v3977
  %4021 = vmatprep.subr.bf16.mxu0 0
  %4022 = vmatpush1.bf16.msra.mxu0 %v3978
  %4023 = vmatprep.subr.bf16.mxu0 0
  %4024 = vmatpush1.bf16.msra.mxu0 %v3979
  %4025 = vmatprep.subr.bf16.mxu0 0
  %4026 = vmatpush1.bf16.msra.mxu0 %v3980
  %4027 = vmatprep.subr.bf16.mxu0 0
  %4028 = vmatpush1.bf16.msra.mxu0 %v3981
  %4029 = vmatprep.subr.bf16.mxu0 0
  %4030 = vmatpush1.bf16.msra.mxu0 %v3982
  %4031 = vmatprep.mubr.bf16.mxu0 %v3900
  %4032 = vmatmul.mubr.bf16.gmra.mrb[0].mxu0 %v3897
  %v4033 = vpop.f32.mrb[0].mxu0
  %v4034 = vadd.f32 0.0, %v4033
  %v4035 = vpop.f32.mrb[0].mxu0
  %v4036 = vpop.f32.mrb[0].mxu0
  %v4037 = vpop.f32.mrb[0].mxu0
  %4038 = vdwg.mxu0
  %v4039 = vadd.f32 %v3804, %v4034
  %v4048 = vunpack.c.l.b16 %v3044
  %v4049 = vunpack.c.l.b16 %v3048
  %v4050 = vunpack.c.l.b16 %v3052
  %v4051 = vunpack.c.l.b16 %v3056
  %v4052 = vunpack.c.l.b16 %v3060
  %v4053 = vunpack.c.l.b16 %v3064
  %v4054 = vunpack.c.l.b16 %v3068
  %v4055 = vunpack.c.l.b16 %v3072
  %v4056 = vrot.slane %v4049, 7
  %v4057 = vsel %vm3092, %v4056, %v4048
  %v4058 = vrot.slane %v4050, 6
  %v4059 = vsel %vm3095, %v4058, %v4057
  %v4060 = vrot.slane %v4051, 5
  %v4061 = vsel %vm3098, %v4060, %v4059
  %v4062 = vrot.slane %v4052, 4
  %v4063 = vsel %vm3101, %v4062, %v4061
  %v4064 = vrot.slane %v4053, 3
  %v4065 = vsel %vm3104, %v4064, %v4063
  %v4066 = vrot.slane %v4054, 2
  %v4067 = vsel %vm3107, %v4066, %v4065
  %v4068 = vrot.slane %v4055, 1
  %v4069 = vsel %vm3110, %v4068, %v4067
  %v4070 = vpack.c.b16 %v4069, %v4069
  %v4071 = vrot.slane %v4048, 1
  %v4072 = vsel %vm3092, %v4049, %v4071
  %v4073 = vrot.slane %v4050, 7
  %v4074 = vsel %vm3095, %v4073, %v4072
  %v4075 = vrot.slane %v4051, 6
  %v4076 = vsel %vm3098, %v4075, %v4074
  %v4077 = vrot.slane %v4052, 5
  %v4078 = vsel %vm3101, %v4077, %v4076
  %v4079 = vrot.slane %v4053, 4
  %v4080 = vsel %vm3104, %v4079, %v4078
  %v4081 = vrot.slane %v4054, 3
  %v4082 = vsel %vm3107, %v4081, %v4080
  %v4083 = vrot.slane %v4055, 2
  %v4084 = vsel %vm3110, %v4083, %v4082
  %v4085 = vpack.c.b16 %v4084, %v4084
  %4086 = vrot.lane.b32.xlu0 %v4085, 64
  %v4087 = vpop.permute.xlu0 %4086
  %v4088 = vrot.slane %v4048, 2
  %v4089 = vrot.slane %v4049, 1
  %v4090 = vsel %vm3092, %v4089, %v4088
  %v4091 = vsel %vm3095, %v4050, %v4090
  %v4092 = vrot.slane %v4051, 7
  %v4093 = vsel %vm3098, %v4092, %v4091
  %v4094 = vrot.slane %v4052, 6
  %v4095 = vsel %vm3101, %v4094, %v4093
  %v4096 = vrot.slane %v4053, 5
  %v4097 = vsel %vm3104, %v4096, %v4095
  %v4098 = vrot.slane %v4054, 4
  %v4099 = vsel %vm3107, %v4098, %v4097
  %v4100 = vrot.slane %v4055, 3
  %v4101 = vsel %vm3110, %v4100, %v4099
  %v4102 = vpack.c.b16 %v4101, %v4101
  %v4103 = vrot.slane %v4048, 3
  %v4104 = vrot.slane %v4049, 2
  %v4105 = vsel %vm3092, %v4104, %v4103
  %v4106 = vrot.slane %v4050, 1
  %v4107 = vsel %vm3095, %v4106, %v4105
  %v4108 = vsel %vm3098, %v4051, %v4107
  %v4109 = vrot.slane %v4052, 7
  %v4110 = vsel %vm3101, %v4109, %v4108
  %v4111 = vrot.slane %v4053, 6
  %v4112 = vsel %vm3104, %v4111, %v4110
  %v4113 = vrot.slane %v4054, 5
  %v4114 = vsel %vm3107, %v4113, %v4112
  %v4115 = vrot.slane %v4055, 4
  %v4116 = vsel %vm3110, %v4115, %v4114
  %v4117 = vpack.c.b16 %v4116, %v4116
  %4118 = vrot.lane.b32.xlu0 %v4117, 64
  %v4119 = vpop.permute.xlu0 %4118
  %v4122 = vsel %vm1870, %v4070, %v4087
  %v4126 = vsel %vm1870, %v4102, %v4119
  %s4128 = scalar_lea.vmem %s3, 512
  %v4129 = vld [vmem:[%s4128] sm:$0xf]
  %v4130 = vld [vmem:[%s4128 + $0x4] sm:$0xf]
  %v4131 = vld [vmem:[%s4128 + $0x8] sm:$0xf]
  %v4132 = vld [vmem:[%s4128 + $0xc] sm:$0xf]
  %v4133 = vld [vmem:[%s4128 + $0x10] sm:$0xf]
  %v4134 = vld [vmem:[%s4128 + $0x14] sm:$0xf]
  %v4135 = vld [vmem:[%s4128 + $0x18] sm:$0xf]
  %v4136 = vld [vmem:[%s4128 + $0x1c] sm:$0xf]
  %v4137 = vld [vmem:[%s4128 + $0x20] sm:$0xf]
  %v4138 = vld [vmem:[%s4128 + $0x24] sm:$0xf]
  %v4139 = vld [vmem:[%s4128 + $0x28] sm:$0xf]
  %v4140 = vld [vmem:[%s4128 + $0x2c] sm:$0xf]
  %v4141 = vld [vmem:[%s4128 + $0x30] sm:$0xf]
  %v4142 = vld [vmem:[%s4128 + $0x34] sm:$0xf]
  %v4143 = vld [vmem:[%s4128 + $0x38] sm:$0xf]
  %v4144 = vld [vmem:[%s4128 + $0x3c] sm:$0xf]
  %v4145 = vld [vmem:[%s4128 + $0x40] sm:$0xf]
  %v4146 = vld [vmem:[%s4128 + $0x44] sm:$0xf]
  %v4147 = vld [vmem:[%s4128 + $0x48] sm:$0xf]
  %v4148 = vld [vmem:[%s4128 + $0x4c] sm:$0xf]
  %v4149 = vld [vmem:[%s4128 + $0x50] sm:$0xf]
  %v4150 = vld [vmem:[%s4128 + $0x54] sm:$0xf]
  %v4151 = vld [vmem:[%s4128 + $0x58] sm:$0xf]
  %v4152 = vld [vmem:[%s4128 + $0x5c] sm:$0xf]
  %v4153 = vld [vmem:[%s4128 + $0x60] sm:$0xf]
  %v4154 = vld [vmem:[%s4128 + $0x64] sm:$0xf]
  %v4155 = vld [vmem:[%s4128 + $0x68] sm:$0xf]
  %v4156 = vld [vmem:[%s4128 + $0x6c] sm:$0xf]
  %v4157 = vld [vmem:[%s4128 + $0x70] sm:$0xf]
  %v4158 = vld [vmem:[%s4128 + $0x74] sm:$0xf]
  %v4159 = vld [vmem:[%s4128 + $0x78] sm:$0xf]
  %v4160 = vld [vmem:[%s4128 + $0x7c] sm:$0xf]
  %v4193 = vunpack.c.l.b16 %v4129
  %v4194 = vunpack.c.l.b16 %v4130
  %v4195 = vunpack.c.l.b16 %v4131
  %v4196 = vunpack.c.l.b16 %v4132
  %v4197 = vunpack.c.l.b16 %v4133
  %v4198 = vunpack.c.l.b16 %v4134
  %v4199 = vunpack.c.l.b16 %v4135
  %v4200 = vunpack.c.l.b16 %v4136
  %v4201 = vunpack.c.l.b16 %v4137
  %v4202 = vunpack.c.l.b16 %v4138
  %v4203 = vunpack.c.l.b16 %v4139
  %v4204 = vunpack.c.l.b16 %v4140
  %v4205 = vunpack.c.l.b16 %v4141
  %v4206 = vunpack.c.l.b16 %v4142
  %v4207 = vunpack.c.l.b16 %v4143
  %v4208 = vunpack.c.l.b16 %v4144
  %v4209 = vunpack.c.l.b16 %v4145
  %v4210 = vunpack.c.l.b16 %v4146
  %v4211 = vunpack.c.l.b16 %v4147
  %v4212 = vunpack.c.l.b16 %v4148
  %v4213 = vunpack.c.l.b16 %v4149
  %v4214 = vunpack.c.l.b16 %v4150
  %v4215 = vunpack.c.l.b16 %v4151
  %v4216 = vunpack.c.l.b16 %v4152
  %v4217 = vunpack.c.l.b16 %v4153
  %v4218 = vunpack.c.l.b16 %v4154
  %v4219 = vunpack.c.l.b16 %v4155
  %v4220 = vunpack.c.l.b16 %v4156
  %v4221 = vunpack.c.l.b16 %v4157
  %v4222 = vunpack.c.l.b16 %v4158
  %v4223 = vunpack.c.l.b16 %v4159
  %v4224 = vunpack.c.l.b16 %v4160
  %v4225 = vpack.c.b16 %v4194, %v4193
  %v4226 = vpack.c.b16 %v4196, %v4195
  %v4227 = vpack.c.b16 %v4198, %v4197
  %v4228 = vpack.c.b16 %v4200, %v4199
  %v4229 = vpack.c.b16 %v4202, %v4201
  %v4230 = vpack.c.b16 %v4204, %v4203
  %v4231 = vpack.c.b16 %v4206, %v4205
  %v4232 = vpack.c.b16 %v4208, %v4207
  %v4233 = vpack.c.b16 %v4210, %v4209
  %v4234 = vpack.c.b16 %v4212, %v4211
  %v4235 = vpack.c.b16 %v4214, %v4213
  %v4236 = vpack.c.b16 %v4216, %v4215
  %v4237 = vpack.c.b16 %v4218, %v4217
  %v4238 = vpack.c.b16 %v4220, %v4219
  %v4239 = vpack.c.b16 %v4222, %v4221
  %v4240 = vpack.c.b16 %v4224, %v4223
  %4257 = vmatprep.subr.bf16.mxu0 0
  %4258 = vmatpush1.bf16.msra.mxu0 %v4225
  %4259 = vmatprep.subr.bf16.mxu0 0
  %4260 = vmatpush1.bf16.msra.mxu0 %v4226
  %4261 = vmatprep.subr.bf16.mxu0 0
  %4262 = vmatpush1.bf16.msra.mxu0 %v4227
  %4263 = vmatprep.subr.bf16.mxu0 0
  %4264 = vmatpush1.bf16.msra.mxu0 %v4228
  %4265 = vmatprep.subr.bf16.mxu0 0
  %4266 = vmatpush1.bf16.msra.mxu0 %v4229
  %4267 = vmatprep.subr.bf16.mxu0 0
  %4268 = vmatpush1.bf16.msra.mxu0 %v4230
  %4269 = vmatprep.subr.bf16.mxu0 0
  %4270 = vmatpush1.bf16.msra.mxu0 %v4231
  %4271 = vmatprep.subr.bf16.mxu0 0
  %4272 = vmatpush1.bf16.msra.mxu0 %v4232
  %4273 = vmatprep.subr.bf16.mxu0 0
  %4274 = vmatpush1.bf16.msra.mxu0 %v4233
  %4275 = vmatprep.subr.bf16.mxu0 0
  %4276 = vmatpush1.bf16.msra.mxu0 %v4234
  %4277 = vmatprep.subr.bf16.mxu0 0
  %4278 = vmatpush1.bf16.msra.mxu0 %v4235
  %4279 = vmatprep.subr.bf16.mxu0 0
  %4280 = vmatpush1.bf16.msra.mxu0 %v4236
  %4281 = vmatprep.subr.bf16.mxu0 0
  %4282 = vmatpush1.bf16.msra.mxu0 %v4237
  %4283 = vmatprep.subr.bf16.mxu0 0
  %4284 = vmatpush1.bf16.msra.mxu0 %v4238
  %4285 = vmatprep.subr.bf16.mxu0 0
  %4286 = vmatpush1.bf16.msra.mxu0 %v4239
  %4287 = vmatprep.subr.bf16.mxu0 0
  %4288 = vmatpush1.bf16.msra.mxu0 %v4240
  %4289 = vmatprep.mubr.bf16.mxu0 %v4126
  %4290 = vmatmul.mubr.bf16.gmra.mrb[0].mxu0 %v4122
  %v4291 = vpop.f32.mrb[0].mxu0
  %v4292 = vadd.f32 0.0, %v4291
  %v4293 = vpop.f32.mrb[0].mxu0
  %v4294 = vpop.f32.mrb[0].mxu0
  %v4295 = vpop.f32.mrb[0].mxu0
  %4296 = vdwg.mxu0
  %v4297 = vadd.f32 %v4039, %v4292
  %v4298 = vsel %vm3104, %v4056, %v4048
  %v4299 = vsel %vm3107, %v4058, %v4298
  %v4300 = vsel %vm3110, %v4060, %v4299
  %v4301 = vsel %vm3092, %v4064, %v4062
  %v4302 = vsel %vm3095, %v4066, %v4301
  %v4303 = vsel %vm3098, %v4068, %v4302
  %v4304 = vpack.c.b16 %v4303, %v4300
  %v4305 = vsel %vm3104, %v4049, %v4071
  %v4306 = vsel %vm3107, %v4073, %v4305
  %v4307 = vsel %vm3110, %v4075, %v4306
  %v4308 = vsel %vm3092, %v4079, %v4077
  %v4309 = vsel %vm3095, %v4081, %v4308
  %v4310 = vsel %vm3098, %v4083, %v4309
  %v4311 = vpack.c.b16 %v4310, %v4307
  %4312 = vrot.lane.b32.xlu0 %v4311, 64
  %v4313 = vpop.permute.xlu0 %4312
  %v4314 = vsel %vm3104, %v4089, %v4088
  %v4315 = vsel %vm3107, %v4050, %v4314
  %v4316 = vsel %vm3110, %v4092, %v4315
  %v4317 = vsel %vm3092, %v4096, %v4094
  %v4318 = vsel %vm3095, %v4098, %v4317
  %v4319 = vsel %vm3098, %v4100, %v4318
  %v4320 = vpack.c.b16 %v4319, %v4316
  %v4321 = vsel %vm3104, %v4104, %v4103
  %v4322 = vsel %vm3107, %v4106, %v4321
  %v4323 = vsel %vm3110, %v4051, %v4322
  %v4324 = vsel %vm3092, %v4111, %v4109
  %v4325 = vsel %vm3095, %v4113, %v4324
  %v4326 = vsel %vm3098, %v4115, %v4325
  %v4327 = vpack.c.b16 %v4326, %v4323
  %4328 = vrot.lane.b32.xlu0 %v4327, 64
  %v4329 = vpop.permute.xlu0 %4328
  %v4332 = vsel %vm1870, %v4304, %v4313
  %v4335 = vsel %vm1870, %v4320, %v4329
  %s4336 = scalar_lea.vmem %s3, 640
  %v4337 = vld [vmem:[%s4336] sm:$0xf]
  %v4338 = vld [vmem:[%s4336 + $0x4] sm:$0xf]
  %v4339 = vld [vmem:[%s4336 + $0x8] sm:$0xf]
  %v4340 = vld [vmem:[%s4336 + $0xc] sm:$0xf]
  %v4341 = vld [vmem:[%s4336 + $0x10] sm:$0xf]
  %v4342 = vld [vmem:[%s4336 + $0x14] sm:$0xf]
  %v4343 = vld [vmem:[%s4336 + $0x18] sm:$0xf]
  %v4344 = vld [vmem:[%s4336 + $0x1c] sm:$0xf]
  %v4345 = vld [vmem:[%s4336 + $0x20] sm:$0xf]
  %v4346 = vld [vmem:[%s4336 + $0x24] sm:$0xf]
  %v4347 = vld [vmem:[%s4336 + $0x28] sm:$0xf]
  %v4348 = vld [vmem:[%s4336 + $0x2c] sm:$0xf]
  %v4349 = vld [vmem:[%s4336 + $0x30] sm:$0xf]
  %v4350 = vld [vmem:[%s4336 + $0x34] sm:$0xf]
  %v4351 = vld [vmem:[%s4336 + $0x38] sm:$0xf]
  %v4352 = vld [vmem:[%s4336 + $0x3c] sm:$0xf]
  %v4353 = vld [vmem:[%s4336 + $0x40] sm:$0xf]
  %v4354 = vld [vmem:[%s4336 + $0x44] sm:$0xf]
  %v4355 = vld [vmem:[%s4336 + $0x48] sm:$0xf]
  %v4356 = vld [vmem:[%s4336 + $0x4c] sm:$0xf]
  %v4357 = vld [vmem:[%s4336 + $0x50] sm:$0xf]
  %v4358 = vld [vmem:[%s4336 + $0x54] sm:$0xf]
  %v4359 = vld [vmem:[%s4336 + $0x58] sm:$0xf]
  %v4360 = vld [vmem:[%s4336 + $0x5c] sm:$0xf]
  %v4361 = vld [vmem:[%s4336 + $0x60] sm:$0xf]
  %v4362 = vld [vmem:[%s4336 + $0x64] sm:$0xf]
  %v4363 = vld [vmem:[%s4336 + $0x68] sm:$0xf]
  %v4364 = vld [vmem:[%s4336 + $0x6c] sm:$0xf]
  %v4365 = vld [vmem:[%s4336 + $0x70] sm:$0xf]
  %v4366 = vld [vmem:[%s4336 + $0x74] sm:$0xf]
  %v4367 = vld [vmem:[%s4336 + $0x78] sm:$0xf]
  %v4368 = vld [vmem:[%s4336 + $0x7c] sm:$0xf]
  %v4371 = vrot.slane %v4332, 2
  %v4372 = vrot.slane %v4335, 2
  %v4407 = vunpack.c.l.b16 %v4337
  %v4408 = vunpack.c.l.b16 %v4338
  %v4409 = vunpack.c.l.b16 %v4339
  %v4410 = vunpack.c.l.b16 %v4340
  %v4411 = vunpack.c.l.b16 %v4341
  %v4412 = vunpack.c.l.b16 %v4342
  %v4413 = vunpack.c.l.b16 %v4343
  %v4414 = vunpack.c.l.b16 %v4344
  %v4415 = vunpack.c.l.b16 %v4345
  %v4416 = vunpack.c.l.b16 %v4346
  %v4417 = vunpack.c.l.b16 %v4347
  %v4418 = vunpack.c.l.b16 %v4348
  %v4419 = vunpack.c.l.b16 %v4349
  %v4420 = vunpack.c.l.b16 %v4350
  %v4421 = vunpack.c.l.b16 %v4351
  %v4422 = vunpack.c.l.b16 %v4352
  %v4423 = vunpack.c.l.b16 %v4353
  %v4424 = vunpack.c.l.b16 %v4354
  %v4425 = vunpack.c.l.b16 %v4355
  %v4426 = vunpack.c.l.b16 %v4356
  %v4427 = vunpack.c.l.b16 %v4357
  %v4428 = vunpack.c.l.b16 %v4358
  %v4429 = vunpack.c.l.b16 %v4359
  %v4430 = vunpack.c.l.b16 %v4360
  %v4431 = vunpack.c.l.b16 %v4361
  %v4432 = vunpack.c.l.b16 %v4362
  %v4433 = vunpack.c.l.b16 %v4363
  %v4434 = vunpack.c.l.b16 %v4364
  %v4435 = vunpack.c.l.b16 %v4365
  %v4436 = vunpack.c.l.b16 %v4366
  %v4437 = vunpack.c.l.b16 %v4367
  %v4438 = vunpack.c.l.b16 %v4368
  %v4439 = vpack.c.b16 %v4408, %v4407
  %v4440 = vpack.c.b16 %v4410, %v4409
  %v4441 = vpack.c.b16 %v4412, %v4411
  %v4442 = vpack.c.b16 %v4414, %v4413
  %v4443 = vpack.c.b16 %v4416, %v4415
  %v4444 = vpack.c.b16 %v4418, %v4417
  %v4445 = vpack.c.b16 %v4420, %v4419
  %v4446 = vpack.c.b16 %v4422, %v4421
  %v4447 = vpack.c.b16 %v4424, %v4423
  %v4448 = vpack.c.b16 %v4426, %v4425
  %v4449 = vpack.c.b16 %v4428, %v4427
  %v4450 = vpack.c.b16 %v4430, %v4429
  %v4451 = vpack.c.b16 %v4432, %v4431
  %v4452 = vpack.c.b16 %v4434, %v4433
  %v4453 = vpack.c.b16 %v4436, %v4435
  %v4454 = vpack.c.b16 %v4438, %v4437
  %4471 = vmatprep.subr.bf16.mxu0 0
  %4472 = vmatpush1.bf16.msra.mxu0 %v4439
  %4473 = vmatprep.subr.bf16.mxu0 0
  %4474 = vmatpush1.bf16.msra.mxu0 %v4440
  %4475 = vmatprep.subr.bf16.mxu0 0
  %4476 = vmatpush1.bf16.msra.mxu0 %v4441
  %4477 = vmatprep.subr.bf16.mxu0 0
  %4478 = vmatpush1.bf16.msra.mxu0 %v4442
  %4479 = vmatprep.subr.bf16.mxu0 0
  %4480 = vmatpush1.bf16.msra.mxu0 %v4443
  %4481 = vmatprep.subr.bf16.mxu0 0
  %4482 = vmatpush1.bf16.msra.mxu0 %v4444
  %4483 = vmatprep.subr.bf16.mxu0 0
  %4484 = vmatpush1.bf16.msra.mxu0 %v4445
  %4485 = vmatprep.subr.bf16.mxu0 0
  %4486 = vmatpush1.bf16.msra.mxu0 %v4446
  %4487 = vmatprep.subr.bf16.mxu0 0
  %4488 = vmatpush1.bf16.msra.mxu0 %v4447
  %4489 = vmatprep.subr.bf16.mxu0 0
  %4490 = vmatpush1.bf16.msra.mxu0 %v4448
  %4491 = vmatprep.subr.bf16.mxu0 0
  %4492 = vmatpush1.bf16.msra.mxu0 %v4449
  %4493 = vmatprep.subr.bf16.mxu0 0
  %4494 = vmatpush1.bf16.msra.mxu0 %v4450
  %4495 = vmatprep.subr.bf16.mxu0 0
  %4496 = vmatpush1.bf16.msra.mxu0 %v4451
  %4497 = vmatprep.subr.bf16.mxu0 0
  %4498 = vmatpush1.bf16.msra.mxu0 %v4452
  %4499 = vmatprep.subr.bf16.mxu0 0
  %4500 = vmatpush1.bf16.msra.mxu0 %v4453
  %4501 = vmatprep.subr.bf16.mxu0 0
  %4502 = vmatpush1.bf16.msra.mxu0 %v4454
  %4503 = vmatprep.mubr.bf16.mxu0 %v4372
  %4504 = vmatmul.mubr.bf16.gmra.mrb[0].mxu0 %v4371
  %v4505 = vpop.f32.mrb[0].mxu0
  %v4506 = vadd.f32 0.0, %v4505
  %v4507 = vpop.f32.mrb[0].mxu0
  %v4508 = vpop.f32.mrb[0].mxu0
  %v4509 = vpop.f32.mrb[0].mxu0
  %4510 = vdwg.mxu0
  %v4511 = vadd.f32 %v4297, %v4506
  %v4512 = vunpack.c.h.b16 %v3044
  %v4513 = vunpack.c.h.b16 %v3048
  %v4514 = vunpack.c.h.b16 %v3052
  %v4515 = vunpack.c.h.b16 %v3056
  %v4516 = vunpack.c.h.b16 %v3060
  %v4517 = vunpack.c.h.b16 %v3064
  %v4518 = vunpack.c.h.b16 %v3068
  %v4519 = vunpack.c.h.b16 %v3072
  %v4520 = vrot.slane %v4513, 7
  %v4521 = vsel %vm3092, %v4520, %v4512
  %v4522 = vrot.slane %v4514, 6
  %v4523 = vsel %vm3095, %v4522, %v4521
  %v4524 = vrot.slane %v4515, 5
  %v4525 = vsel %vm3098, %v4524, %v4523
  %v4526 = vrot.slane %v4516, 4
  %v4527 = vsel %vm3101, %v4526, %v4525
  %v4528 = vrot.slane %v4517, 3
  %v4529 = vsel %vm3104, %v4528, %v4527
  %v4530 = vrot.slane %v4518, 2
  %v4531 = vsel %vm3107, %v4530, %v4529
  %v4532 = vrot.slane %v4519, 1
  %v4533 = vsel %vm3110, %v4532, %v4531
  %v4534 = vpack.c.b16 %v4533, %v4533
  %v4535 = vrot.slane %v4512, 1
  %v4536 = vsel %vm3092, %v4513, %v4535
  %v4537 = vrot.slane %v4514, 7
  %v4538 = vsel %vm3095, %v4537, %v4536
  %v4539 = vrot.slane %v4515, 6
  %v4540 = vsel %vm3098, %v4539, %v4538
  %v4541 = vrot.slane %v4516, 5
  %v4542 = vsel %vm3101, %v4541, %v4540
  %v4543 = vrot.slane %v4517, 4
  %v4544 = vsel %vm3104, %v4543, %v4542
  %v4545 = vrot.slane %v4518, 3
  %v4546 = vsel %vm3107, %v4545, %v4544
  %v4547 = vrot.slane %v4519, 2
  %v4548 = vsel %vm3110, %v4547, %v4546
  %v4549 = vpack.c.b16 %v4548, %v4548
  %4550 = vrot.lane.b32.xlu0 %v4549, 64
  %v4551 = vpop.permute.xlu0 %4550
  %v4552 = vrot.slane %v4512, 2
  %v4553 = vrot.slane %v4513, 1
  %v4554 = vsel %vm3092, %v4553, %v4552
  %v4555 = vsel %vm3095, %v4514, %v4554
  %v4556 = vrot.slane %v4515, 7
  %v4557 = vsel %vm3098, %v4556, %v4555
  %v4558 = vrot.slane %v4516, 6
  %v4559 = vsel %vm3101, %v4558, %v4557
  %v4560 = vrot.slane %v4517, 5
  %v4561 = vsel %vm3104, %v4560, %v4559
  %v4562 = vrot.slane %v4518, 4
  %v4563 = vsel %vm3107, %v4562, %v4561
  %v4564 = vrot.slane %v4519, 3
  %v4565 = vsel %vm3110, %v4564, %v4563
  %v4566 = vpack.c.b16 %v4565, %v4565
  %v4567 = vrot.slane %v4512, 3
  %v4568 = vrot.slane %v4513, 2
  %v4569 = vsel %vm3092, %v4568, %v4567
  %v4570 = vrot.slane %v4514, 1
  %v4571 = vsel %vm3095, %v4570, %v4569
  %v4572 = vsel %vm3098, %v4515, %v4571
  %v4573 = vrot.slane %v4516, 7
  %v4574 = vsel %vm3101, %v4573, %v4572
  %v4575 = vrot.slane %v4517, 6
  %v4576 = vsel %vm3104, %v4575, %v4574
  %v4577 = vrot.slane %v4518, 5
  %v4578 = vsel %vm3107, %v4577, %v4576
  %v4579 = vrot.slane %v4519, 4
  %v4580 = vsel %vm3110, %v4579, %v4578
  %v4581 = vpack.c.b16 %v4580, %v4580
  %4582 = vrot.lane.b32.xlu0 %v4581, 64
  %v4583 = vpop.permute.xlu0 %4582
  %v4586 = vsel %vm1870, %v4534, %v4551
  %v4589 = vsel %vm1870, %v4566, %v4583
  %s4590 = scalar_lea.vmem %s3, 768
  %v4591 = vld [vmem:[%s4590] sm:$0xf]
  %v4592 = vld [vmem:[%s4590 + $0x4] sm:$0xf]
  %v4593 = vld [vmem:[%s4590 + $0x8] sm:$0xf]
  %v4594 = vld [vmem:[%s4590 + $0xc] sm:$0xf]
  %v4595 = vld [vmem:[%s4590 + $0x10] sm:$0xf]
  %v4596 = vld [vmem:[%s4590 + $0x14] sm:$0xf]
  %v4597 = vld [vmem:[%s4590 + $0x18] sm:$0xf]
  %v4598 = vld [vmem:[%s4590 + $0x1c] sm:$0xf]
  %v4599 = vld [vmem:[%s4590 + $0x20] sm:$0xf]
  %v4600 = vld [vmem:[%s4590 + $0x24] sm:$0xf]
  %v4601 = vld [vmem:[%s4590 + $0x28] sm:$0xf]
  %v4602 = vld [vmem:[%s4590 + $0x2c] sm:$0xf]
  %v4603 = vld [vmem:[%s4590 + $0x30] sm:$0xf]
  %v4604 = vld [vmem:[%s4590 + $0x34] sm:$0xf]
  %v4605 = vld [vmem:[%s4590 + $0x38] sm:$0xf]
  %v4606 = vld [vmem:[%s4590 + $0x3c] sm:$0xf]
  %v4607 = vld [vmem:[%s4590 + $0x40] sm:$0xf]
  %v4608 = vld [vmem:[%s4590 + $0x44] sm:$0xf]
  %v4609 = vld [vmem:[%s4590 + $0x48] sm:$0xf]
  %v4610 = vld [vmem:[%s4590 + $0x4c] sm:$0xf]
  %v4611 = vld [vmem:[%s4590 + $0x50] sm:$0xf]
  %v4612 = vld [vmem:[%s4590 + $0x54] sm:$0xf]
  %v4613 = vld [vmem:[%s4590 + $0x58] sm:$0xf]
  %v4614 = vld [vmem:[%s4590 + $0x5c] sm:$0xf]
  %v4615 = vld [vmem:[%s4590 + $0x60] sm:$0xf]
  %v4616 = vld [vmem:[%s4590 + $0x64] sm:$0xf]
  %v4617 = vld [vmem:[%s4590 + $0x68] sm:$0xf]
  %v4618 = vld [vmem:[%s4590 + $0x6c] sm:$0xf]
  %v4619 = vld [vmem:[%s4590 + $0x70] sm:$0xf]
  %v4620 = vld [vmem:[%s4590 + $0x74] sm:$0xf]
  %v4621 = vld [vmem:[%s4590 + $0x78] sm:$0xf]
  %v4622 = vld [vmem:[%s4590 + $0x7c] sm:$0xf]
  %v4625 = vrot.slane %v4586, 4
  %v4626 = vrot.slane %v4589, 4
  %v4661 = vunpack.c.l.b16 %v4591
  %v4662 = vunpack.c.l.b16 %v4592
  %v4663 = vunpack.c.l.b16 %v4593
  %v4664 = vunpack.c.l.b16 %v4594
  %v4665 = vunpack.c.l.b16 %v4595
  %v4666 = vunpack.c.l.b16 %v4596
  %v4667 = vunpack.c.l.b16 %v4597
  %v4668 = vunpack.c.l.b16 %v4598
  %v4669 = vunpack.c.l.b16 %v4599
  %v4670 = vunpack.c.l.b16 %v4600
  %v4671 = vunpack.c.l.b16 %v4601
  %v4672 = vunpack.c.l.b16 %v4602
  %v4673 = vunpack.c.l.b16 %v4603
  %v4674 = vunpack.c.l.b16 %v4604
  %v4675 = vunpack.c.l.b16 %v4605
  %v4676 = vunpack.c.l.b16 %v4606
  %v4677 = vunpack.c.l.b16 %v4607
  %v4678 = vunpack.c.l.b16 %v4608
  %v4679 = vunpack.c.l.b16 %v4609
  %v4680 = vunpack.c.l.b16 %v4610
  %v4681 = vunpack.c.l.b16 %v4611
  %v4682 = vunpack.c.l.b16 %v4612
  %v4683 = vunpack.c.l.b16 %v4613
  %v4684 = vunpack.c.l.b16 %v4614
  %v4685 = vunpack.c.l.b16 %v4615
  %v4686 = vunpack.c.l.b16 %v4616
  %v4687 = vunpack.c.l.b16 %v4617
  %v4688 = vunpack.c.l.b16 %v4618
  %v4689 = vunpack.c.l.b16 %v4619
  %v4690 = vunpack.c.l.b16 %v4620
  %v4691 = vunpack.c.l.b16 %v4621
  %v4692 = vunpack.c.l.b16 %v4622
  %v4693 = vpack.c.b16 %v4662, %v4661
  %v4694 = vpack.c.b16 %v4664, %v4663
  %v4695 = vpack.c.b16 %v4666, %v4665
  %v4696 = vpack.c.b16 %v4668, %v4667
  %v4697 = vpack.c.b16 %v4670, %v4669
  %v4698 = vpack.c.b16 %v4672, %v4671
  %v4699 = vpack.c.b16 %v4674, %v4673
  %v4700 = vpack.c.b16 %v4676, %v4675
  %v4701 = vpack.c.b16 %v4678, %v4677
  %v4702 = vpack.c.b16 %v4680, %v4679
  %v4703 = vpack.c.b16 %v4682, %v4681
  %v4704 = vpack.c.b16 %v4684, %v4683
  %v4705 = vpack.c.b16 %v4686, %v4685
  %v4706 = vpack.c.b16 %v4688, %v4687
  %v4707 = vpack.c.b16 %v4690, %v4689
  %v4708 = vpack.c.b16 %v4692, %v4691
  %4725 = vmatprep.subr.bf16.mxu0 0
  %4726 = vmatpush1.bf16.msra.mxu0 %v4693
  %4727 = vmatprep.subr.bf16.mxu0 0
  %4728 = vmatpush1.bf16.msra.mxu0 %v4694
  %4729 = vmatprep.subr.bf16.mxu0 0
  %4730 = vmatpush1.bf16.msra.mxu0 %v4695
  %4731 = vmatprep.subr.bf16.mxu0 0
  %4732 = vmatpush1.bf16.msra.mxu0 %v4696
  %4733 = vmatprep.subr.bf16.mxu0 0
  %4734 = vmatpush1.bf16.msra.mxu0 %v4697
  %4735 = vmatprep.subr.bf16.mxu0 0
  %4736 = vmatpush1.bf16.msra.mxu0 %v4698
  %4737 = vmatprep.subr.bf16.mxu0 0
  %4738 = vmatpush1.bf16.msra.mxu0 %v4699
  %4739 = vmatprep.subr.bf16.mxu0 0
  %4740 = vmatpush1.bf16.msra.mxu0 %v4700
  %4741 = vmatprep.subr.bf16.mxu0 0
  %4742 = vmatpush1.bf16.msra.mxu0 %v4701
  %4743 = vmatprep.subr.bf16.mxu0 0
  %4744 = vmatpush1.bf16.msra.mxu0 %v4702
  %4745 = vmatprep.subr.bf16.mxu0 0
  %4746 = vmatpush1.bf16.msra.mxu0 %v4703
  %4747 = vmatprep.subr.bf16.mxu0 0
  %4748 = vmatpush1.bf16.msra.mxu0 %v4704
  %4749 = vmatprep.subr.bf16.mxu0 0
  %4750 = vmatpush1.bf16.msra.mxu0 %v4705
  %4751 = vmatprep.subr.bf16.mxu0 0
  %4752 = vmatpush1.bf16.msra.mxu0 %v4706
  %4753 = vmatprep.subr.bf16.mxu0 0
  %4754 = vmatpush1.bf16.msra.mxu0 %v4707
  %4755 = vmatprep.subr.bf16.mxu0 0
  %4756 = vmatpush1.bf16.msra.mxu0 %v4708
  %4757 = vmatprep.mubr.bf16.mxu0 %v4626
  %4758 = vmatmul.mubr.bf16.gmra.mrb[0].mxu0 %v4625
  %v4759 = vpop.f32.mrb[0].mxu0
  %v4760 = vadd.f32 0.0, %v4759
  %v4761 = vpop.f32.mrb[0].mxu0
  %v4762 = vpop.f32.mrb[0].mxu0
  %v4763 = vpop.f32.mrb[0].mxu0
  %4764 = vdwg.mxu0
  %v4765 = vadd.f32 %v4511, %v4760
  %v4766 = vsel %vm3104, %v4520, %v4512
  %v4767 = vsel %vm3107, %v4522, %v4766
  %v4768 = vsel %vm3110, %v4524, %v4767
  %v4769 = vsel %vm3092, %v4528, %v4526
  %v4770 = vsel %vm3095, %v4530, %v4769
  %v4771 = vsel %vm3098, %v4532, %v4770
  %v4772 = vpack.c.b16 %v4768, %v4768
  %v4773 = vpack.c.b16 %v4771, %v4771
  %v4774 = vsel %vm3104, %v4513, %v4535
  %v4775 = vsel %vm3107, %v4537, %v4774
  %v4776 = vsel %vm3110, %v4539, %v4775
  %v4777 = vsel %vm3092, %v4543, %v4541
  %v4778 = vsel %vm3095, %v4545, %v4777
  %v4779 = vsel %vm3098, %v4547, %v4778
  %v4780 = vpack.c.b16 %v4776, %v4776
  %v4781 = vpack.c.b16 %v4779, %v4779
  %4782 = vrot.lane.b32.xlu0 %v4780, 64
  %v4783 = vpop.permute.xlu0 %4782
  %4784 = vrot.lane.b32.xlu0 %v4781, 64
  %v4785 = vpop.permute.xlu0 %4784
  %v4786 = vsel %vm3104, %v4553, %v4552
  %v4787 = vsel %vm3107, %v4514, %v4786
  %v4788 = vsel %vm3110, %v4556, %v4787
  %v4789 = vsel %vm3092, %v4560, %v4558
  %v4790 = vsel %vm3095, %v4562, %v4789
  %v4791 = vsel %vm3098, %v4564, %v4790
  %v4792 = vpack.c.b16 %v4788, %v4788
  %v4793 = vpack.c.b16 %v4791, %v4791
  %v4794 = vsel %vm3104, %v4568, %v4567
  %v4795 = vsel %vm3107, %v4570, %v4794
  %v4796 = vsel %vm3110, %v4515, %v4795
  %v4797 = vsel %vm3092, %v4575, %v4573
  %v4798 = vsel %vm3095, %v4577, %v4797
  %v4799 = vsel %vm3098, %v4579, %v4798
  %v4800 = vpack.c.b16 %v4796, %v4796
  %v4801 = vpack.c.b16 %v4799, %v4799
  %4802 = vrot.lane.b32.xlu0 %v4800, 64
  %v4803 = vpop.permute.xlu0 %4802
  %4804 = vrot.lane.b32.xlu0 %v4801, 64
  %v4805 = vpop.permute.xlu0 %4804
  %v4808 = vsel %vm1870, %v4772, %v4783
  %v4811 = vsel %vm1870, %v4773, %v4785
  %v4814 = vsel %vm1870, %v4792, %v4803
  %v4817 = vsel %vm1870, %v4793, %v4805
  %s4818 = scalar_lea.vmem %s3, 896
  %v4819 = vld [vmem:[%s4818] sm:$0xf]
  %v4820 = vld [vmem:[%s4818 + $0x4] sm:$0xf]
  %v4821 = vld [vmem:[%s4818 + $0x8] sm:$0xf]
  %v4822 = vld [vmem:[%s4818 + $0xc] sm:$0xf]
  %v4823 = vld [vmem:[%s4818 + $0x10] sm:$0xf]
  %v4824 = vld [vmem:[%s4818 + $0x14] sm:$0xf]
  %v4825 = vld [vmem:[%s4818 + $0x18] sm:$0xf]
  %v4826 = vld [vmem:[%s4818 + $0x1c] sm:$0xf]
  %v4827 = vld [vmem:[%s4818 + $0x20] sm:$0xf]
  %v4828 = vld [vmem:[%s4818 + $0x24] sm:$0xf]
  %v4829 = vld [vmem:[%s4818 + $0x28] sm:$0xf]
  %v4830 = vld [vmem:[%s4818 + $0x2c] sm:$0xf]
  %v4831 = vld [vmem:[%s4818 + $0x30] sm:$0xf]
  %v4832 = vld [vmem:[%s4818 + $0x34] sm:$0xf]
  %v4833 = vld [vmem:[%s4818 + $0x38] sm:$0xf]
  %v4834 = vld [vmem:[%s4818 + $0x3c] sm:$0xf]
  %v4835 = vld [vmem:[%s4818 + $0x40] sm:$0xf]
  %v4836 = vld [vmem:[%s4818 + $0x44] sm:$0xf]
  %v4837 = vld [vmem:[%s4818 + $0x48] sm:$0xf]
  %v4838 = vld [vmem:[%s4818 + $0x4c] sm:$0xf]
  %v4839 = vld [vmem:[%s4818 + $0x50] sm:$0xf]
  %v4840 = vld [vmem:[%s4818 + $0x54] sm:$0xf]
  %v4841 = vld [vmem:[%s4818 + $0x58] sm:$0xf]
  %v4842 = vld [vmem:[%s4818 + $0x5c] sm:$0xf]
  %v4843 = vld [vmem:[%s4818 + $0x60] sm:$0xf]
  %v4844 = vld [vmem:[%s4818 + $0x64] sm:$0xf]
  %v4845 = vld [vmem:[%s4818 + $0x68] sm:$0xf]
  %v4846 = vld [vmem:[%s4818 + $0x6c] sm:$0xf]
  %v4847 = vld [vmem:[%s4818 + $0x70] sm:$0xf]
  %v4848 = vld [vmem:[%s4818 + $0x74] sm:$0xf]
  %v4849 = vld [vmem:[%s4818 + $0x78] sm:$0xf]
  %v4850 = vld [vmem:[%s4818 + $0x7c] sm:$0xf]
  %v4855 = vrot.slane %v4808, 6
  %v4856 = vrot.slane %v4811, 6
  %v4857 = vsel %vm3894, %v4855, %v4856
  %v4858 = vrot.slane %v4814, 6
  %v4859 = vrot.slane %v4817, 6
  %v4860 = vsel %vm3894, %v4858, %v4859
  %v4895 = vunpack.c.l.b16 %v4819
  %v4896 = vunpack.c.l.b16 %v4820
  %v4897 = vunpack.c.l.b16 %v4821
  %v4898 = vunpack.c.l.b16 %v4822
  %v4899 = vunpack.c.l.b16 %v4823
  %v4900 = vunpack.c.l.b16 %v4824
  %v4901 = vunpack.c.l.b16 %v4825
  %v4902 = vunpack.c.l.b16 %v4826
  %v4903 = vunpack.c.l.b16 %v4827
  %v4904 = vunpack.c.l.b16 %v4828
  %v4905 = vunpack.c.l.b16 %v4829
  %v4906 = vunpack.c.l.b16 %v4830
  %v4907 = vunpack.c.l.b16 %v4831
  %v4908 = vunpack.c.l.b16 %v4832
  %v4909 = vunpack.c.l.b16 %v4833
  %v4910 = vunpack.c.l.b16 %v4834
  %v4911 = vunpack.c.l.b16 %v4835
  %v4912 = vunpack.c.l.b16 %v4836
  %v4913 = vunpack.c.l.b16 %v4837
  %v4914 = vunpack.c.l.b16 %v4838
  %v4915 = vunpack.c.l.b16 %v4839
  %v4916 = vunpack.c.l.b16 %v4840
  %v4917 = vunpack.c.l.b16 %v4841
  %v4918 = vunpack.c.l.b16 %v4842
  %v4919 = vunpack.c.l.b16 %v4843
  %v4920 = vunpack.c.l.b16 %v4844
  %v4921 = vunpack.c.l.b16 %v4845
  %v4922 = vunpack.c.l.b16 %v4846
  %v4923 = vunpack.c.l.b16 %v4847
  %v4924 = vunpack.c.l.b16 %v4848
  %v4925 = vunpack.c.l.b16 %v4849
  %v4926 = vunpack.c.l.b16 %v4850
  %v4927 = vpack.c.b16 %v4896, %v4895
  %v4928 = vpack.c.b16 %v4898, %v4897
  %v4929 = vpack.c.b16 %v4900, %v4899
  %v4930 = vpack.c.b16 %v4902, %v4901
  %v4931 = vpack.c.b16 %v4904, %v4903
  %v4932 = vpack.c.b16 %v4906, %v4905
  %v4933 = vpack.c.b16 %v4908, %v4907
  %v4934 = vpack.c.b16 %v4910, %v4909
  %v4935 = vpack.c.b16 %v4912, %v4911
  %v4936 = vpack.c.b16 %v4914, %v4913
  %v4937 = vpack.c.b16 %v4916, %v4915
  %v4938 = vpack.c.b16 %v4918, %v4917
  %v4939 = vpack.c.b16 %v4920, %v4919
  %v4940 = vpack.c.b16 %v4922, %v4921
  %v4941 = vpack.c.b16 %v4924, %v4923
  %v4942 = vpack.c.b16 %v4926, %v4925
  %4959 = vmatprep.subr.bf16.mxu0 0
  %4960 = vmatpush1.bf16.msra.mxu0 %v4927
  %4961 = vmatprep.subr.bf16.mxu0 0
  %4962 = vmatpush1.bf16.msra.mxu0 %v4928
  %4963 = vmatprep.subr.bf16.mxu0 0
  %4964 = vmatpush1.bf16.msra.mxu0 %v4929
  %4965 = vmatprep.subr.bf16.mxu0 0
  %4966 = vmatpush1.bf16.msra.mxu0 %v4930
  %4967 = vmatprep.subr.bf16.mxu0 0
  %4968 = vmatpush1.bf16.msra.mxu0 %v4931
  %4969 = vmatprep.subr.bf16.mxu0 0
  %4970 = vmatpush1.bf16.msra.mxu0 %v4932
  %4971 = vmatprep.subr.bf16.mxu0 0
  %4972 = vmatpush1.bf16.msra.mxu0 %v4933
  %4973 = vmatprep.subr.bf16.mxu0 0
  %4974 = vmatpush1.bf16.msra.mxu0 %v4934
  %4975 = vmatprep.subr.bf16.mxu0 0
  %4976 = vmatpush1.bf16.msra.mxu0 %v4935
  %4977 = vmatprep.subr.bf16.mxu0 0
  %4978 = vmatpush1.bf16.msra.mxu0 %v4936
  %4979 = vmatprep.subr.bf16.mxu0 0
  %4980 = vmatpush1.bf16.msra.mxu0 %v4937
  %4981 = vmatprep.subr.bf16.mxu0 0
  %4982 = vmatpush1.bf16.msra.mxu0 %v4938
  %4983 = vmatprep.subr.bf16.mxu0 0
  %4984 = vmatpush1.bf16.msra.mxu0 %v4939
  %4985 = vmatprep.subr.bf16.mxu0 0
  %4986 = vmatpush1.bf16.msra.mxu0 %v4940
  %4987 = vmatprep.subr.bf16.mxu0 0
  %4988 = vmatpush1.bf16.msra.mxu0 %v4941
  %4989 = vmatprep.subr.bf16.mxu0 0
  %4990 = vmatpush1.bf16.msra.mxu0 %v4942
  %4991 = vmatprep.mubr.bf16.mxu0 %v4860
  %4992 = vmatmul.mubr.bf16.gmra.mrb[0].mxu0 %v4857
  %v4993 = vpop.f32.mrb[0].mxu0
  %v4994 = vadd.f32 0.0, %v4993
  %v4995 = vpop.f32.mrb[0].mxu0
  %v4996 = vpop.f32.mrb[0].mxu0
  %v4997 = vpop.f32.mrb[0].mxu0
  %4998 = vdwg.mxu0
  %v4999 = vadd.f32 %v4765, %v4994
  %v5008 = vunpack.c.l.b16 %v3045
  %v5009 = vunpack.c.l.b16 %v3049
  %v5010 = vunpack.c.l.b16 %v3053
  %v5011 = vunpack.c.l.b16 %v3057
  %v5012 = vunpack.c.l.b16 %v3061
  %v5013 = vunpack.c.l.b16 %v3065
  %v5014 = vunpack.c.l.b16 %v3069
  %v5015 = vunpack.c.l.b16 %v3073
  %v5016 = vrot.slane %v5009, 7
  %v5017 = vsel %vm3092, %v5016, %v5008
  %v5018 = vrot.slane %v5010, 6
  %v5019 = vsel %vm3095, %v5018, %v5017
  %v5020 = vrot.slane %v5011, 5
  %v5021 = vsel %vm3098, %v5020, %v5019
  %v5022 = vrot.slane %v5012, 4
  %v5023 = vsel %vm3101, %v5022, %v5021
  %v5024 = vrot.slane %v5013, 3
  %v5025 = vsel %vm3104, %v5024, %v5023
  %v5026 = vrot.slane %v5014, 2
  %v5027 = vsel %vm3107, %v5026, %v5025
  %v5028 = vrot.slane %v5015, 1
  %v5029 = vsel %vm3110, %v5028, %v5027
  %v5030 = vpack.c.b16 %v5029, %v5029
  %v5031 = vrot.slane %v5008, 1
  %v5032 = vsel %vm3092, %v5009, %v5031
  %v5033 = vrot.slane %v5010, 7
  %v5034 = vsel %vm3095, %v5033, %v5032
  %v5035 = vrot.slane %v5011, 6
  %v5036 = vsel %vm3098, %v5035, %v5034
  %v5037 = vrot.slane %v5012, 5
  %v5038 = vsel %vm3101, %v5037, %v5036
  %v5039 = vrot.slane %v5013, 4
  %v5040 = vsel %vm3104, %v5039, %v5038
  %v5041 = vrot.slane %v5014, 3
  %v5042 = vsel %vm3107, %v5041, %v5040
  %v5043 = vrot.slane %v5015, 2
  %v5044 = vsel %vm3110, %v5043, %v5042
  %v5045 = vpack.c.b16 %v5044, %v5044
  %5046 = vrot.lane.b32.xlu0 %v5045, 64
  %v5047 = vpop.permute.xlu0 %5046
  %v5048 = vrot.slane %v5008, 2
  %v5049 = vrot.slane %v5009, 1
  %v5050 = vsel %vm3092, %v5049, %v5048
  %v5051 = vsel %vm3095, %v5010, %v5050
  %v5052 = vrot.slane %v5011, 7
  %v5053 = vsel %vm3098, %v5052, %v5051
  %v5054 = vrot.slane %v5012, 6
  %v5055 = vsel %vm3101, %v5054, %v5053
  %v5056 = vrot.slane %v5013, 5
  %v5057 = vsel %vm3104, %v5056, %v5055
  %v5058 = vrot.slane %v5014, 4
  %v5059 = vsel %vm3107, %v5058, %v5057
  %v5060 = vrot.slane %v5015, 3
  %v5061 = vsel %vm3110, %v5060, %v5059
  %v5062 = vpack.c.b16 %v5061, %v5061
  %v5063 = vrot.slane %v5008, 3
  %v5064 = vrot.slane %v5009, 2
  %v5065 = vsel %vm3092, %v5064, %v5063
  %v5066 = vrot.slane %v5010, 1
  %v5067 = vsel %vm3095, %v5066, %v5065
  %v5068 = vsel %vm3098, %v5011, %v5067
  %v5069 = vrot.slane %v5012, 7
  %v5070 = vsel %vm3101, %v5069, %v5068
  %v5071 = vrot.slane %v5013, 6
  %v5072 = vsel %vm3104, %v5071, %v5070
  %v5073 = vrot.slane %v5014, 5
  %v5074 = vsel %vm3107, %v5073, %v5072
  %v5075 = vrot.slane %v5015, 4
  %v5076 = vsel %vm3110, %v5075, %v5074
  %v5077 = vpack.c.b16 %v5076, %v5076
  %5078 = vrot.lane.b32.xlu0 %v5077, 64
  %v5079 = vpop.permute.xlu0 %5078
  %v5082 = vsel %vm1870, %v5030, %v5047
  %v5086 = vsel %vm1870, %v5062, %v5079
  %s5088 = scalar_lea.vmem %s3, 1024
  %v5089 = vld [vmem:[%s5088] sm:$0xf]
  %v5090 = vld [vmem:[%s5088 + $0x4] sm:$0xf]
  %v5091 = vld [vmem:[%s5088 + $0x8] sm:$0xf]
  %v5092 = vld [vmem:[%s5088 + $0xc] sm:$0xf]
  %v5093 = vld [vmem:[%s5088 + $0x10] sm:$0xf]
  %v5094 = vld [vmem:[%s5088 + $0x14] sm:$0xf]
  %v5095 = vld [vmem:[%s5088 + $0x18] sm:$0xf]
  %v5096 = vld [vmem:[%s5088 + $0x1c] sm:$0xf]
  %v5097 = vld [vmem:[%s5088 + $0x20] sm:$0xf]
  %v5098 = vld [vmem:[%s5088 + $0x24] sm:$0xf]
  %v5099 = vld [vmem:[%s5088 + $0x28] sm:$0xf]
  %v5100 = vld [vmem:[%s5088 + $0x2c] sm:$0xf]
  %v5101 = vld [vmem:[%s5088 + $0x30] sm:$0xf]
  %v5102 = vld [vmem:[%s5088 + $0x34] sm:$0xf]
  %v5103 = vld [vmem:[%s5088 + $0x38] sm:$0xf]
  %v5104 = vld [vmem:[%s5088 + $0x3c] sm:$0xf]
  %v5105 = vld [vmem:[%s5088 + $0x40] sm:$0xf]
  %v5106 = vld [vmem:[%s5088 + $0x44] sm:$0xf]
  %v5107 = vld [vmem:[%s5088 + $0x48] sm:$0xf]
  %v5108 = vld [vmem:[%s5088 + $0x4c] sm:$0xf]
  %v5109 = vld [vmem:[%s5088 + $0x50] sm:$0xf]
  %v5110 = vld [vmem:[%s5088 + $0x54] sm:$0xf]
  %v5111 = vld [vmem:[%s5088 + $0x58] sm:$0xf]
  %v5112 = vld [vmem:[%s5088 + $0x5c] sm:$0xf]
  %v5113 = vld [vmem:[%s5088 + $0x60] sm:$0xf]
  %v5114 = vld [vmem:[%s5088 + $0x64] sm:$0xf]
  %v5115 = vld [vmem:[%s5088 + $0x68] sm:$0xf]
  %v5116 = vld [vmem:[%s5088 + $0x6c] sm:$0xf]
  %v5117 = vld [vmem:[%s5088 + $0x70] sm:$0xf]
  %v5118 = vld [vmem:[%s5088 + $0x74] sm:$0xf]
  %v5119 = vld [vmem:[%s5088 + $0x78] sm:$0xf]
  %v5120 = vld [vmem:[%s5088 + $0x7c] sm:$0xf]
  %v5153 = vunpack.c.l.b16 %v5089
  %v5154 = vunpack.c.l.b16 %v5090
  %v5155 = vunpack.c.l.b16 %v5091
  %v5156 = vunpack.c.l.b16 %v5092
  %v5157 = vunpack.c.l.b16 %v5093
  %v5158 = vunpack.c.l.b16 %v5094
  %v5159 = vunpack.c.l.b16 %v5095
  %v5160 = vunpack.c.l.b16 %v5096
  %v5161 = vunpack.c.l.b16 %v5097
  %v5162 = vunpack.c.l.b16 %v5098
  %v5163 = vunpack.c.l.b16 %v5099
  %v5164 = vunpack.c.l.b16 %v5100
  %v5165 = vunpack.c.l.b16 %v5101
  %v5166 = vunpack.c.l.b16 %v5102
  %v5167 = vunpack.c.l.b16 %v5103
  %v5168 = vunpack.c.l.b16 %v5104
  %v5169 = vunpack.c.l.b16 %v5105
  %v5170 = vunpack.c.l.b16 %v5106
  %v5171 = vunpack.c.l.b16 %v5107
  %v5172 = vunpack.c.l.b16 %v5108
  %v5173 = vunpack.c.l.b16 %v5109
  %v5174 = vunpack.c.l.b16 %v5110
  %v5175 = vunpack.c.l.b16 %v5111
  %v5176 = vunpack.c.l.b16 %v5112
  %v5177 = vunpack.c.l.b16 %v5113
  %v5178 = vunpack.c.l.b16 %v5114
  %v5179 = vunpack.c.l.b16 %v5115
  %v5180 = vunpack.c.l.b16 %v5116
  %v5181 = vunpack.c.l.b16 %v5117
  %v5182 = vunpack.c.l.b16 %v5118
  %v5183 = vunpack.c.l.b16 %v5119
  %v5184 = vunpack.c.l.b16 %v5120
  %v5185 = vpack.c.b16 %v5154, %v5153
  %v5186 = vpack.c.b16 %v5156, %v5155
  %v5187 = vpack.c.b16 %v5158, %v5157
  %v5188 = vpack.c.b16 %v5160, %v5159
  %v5189 = vpack.c.b16 %v5162, %v5161
  %v5190 = vpack.c.b16 %v5164, %v5163
  %v5191 = vpack.c.b16 %v5166, %v5165
  %v5192 = vpack.c.b16 %v5168, %v5167
  %v5193 = vpack.c.b16 %v5170, %v5169
  %v5194 = vpack.c.b16 %v5172, %v5171
  %v5195 = vpack.c.b16 %v5174, %v5173
  %v5196 = vpack.c.b16 %v5176, %v5175
  %v5197 = vpack.c.b16 %v5178, %v5177
  %v5198 = vpack.c.b16 %v5180, %v5179
  %v5199 = vpack.c.b16 %v5182, %v5181
  %v5200 = vpack.c.b16 %v5184, %v5183
  %5217 = vmatprep.subr.bf16.mxu0 0
  %5218 = vmatpush1.bf16.msra.mxu0 %v5185
  %5219 = vmatprep.subr.bf16.mxu0 0
  %5220 = vmatpush1.bf16.msra.mxu0 %v5186
  %5221 = vmatprep.subr.bf16.mxu0 0
  %5222 = vmatpush1.bf16.msra.mxu0 %v5187
  %5223 = vmatprep.subr.bf16.mxu0 0
  %5224 = vmatpush1.bf16.msra.mxu0 %v5188
  %5225 = vmatprep.subr.bf16.mxu0 0
  %5226 = vmatpush1.bf16.msra.mxu0 %v5189
  %5227 = vmatprep.subr.bf16.mxu0 0
  %5228 = vmatpush1.bf16.msra.mxu0 %v5190
  %5229 = vmatprep.subr.bf16.mxu0 0
  %5230 = vmatpush1.bf16.msra.mxu0 %v5191
  %5231 = vmatprep.subr.bf16.mxu0 0
  %5232 = vmatpush1.bf16.msra.mxu0 %v5192
  %5233 = vmatprep.subr.bf16.mxu0 0
  %5234 = vmatpush1.bf16.msra.mxu0 %v5193
  %5235 = vmatprep.subr.bf16.mxu0 0
  %5236 = vmatpush1.bf16.msra.mxu0 %v5194
  %5237 = vmatprep.subr.bf16.mxu0 0
  %5238 = vmatpush1.bf16.msra.mxu0 %v5195
  %5239 = vmatprep.subr.bf16.mxu0 0
  %5240 = vmatpush1.bf16.msra.mxu0 %v5196
  %5241 = vmatprep.subr.bf16.mxu0 0
  %5242 = vmatpush1.bf16.msra.mxu0 %v5197
  %5243 = vmatprep.subr.bf16.mxu0 0
  %5244 = vmatpush1.bf16.msra.mxu0 %v5198
  %5245 = vmatprep.subr.bf16.mxu0 0
  %5246 = vmatpush1.bf16.msra.mxu0 %v5199
  %5247 = vmatprep.subr.bf16.mxu0 0
  %5248 = vmatpush1.bf16.msra.mxu0 %v5200
  %5249 = vmatprep.mubr.bf16.mxu0 %v5086
  %5250 = vmatmul.mubr.bf16.gmra.mrb[0].mxu0 %v5082
  %v5251 = vpop.f32.mrb[0].mxu0
  %v5252 = vadd.f32 0.0, %v5251
  %v5253 = vpop.f32.mrb[0].mxu0
  %v5254 = vpop.f32.mrb[0].mxu0
  %v5255 = vpop.f32.mrb[0].mxu0
  %5256 = vdwg.mxu0
  %v5257 = vadd.f32 %v4999, %v5252
  %v5258 = vsel %vm3104, %v5016, %v5008
  %v5259 = vsel %vm3107, %v5018, %v5258
  %v5260 = vsel %vm3110, %v5020, %v5259
  %v5261 = vsel %vm3092, %v5024, %v5022
  %v5262 = vsel %vm3095, %v5026, %v5261
  %v5263 = vsel %vm3098, %v5028, %v5262
  %v5264 = vpack.c.b16 %v5263, %v5260
  %v5265 = vsel %vm3104, %v5009, %v5031
  %v5266 = vsel %vm3107, %v5033, %v5265
  %v5267 = vsel %vm3110, %v5035, %v5266
  %v5268 = vsel %vm3092, %v5039, %v5037
  %v5269 = vsel %vm3095, %v5041, %v5268
  %v5270 = vsel %vm3098, %v5043, %v5269
  %v5271 = vpack.c.b16 %v5270, %v5267
  %5272 = vrot.lane.b32.xlu0 %v5271, 64
  %v5273 = vpop.permute.xlu0 %5272
  %v5274 = vsel %vm3104, %v5049, %v5048
  %v5275 = vsel %vm3107, %v5010, %v5274
  %v5276 = vsel %vm3110, %v5052, %v5275
  %v5277 = vsel %vm3092, %v5056, %v5054
  %v5278 = vsel %vm3095, %v5058, %v5277
  %v5279 = vsel %vm3098, %v5060, %v5278
  %v5280 = vpack.c.b16 %v5279, %v5276
  %v5281 = vsel %vm3104, %v5064, %v5063
  %v5282 = vsel %vm3107, %v5066, %v5281
  %v5283 = vsel %vm3110, %v5011, %v5282
  %v5284 = vsel %vm3092, %v5071, %v5069
  %v5285 = vsel %vm3095, %v5073, %v5284
  %v5286 = vsel %vm3098, %v5075, %v5285
  %v5287 = vpack.c.b16 %v5286, %v5283
  %5288 = vrot.lane.b32.xlu0 %v5287, 64
  %v5289 = vpop.permute.xlu0 %5288
  %v5292 = vsel %vm1870, %v5264, %v5273
  %v5295 = vsel %vm1870, %v5280, %v5289
  %s5296 = scalar_lea.vmem %s3, 1152
  %v5297 = vld [vmem:[%s5296] sm:$0xf]
  %v5298 = vld [vmem:[%s5296 + $0x4] sm:$0xf]
  %v5299 = vld [vmem:[%s5296 + $0x8] sm:$0xf]
  %v5300 = vld [vmem:[%s5296 + $0xc] sm:$0xf]
  %v5301 = vld [vmem:[%s5296 + $0x10] sm:$0xf]
  %v5302 = vld [vmem:[%s5296 + $0x14] sm:$0xf]
  %v5303 = vld [vmem:[%s5296 + $0x18] sm:$0xf]
  %v5304 = vld [vmem:[%s5296 + $0x1c] sm:$0xf]
  %v5305 = vld [vmem:[%s5296 + $0x20] sm:$0xf]
  %v5306 = vld [vmem:[%s5296 + $0x24] sm:$0xf]
  %v5307 = vld [vmem:[%s5296 + $0x28] sm:$0xf]
  %v5308 = vld [vmem:[%s5296 + $0x2c] sm:$0xf]
  %v5309 = vld [vmem:[%s5296 + $0x30] sm:$0xf]
  %v5310 = vld [vmem:[%s5296 + $0x34] sm:$0xf]
  %v5311 = vld [vmem:[%s5296 + $0x38] sm:$0xf]
  %v5312 = vld [vmem:[%s5296 + $0x3c] sm:$0xf]
  %v5313 = vld [vmem:[%s5296 + $0x40] sm:$0xf]
  %v5314 = vld [vmem:[%s5296 + $0x44] sm:$0xf]
  %v5315 = vld [vmem:[%s5296 + $0x48] sm:$0xf]
  %v5316 = vld [vmem:[%s5296 + $0x4c] sm:$0xf]
  %v5317 = vld [vmem:[%s5296 + $0x50] sm:$0xf]
  %v5318 = vld [vmem:[%s5296 + $0x54] sm:$0xf]
  %v5319 = vld [vmem:[%s5296 + $0x58] sm:$0xf]
  %v5320 = vld [vmem:[%s5296 + $0x5c] sm:$0xf]
  %v5321 = vld [vmem:[%s5296 + $0x60] sm:$0xf]
  %v5322 = vld [vmem:[%s5296 + $0x64] sm:$0xf]
  %v5323 = vld [vmem:[%s5296 + $0x68] sm:$0xf]
  %v5324 = vld [vmem:[%s5296 + $0x6c] sm:$0xf]
  %v5325 = vld [vmem:[%s5296 + $0x70] sm:$0xf]
  %v5326 = vld [vmem:[%s5296 + $0x74] sm:$0xf]
  %v5327 = vld [vmem:[%s5296 + $0x78] sm:$0xf]
  %v5328 = vld [vmem:[%s5296 + $0x7c] sm:$0xf]
  %v5331 = vrot.slane %v5292, 2
  %v5332 = vrot.slane %v5295, 2
  %v5367 = vunpack.c.l.b16 %v5297
  %v5368 = vunpack.c.l.b16 %v5298
  %v5369 = vunpack.c.l.b16 %v5299
  %v5370 = vunpack.c.l.b16 %v5300
  %v5371 = vunpack.c.l.b16 %v5301
  %v5372 = vunpack.c.l.b16 %v5302
  %v5373 = vunpack.c.l.b16 %v5303
  %v5374 = vunpack.c.l.b16 %v5304
  %v5375 = vunpack.c.l.b16 %v5305
  %v5376 = vunpack.c.l.b16 %v5306
  %v5377 = vunpack.c.l.b16 %v5307
  %v5378 = vunpack.c.l.b16 %v5308
  %v5379 = vunpack.c.l.b16 %v5309
  %v5380 = vunpack.c.l.b16 %v5310
  %v5381 = vunpack.c.l.b16 %v5311
  %v5382 = vunpack.c.l.b16 %v5312
  %v5383 = vunpack.c.l.b16 %v5313
  %v5384 = vunpack.c.l.b16 %v5314
  %v5385 = vunpack.c.l.b16 %v5315
  %v5386 = vunpack.c.l.b16 %v5316
  %v5387 = vunpack.c.l.b16 %v5317
  %v5388 = vunpack.c.l.b16 %v5318
  %v5389 = vunpack.c.l.b16 %v5319
  %v5390 = vunpack.c.l.b16 %v5320
  %v5391 = vunpack.c.l.b16 %v5321
  %v5392 = vunpack.c.l.b16 %v5322
  %v5393 = vunpack.c.l.b16 %v5323
  %v5394 = vunpack.c.l.b16 %v5324
  %v5395 = vunpack.c.l.b16 %v5325
  %v5396 = vunpack.c.l.b16 %v5326
  %v5397 = vunpack.c.l.b16 %v5327
  %v5398 = vunpack.c.l.b16 %v5328
  %v5399 = vpack.c.b16 %v5368, %v5367
  %v5400 = vpack.c.b16 %v5370, %v5369
  %v5401 = vpack.c.b16 %v5372, %v5371
  %v5402 = vpack.c.b16 %v5374, %v5373
  %v5403 = vpack.c.b16 %v5376, %v5375
  %v5404 = vpack.c.b16 %v5378, %v5377
  %v5405 = vpack.c.b16 %v5380, %v5379
  %v5406 = vpack.c.b16 %v5382, %v5381
  %v5407 = vpack.c.b16 %v5384, %v5383
  %v5408 = vpack.c.b16 %v5386, %v5385
  %v5409 = vpack.c.b16 %v5388, %v5387
  %v5410 = vpack.c.b16 %v5390, %v5389
  %v5411 = vpack.c.b16 %v5392, %v5391
  %v5412 = vpack.c.b16 %v5394, %v5393
  %v5413 = vpack.c.b16 %v5396, %v5395
  %v5414 = vpack.c.b16 %v5398, %v5397
  %5431 = vmatprep.subr.bf16.mxu0 0
  %5432 = vmatpush1.bf16.msra.mxu0 %v5399
  %5433 = vmatprep.subr.bf16.mxu0 0
  %5434 = vmatpush1.bf16.msra.mxu0 %v5400
  %5435 = vmatprep.subr.bf16.mxu0 0
  %5436 = vmatpush1.bf16.msra.mxu0 %v5401
  %5437 = vmatprep.subr.bf16.mxu0 0
  %5438 = vmatpush1.bf16.msra.mxu0 %v5402
  %5439 = vmatprep.subr.bf16.mxu0 0
  %5440 = vmatpush1.bf16.msra.mxu0 %v5403
  %5441 = vmatprep.subr.bf16.mxu0 0
  %5442 = vmatpush1.bf16.msra.mxu0 %v5404
  %5443 = vmatprep.subr.bf16.mxu0 0
  %5444 = vmatpush1.bf16.msra.mxu0 %v5405
  %5445 = vmatprep.subr.bf16.mxu0 0
  %5446 = vmatpush1.bf16.msra.mxu0 %v5406
  %5447 = vmatprep.subr.bf16.mxu0 0
  %5448 = vmatpush1.bf16.msra.mxu0 %v5407
  %5449 = vmatprep.subr.bf16.mxu0 0
  %5450 = vmatpush1.bf16.msra.mxu0 %v5408
  %5451 = vmatprep.subr.bf16.mxu0 0
  %5452 = vmatpush1.bf16.msra.mxu0 %v5409
  %5453 = vmatprep.subr.bf16.mxu0 0
  %5454 = vmatpush1.bf16.msra.mxu0 %v5410
  %5455 = vmatprep.subr.bf16.mxu0 0
  %5456 = vmatpush1.bf16.msra.mxu0 %v5411
  %5457 = vmatprep.subr.bf16.mxu0 0
  %5458 = vmatpush1.bf16.msra.mxu0 %v5412
  %5459 = vmatprep.subr.bf16.mxu0 0
  %5460 = vmatpush1.bf16.msra.mxu0 %v5413
  %5461 = vmatprep.subr.bf16.mxu0 0
  %5462 = vmatpush1.bf16.msra.mxu0 %v5414
  %5463 = vmatprep.mubr.bf16.mxu0 %v5332
  %5464 = vmatmul.mubr.bf16.gmra.mrb[0].mxu0 %v5331
  %v5465 = vpop.f32.mrb[0].mxu0
  %v5466 = vadd.f32 0.0, %v5465
  %v5467 = vpop.f32.mrb[0].mxu0
  %v5468 = vpop.f32.mrb[0].mxu0
  %v5469 = vpop.f32.mrb[0].mxu0
  %5470 = vdwg.mxu0
  %v5471 = vadd.f32 %v5257, %v5466
  %v5472 = vunpack.c.h.b16 %v3045
  %v5473 = vunpack.c.h.b16 %v3049
  %v5474 = vunpack.c.h.b16 %v3053
  %v5475 = vunpack.c.h.b16 %v3057
  %v5476 = vunpack.c.h.b16 %v3061
  %v5477 = vunpack.c.h.b16 %v3065
  %v5478 = vunpack.c.h.b16 %v3069
  %v5479 = vunpack.c.h.b16 %v3073
  %v5480 = vrot.slane %v5473, 7
  %v5481 = vsel %vm3092, %v5480, %v5472
  %v5482 = vrot.slane %v5474, 6
  %v5483 = vsel %vm3095, %v5482, %v5481
  %v5484 = vrot.slane %v5475, 5
  %v5485 = vsel %vm3098, %v5484, %v5483
  %v5486 = vrot.slane %v5476, 4
  %v5487 = vsel %vm3101, %v5486, %v5485
  %v5488 = vrot.slane %v5477, 3
  %v5489 = vsel %vm3104, %v5488, %v5487
  %v5490 = vrot.slane %v5478, 2
  %v5491 = vsel %vm3107, %v5490, %v5489
  %v5492 = vrot.slane %v5479, 1
  %v5493 = vsel %vm3110, %v5492, %v5491
  %v5494 = vpack.c.b16 %v5493, %v5493
  %v5495 = vrot.slane %v5472, 1
  %v5496 = vsel %vm3092, %v5473, %v5495
  %v5497 = vrot.slane %v5474, 7
  %v5498 = vsel %vm3095, %v5497, %v5496
  %v5499 = vrot.slane %v5475, 6
  %v5500 = vsel %vm3098, %v5499, %v5498
  %v5501 = vrot.slane %v5476, 5
  %v5502 = vsel %vm3101, %v5501, %v5500
  %v5503 = vrot.slane %v5477, 4
  %v5504 = vsel %vm3104, %v5503, %v5502
  %v5505 = vrot.slane %v5478, 3
  %v5506 = vsel %vm3107, %v5505, %v5504
  %v5507 = vrot.slane %v5479, 2
  %v5508 = vsel %vm3110, %v5507, %v5506
  %v5509 = vpack.c.b16 %v5508, %v5508
  %5510 = vrot.lane.b32.xlu0 %v5509, 64
  %v5511 = vpop.permute.xlu0 %5510
  %v5512 = vrot.slane %v5472, 2
  %v5513 = vrot.slane %v5473, 1
  %v5514 = vsel %vm3092, %v5513, %v5512
  %v5515 = vsel %vm3095, %v5474, %v5514
  %v5516 = vrot.slane %v5475, 7
  %v5517 = vsel %vm3098, %v5516, %v5515
  %v5518 = vrot.slane %v5476, 6
  %v5519 = vsel %vm3101, %v5518, %v5517
  %v5520 = vrot.slane %v5477, 5
  %v5521 = vsel %vm3104, %v5520, %v5519
  %v5522 = vrot.slane %v5478, 4
  %v5523 = vsel %vm3107, %v5522, %v5521
  %v5524 = vrot.slane %v5479, 3
  %v5525 = vsel %vm3110, %v5524, %v5523
  %v5526 = vpack.c.b16 %v5525, %v5525
  %v5527 = vrot.slane %v5472, 3
  %v5528 = vrot.slane %v5473, 2
  %v5529 = vsel %vm3092, %v5528, %v5527
  %v5530 = vrot.slane %v5474, 1
  %v5531 = vsel %vm3095, %v5530, %v5529
  %v5532 = vsel %vm3098, %v5475, %v5531
  %v5533 = vrot.slane %v5476, 7
  %v5534 = vsel %vm3101, %v5533, %v5532
  %v5535 = vrot.slane %v5477, 6
  %v5536 = vsel %vm3104, %v5535, %v5534
  %v5537 = vrot.slane %v5478, 5
  %v5538 = vsel %vm3107, %v5537, %v5536
  %v5539 = vrot.slane %v5479, 4
  %v5540 = vsel %vm3110, %v5539, %v5538
  %v5541 = vpack.c.b16 %v5540, %v5540
  %5542 = vrot.lane.b32.xlu0 %v5541, 64
  %v5543 = vpop.permute.xlu0 %5542
  %v5546 = vsel %vm1870, %v5494, %v5511
  %v5549 = vsel %vm1870, %v5526, %v5543
  %s5550 = scalar_lea.vmem %s3, 1280
  %v5551 = vld [vmem:[%s5550] sm:$0xf]
  %v5552 = vld [vmem:[%s5550 + $0x4] sm:$0xf]
  %v5553 = vld [vmem:[%s5550 + $0x8] sm:$0xf]
  %v5554 = vld [vmem:[%s5550 + $0xc] sm:$0xf]
  %v5555 = vld [vmem:[%s5550 + $0x10] sm:$0xf]
  %v5556 = vld [vmem:[%s5550 + $0x14] sm:$0xf]
  %v5557 = vld [vmem:[%s5550 + $0x18] sm:$0xf]
  %v5558 = vld [vmem:[%s5550 + $0x1c] sm:$0xf]
  %v5559 = vld [vmem:[%s5550 + $0x20] sm:$0xf]
  %v5560 = vld [vmem:[%s5550 + $0x24] sm:$0xf]
  %v5561 = vld [vmem:[%s5550 + $0x28] sm:$0xf]
  %v5562 = vld [vmem:[%s5550 + $0x2c] sm:$0xf]
  %v5563 = vld [vmem:[%s5550 + $0x30] sm:$0xf]
  %v5564 = vld [vmem:[%s5550 + $0x34] sm:$0xf]
  %v5565 = vld [vmem:[%s5550 + $0x38] sm:$0xf]
  %v5566 = vld [vmem:[%s5550 + $0x3c] sm:$0xf]
  %v5567 = vld [vmem:[%s5550 + $0x40] sm:$0xf]
  %v5568 = vld [vmem:[%s5550 + $0x44] sm:$0xf]
  %v5569 = vld [vmem:[%s5550 + $0x48] sm:$0xf]
  %v5570 = vld [vmem:[%s5550 + $0x4c] sm:$0xf]
  %v5571 = vld [vmem:[%s5550 + $0x50] sm:$0xf]
  %v5572 = vld [vmem:[%s5550 + $0x54] sm:$0xf]
  %v5573 = vld [vmem:[%s5550 + $0x58] sm:$0xf]
  %v5574 = vld [vmem:[%s5550 + $0x5c] sm:$0xf]
  %v5575 = vld [vmem:[%s5550 + $0x60] sm:$0xf]
  %v5576 = vld [vmem:[%s5550 + $0x64] sm:$0xf]
  %v5577 = vld [vmem:[%s5550 + $0x68] sm:$0xf]
  %v5578 = vld [vmem:[%s5550 + $0x6c] sm:$0xf]
  %v5579 = vld [vmem:[%s5550 + $0x70] sm:$0xf]
  %v5580 = vld [vmem:[%s5550 + $0x74] sm:$0xf]
  %v5581 = vld [vmem:[%s5550 + $0x78] sm:$0xf]
  %v5582 = vld [vmem:[%s5550 + $0x7c] sm:$0xf]
  %v5585 = vrot.slane %v5546, 4
  %v5586 = vrot.slane %v5549, 4
  %v5621 = vunpack.c.l.b16 %v5551
  %v5622 = vunpack.c.l.b16 %v5552
  %v5623 = vunpack.c.l.b16 %v5553
  %v5624 = vunpack.c.l.b16 %v5554
  %v5625 = vunpack.c.l.b16 %v5555
  %v5626 = vunpack.c.l.b16 %v5556
  %v5627 = vunpack.c.l.b16 %v5557
  %v5628 = vunpack.c.l.b16 %v5558
  %v5629 = vunpack.c.l.b16 %v5559
  %v5630 = vunpack.c.l.b16 %v5560
  %v5631 = vunpack.c.l.b16 %v5561
  %v5632 = vunpack.c.l.b16 %v5562
  %v5633 = vunpack.c.l.b16 %v5563
  %v5634 = vunpack.c.l.b16 %v5564
  %v5635 = vunpack.c.l.b16 %v5565
  %v5636 = vunpack.c.l.b16 %v5566
  %v5637 = vunpack.c.l.b16 %v5567
  %v5638 = vunpack.c.l.b16 %v5568
  %v5639 = vunpack.c.l.b16 %v5569
  %v5640 = vunpack.c.l.b16 %v5570
  %v5641 = vunpack.c.l.b16 %v5571
  %v5642 = vunpack.c.l.b16 %v5572
  %v5643 = vunpack.c.l.b16 %v5573
  %v5644 = vunpack.c.l.b16 %v5574
  %v5645 = vunpack.c.l.b16 %v5575
  %v5646 = vunpack.c.l.b16 %v5576
  %v5647 = vunpack.c.l.b16 %v5577
  %v5648 = vunpack.c.l.b16 %v5578
  %v5649 = vunpack.c.l.b16 %v5579
  %v5650 = vunpack.c.l.b16 %v5580
  %v5651 = vunpack.c.l.b16 %v5581
  %v5652 = vunpack.c.l.b16 %v5582
  %v5653 = vpack.c.b16 %v5622, %v5621
  %v5654 = vpack.c.b16 %v5624, %v5623
  %v5655 = vpack.c.b16 %v5626, %v5625
  %v5656 = vpack.c.b16 %v5628, %v5627
  %v5657 = vpack.c.b16 %v5630, %v5629
  %v5658 = vpack.c.b16 %v5632, %v5631
  %v5659 = vpack.c.b16 %v5634, %v5633
  %v5660 = vpack.c.b16 %v5636, %v5635
  %v5661 = vpack.c.b16 %v5638, %v5637
  %v5662 = vpack.c.b16 %v5640, %v5639
  %v5663 = vpack.c.b16 %v5642, %v5641
  %v5664 = vpack.c.b16 %v5644, %v5643
  %v5665 = vpack.c.b16 %v5646, %v5645
  %v5666 = vpack.c.b16 %v5648, %v5647
  %v5667 = vpack.c.b16 %v5650, %v5649
  %v5668 = vpack.c.b16 %v5652, %v5651
  %5685 = vmatprep.subr.bf16.mxu0 0
  %5686 = vmatpush1.bf16.msra.mxu0 %v5653
  %5687 = vmatprep.subr.bf16.mxu0 0
  %5688 = vmatpush1.bf16.msra.mxu0 %v5654
  %5689 = vmatprep.subr.bf16.mxu0 0
  %5690 = vmatpush1.bf16.msra.mxu0 %v5655
  %5691 = vmatprep.subr.bf16.mxu0 0
  %5692 = vmatpush1.bf16.msra.mxu0 %v5656
  %5693 = vmatprep.subr.bf16.mxu0 0
  %5694 = vmatpush1.bf16.msra.mxu0 %v5657
  %5695 = vmatprep.subr.bf16.mxu0 0
  %5696 = vmatpush1.bf16.msra.mxu0 %v5658
  %5697 = vmatprep.subr.bf16.mxu0 0
  %5698 = vmatpush1.bf16.msra.mxu0 %v5659
  %5699 = vmatprep.subr.bf16.mxu0 0
  %5700 = vmatpush1.bf16.msra.mxu0 %v5660
  %5701 = vmatprep.subr.bf16.mxu0 0
  %5702 = vmatpush1.bf16.msra.mxu0 %v5661
  %5703 = vmatprep.subr.bf16.mxu0 0
  %5704 = vmatpush1.bf16.msra.mxu0 %v5662
  %5705 = vmatprep.subr.bf16.mxu0 0
  %5706 = vmatpush1.bf16.msra.mxu0 %v5663
  %5707 = vmatprep.subr.bf16.mxu0 0
  %5708 = vmatpush1.bf16.msra.mxu0 %v5664
  %5709 = vmatprep.subr.bf16.mxu0 0
  %5710 = vmatpush1.bf16.msra.mxu0 %v5665
  %5711 = vmatprep.subr.bf16.mxu0 0
  %5712 = vmatpush1.bf16.msra.mxu0 %v5666
  %5713 = vmatprep.subr.bf16.mxu0 0
  %5714 = vmatpush1.bf16.msra.mxu0 %v5667
  %5715 = vmatprep.subr.bf16.mxu0 0
  %5716 = vmatpush1.bf16.msra.mxu0 %v5668
  %5717 = vmatprep.mubr.bf16.mxu0 %v5586
  %5718 = vmatmul.mubr.bf16.gmra.mrb[0].mxu0 %v5585
  %v5719 = vpop.f32.mrb[0].mxu0
  %v5720 = vadd.f32 0.0, %v5719
  %v5721 = vpop.f32.mrb[0].mxu0
  %v5722 = vpop.f32.mrb[0].mxu0
  %v5723 = vpop.f32.mrb[0].mxu0
  %5724 = vdwg.mxu0
  %v5725 = vadd.f32 %v5471, %v5720
  %v5726 = vsel %vm3104, %v5480, %v5472
  %v5727 = vsel %vm3107, %v5482, %v5726
  %v5728 = vsel %vm3110, %v5484, %v5727
  %v5729 = vsel %vm3092, %v5488, %v5486
  %v5730 = vsel %vm3095, %v5490, %v5729
  %v5731 = vsel %vm3098, %v5492, %v5730
  %v5732 = vpack.c.b16 %v5728, %v5728
  %v5733 = vpack.c.b16 %v5731, %v5731
  %v5734 = vsel %vm3104, %v5473, %v5495
  %v5735 = vsel %vm3107, %v5497, %v5734
  %v5736 = vsel %vm3110, %v5499, %v5735
  %v5737 = vsel %vm3092, %v5503, %v5501
  %v5738 = vsel %vm3095, %v5505, %v5737
  %v5739 = vsel %vm3098, %v5507, %v5738
  %v5740 = vpack.c.b16 %v5736, %v5736
  %v5741 = vpack.c.b16 %v5739, %v5739
  %5742 = vrot.lane.b32.xlu0 %v5740, 64
  %v5743 = vpop.permute.xlu0 %5742
  %5744 = vrot.lane.b32.xlu0 %v5741, 64
  %v5745 = vpop.permute.xlu0 %5744
  %v5746 = vsel %vm3104, %v5513, %v5512
  %v5747 = vsel %vm3107, %v5474, %v5746
  %v5748 = vsel %vm3110, %v5516, %v5747
  %v5749 = vsel %vm3092, %v5520, %v5518
  %v5750 = vsel %vm3095, %v5522, %v5749
  %v5751 = vsel %vm3098, %v5524, %v5750
  %v5752 = vpack.c.b16 %v5748, %v5748
  %v5753 = vpack.c.b16 %v5751, %v5751
  %v5754 = vsel %vm3104, %v5528, %v5527
  %v5755 = vsel %vm3107, %v5530, %v5754
  %v5756 = vsel %vm3110, %v5475, %v5755
  %v5757 = vsel %vm3092, %v5535, %v5533
  %v5758 = vsel %vm3095, %v5537, %v5757
  %v5759 = vsel %vm3098, %v5539, %v5758
  %v5760 = vpack.c.b16 %v5756, %v5756
  %v5761 = vpack.c.b16 %v5759, %v5759
  %5762 = vrot.lane.b32.xlu0 %v5760, 64
  %v5763 = vpop.permute.xlu0 %5762
  %5764 = vrot.lane.b32.xlu0 %v5761, 64
  %v5765 = vpop.permute.xlu0 %5764
  %v5768 = vsel %vm1870, %v5732, %v5743
  %v5771 = vsel %vm1870, %v5733, %v5745
  %v5774 = vsel %vm1870, %v5752, %v5763
  %v5777 = vsel %vm1870, %v5753, %v5765
  %s5778 = scalar_lea.vmem %s3, 1408
  %v5779 = vld [vmem:[%s5778] sm:$0xf]
  %v5780 = vld [vmem:[%s5778 + $0x4] sm:$0xf]
  %v5781 = vld [vmem:[%s5778 + $0x8] sm:$0xf]
  %v5782 = vld [vmem:[%s5778 + $0xc] sm:$0xf]
  %v5783 = vld [vmem:[%s5778 + $0x10] sm:$0xf]
  %v5784 = vld [vmem:[%s5778 + $0x14] sm:$0xf]
  %v5785 = vld [vmem:[%s5778 + $0x18] sm:$0xf]
  %v5786 = vld [vmem:[%s5778 + $0x1c] sm:$0xf]
  %v5787 = vld [vmem:[%s5778 + $0x20] sm:$0xf]
  %v5788 = vld [vmem:[%s5778 + $0x24] sm:$0xf]
  %v5789 = vld [vmem:[%s5778 + $0x28] sm:$0xf]
  %v5790 = vld [vmem:[%s5778 + $0x2c] sm:$0xf]
  %v5791 = vld [vmem:[%s5778 + $0x30] sm:$0xf]
  %v5792 = vld [vmem:[%s5778 + $0x34] sm:$0xf]
  %v5793 = vld [vmem:[%s5778 + $0x38] sm:$0xf]
  %v5794 = vld [vmem:[%s5778 + $0x3c] sm:$0xf]
  %v5795 = vld [vmem:[%s5778 + $0x40] sm:$0xf]
  %v5796 = vld [vmem:[%s5778 + $0x44] sm:$0xf]
  %v5797 = vld [vmem:[%s5778 + $0x48] sm:$0xf]
  %v5798 = vld [vmem:[%s5778 + $0x4c] sm:$0xf]
  %v5799 = vld [vmem:[%s5778 + $0x50] sm:$0xf]
  %v5800 = vld [vmem:[%s5778 + $0x54] sm:$0xf]
  %v5801 = vld [vmem:[%s5778 + $0x58] sm:$0xf]
  %v5802 = vld [vmem:[%s5778 + $0x5c] sm:$0xf]
  %v5803 = vld [vmem:[%s5778 + $0x60] sm:$0xf]
  %v5804 = vld [vmem:[%s5778 + $0x64] sm:$0xf]
  %v5805 = vld [vmem:[%s5778 + $0x68] sm:$0xf]
  %v5806 = vld [vmem:[%s5778 + $0x6c] sm:$0xf]
  %v5807 = vld [vmem:[%s5778 + $0x70] sm:$0xf]
  %v5808 = vld [vmem:[%s5778 + $0x74] sm:$0xf]
  %v5809 = vld [vmem:[%s5778 + $0x78] sm:$0xf]
  %v5810 = vld [vmem:[%s5778 + $0x7c] sm:$0xf]
  %v5815 = vrot.slane %v5768, 6
  %v5816 = vrot.slane %v5771, 6
  %v5817 = vsel %vm3894, %v5815, %v5816
  %v5818 = vrot.slane %v5774, 6
  %v5819 = vrot.slane %v5777, 6
  %v5820 = vsel %vm3894, %v5818, %v5819
  %v5855 = vunpack.c.l.b16 %v5779
  %v5856 = vunpack.c.l.b16 %v5780
  %v5857 = vunpack.c.l.b16 %v5781
  %v5858 = vunpack.c.l.b16 %v5782
  %v5859 = vunpack.c.l.b16 %v5783
  %v5860 = vunpack.c.l.b16 %v5784
  %v5861 = vunpack.c.l.b16 %v5785
  %v5862 = vunpack.c.l.b16 %v5786
  %v5863 = vunpack.c.l.b16 %v5787
  %v5864 = vunpack.c.l.b16 %v5788
  %v5865 = vunpack.c.l.b16 %v5789
  %v5866 = vunpack.c.l.b16 %v5790
  %v5867 = vunpack.c.l.b16 %v5791
  %v5868 = vunpack.c.l.b16 %v5792
  %v5869 = vunpack.c.l.b16 %v5793
  %v5870 = vunpack.c.l.b16 %v5794
  %v5871 = vunpack.c.l.b16 %v5795
  %v5872 = vunpack.c.l.b16 %v5796
  %v5873 = vunpack.c.l.b16 %v5797
  %v5874 = vunpack.c.l.b16 %v5798
  %v5875 = vunpack.c.l.b16 %v5799
  %v5876 = vunpack.c.l.b16 %v5800
  %v5877 = vunpack.c.l.b16 %v5801
  %v5878 = vunpack.c.l.b16 %v5802
  %v5879 = vunpack.c.l.b16 %v5803
  %v5880 = vunpack.c.l.b16 %v5804
  %v5881 = vunpack.c.l.b16 %v5805
  %v5882 = vunpack.c.l.b16 %v5806
  %v5883 = vunpack.c.l.b16 %v5807
  %v5884 = vunpack.c.l.b16 %v5808
  %v5885 = vunpack.c.l.b16 %v5809
  %v5886 = vunpack.c.l.b16 %v5810
  %v5887 = vpack.c.b16 %v5856, %v5855
  %v5888 = vpack.c.b16 %v5858, %v5857
  %v5889 = vpack.c.b16 %v5860, %v5859
  %v5890 = vpack.c.b16 %v5862, %v5861
  %v5891 = vpack.c.b16 %v5864, %v5863
  %v5892 = vpack.c.b16 %v5866, %v5865
  %v5893 = vpack.c.b16 %v5868, %v5867
  %v5894 = vpack.c.b16 %v5870, %v5869
  %v5895 = vpack.c.b16 %v5872, %v5871
  %v5896 = vpack.c.b16 %v5874, %v5873
  %v5897 = vpack.c.b16 %v5876, %v5875
  %v5898 = vpack.c.b16 %v5878, %v5877
  %v5899 = vpack.c.b16 %v5880, %v5879
  %v5900 = vpack.c.b16 %v5882, %v5881
  %v5901 = vpack.c.b16 %v5884, %v5883
  %v5902 = vpack.c.b16 %v5886, %v5885
  %5919 = vmatprep.subr.bf16.mxu0 0
  %5920 = vmatpush1.bf16.msra.mxu0 %v5887
  %5921 = vmatprep.subr.bf16.mxu0 0
  %5922 = vmatpush1.bf16.msra.mxu0 %v5888
  %5923 = vmatprep.subr.bf16.mxu0 0
  %5924 = vmatpush1.bf16.msra.mxu0 %v5889
  %5925 = vmatprep.subr.bf16.mxu0 0
  %5926 = vmatpush1.bf16.msra.mxu0 %v5890
  %5927 = vmatprep.subr.bf16.mxu0 0
  %5928 = vmatpush1.bf16.msra.mxu0 %v5891
  %5929 = vmatprep.subr.bf16.mxu0 0
  %5930 = vmatpush1.bf16.msra.mxu0 %v5892
  %5931 = vmatprep.subr.bf16.mxu0 0
  %5932 = vmatpush1.bf16.msra.mxu0 %v5893
  %5933 = vmatprep.subr.bf16.mxu0 0
  %5934 = vmatpush1.bf16.msra.mxu0 %v5894
  %5935 = vmatprep.subr.bf16.mxu0 0
  %5936 = vmatpush1.bf16.msra.mxu0 %v5895
  %5937 = vmatprep.subr.bf16.mxu0 0
  %5938 = vmatpush1.bf16.msra.mxu0 %v5896
  %5939 = vmatprep.subr.bf16.mxu0 0
  %5940 = vmatpush1.bf16.msra.mxu0 %v5897
  %5941 = vmatprep.subr.bf16.mxu0 0
  %5942 = vmatpush1.bf16.msra.mxu0 %v5898
  %5943 = vmatprep.subr.bf16.mxu0 0
  %5944 = vmatpush1.bf16.msra.mxu0 %v5899
  %5945 = vmatprep.subr.bf16.mxu0 0
  %5946 = vmatpush1.bf16.msra.mxu0 %v5900
  %5947 = vmatprep.subr.bf16.mxu0 0
  %5948 = vmatpush1.bf16.msra.mxu0 %v5901
  %5949 = vmatprep.subr.bf16.mxu0 0
  %5950 = vmatpush1.bf16.msra.mxu0 %v5902
  %5951 = vmatprep.mubr.bf16.mxu0 %v5820
  %5952 = vmatmul.mubr.bf16.gmra.mrb[0].mxu0 %v5817
  %v5953 = vpop.f32.mrb[0].mxu0
  %v5954 = vadd.f32 0.0, %v5953
  %v5955 = vpop.f32.mrb[0].mxu0
  %v5956 = vpop.f32.mrb[0].mxu0
  %v5957 = vpop.f32.mrb[0].mxu0
  %5958 = vdwg.mxu0
  %v5959 = vadd.f32 %v5725, %v5954
  %v5968 = vunpack.c.l.b16 %v3046
  %v5969 = vunpack.c.l.b16 %v3050
  %v5970 = vunpack.c.l.b16 %v3054
  %v5971 = vunpack.c.l.b16 %v3058
  %v5972 = vunpack.c.l.b16 %v3062
  %v5973 = vunpack.c.l.b16 %v3066
  %v5974 = vunpack.c.l.b16 %v3070
  %v5975 = vunpack.c.l.b16 %v3074
  %v5976 = vrot.slane %v5969, 7
  %v5977 = vsel %vm3092, %v5976, %v5968
  %v5978 = vrot.slane %v5970, 6
  %v5979 = vsel %vm3095, %v5978, %v5977
  %v5980 = vrot.slane %v5971, 5
  %v5981 = vsel %vm3098, %v5980, %v5979
  %v5982 = vrot.slane %v5972, 4
  %v5983 = vsel %vm3101, %v5982, %v5981
  %v5984 = vrot.slane %v5973, 3
  %v5985 = vsel %vm3104, %v5984, %v5983
  %v5986 = vrot.slane %v5974, 2
  %v5987 = vsel %vm3107, %v5986, %v5985
  %v5988 = vrot.slane %v5975, 1
  %v5989 = vsel %vm3110, %v5988, %v5987
  %v5990 = vpack.c.b16 %v5989, %v5989
  %v5991 = vrot.slane %v5968, 1
  %v5992 = vsel %vm3092, %v5969, %v5991
  %v5993 = vrot.slane %v5970, 7
  %v5994 = vsel %vm3095, %v5993, %v5992
  %v5995 = vrot.slane %v5971, 6
  %v5996 = vsel %vm3098, %v5995, %v5994
  %v5997 = vrot.slane %v5972, 5
  %v5998 = vsel %vm3101, %v5997, %v5996
  %v5999 = vrot.slane %v5973, 4
  %v6000 = vsel %vm3104, %v5999, %v5998
  %v6001 = vrot.slane %v5974, 3
  %v6002 = vsel %vm3107, %v6001, %v6000
  %v6003 = vrot.slane %v5975, 2
  %v6004 = vsel %vm3110, %v6003, %v6002
  %v6005 = vpack.c.b16 %v6004, %v6004
  %6006 = vrot.lane.b32.xlu0 %v6005, 64
  %v6007 = vpop.permute.xlu0 %6006
  %v6008 = vrot.slane %v5968, 2
  %v6009 = vrot.slane %v5969, 1
  %v6010 = vsel %vm3092, %v6009, %v6008
  %v6011 = vsel %vm3095, %v5970, %v6010
  %v6012 = vrot.slane %v5971, 7
  %v6013 = vsel %vm3098, %v6012, %v6011
  %v6014 = vrot.slane %v5972, 6
  %v6015 = vsel %vm3101, %v6014, %v6013
  %v6016 = vrot.slane %v5973, 5
  %v6017 = vsel %vm3104, %v6016, %v6015
  %v6018 = vrot.slane %v5974, 4
  %v6019 = vsel %vm3107, %v6018, %v6017
  %v6020 = vrot.slane %v5975, 3
  %v6021 = vsel %vm3110, %v6020, %v6019
  %v6022 = vpack.c.b16 %v6021, %v6021
  %v6023 = vrot.slane %v5968, 3
  %v6024 = vrot.slane %v5969, 2
  %v6025 = vsel %vm3092, %v6024, %v6023
  %v6026 = vrot.slane %v5970, 1
  %v6027 = vsel %vm3095, %v6026, %v6025
  %v6028 = vsel %vm3098, %v5971, %v6027
  %v6029 = vrot.slane %v5972, 7
  %v6030 = vsel %vm3101, %v6029, %v6028
  %v6031 = vrot.slane %v5973, 6
  %v6032 = vsel %vm3104, %v6031, %v6030
  %v6033 = vrot.slane %v5974, 5
  %v6034 = vsel %vm3107, %v6033, %v6032
  %v6035 = vrot.slane %v5975, 4
  %v6036 = vsel %vm3110, %v6035, %v6034
  %v6037 = vpack.c.b16 %v6036, %v6036
  %6038 = vrot.lane.b32.xlu0 %v6037, 64
  %v6039 = vpop.permute.xlu0 %6038
  %v6042 = vsel %vm1870, %v5990, %v6007
  %v6046 = vsel %vm1870, %v6022, %v6039
  %s6048 = scalar_lea.vmem %s3, 1536
  %v6049 = vld [vmem:[%s6048] sm:$0xf]
  %v6050 = vld [vmem:[%s6048 + $0x4] sm:$0xf]
  %v6051 = vld [vmem:[%s6048 + $0x8] sm:$0xf]
  %v6052 = vld [vmem:[%s6048 + $0xc] sm:$0xf]
  %v6053 = vld [vmem:[%s6048 + $0x10] sm:$0xf]
  %v6054 = vld [vmem:[%s6048 + $0x14] sm:$0xf]
  %v6055 = vld [vmem:[%s6048 + $0x18] sm:$0xf]
  %v6056 = vld [vmem:[%s6048 + $0x1c] sm:$0xf]
  %v6057 = vld [vmem:[%s6048 + $0x20] sm:$0xf]
  %v6058 = vld [vmem:[%s6048 + $0x24] sm:$0xf]
  %v6059 = vld [vmem:[%s6048 + $0x28] sm:$0xf]
  %v6060 = vld [vmem:[%s6048 + $0x2c] sm:$0xf]
  %v6061 = vld [vmem:[%s6048 + $0x30] sm:$0xf]
  %v6062 = vld [vmem:[%s6048 + $0x34] sm:$0xf]
  %v6063 = vld [vmem:[%s6048 + $0x38] sm:$0xf]
  %v6064 = vld [vmem:[%s6048 + $0x3c] sm:$0xf]
  %v6065 = vld [vmem:[%s6048 + $0x40] sm:$0xf]
  %v6066 = vld [vmem:[%s6048 + $0x44] sm:$0xf]
  %v6067 = vld [vmem:[%s6048 + $0x48] sm:$0xf]
  %v6068 = vld [vmem:[%s6048 + $0x4c] sm:$0xf]
  %v6069 = vld [vmem:[%s6048 + $0x50] sm:$0xf]
  %v6070 = vld [vmem:[%s6048 + $0x54] sm:$0xf]
  %v6071 = vld [vmem:[%s6048 + $0x58] sm:$0xf]
  %v6072 = vld [vmem:[%s6048 + $0x5c] sm:$0xf]
  %v6073 = vld [vmem:[%s6048 + $0x60] sm:$0xf]
  %v6074 = vld [vmem:[%s6048 + $0x64] sm:$0xf]
  %v6075 = vld [vmem:[%s6048 + $0x68] sm:$0xf]
  %v6076 = vld [vmem:[%s6048 + $0x6c] sm:$0xf]
  %v6077 = vld [vmem:[%s6048 + $0x70] sm:$0xf]
  %v6078 = vld [vmem:[%s6048 + $0x74] sm:$0xf]
  %v6079 = vld [vmem:[%s6048 + $0x78] sm:$0xf]
  %v6080 = vld [vmem:[%s6048 + $0x7c] sm:$0xf]
  %v6113 = vunpack.c.l.b16 %v6049
  %v6114 = vunpack.c.l.b16 %v6050
  %v6115 = vunpack.c.l.b16 %v6051
  %v6116 = vunpack.c.l.b16 %v6052
  %v6117 = vunpack.c.l.b16 %v6053
  %v6118 = vunpack.c.l.b16 %v6054
  %v6119 = vunpack.c.l.b16 %v6055
  %v6120 = vunpack.c.l.b16 %v6056
  %v6121 = vunpack.c.l.b16 %v6057
  %v6122 = vunpack.c.l.b16 %v6058
  %v6123 = vunpack.c.l.b16 %v6059
  %v6124 = vunpack.c.l.b16 %v6060
  %v6125 = vunpack.c.l.b16 %v6061
  %v6126 = vunpack.c.l.b16 %v6062
  %v6127 = vunpack.c.l.b16 %v6063
  %v6128 = vunpack.c.l.b16 %v6064
  %v6129 = vunpack.c.l.b16 %v6065
  %v6130 = vunpack.c.l.b16 %v6066
  %v6131 = vunpack.c.l.b16 %v6067
  %v6132 = vunpack.c.l.b16 %v6068
  %v6133 = vunpack.c.l.b16 %v6069
  %v6134 = vunpack.c.l.b16 %v6070
  %v6135 = vunpack.c.l.b16 %v6071
  %v6136 = vunpack.c.l.b16 %v6072
  %v6137 = vunpack.c.l.b16 %v6073
  %v6138 = vunpack.c.l.b16 %v6074
  %v6139 = vunpack.c.l.b16 %v6075
  %v6140 = vunpack.c.l.b16 %v6076
  %v6141 = vunpack.c.l.b16 %v6077
  %v6142 = vunpack.c.l.b16 %v6078
  %v6143 = vunpack.c.l.b16 %v6079
  %v6144 = vunpack.c.l.b16 %v6080
  %v6145 = vpack.c.b16 %v6114, %v6113
  %v6146 = vpack.c.b16 %v6116, %v6115
  %v6147 = vpack.c.b16 %v6118, %v6117
  %v6148 = vpack.c.b16 %v6120, %v6119
  %v6149 = vpack.c.b16 %v6122, %v6121
  %v6150 = vpack.c.b16 %v6124, %v6123
  %v6151 = vpack.c.b16 %v6126, %v6125
  %v6152 = vpack.c.b16 %v6128, %v6127
  %v6153 = vpack.c.b16 %v6130, %v6129
  %v6154 = vpack.c.b16 %v6132, %v6131
  %v6155 = vpack.c.b16 %v6134, %v6133
  %v6156 = vpack.c.b16 %v6136, %v6135
  %v6157 = vpack.c.b16 %v6138, %v6137
  %v6158 = vpack.c.b16 %v6140, %v6139
  %v6159 = vpack.c.b16 %v6142, %v6141
  %v6160 = vpack.c.b16 %v6144, %v6143
  %6177 = vmatprep.subr.bf16.mxu0 0
  %6178 = vmatpush1.bf16.msra.mxu0 %v6145
  %6179 = vmatprep.subr.bf16.mxu0 0
  %6180 = vmatpush1.bf16.msra.mxu0 %v6146
  %6181 = vmatprep.subr.bf16.mxu0 0
  %6182 = vmatpush1.bf16.msra.mxu0 %v6147
  %6183 = vmatprep.subr.bf16.mxu0 0
  %6184 = vmatpush1.bf16.msra.mxu0 %v6148
  %6185 = vmatprep.subr.bf16.mxu0 0
  %6186 = vmatpush1.bf16.msra.mxu0 %v6149
  %6187 = vmatprep.subr.bf16.mxu0 0
  %6188 = vmatpush1.bf16.msra.mxu0 %v6150
  %6189 = vmatprep.subr.bf16.mxu0 0
  %6190 = vmatpush1.bf16.msra.mxu0 %v6151
  %6191 = vmatprep.subr.bf16.mxu0 0
  %6192 = vmatpush1.bf16.msra.mxu0 %v6152
  %6193 = vmatprep.subr.bf16.mxu0 0
  %6194 = vmatpush1.bf16.msra.mxu0 %v6153
  %6195 = vmatprep.subr.bf16.mxu0 0
  %6196 = vmatpush1.bf16.msra.mxu0 %v6154
  %6197 = vmatprep.subr.bf16.mxu0 0
  %6198 = vmatpush1.bf16.msra.mxu0 %v6155
  %6199 = vmatprep.subr.bf16.mxu0 0
  %6200 = vmatpush1.bf16.msra.mxu0 %v6156
  %6201 = vmatprep.subr.bf16.mxu0 0
  %6202 = vmatpush1.bf16.msra.mxu0 %v6157
  %6203 = vmatprep.subr.bf16.mxu0 0
  %6204 = vmatpush1.bf16.msra.mxu0 %v6158
  %6205 = vmatprep.subr.bf16.mxu0 0
  %6206 = vmatpush1.bf16.msra.mxu0 %v6159
  %6207 = vmatprep.subr.bf16.mxu0 0
  %6208 = vmatpush1.bf16.msra.mxu0 %v6160
  %6209 = vmatprep.mubr.bf16.mxu0 %v6046
  %6210 = vmatmul.mubr.bf16.gmra.mrb[0].mxu0 %v6042
  %v6211 = vpop.f32.mrb[0].mxu0
  %v6212 = vadd.f32 0.0, %v6211
  %v6213 = vpop.f32.mrb[0].mxu0
  %v6214 = vpop.f32.mrb[0].mxu0
  %v6215 = vpop.f32.mrb[0].mxu0
  %6216 = vdwg.mxu0
  %v6217 = vadd.f32 %v5959, %v6212
  %v6218 = vsel %vm3104, %v5976, %v5968
  %v6219 = vsel %vm3107, %v5978, %v6218
  %v6220 = vsel %vm3110, %v5980, %v6219
  %v6221 = vsel %vm3092, %v5984, %v5982
  %v6222 = vsel %vm3095, %v5986, %v6221
  %v6223 = vsel %vm3098, %v5988, %v6222
  %v6224 = vpack.c.b16 %v6223, %v6220
  %v6225 = vsel %vm3104, %v5969, %v5991
  %v6226 = vsel %vm3107, %v5993, %v6225
  %v6227 = vsel %vm3110, %v5995, %v6226
  %v6228 = vsel %vm3092, %v5999, %v5997
  %v6229 = vsel %vm3095, %v6001, %v6228
  %v6230 = vsel %vm3098, %v6003, %v6229
  %v6231 = vpack.c.b16 %v6230, %v6227
  %6232 = vrot.lane.b32.xlu0 %v6231, 64
  %v6233 = vpop.permute.xlu0 %6232
  %v6234 = vsel %vm3104, %v6009, %v6008
  %v6235 = vsel %vm3107, %v5970, %v6234
  %v6236 = vsel %vm3110, %v6012, %v6235
  %v6237 = vsel %vm3092, %v6016, %v6014
  %v6238 = vsel %vm3095, %v6018, %v6237
  %v6239 = vsel %vm3098, %v6020, %v6238
  %v6240 = vpack.c.b16 %v6239, %v6236
  %v6241 = vsel %vm3104, %v6024, %v6023
  %v6242 = vsel %vm3107, %v6026, %v6241
  %v6243 = vsel %vm3110, %v5971, %v6242
  %v6244 = vsel %vm3092, %v6031, %v6029
  %v6245 = vsel %vm3095, %v6033, %v6244
  %v6246 = vsel %vm3098, %v6035, %v6245
  %v6247 = vpack.c.b16 %v6246, %v6243
  %6248 = vrot.lane.b32.xlu0 %v6247, 64
  %v6249 = vpop.permute.xlu0 %6248
  %v6252 = vsel %vm1870, %v6224, %v6233
  %v6255 = vsel %vm1870, %v6240, %v6249
  %s6256 = scalar_lea.vmem %s3, 1664
  %v6257 = vld [vmem:[%s6256] sm:$0xf]
  %v6258 = vld [vmem:[%s6256 + $0x4] sm:$0xf]
  %v6259 = vld [vmem:[%s6256 + $0x8] sm:$0xf]
  %v6260 = vld [vmem:[%s6256 + $0xc] sm:$0xf]
  %v6261 = vld [vmem:[%s6256 + $0x10] sm:$0xf]
  %v6262 = vld [vmem:[%s6256 + $0x14] sm:$0xf]
  %v6263 = vld [vmem:[%s6256 + $0x18] sm:$0xf]
  %v6264 = vld [vmem:[%s6256 + $0x1c] sm:$0xf]
  %v6265 = vld [vmem:[%s6256 + $0x20] sm:$0xf]
  %v6266 = vld [vmem:[%s6256 + $0x24] sm:$0xf]
  %v6267 = vld [vmem:[%s6256 + $0x28] sm:$0xf]
  %v6268 = vld [vmem:[%s6256 + $0x2c] sm:$0xf]
  %v6269 = vld [vmem:[%s6256 + $0x30] sm:$0xf]
  %v6270 = vld [vmem:[%s6256 + $0x34] sm:$0xf]
  %v6271 = vld [vmem:[%s6256 + $0x38] sm:$0xf]
  %v6272 = vld [vmem:[%s6256 + $0x3c] sm:$0xf]
  %v6273 = vld [vmem:[%s6256 + $0x40] sm:$0xf]
  %v6274 = vld [vmem:[%s6256 + $0x44] sm:$0xf]
  %v6275 = vld [vmem:[%s6256 + $0x48] sm:$0xf]
  %v6276 = vld [vmem:[%s6256 + $0x4c] sm:$0xf]
  %v6277 = vld [vmem:[%s6256 + $0x50] sm:$0xf]
  %v6278 = vld [vmem:[%s6256 + $0x54] sm:$0xf]
  %v6279 = vld [vmem:[%s6256 + $0x58] sm:$0xf]
  %v6280 = vld [vmem:[%s6256 + $0x5c] sm:$0xf]
  %v6281 = vld [vmem:[%s6256 + $0x60] sm:$0xf]
  %v6282 = vld [vmem:[%s6256 + $0x64] sm:$0xf]
  %v6283 = vld [vmem:[%s6256 + $0x68] sm:$0xf]
  %v6284 = vld [vmem:[%s6256 + $0x6c] sm:$0xf]
  %v6285 = vld [vmem:[%s6256 + $0x70] sm:$0xf]
  %v6286 = vld [vmem:[%s6256 + $0x74] sm:$0xf]
  %v6287 = vld [vmem:[%s6256 + $0x78] sm:$0xf]
  %v6288 = vld [vmem:[%s6256 + $0x7c] sm:$0xf]
  %v6291 = vrot.slane %v6252, 2
  %v6292 = vrot.slane %v6255, 2
  %v6327 = vunpack.c.l.b16 %v6257
  %v6328 = vunpack.c.l.b16 %v6258
  %v6329 = vunpack.c.l.b16 %v6259
  %v6330 = vunpack.c.l.b16 %v6260
  %v6331 = vunpack.c.l.b16 %v6261
  %v6332 = vunpack.c.l.b16 %v6262
  %v6333 = vunpack.c.l.b16 %v6263
  %v6334 = vunpack.c.l.b16 %v6264
  %v6335 = vunpack.c.l.b16 %v6265
  %v6336 = vunpack.c.l.b16 %v6266
  %v6337 = vunpack.c.l.b16 %v6267
  %v6338 = vunpack.c.l.b16 %v6268
  %v6339 = vunpack.c.l.b16 %v6269
  %v6340 = vunpack.c.l.b16 %v6270
  %v6341 = vunpack.c.l.b16 %v6271
  %v6342 = vunpack.c.l.b16 %v6272
  %v6343 = vunpack.c.l.b16 %v6273
  %v6344 = vunpack.c.l.b16 %v6274
  %v6345 = vunpack.c.l.b16 %v6275
  %v6346 = vunpack.c.l.b16 %v6276
  %v6347 = vunpack.c.l.b16 %v6277
  %v6348 = vunpack.c.l.b16 %v6278
  %v6349 = vunpack.c.l.b16 %v6279
  %v6350 = vunpack.c.l.b16 %v6280
  %v6351 = vunpack.c.l.b16 %v6281
  %v6352 = vunpack.c.l.b16 %v6282
  %v6353 = vunpack.c.l.b16 %v6283
  %v6354 = vunpack.c.l.b16 %v6284
  %v6355 = vunpack.c.l.b16 %v6285
  %v6356 = vunpack.c.l.b16 %v6286
  %v6357 = vunpack.c.l.b16 %v6287
  %v6358 = vunpack.c.l.b16 %v6288
  %v6359 = vpack.c.b16 %v6328, %v6327
  %v6360 = vpack.c.b16 %v6330, %v6329
  %v6361 = vpack.c.b16 %v6332, %v6331
  %v6362 = vpack.c.b16 %v6334, %v6333
  %v6363 = vpack.c.b16 %v6336, %v6335
  %v6364 = vpack.c.b16 %v6338, %v6337
  %v6365 = vpack.c.b16 %v6340, %v6339
  %v6366 = vpack.c.b16 %v6342, %v6341
  %v6367 = vpack.c.b16 %v6344, %v6343
  %v6368 = vpack.c.b16 %v6346, %v6345
  %v6369 = vpack.c.b16 %v6348, %v6347
  %v6370 = vpack.c.b16 %v6350, %v6349
  %v6371 = vpack.c.b16 %v6352, %v6351
  %v6372 = vpack.c.b16 %v6354, %v6353
  %v6373 = vpack.c.b16 %v6356, %v6355
  %v6374 = vpack.c.b16 %v6358, %v6357
  %6391 = vmatprep.subr.bf16.mxu0 0
  %6392 = vmatpush1.bf16.msra.mxu0 %v6359
  %6393 = vmatprep.subr.bf16.mxu0 0
  %6394 = vmatpush1.bf16.msra.mxu0 %v6360
  %6395 = vmatprep.subr.bf16.mxu0 0
  %6396 = vmatpush1.bf16.msra.mxu0 %v6361
  %6397 = vmatprep.subr.bf16.mxu0 0
  %6398 = vmatpush1.bf16.msra.mxu0 %v6362
  %6399 = vmatprep.subr.bf16.mxu0 0
  %6400 = vmatpush1.bf16.msra.mxu0 %v6363
  %6401 = vmatprep.subr.bf16.mxu0 0
  %6402 = vmatpush1.bf16.msra.mxu0 %v6364
  %6403 = vmatprep.subr.bf16.mxu0 0
  %6404 = vmatpush1.bf16.msra.mxu0 %v6365
  %6405 = vmatprep.subr.bf16.mxu0 0
  %6406 = vmatpush1.bf16.msra.mxu0 %v6366
  %6407 = vmatprep.subr.bf16.mxu0 0
  %6408 = vmatpush1.bf16.msra.mxu0 %v6367
  %6409 = vmatprep.subr.bf16.mxu0 0
  %6410 = vmatpush1.bf16.msra.mxu0 %v6368
  %6411 = vmatprep.subr.bf16.mxu0 0
  %6412 = vmatpush1.bf16.msra.mxu0 %v6369
  %6413 = vmatprep.subr.bf16.mxu0 0
  %6414 = vmatpush1.bf16.msra.mxu0 %v6370
  %6415 = vmatprep.subr.bf16.mxu0 0
  %6416 = vmatpush1.bf16.msra.mxu0 %v6371
  %6417 = vmatprep.subr.bf16.mxu0 0
  %6418 = vmatpush1.bf16.msra.mxu0 %v6372
  %6419 = vmatprep.subr.bf16.mxu0 0
  %6420 = vmatpush1.bf16.msra.mxu0 %v6373
  %6421 = vmatprep.subr.bf16.mxu0 0
  %6422 = vmatpush1.bf16.msra.mxu0 %v6374
  %6423 = vmatprep.mubr.bf16.mxu0 %v6292
  %6424 = vmatmul.mubr.bf16.gmra.mrb[0].mxu0 %v6291
  %v6425 = vpop.f32.mrb[0].mxu0
  %v6426 = vadd.f32 0.0, %v6425
  %v6427 = vpop.f32.mrb[0].mxu0
  %v6428 = vpop.f32.mrb[0].mxu0
  %v6429 = vpop.f32.mrb[0].mxu0
  %6430 = vdwg.mxu0
  %v6431 = vadd.f32 %v6217, %v6426
  %v6432 = vunpack.c.h.b16 %v3046
  %v6433 = vunpack.c.h.b16 %v3050
  %v6434 = vunpack.c.h.b16 %v3054
  %v6435 = vunpack.c.h.b16 %v3058
  %v6436 = vunpack.c.h.b16 %v3062
  %v6437 = vunpack.c.h.b16 %v3066
  %v6438 = vunpack.c.h.b16 %v3070
  %v6439 = vunpack.c.h.b16 %v3074
  %v6440 = vrot.slane %v6433, 7
  %v6441 = vsel %vm3092, %v6440, %v6432
  %v6442 = vrot.slane %v6434, 6
  %v6443 = vsel %vm3095, %v6442, %v6441
  %v6444 = vrot.slane %v6435, 5
  %v6445 = vsel %vm3098, %v6444, %v6443
  %v6446 = vrot.slane %v6436, 4
  %v6447 = vsel %vm3101, %v6446, %v6445
  %v6448 = vrot.slane %v6437, 3
  %v6449 = vsel %vm3104, %v6448, %v6447
  %v6450 = vrot.slane %v6438, 2
  %v6451 = vsel %vm3107, %v6450, %v6449
  %v6452 = vrot.slane %v6439, 1
  %v6453 = vsel %vm3110, %v6452, %v6451
  %v6454 = vpack.c.b16 %v6453, %v6453
  %v6455 = vrot.slane %v6432, 1
  %v6456 = vsel %vm3092, %v6433, %v6455
  %v6457 = vrot.slane %v6434, 7
  %v6458 = vsel %vm3095, %v6457, %v6456
  %v6459 = vrot.slane %v6435, 6
  %v6460 = vsel %vm3098, %v6459, %v6458
  %v6461 = vrot.slane %v6436, 5
  %v6462 = vsel %vm3101, %v6461, %v6460
  %v6463 = vrot.slane %v6437, 4
  %v6464 = vsel %vm3104, %v6463, %v6462
  %v6465 = vrot.slane %v6438, 3
  %v6466 = vsel %vm3107, %v6465, %v6464
  %v6467 = vrot.slane %v6439, 2
  %v6468 = vsel %vm3110, %v6467, %v6466
  %v6469 = vpack.c.b16 %v6468, %v6468
  %6470 = vrot.lane.b32.xlu0 %v6469, 64
  %v6471 = vpop.permute.xlu0 %6470
  %v6472 = vrot.slane %v6432, 2
  %v6473 = vrot.slane %v6433, 1
  %v6474 = vsel %vm3092, %v6473, %v6472
  %v6475 = vsel %vm3095, %v6434, %v6474
  %v6476 = vrot.slane %v6435, 7
  %v6477 = vsel %vm3098, %v6476, %v6475
  %v6478 = vrot.slane %v6436, 6
  %v6479 = vsel %vm3101, %v6478, %v6477
  %v6480 = vrot.slane %v6437, 5
  %v6481 = vsel %vm3104, %v6480, %v6479
  %v6482 = vrot.slane %v6438, 4
  %v6483 = vsel %vm3107, %v6482, %v6481
  %v6484 = vrot.slane %v6439, 3
  %v6485 = vsel %vm3110, %v6484, %v6483
  %v6486 = vpack.c.b16 %v6485, %v6485
  %v6487 = vrot.slane %v6432, 3
  %v6488 = vrot.slane %v6433, 2
  %v6489 = vsel %vm3092, %v6488, %v6487
  %v6490 = vrot.slane %v6434, 1
  %v6491 = vsel %vm3095, %v6490, %v6489
  %v6492 = vsel %vm3098, %v6435, %v6491
  %v6493 = vrot.slane %v6436, 7
  %v6494 = vsel %vm3101, %v6493, %v6492
  %v6495 = vrot.slane %v6437, 6
  %v6496 = vsel %vm3104, %v6495, %v6494
  %v6497 = vrot.slane %v6438, 5
  %v6498 = vsel %vm3107, %v6497, %v6496
  %v6499 = vrot.slane %v6439, 4
  %v6500 = vsel %vm3110, %v6499, %v6498
  %v6501 = vpack.c.b16 %v6500, %v6500
  %6502 = vrot.lane.b32.xlu0 %v6501, 64
  %v6503 = vpop.permute.xlu0 %6502
  %v6506 = vsel %vm1870, %v6454, %v6471
  %v6509 = vsel %vm1870, %v6486, %v6503
  %s6510 = scalar_lea.vmem %s3, 1792
  %v6511 = vld [vmem:[%s6510] sm:$0xf]
  %v6512 = vld [vmem:[%s6510 + $0x4] sm:$0xf]
  %v6513 = vld [vmem:[%s6510 + $0x8] sm:$0xf]
  %v6514 = vld [vmem:[%s6510 + $0xc] sm:$0xf]
  %v6515 = vld [vmem:[%s6510 + $0x10] sm:$0xf]
  %v6516 = vld [vmem:[%s6510 + $0x14] sm:$0xf]
  %v6517 = vld [vmem:[%s6510 + $0x18] sm:$0xf]
  %v6518 = vld [vmem:[%s6510 + $0x1c] sm:$0xf]
  %v6519 = vld [vmem:[%s6510 + $0x20] sm:$0xf]
  %v6520 = vld [vmem:[%s6510 + $0x24] sm:$0xf]
  %v6521 = vld [vmem:[%s6510 + $0x28] sm:$0xf]
  %v6522 = vld [vmem:[%s6510 + $0x2c] sm:$0xf]
  %v6523 = vld [vmem:[%s6510 + $0x30] sm:$0xf]
  %v6524 = vld [vmem:[%s6510 + $0x34] sm:$0xf]
  %v6525 = vld [vmem:[%s6510 + $0x38] sm:$0xf]
  %v6526 = vld [vmem:[%s6510 + $0x3c] sm:$0xf]
  %v6527 = vld [vmem:[%s6510 + $0x40] sm:$0xf]
  %v6528 = vld [vmem:[%s6510 + $0x44] sm:$0xf]
  %v6529 = vld [vmem:[%s6510 + $0x48] sm:$0xf]
  %v6530 = vld [vmem:[%s6510 + $0x4c] sm:$0xf]
  %v6531 = vld [vmem:[%s6510 + $0x50] sm:$0xf]
  %v6532 = vld [vmem:[%s6510 + $0x54] sm:$0xf]
  %v6533 = vld [vmem:[%s6510 + $0x58] sm:$0xf]
  %v6534 = vld [vmem:[%s6510 + $0x5c] sm:$0xf]
  %v6535 = vld [vmem:[%s6510 + $0x60] sm:$0xf]
  %v6536 = vld [vmem:[%s6510 + $0x64] sm:$0xf]
  %v6537 = vld [vmem:[%s6510 + $0x68] sm:$0xf]
  %v6538 = vld [vmem:[%s6510 + $0x6c] sm:$0xf]
  %v6539 = vld [vmem:[%s6510 + $0x70] sm:$0xf]
  %v6540 = vld [vmem:[%s6510 + $0x74] sm:$0xf]
  %v6541 = vld [vmem:[%s6510 + $0x78] sm:$0xf]
  %v6542 = vld [vmem:[%s6510 + $0x7c] sm:$0xf]
  %v6545 = vrot.slane %v6506, 4
  %v6546 = vrot.slane %v6509, 4
  %v6581 = vunpack.c.l.b16 %v6511
  %v6582 = vunpack.c.l.b16 %v6512
  %v6583 = vunpack.c.l.b16 %v6513
  %v6584 = vunpack.c.l.b16 %v6514
  %v6585 = vunpack.c.l.b16 %v6515
  %v6586 = vunpack.c.l.b16 %v6516
  %v6587 = vunpack.c.l.b16 %v6517
  %v6588 = vunpack.c.l.b16 %v6518
  %v6589 = vunpack.c.l.b16 %v6519
  %v6590 = vunpack.c.l.b16 %v6520
  %v6591 = vunpack.c.l.b16 %v6521
  %v6592 = vunpack.c.l.b16 %v6522
  %v6593 = vunpack.c.l.b16 %v6523
  %v6594 = vunpack.c.l.b16 %v6524
  %v6595 = vunpack.c.l.b16 %v6525
  %v6596 = vunpack.c.l.b16 %v6526
  %v6597 = vunpack.c.l.b16 %v6527
  %v6598 = vunpack.c.l.b16 %v6528
  %v6599 = vunpack.c.l.b16 %v6529
  %v6600 = vunpack.c.l.b16 %v6530
  %v6601 = vunpack.c.l.b16 %v6531
  %v6602 = vunpack.c.l.b16 %v6532
  %v6603 = vunpack.c.l.b16 %v6533
  %v6604 = vunpack.c.l.b16 %v6534
  %v6605 = vunpack.c.l.b16 %v6535
  %v6606 = vunpack.c.l.b16 %v6536
  %v6607 = vunpack.c.l.b16 %v6537
  %v6608 = vunpack.c.l.b16 %v6538
  %v6609 = vunpack.c.l.b16 %v6539
  %v6610 = vunpack.c.l.b16 %v6540
  %v6611 = vunpack.c.l.b16 %v6541
  %v6612 = vunpack.c.l.b16 %v6542
  %v6613 = vpack.c.b16 %v6582, %v6581
  %v6614 = vpack.c.b16 %v6584, %v6583
  %v6615 = vpack.c.b16 %v6586, %v6585
  %v6616 = vpack.c.b16 %v6588, %v6587
  %v6617 = vpack.c.b16 %v6590, %v6589
  %v6618 = vpack.c.b16 %v6592, %v6591
  %v6619 = vpack.c.b16 %v6594, %v6593
  %v6620 = vpack.c.b16 %v6596, %v6595
  %v6621 = vpack.c.b16 %v6598, %v6597
  %v6622 = vpack.c.b16 %v6600, %v6599
  %v6623 = vpack.c.b16 %v6602, %v6601
  %v6624 = vpack.c.b16 %v6604, %v6603
  %v6625 = vpack.c.b16 %v6606, %v6605
  %v6626 = vpack.c.b16 %v6608, %v6607
  %v6627 = vpack.c.b16 %v6610, %v6609
  %v6628 = vpack.c.b16 %v6612, %v6611
  %6645 = vmatprep.subr.bf16.mxu0 0
  %6646 = vmatpush1.bf16.msra.mxu0 %v6613
  %6647 = vmatprep.subr.bf16.mxu0 0
  %6648 = vmatpush1.bf16.msra.mxu0 %v6614
  %6649 = vmatprep.subr.bf16.mxu0 0
  %6650 = vmatpush1.bf16.msra.mxu0 %v6615
  %6651 = vmatprep.subr.bf16.mxu0 0
  %6652 = vmatpush1.bf16.msra.mxu0 %v6616
  %6653 = vmatprep.subr.bf16.mxu0 0
  %6654 = vmatpush1.bf16.msra.mxu0 %v6617
  %6655 = vmatprep.subr.bf16.mxu0 0
  %6656 = vmatpush1.bf16.msra.mxu0 %v6618
  %6657 = vmatprep.subr.bf16.mxu0 0
  %6658 = vmatpush1.bf16.msra.mxu0 %v6619
  %6659 = vmatprep.subr.bf16.mxu0 0
  %6660 = vmatpush1.bf16.msra.mxu0 %v6620
  %6661 = vmatprep.subr.bf16.mxu0 0
  %6662 = vmatpush1.bf16.msra.mxu0 %v6621
  %6663 = vmatprep.subr.bf16.mxu0 0
  %6664 = vmatpush1.bf16.msra.mxu0 %v6622
  %6665 = vmatprep.subr.bf16.mxu0 0
  %6666 = vmatpush1.bf16.msra.mxu0 %v6623
  %6667 = vmatprep.subr.bf16.mxu0 0
  %6668 = vmatpush1.bf16.msra.mxu0 %v6624
  %6669 = vmatprep.subr.bf16.mxu0 0
  %6670 = vmatpush1.bf16.msra.mxu0 %v6625
  %6671 = vmatprep.subr.bf16.mxu0 0
  %6672 = vmatpush1.bf16.msra.mxu0 %v6626
  %6673 = vmatprep.subr.bf16.mxu0 0
  %6674 = vmatpush1.bf16.msra.mxu0 %v6627
  %6675 = vmatprep.subr.bf16.mxu0 0
  %6676 = vmatpush1.bf16.msra.mxu0 %v6628
  %6677 = vmatprep.mubr.bf16.mxu0 %v6546
  %6678 = vmatmul.mubr.bf16.gmra.mrb[0].mxu0 %v6545
  %v6679 = vpop.f32.mrb[0].mxu0
  %v6680 = vadd.f32 0.0, %v6679
  %v6681 = vpop.f32.mrb[0].mxu0
  %v6682 = vpop.f32.mrb[0].mxu0
  %v6683 = vpop.f32.mrb[0].mxu0
  %6684 = vdwg.mxu0
  %v6685 = vadd.f32 %v6431, %v6680
  %v6686 = vsel %vm3104, %v6440, %v6432
  %v6687 = vsel %vm3107, %v6442, %v6686
  %v6688 = vsel %vm3110, %v6444, %v6687
  %v6689 = vsel %vm3092, %v6448, %v6446
  %v6690 = vsel %vm3095, %v6450, %v6689
  %v6691 = vsel %vm3098, %v6452, %v6690
  %v6692 = vpack.c.b16 %v6688, %v6688
  %v6693 = vpack.c.b16 %v6691, %v6691
  %v6694 = vsel %vm3104, %v6433, %v6455
  %v6695 = vsel %vm3107, %v6457, %v6694
  %v6696 = vsel %vm3110, %v6459, %v6695
  %v6697 = vsel %vm3092, %v6463, %v6461
  %v6698 = vsel %vm3095, %v6465, %v6697
  %v6699 = vsel %vm3098, %v6467, %v6698
  %v6700 = vpack.c.b16 %v6696, %v6696
  %v6701 = vpack.c.b16 %v6699, %v6699
  %6702 = vrot.lane.b32.xlu0 %v6700, 64
  %v6703 = vpop.permute.xlu0 %6702
  %6704 = vrot.lane.b32.xlu0 %v6701, 64
  %v6705 = vpop.permute.xlu0 %6704
  %v6706 = vsel %vm3104, %v6473, %v6472
  %v6707 = vsel %vm3107, %v6434, %v6706
  %v6708 = vsel %vm3110, %v6476, %v6707
  %v6709 = vsel %vm3092, %v6480, %v6478
  %v6710 = vsel %vm3095, %v6482, %v6709
  %v6711 = vsel %vm3098, %v6484, %v6710
  %v6712 = vpack.c.b16 %v6708, %v6708
  %v6713 = vpack.c.b16 %v6711, %v6711
  %v6714 = vsel %vm3104, %v6488, %v6487
  %v6715 = vsel %vm3107, %v6490, %v6714
  %v6716 = vsel %vm3110, %v6435, %v6715
  %v6717 = vsel %vm3092, %v6495, %v6493
  %v6718 = vsel %vm3095, %v6497, %v6717
  %v6719 = vsel %vm3098, %v6499, %v6718
  %v6720 = vpack.c.b16 %v6716, %v6716
  %v6721 = vpack.c.b16 %v6719, %v6719
  %6722 = vrot.lane.b32.xlu0 %v6720, 64
  %v6723 = vpop.permute.xlu0 %6722
  %6724 = vrot.lane.b32.xlu0 %v6721, 64
  %v6725 = vpop.permute.xlu0 %6724
  %v6728 = vsel %vm1870, %v6692, %v6703
  %v6731 = vsel %vm1870, %v6693, %v6705
  %v6734 = vsel %vm1870, %v6712, %v6723
  %v6737 = vsel %vm1870, %v6713, %v6725
  %s6738 = scalar_lea.vmem %s3, 1920
  %v6739 = vld [vmem:[%s6738] sm:$0xf]
  %v6740 = vld [vmem:[%s6738 + $0x4] sm:$0xf]
  %v6741 = vld [vmem:[%s6738 + $0x8] sm:$0xf]
  %v6742 = vld [vmem:[%s6738 + $0xc] sm:$0xf]
  %v6743 = vld [vmem:[%s6738 + $0x10] sm:$0xf]
  %v6744 = vld [vmem:[%s6738 + $0x14] sm:$0xf]
  %v6745 = vld [vmem:[%s6738 + $0x18] sm:$0xf]
  %v6746 = vld [vmem:[%s6738 + $0x1c] sm:$0xf]
  %v6747 = vld [vmem:[%s6738 + $0x20] sm:$0xf]
  %v6748 = vld [vmem:[%s6738 + $0x24] sm:$0xf]
  %v6749 = vld [vmem:[%s6738 + $0x28] sm:$0xf]
  %v6750 = vld [vmem:[%s6738 + $0x2c] sm:$0xf]
  %v6751 = vld [vmem:[%s6738 + $0x30] sm:$0xf]
  %v6752 = vld [vmem:[%s6738 + $0x34] sm:$0xf]
  %v6753 = vld [vmem:[%s6738 + $0x38] sm:$0xf]
  %v6754 = vld [vmem:[%s6738 + $0x3c] sm:$0xf]
  %v6755 = vld [vmem:[%s6738 + $0x40] sm:$0xf]
  %v6756 = vld [vmem:[%s6738 + $0x44] sm:$0xf]
  %v6757 = vld [vmem:[%s6738 + $0x48] sm:$0xf]
  %v6758 = vld [vmem:[%s6738 + $0x4c] sm:$0xf]
  %v6759 = vld [vmem:[%s6738 + $0x50] sm:$0xf]
  %v6760 = vld [vmem:[%s6738 + $0x54] sm:$0xf]
  %v6761 = vld [vmem:[%s6738 + $0x58] sm:$0xf]
  %v6762 = vld [vmem:[%s6738 + $0x5c] sm:$0xf]
  %v6763 = vld [vmem:[%s6738 + $0x60] sm:$0xf]
  %v6764 = vld [vmem:[%s6738 + $0x64] sm:$0xf]
  %v6765 = vld [vmem:[%s6738 + $0x68] sm:$0xf]
  %v6766 = vld [vmem:[%s6738 + $0x6c] sm:$0xf]
  %v6767 = vld [vmem:[%s6738 + $0x70] sm:$0xf]
  %v6768 = vld [vmem:[%s6738 + $0x74] sm:$0xf]
  %v6769 = vld [vmem:[%s6738 + $0x78] sm:$0xf]
  %v6770 = vld [vmem:[%s6738 + $0x7c] sm:$0xf]
  %v6775 = vrot.slane %v6728, 6
  %v6776 = vrot.slane %v6731, 6
  %v6777 = vsel %vm3894, %v6775, %v6776
  %v6778 = vrot.slane %v6734, 6
  %v6779 = vrot.slane %v6737, 6
  %v6780 = vsel %vm3894, %v6778, %v6779
  %v6815 = vunpack.c.l.b16 %v6739
  %v6816 = vunpack.c.l.b16 %v6740
  %v6817 = vunpack.c.l.b16 %v6741
  %v6818 = vunpack.c.l.b16 %v6742
  %v6819 = vunpack.c.l.b16 %v6743
  %v6820 = vunpack.c.l.b16 %v6744
  %v6821 = vunpack.c.l.b16 %v6745
  %v6822 = vunpack.c.l.b16 %v6746
  %v6823 = vunpack.c.l.b16 %v6747
  %v6824 = vunpack.c.l.b16 %v6748
  %v6825 = vunpack.c.l.b16 %v6749
  %v6826 = vunpack.c.l.b16 %v6750
  %v6827 = vunpack.c.l.b16 %v6751
  %v6828 = vunpack.c.l.b16 %v6752
  %v6829 = vunpack.c.l.b16 %v6753
  %v6830 = vunpack.c.l.b16 %v6754
  %v6831 = vunpack.c.l.b16 %v6755
  %v6832 = vunpack.c.l.b16 %v6756
  %v6833 = vunpack.c.l.b16 %v6757
  %v6834 = vunpack.c.l.b16 %v6758
  %v6835 = vunpack.c.l.b16 %v6759
  %v6836 = vunpack.c.l.b16 %v6760
  %v6837 = vunpack.c.l.b16 %v6761
  %v6838 = vunpack.c.l.b16 %v6762
  %v6839 = vunpack.c.l.b16 %v6763
  %v6840 = vunpack.c.l.b16 %v6764
  %v6841 = vunpack.c.l.b16 %v6765
  %v6842 = vunpack.c.l.b16 %v6766
  %v6843 = vunpack.c.l.b16 %v6767
  %v6844 = vunpack.c.l.b16 %v6768
  %v6845 = vunpack.c.l.b16 %v6769
  %v6846 = vunpack.c.l.b16 %v6770
  %v6847 = vpack.c.b16 %v6816, %v6815
  %v6848 = vpack.c.b16 %v6818, %v6817
  %v6849 = vpack.c.b16 %v6820, %v6819
  %v6850 = vpack.c.b16 %v6822, %v6821
  %v6851 = vpack.c.b16 %v6824, %v6823
  %v6852 = vpack.c.b16 %v6826, %v6825
  %v6853 = vpack.c.b16 %v6828, %v6827
  %v6854 = vpack.c.b16 %v6830, %v6829
  %v6855 = vpack.c.b16 %v6832, %v6831
  %v6856 = vpack.c.b16 %v6834, %v6833
  %v6857 = vpack.c.b16 %v6836, %v6835
  %v6858 = vpack.c.b16 %v6838, %v6837
  %v6859 = vpack.c.b16 %v6840, %v6839
  %v6860 = vpack.c.b16 %v6842, %v6841
  %v6861 = vpack.c.b16 %v6844, %v6843
  %v6862 = vpack.c.b16 %v6846, %v6845
  %6879 = vmatprep.subr.bf16.mxu0 0
  %6880 = vmatpush1.bf16.msra.mxu0 %v6847
  %6881 = vmatprep.subr.bf16.mxu0 0
  %6882 = vmatpush1.bf16.msra.mxu0 %v6848
  %6883 = vmatprep.subr.bf16.mxu0 0
  %6884 = vmatpush1.bf16.msra.mxu0 %v6849
  %6885 = vmatprep.subr.bf16.mxu0 0
  %6886 = vmatpush1.bf16.msra.mxu0 %v6850
  %6887 = vmatprep.subr.bf16.mxu0 0
  %6888 = vmatpush1.bf16.msra.mxu0 %v6851
  %6889 = vmatprep.subr.bf16.mxu0 0
  %6890 = vmatpush1.bf16.msra.mxu0 %v6852
  %6891 = vmatprep.subr.bf16.mxu0 0
  %6892 = vmatpush1.bf16.msra.mxu0 %v6853
  %6893 = vmatprep.subr.bf16.mxu0 0
  %6894 = vmatpush1.bf16.msra.mxu0 %v6854
  %6895 = vmatprep.subr.bf16.mxu0 0
  %6896 = vmatpush1.bf16.msra.mxu0 %v6855
  %6897 = vmatprep.subr.bf16.mxu0 0
  %6898 = vmatpush1.bf16.msra.mxu0 %v6856
  %6899 = vmatprep.subr.bf16.mxu0 0
  %6900 = vmatpush1.bf16.msra.mxu0 %v6857
  %6901 = vmatprep.subr.bf16.mxu0 0
  %6902 = vmatpush1.bf16.msra.mxu0 %v6858
  %6903 = vmatprep.subr.bf16.mxu0 0
  %6904 = vmatpush1.bf16.msra.mxu0 %v6859
  %6905 = vmatprep.subr.bf16.mxu0 0
  %6906 = vmatpush1.bf16.msra.mxu0 %v6860
  %6907 = vmatprep.subr.bf16.mxu0 0
  %6908 = vmatpush1.bf16.msra.mxu0 %v6861
  %6909 = vmatprep.subr.bf16.mxu0 0
  %6910 = vmatpush1.bf16.msra.mxu0 %v6862
  %6911 = vmatprep.mubr.bf16.mxu0 %v6780
  %6912 = vmatmul.mubr.bf16.gmra.mrb[0].mxu0 %v6777
  %v6913 = vpop.f32.mrb[0].mxu0
  %v6914 = vadd.f32 0.0, %v6913
  %v6915 = vpop.f32.mrb[0].mxu0
  %v6916 = vpop.f32.mrb[0].mxu0
  %v6917 = vpop.f32.mrb[0].mxu0
  %6918 = vdwg.mxu0
  %v6919 = vadd.f32 %v6685, %v6914
  %v6920 = vld [vmem:[%s5 + $0x4] ss:$0 sm:$0xff]
  %v6921 = vadd.f32 %v6919, %v6920
  %v6922 = vmax.f32 %v6921, 0.0
  %v6923 = vpack.c.bf16 %v6922, %v6922
  %v6924 = vld [vmem:[%s4] sm:$0xf]
  %v6925 = vld [vmem:[%s4 + $0x4] sm:$0xf]
  %v6926 = vld [vmem:[%s4 + $0x8] sm:$0xf]
  %v6927 = vld [vmem:[%s4 + $0xc] sm:$0xf]
  %v6928 = vld [vmem:[%s4 + $0x10] sm:$0xf]
  %v6929 = vld [vmem:[%s4 + $0x14] sm:$0xf]
  %v6930 = vld [vmem:[%s4 + $0x18] sm:$0xf]
  %v6931 = vld [vmem:[%s4 + $0x1c] sm:$0xf]
  %v6932 = vld [vmem:[%s4 + $0x20] sm:$0xf]
  %v6933 = vld [vmem:[%s4 + $0x24] sm:$0xf]
  %v6934 = vld [vmem:[%s4 + $0x28] sm:$0xf]
  %v6935 = vld [vmem:[%s4 + $0x2c] sm:$0xf]
  %v6936 = vld [vmem:[%s4 + $0x30] sm:$0xf]
  %v6937 = vld [vmem:[%s4 + $0x34] sm:$0xf]
  %v6938 = vld [vmem:[%s4 + $0x38] sm:$0xf]
  %v6939 = vld [vmem:[%s4 + $0x3c] sm:$0xf]
  %v6940 = vld [vmem:[%s5 + $0x5] ss:$0 sm:$0xff]
  %v6957 = vunpack.c.l.b16 %v6924
  %v6958 = vunpack.c.l.b16 %v6925
  %v6959 = vunpack.c.l.b16 %v6926
  %v6960 = vunpack.c.l.b16 %v6927
  %v6961 = vunpack.c.l.b16 %v6928
  %v6962 = vunpack.c.l.b16 %v6929
  %v6963 = vunpack.c.l.b16 %v6930
  %v6964 = vunpack.c.l.b16 %v6931
  %v6965 = vunpack.c.l.b16 %v6932
  %v6966 = vunpack.c.l.b16 %v6933
  %v6967 = vunpack.c.l.b16 %v6934
  %v6968 = vunpack.c.l.b16 %v6935
  %v6969 = vunpack.c.l.b16 %v6936
  %v6970 = vunpack.c.l.b16 %v6937
  %v6971 = vunpack.c.l.b16 %v6938
  %v6972 = vunpack.c.l.b16 %v6939
  %v6973 = vpack.c.b16 %v6958, %v6957
  %v6974 = vpack.c.b16 %v6960, %v6959
  %v6975 = vpack.c.b16 %v6962, %v6961
  %v6976 = vpack.c.b16 %v6964, %v6963
  %v6977 = vpack.c.b16 %v6966, %v6965
  %v6978 = vpack.c.b16 %v6968, %v6967
  %v6979 = vpack.c.b16 %v6970, %v6969
  %v6980 = vpack.c.b16 %v6972, %v6971
  %6989 = vmatprep.subr.bf16.mxu0 0
  %6990 = vmatpush1.bf16.msra.mxu0 %v6973
  %6991 = vmatprep.subr.bf16.mxu0 0
  %6992 = vmatpush1.bf16.msra.mxu0 %v6974
  %6993 = vmatprep.subr.bf16.mxu0 0
  %6994 = vmatpush1.bf16.msra.mxu0 %v6975
  %6995 = vmatprep.subr.bf16.mxu0 0
  %6996 = vmatpush1.bf16.msra.mxu0 %v6976
  %6997 = vmatprep.subr.bf16.mxu0 0
  %6998 = vmatpush1.bf16.msra.mxu0 %v6977
  %6999 = vmatprep.subr.bf16.mxu0 0
  %7000 = vmatpush1.bf16.msra.mxu0 %v6978
  %7001 = vmatprep.subr.bf16.mxu0 0
  %7002 = vmatpush1.bf16.msra.mxu0 %v6979
  %7003 = vmatprep.subr.bf16.mxu0 0
  %7004 = vmatpush1.bf16.msra.mxu0 %v6980
  %7005 = vmatprep.subr.bf16.mxu0 0
  %7006 = vmatpush1.bf16.msra.mxu0 0
  %7007 = vmatprep.subr.bf16.mxu0 0
  %7008 = vmatpush1.bf16.msra.mxu0 0
  %7009 = vmatprep.subr.bf16.mxu0 0
  %7010 = vmatpush1.bf16.msra.mxu0 0
  %7011 = vmatprep.subr.bf16.mxu0 0
  %7012 = vmatpush1.bf16.msra.mxu0 0
  %7013 = vmatprep.subr.bf16.mxu0 0
  %7014 = vmatpush1.bf16.msra.mxu0 0
  %7015 = vmatprep.subr.bf16.mxu0 0
  %7016 = vmatpush1.bf16.msra.mxu0 0
  %7017 = vmatprep.subr.bf16.mxu0 0
  %7018 = vmatpush1.bf16.msra.mxu0 0
  %7019 = vmatprep.subr.bf16.mxu0 0
  %7020 = vmatpush1.bf16.msra.mxu0 0
  %7021 = vmatprep.mubr.bf16.mxu0 0
  %7022 = vmatmul.mubr.bf16.gmra.mrb[0].mxu0 %v6923
  %v7023 = vpop.f32.mrb[0].mxu0
  %v7024 = vadd.f32 %v6940, %v7023
  %v7025 = vpop.f32.mrb[0].mxu0
  %v7026 = vpop.f32.mrb[0].mxu0
  %v7027 = vpop.f32.mrb[0].mxu0
  %7028 = vdwg.mxu0
  %v7029 = vmax.f32 %v7024, 0.0
  %v7030 = vld [vmem:[%s5 + $0x6] ss:$0 sm:$0xff]
  %v7031 = vmul.f32 %v7029, %v7030
  %vm7032 = vcmask 261120
  %v7033 = vsel %vm7032, %v7031, 0.0
  %7034 = vadd.xlane.f32.xlu0 %v7033
  %v7035 = vpop.xlane.xlu0 %7034
  %v7036 = vld [vmem:[%s5 + $0x7] ss:$0 sm:$0xff]
  %v7037 = vadd.f32 %v7035, %v7036
  %v7038 = vxor.u32 %v7037, 2147483648
  %v7039 = vmul.f32 %v7038, 1.442695
  %v7040 = vpow.pop %v7039
  %v7041 = vadd.f32 %v7040, 1.0
  %v7042 = vrcp.pop %v7041
  %v7043 = vmul.f32 1.0, %v7042
  %vm7044 = vcmask 7168
  %7045 = vst.msk [vmem:[%s6] sm:$0xff] %vm7044, %v7043
  // Predicated region
  $region26: #{gesture_net_forward.1} parent=0 // pred_check
    _
  $region27: #{gesture_net_forward.1} parent=0 // pred_check_branch
    %7047 = sbr.rel (0) target = $region29
  $region28: #{gesture_net_forward.1} parent=0 // pred_region
    _
  $region29: #{gesture_net_forward.1} parent=0 // pred_fallthru
    _
  // Predicated region
  $region30: #{gesture_net_forward.1} parent=0 // pred_check
    _
  $region31: #{gesture_net_forward.1} parent=0 // pred_check_branch
    %7049 = sbr.rel (0) target = $region33
  $region32: #{gesture_net_forward.1} parent=0 // pred_region
    _
  $region33: #{gesture_net_forward.1} parent=0 // pred_fallthru
    _

</llo_original>
